<compile_context>
chip_gen: v7x
topology: tpu7x:2x2x1
jax: 0.10.0
libtpu: 0.0.40
codegen_flags: <defaults>
</compile_context>

<pallas_src>
import math

import numpy as np
import jax
import jax.numpy as jnp
from jax import lax
from jax.experimental import pallas as pl
from jax.experimental.pallas import tpu as pltpu

BN_EPS = 1e-5

DENSENET_CFG = {
    'block_1': dict(num_layers=3, out_channels=10, bottleneck_channels=32, kernel_size=7),
    'block_2': dict(num_layers=2, out_channels=4, bottleneck_channels=20, kernel_size=3),
    'block_3': dict(num_layers=2, out_channels=4, bottleneck_channels=20, kernel_size=3),
    'pooling_block_1': dict(out_channels=48, kernel_size=2),
    'pooling_block_2': dict(out_channels=48, kernel_size=2),
}


# --------------------------------------------------------------- param packing
# Done ONCE at init (outside jit): all per-forward constant prep is hoisted.

class _ColPacker:
    """Packs per-channel vectors as columns of one (max_len, n_vec) f32 array."""

    def __init__(self):
        self._cols = []

    def add(self, v):
        v = np.asarray(v, np.float32).reshape(-1)
        self._cols.append(v)
        return (len(self._cols) - 1, v.shape[0])          # (column, length)

    def pack(self):
        h = max(c.shape[0] for c in self._cols)
        out = np.zeros((h, len(self._cols)), np.float32)
        for j, c in enumerate(self._cols):
            out[:c.shape[0], j] = c
        return jnp.asarray(out)


class _RowPacker:
    """Packs 2-D matrices row-wise (zero padded to a common width) into one f32 array."""

    def __init__(self):
        self._mats = []
        self._row = 0

    def add(self, a):
        a = np.asarray(a, np.float32)
        h = (self._row, a.shape[0], a.shape[1])            # (row, rows, cols)
        self._mats.append(a)
        self._row += a.shape[0]
        return h

    def pack(self):
        w = max(a.shape[1] for a in self._mats)
        rows = [np.pad(a, ((0, 0), (0, w - a.shape[1]))) for a in self._mats]
        return jnp.asarray(np.concatenate(rows, axis=0))


def prepare_params(params):
    """Packs raw parameters into two device arrays + static (Python int) handles."""
    cfg = DENSENET_CFG
    vp, mp = _ColPacker(), _RowPacker()

    def pack_dense(p, k):
        c_out, c_bot, kk = np.asarray(p['w2']).shape
        assert kk == k
        # im2col-flattened conv weight: w2f[o, tap * c_bot + c] = w2[o, c, tap]
        w2f = np.asarray(p['w2'], np.float32).transpose(0, 2, 1).reshape(c_out, k * c_bot)
        return dict(g1=vp.add(p['g1']), be1=vp.add(p['be1']),
                    w1=mp.add(p['w1']), c1=vp.add(p['c1']),
                    g2=vp.add(p['g2']), be2=vp.add(p['be2']),
                    w2=mp.add(w2f), c2=vp.add(p['c2']))

    def pack_pool(p):
        return dict(g=vp.add(p['g']), be=vp.add(p['be']),
                    w=mp.add(p['w']), c=vp.add(p['c']))

    handles = dict(
        block_1=[pack_dense(p, cfg['block_1']['kernel_size']) for p in params['block_1']],
        pool_1=pack_pool(params['pool_1']),
        block_2=[pack_dense(p, cfg['block_2']['kernel_size']) for p in params['block_2']],
        pool_2=pack_pool(params['pool_2']),
        block_3=[pack_dense(p, cfg['block_3']['kernel_size']) for p in params['block_3']],
    )
    return vp.pack(), mp.pack(), handles


# ------------------------------------------------------------ fused Pallas fwd

def build_forward(handles, in_channels, n_batch, seq_len):
    cfg = DENSENET_CFG
    N = n_batch
    b1, b2, b3 = cfg['block_1'], cfg['block_2'], cfg['block_3']
    kp1 = cfg['pooling_block_1']['kernel_size']
    kp2 = cfg['pooling_block_2']['kernel_size']

    # TODO(synk): general padded AvgPool1d (pad > 0) is not implemented; the
    # DenseNet config uses kernel_size=2 -> pad=0, stride=2, which is what is
    # implemented (k static column adds, no O(L^2) pooling matrix).
    assert (kp1 - 1) // 2 == 0 and (kp2 - 1) // 2 == 0
    L1 = seq_len
    assert L1 % kp1 == 0
    L2 = L1 // kp1
    assert L2 % kp2 == 0
    L3 = L2 // kp2
    NL1, NL2, NL3 = N * L1, N * L2, N * L3

    c1_out = in_channels + b1['num_layers'] * b1['out_channels']     # 34
    c2_in = cfg['pooling_block_1']['out_channels']                   # 48
    c2_out = c2_in + b2['num_layers'] * b2['out_channels']           # 56
    c3_in = cfg['pooling_block_2']['out_channels']                   # 48
    c3_out = c3_in + b3['num_layers'] * b3['out_channels']           # 56

    def kernel(x_ref, vecs_ref, mats_ref, o_ref,
               buf1, buf2, buf3, im1, im2, im3, zbuf, poolbuf):

        def vec(h):                                   # (n, 1) column vector
            j, n = h
            return vecs_ref[0:n, j:j + 1]

        def mat(h):                                   # (rows, cols) matrix
            r, nr, nc = h
            return mats_ref[r:r + nr, 0:nc]

        def bn_stats(v):                              # biased stats over N*L lanes
            m = jnp.mean(v, axis=1, keepdims=True)
            va = jnp.mean(jnp.square(v - m), axis=1, keepdims=True)
            return m, va

        def dense_layer(buf, im, ph, c_in, c_bot, c_out, k, L):
            NL = N * L
            pad = k // 2
            x = buf[0:c_in, :]
            r = jnp.maximum(x, 0.0)
            m1, v1 = bn_stats(r)
            s1 = vec(ph['g1']) * lax.rsqrt(v1 + BN_EPS)
            t1 = vec(ph['be1']) - m1 * s1
            y = jnp.dot(mat(ph['w1']), r * s1 + t1,
                        preferred_element_type=jnp.float32) + vec(ph['c1'])
            r2 = jnp.maximum(y, 0.0)
            m2, v2 = bn_stats(r2)
            s2 = vec(ph['g2']) * lax.rsqrt(v2 + BN_EPS)
            t2 = vec(ph['be2']) - m2 * s2
            zbuf[0:c_bot, 0:NL] = r2 * s2 + t2
            # im2col operand: shifted windows of the normalized activation.
            # Out-of-range ('same' padding / batch boundary) columns stay zero
            # from the one-time per-block zeroing of `im`.
            for tap in range(k):
                off = tap - pad
                lo, hi = max(0, -off), min(L, L - off)
                for n in range(N):
                    im[tap * c_bot:(tap + 1) * c_bot, n * L + lo:n * L + hi] = \
                        zbuf[0:c_bot, n * L + lo + off:n * L + hi + off]
            out = jnp.dot(mat(ph['w2']), im[...],
                          preferred_element_type=jnp.float32) + vec(ph['c2'])
            buf[c_in:c_in + c_out, :] = out           # in-place channel "concat"

        def pool_block(buf_in, buf_out, ph, c_in, c_out, k, L_in):
            Lp = L_in // k
            M = N * Lp
            z = buf_in[0:c_in, :]
            m, v = bn_stats(z)                        # stats of the *unpooled* input
            s = vec(ph['g']) * lax.rsqrt(v + BN_EPS)
            t = vec(ph['be']) - m * s
            # AvgPool1d(k, stride=k, pad=0): output column c pools input columns
            # [c*k, (c+1)*k); batch segments stay aligned since L_in % k == 0.
            for col in range(M):
                win = buf_in[0:c_in, col * k:(col + 1) * k]
                poolbuf[0:c_in, col:col + 1] = jnp.sum(win, axis=1, keepdims=True) * (1.0 / k)
            pooled = poolbuf[0:c_in, 0:M]
            # pool and 1x1 conv commute (pad=0): conv runs on the pooled columns.
            out = jnp.dot(mat(ph['w']), pooled * s + t,
                          preferred_element_type=jnp.float32) + vec(ph['c'])
            buf_out[0:c_out, :] = out

        # ---- load input: (N, C, L) -> channel-major, lane-dense (C, N*L)
        for n in range(N):
            buf1[0:in_channels, n * L1:(n + 1) * L1] = x_ref[n, :, :]

        # ---- dense block 1 + pooling block 1
        im1[...] = jnp.zeros_like(im1)
        c = in_channels
        for ph in handles['block_1']:
            dense_layer(buf1, im1, ph, c, b1['bottleneck_channels'],
                        b1['out_channels'], b1['kernel_size'], L1)
            c += b1['out_channels']
        pool_block(buf1, buf2, handles['pool_1'], c, c2_in, kp1, L1)

        # ---- dense block 2 + pooling block 2
        im2[...] = jnp.zeros_like(im2)
        c = c2_in
        for ph in handles['block_2']:
            dense_layer(buf2, im2, ph, c, b2['bottleneck_channels'],
                        b2['out_channels'], b2['kernel_size'], L2)
            c += b2['out_channels']
        pool_block(buf2, buf3, handles['pool_2'], c, c3_in, kp2, L2)

        # ---- dense block 3
        im3[...] = jnp.zeros_like(im3)
        c = c3_in
        for ph in handles['block_3']:
            dense_layer(buf3, im3, ph, c, b3['bottleneck_channels'],
                        b3['out_channels'], b3['kernel_size'], L3)
            c += b3['out_channels']

        # ---- store output back in (N, C, L) layout
        for n in range(N):
            o_ref[n, :, :] = buf3[0:c3_out, n * L3:(n + 1) * L3]

    scratch_shapes = [
        pltpu.VMEM((c1_out, NL1), jnp.float32),                                   # buf1
        pltpu.VMEM((c2_out, NL2), jnp.float32),                                   # buf2
        pltpu.VMEM((c3_out, NL3), jnp.float32),                                   # buf3
        pltpu.VMEM((b1['kernel_size'] * b1['bottleneck_channels'], NL1), jnp.float32),  # im1
        pltpu.VMEM((b2['kernel_size'] * b2['bottleneck_channels'], NL2), jnp.float32),  # im2
        pltpu.VMEM((b3['kernel_size'] * b3['bottleneck_channels'], NL3), jnp.float32),  # im3
        pltpu.VMEM((max(b1['bottleneck_channels'], b2['bottleneck_channels'],
                        b3['bottleneck_channels']), NL1), jnp.float32),           # zbuf
        pltpu.VMEM((max(c1_out, c2_out), max(NL2, NL3)), jnp.float32),            # poolbuf
    ]

    fused = pl.pallas_call(
        kernel,
        out_shape=jax.ShapeDtypeStruct((N, c3_out, L3), jnp.float32),
        scratch_shapes=scratch_shapes,
        compiler_params=pltpu.CompilerParams(vmem_limit_bytes=32 * 1024 * 1024),
    )

    def fwd(x, vecs, mats):
        return fused(x, vecs, mats)

    return fwd


# ------------------------------------------------------------- parameter init

def _init_bn(key, c):
    k1, k2 = jax.random.split(key)
    return (1.0 + 0.1 * jax.random.normal(k1, (c,), jnp.float32),
            0.1 * jax.random.normal(k2, (c,), jnp.float32))


def _init_conv(key, c_out, c_in, k):
    k1, k2 = jax.random.split(key)
    w = jax.random.normal(k1, (c_out, c_in, k), jnp.float32) / math.sqrt(c_in * k)
    b = 0.1 * jax.random.normal(k2, (c_out,), jnp.float32)
    return w, b


def _init_dense_layer(key, c_in, c_out, c_bot, ksz):
    k1, k2, k3, k4 = jax.random.split(key, 4)
    g1, be1 = _init_bn(k1, c_in)
    w1, c1 = _init_conv(k2, c_bot, c_in, 1)
    g2, be2 = _init_bn(k3, c_bot)
    w2, c2 = _init_conv(k4, c_out, c_bot, ksz)
    return dict(g1=g1, be1=be1, w1=w1[:, :, 0], c1=c1,
                g2=g2, be2=be2, w2=w2, c2=c2)


def _init_pool_block(key, c_in, c_out):
    k1, k2 = jax.random.split(key)
    g, be = _init_bn(k1, c_in)
    w, c = _init_conv(k2, c_out, c_in, 1)
    return dict(g=g, be=be, w=w[:, :, 0], c=c)


def _init_dense_block(key, c_in, cfg):
    layers = []
    for i, kk in enumerate(jax.random.split(key, cfg['num_layers'])):
        layers.append(_init_dense_layer(kk, c_in + i * cfg['out_channels'],
                                        cfg['out_channels'],
                                        cfg['bottleneck_channels'],
                                        cfg['kernel_size']))
    return layers, c_in + cfg['num_layers'] * cfg['out_channels']


def init_densenet(key, in_channels):
    cfg = DENSENET_CFG
    keys = jax.random.split(key, 5)
    params = {}
    params['block_1'], c = _init_dense_block(keys[0], in_channels, cfg['block_1'])
    params['pool_1'] = _init_pool_block(keys[1], c, cfg['pooling_block_1']['out_channels'])
    c = cfg['pooling_block_1']['out_channels']
    params['block_2'], c = _init_dense_block(keys[2], c, cfg['block_2'])
    params['pool_2'] = _init_pool_block(keys[3], c, cfg['pooling_block_2']['out_channels'])
    c = cfg['pooling_block_2']['out_channels']
    params['block_3'], _ = _init_dense_block(keys[4], c, cfg['block_3'])
    return params


# ------------------------------------------------------------- pure-JAX reference

_HI = lax.Precision.HIGHEST


def _ref_bn(x, gamma, beta):
    mean = jnp.mean(x, axis=(0, 2), keepdims=True)
    var = jnp.mean(jnp.square(x - mean), axis=(0, 2), keepdims=True)
    return (x - mean) / jnp.sqrt(var + BN_EPS) * gamma[None, :, None] + beta[None, :, None]


def _ref_conv1d(x, w, b, pad):
    out = lax.conv_general_dilated(x, w, window_strides=(1,), padding=[(pad, pad)],
                                   dimension_numbers=('NCH', 'OIH', 'NCH'),
                                   precision=_HI)
    return out + b[None, :, None]


def _ref_avg_pool(x, k):
    pad = (k - 1) // 2
    L = x.shape[2]
    l_out = (L + 2 * pad - k) // k + 1
    xp = jnp.pad(x, ((0, 0), (0, 0), (pad, pad)))
    cols = [jnp.mean(xp[:, :, j * k:j * k + k], axis=-1) for j in range(l_out)]
    return jnp.stack(cols, axis=-1)


def _ref_dense_layer(x, p, ksz):
    y = _ref_conv1d(_ref_bn(jax.nn.relu(x), p['g1'], p['be1']), p['w1'][:, :, None], p['c1'], 0)
    out = _ref_conv1d(_ref_bn(jax.nn.relu(y), p['g2'], p['be2']), p['w2'], p['c2'], ksz // 2)
    return jnp.concatenate([x, out], axis=1)


def _ref_pool_block(x, p, k):
    y = _ref_conv1d(_ref_bn(x, p['g'], p['be']), p['w'][:, :, None], p['c'], 0)
    return _ref_avg_pool(y, k)


def densenet_reference(x, params):
    cfg = DENSENET_CFG
    for p in params['block_1']:
        x = _ref_dense_layer(x, p, cfg['block_1']['kernel_size'])
    x = _ref_pool_block(x, params['pool_1'], cfg['pooling_block_1']['kernel_size'])
    for p in params['block_2']:
        x = _ref_dense_layer(x, p, cfg['block_2']['kernel_size'])
    x = _ref_pool_block(x, params['pool_2'], cfg['pooling_block_2']['kernel_size'])
    for p in params['block_3']:
        x = _ref_dense_layer(x, p, cfg['block_3']['kernel_size'])
    return x


# ------------------------------------------------------------- main

if __name__ == "__main__":
    N, C_IN, L = 2, 4, 16

    key = jax.random.PRNGKey(0)
    kx, kp = jax.random.split(key)
    x = jax.random.normal(kx, (N, C_IN, L), dtype=jnp.float32)
    params = init_densenet(kp, C_IN)

    vecs, mats, handles = prepare_params(params)      # once, at init
    fwd = jax.jit(build_forward(handles, C_IN, N, L))

    out = jax.block_until_ready(fwd(x, vecs, mats))
    ref = jax.block_until_ready(densenet_reference(x, params))

    assert out.shape == ref.shape == (N, 56, 4), (out.shape, ref.shape)
    np.testing.assert_allclose(np.asarray(out), np.asarray(ref), atol=2e-3, rtol=2e-3)

    print("KERNEL_OK")
</pallas_src>

<mosaic_0001>
module attributes {stable_mosaic.version = 11 : i64} {
  func.func @kernel(%arg0: memref<2x4x16xf32, #tpu.memory_space<vmem>>, %arg1: memref<56x48xf32, #tpu.memory_space<vmem>>, %arg2: memref<318x224xf32, #tpu.memory_space<vmem>>, %arg3: memref<2x56x4xf32, #tpu.memory_space<vmem>>, %arg4: memref<34x32xf32, #tpu.memory_space<vmem>>, %arg5: memref<56x16xf32, #tpu.memory_space<vmem>>, %arg6: memref<56x8xf32, #tpu.memory_space<vmem>>, %arg7: memref<224x32xf32, #tpu.memory_space<vmem>>, %arg8: memref<60x16xf32, #tpu.memory_space<vmem>>, %arg9: memref<60x8xf32, #tpu.memory_space<vmem>>, %arg10: memref<32x32xf32, #tpu.memory_space<vmem>>, %arg11: memref<56x16xf32, #tpu.memory_space<vmem>>) attributes {dimension_semantics = [], scalar_prefetch = 0 : i64, scratch_operands = 8 : i64, tpu.core_type = #tpu.core_type<tc>} {
    %c0 = arith.constant 0 : index
    %c0_0 = arith.constant 0 : index
    %c0_1 = arith.constant 0 : index
    %0 = vector.load %arg0[%c0, %c0_0, %c0_1] : memref<2x4x16xf32, #tpu.memory_space<vmem>>, vector<1x4x16xf32>
    %1 = vector.shape_cast %0 : vector<1x4x16xf32> to vector<4x16xf32>
    %c0_2 = arith.constant 0 : index
    %c0_3 = arith.constant 0 : index
    %2 = vector.load %arg4[%c0_2, %c0_3] : memref<34x32xf32, #tpu.memory_space<vmem>>, vector<4x16xf32>
    tpu.vector_store %arg4[%c0_2, %c0_3], %1 {strides = array<i32>} : memref<34x32xf32, #tpu.memory_space<vmem>>, vector<4x16xf32>,
    %c1 = arith.constant 1 : index
    %c0_4 = arith.constant 0 : index
    %c0_5 = arith.constant 0 : index
    %3 = vector.load %arg0[%c1, %c0_4, %c0_5] : memref<2x4x16xf32, #tpu.memory_space<vmem>>, vector<1x4x16xf32>
    %4 = vector.shape_cast %3 : vector<1x4x16xf32> to vector<4x16xf32>
    %c0_6 = arith.constant 0 : index
    %c16 = arith.constant 16 : index
    %5 = vector.load %arg4[%c0_6, %c16] : memref<34x32xf32, #tpu.memory_space<vmem>>, vector<4x16xf32>
    tpu.vector_store %arg4[%c0_6, %c16], %4 {strides = array<i32>} : memref<34x32xf32, #tpu.memory_space<vmem>>, vector<4x16xf32>,
    %cst = arith.constant 0.000000e+00 : f32
    %6 = vector.broadcast %cst : f32 to vector<224x32xf32>
    %c0_7 = arith.constant 0 : index
    %c0_8 = arith.constant 0 : index
    %7 = vector.load %arg7[%c0_7, %c0_8] : memref<224x32xf32, #tpu.memory_space<vmem>>, vector<224x32xf32>
    tpu.vector_store %arg7[%c0_7, %c0_8], %6 {strides = array<i32>} : memref<224x32xf32, #tpu.memory_space<vmem>>, vector<224x32xf32>,
    %c0_9 = arith.constant 0 : index
    %c0_10 = arith.constant 0 : index
    %8 = vector.load %arg4[%c0_9, %c0_10] : memref<34x32xf32, #tpu.memory_space<vmem>>, vector<4x32xf32>
    %cst_11 = arith.constant 0.000000e+00 : f32
    %9 = vector.broadcast %cst_11 : f32 to vector<4x32xf32>
    %10 = arith.maximumf %8, %9 : vector<4x32xf32>
    %cst_12 = arith.constant dense<0.000000e+00> : vector<4xf32>
    %11 = vector.multi_reduction <add>, %10, %cst_12 [1] : vector<4x32xf32> to vector<4xf32>
    %12 = vector.shape_cast %11 : vector<4xf32> to vector<4x1xf32>
    %cst_13 = arith.constant 3.200000e+01 : f32
    %13 = vector.broadcast %cst_13 : f32 to vector<4x1xf32>
    %14 = arith.divf %12, %13 : vector<4x1xf32>
    %15 = vector.broadcast %14 : vector<4x1xf32> to vector<4x32xf32>
    %16 = arith.subf %10, %15 : vector<4x32xf32>
    %17 = arith.mulf %16, %16 : vector<4x32xf32>
    %cst_14 = arith.constant dense<0.000000e+00> : vector<4xf32>
    %18 = vector.multi_reduction <add>, %17, %cst_14 [1] : vector<4x32xf32> to vector<4xf32>
    %19 = vector.shape_cast %18 : vector<4xf32> to vector<4x1xf32>
    %cst_15 = arith.constant 3.200000e+01 : f32
    %20 = vector.broadcast %cst_15 : f32 to vector<4x1xf32>
    %21 = arith.divf %19, %20 : vector<4x1xf32>
    %c0_16 = arith.constant 0 : index
    %c0_17 = arith.constant 0 : index
    %22 = vector.load %arg1[%c0_16, %c0_17] : memref<56x48xf32, #tpu.memory_space<vmem>>, vector<4x1xf32>
    %cst_18 = arith.constant 9.99999974E-6 : f32
    %23 = vector.broadcast %cst_18 : f32 to vector<4x1xf32>
    %24 = arith.addf %21, %23 : vector<4x1xf32>
    %25 = math.rsqrt %24 : vector<4x1xf32>
    %26 = arith.mulf %22, %25 : vector<4x1xf32>
    %c0_19 = arith.constant 0 : index
    %c1_20 = arith.constant 1 : index
    %27 = vector.load %arg1[%c0_19, %c1_20] : memref<56x48xf32, #tpu.memory_space<vmem>>, vector<4x1xf32>
    %28 = arith.mulf %14, %26 : vector<4x1xf32>
    %29 = arith.subf %27, %28 : vector<4x1xf32>
    %c0_21 = arith.constant 0 : index
    %c0_22 = arith.constant 0 : index
    %30 = vector.load %arg2[%c0_21, %c0_22] : memref<318x224xf32, #tpu.memory_space<vmem>>, vector<32x4xf32>
    %31 = vector.broadcast %26 : vector<4x1xf32> to vector<4x32xf32>
    %32 = arith.mulf %10, %31 : vector<4x32xf32>
    %33 = vector.broadcast %29 : vector<4x1xf32> to vector<4x32xf32>
    %34 = arith.addf %32, %33 : vector<4x32xf32>
    %cst_23 = arith.constant dense<0.000000e+00> : vector<32x32xf32>
    %35 = tpu.matmul %30, %34, %cst_23 {dimension_numbers = #tpu.dot_dimension_numbers<[1], [0], [0], [1], [0, 0, 1, 1], [], []>} : vector<32x4xf32>, vector<4x32xf32>, vector<32x32xf32> -> vector<32x32xf32>
    %c0_24 = arith.constant 0 : index
    %c2 = arith.constant 2 : index
    %36 = vector.load %arg1[%c0_24, %c2] : memref<56x48xf32, #tpu.memory_space<vmem>>, vector<32x1xf32>
    %37 = vector.broadcast %36 : vector<32x1xf32> to vector<32x32xf32>
    %38 = arith.addf %35, %37 : vector<32x32xf32>
    %cst_25 = arith.constant 0.000000e+00 : f32
    %39 = vector.broadcast %cst_25 : f32 to vector<32x32xf32>
    %40 = arith.maximumf %38, %39 : vector<32x32xf32>
    %cst_26 = arith.constant dense<0.000000e+00> : vector<32xf32>
    %41 = vector.multi_reduction <add>, %40, %cst_26 [1] : vector<32x32xf32> to vector<32xf32>
    %42 = vector.shape_cast %41 : vector<32xf32> to vector<32x1xf32>
    %cst_27 = arith.constant 3.200000e+01 : f32
    %43 = vector.broadcast %cst_27 : f32 to vector<32x1xf32>
    %44 = arith.divf %42, %43 : vector<32x1xf32>
    %45 = vector.broadcast %44 : vector<32x1xf32> to vector<32x32xf32>
    %46 = arith.subf %40, %45 : vector<32x32xf32>
    %47 = arith.mulf %46, %46 : vector<32x32xf32>
    %cst_28 = arith.constant dense<0.000000e+00> : vector<32xf32>
    %48 = vector.multi_reduction <add>, %47, %cst_28 [1] : vector<32x32xf32> to vector<32xf32>
    %49 = vector.shape_cast %48 : vector<32xf32> to vector<32x1xf32>
    %cst_29 = arith.constant 3.200000e+01 : f32
    %50 = vector.broadcast %cst_29 : f32 to vector<32x1xf32>
    %51 = arith.divf %49, %50 : vector<32x1xf32>
    %c0_30 = arith.constant 0 : index
    %c3 = arith.constant 3 : index
    %52 = vector.load %arg1[%c0_30, %c3] : memref<56x48xf32, #tpu.memory_space<vmem>>, vector<32x1xf32>
    %cst_31 = arith.constant 9.99999974E-6 : f32
    %53 = vector.broadcast %cst_31 : f32 to vector<32x1xf32>
    %54 = arith.addf %51, %53 : vector<32x1xf32>
    %55 = math.rsqrt %54 : vector<32x1xf32>
    %56 = arith.mulf %52, %55 : vector<32x1xf32>
    %c0_32 = arith.constant 0 : index
    %c4 = arith.constant 4 : index
    %57 = vector.load %arg1[%c0_32, %c4] : memref<56x48xf32, #tpu.memory_space<vmem>>, vector<32x1xf32>
    %58 = arith.mulf %44, %56 : vector<32x1xf32>
    %59 = arith.subf %57, %58 : vector<32x1xf32>
    %60 = vector.broadcast %56 : vector<32x1xf32> to vector<32x32xf32>
    %61 = arith.mulf %40, %60 : vector<32x32xf32>
    %62 = vector.broadcast %59 : vector<32x1xf32> to vector<32x32xf32>
    %63 = arith.addf %61, %62 : vector<32x32xf32>
    %c0_33 = arith.constant 0 : index
    %c0_34 = arith.constant 0 : index
    %64 = vector.load %arg10[%c0_33, %c0_34] : memref<32x32xf32, #tpu.memory_space<vmem>>, vector<32x32xf32>
    tpu.vector_store %arg10[%c0_33, %c0_34], %63 {strides = array<i32>} : memref<32x32xf32, #tpu.memory_space<vmem>>, vector<32x32xf32>,
    %c0_35 = arith.constant 0 : index
    %c0_36 = arith.constant 0 : index
    %65 = vector.load %arg10[%c0_35, %c0_36] : memref<32x32xf32, #tpu.memory_space<vmem>>, vector<32x13xf32>
    %c0_37 = arith.constant 0 : index
    %c3_38 = arith.constant 3 : index
    %66 = vector.load %arg7[%c0_37, %c3_38] : memref<224x32xf32, #tpu.memory_space<vmem>>, vector<32x13xf32>
    tpu.vector_store %arg7[%c0_37, %c3_38], %65 {strides = array<i32>} : memref<224x32xf32, #tpu.memory_space<vmem>>, vector<32x13xf32>,
    %c0_39 = arith.constant 0 : index
    %c16_40 = arith.constant 16 : index
    %67 = vector.load %arg10[%c0_39, %c16_40] : memref<32x32xf32, #tpu.memory_space<vmem>>, vector<32x13xf32>
    %c0_41 = arith.constant 0 : index
    %c19 = arith.constant 19 : index
    %68 = vector.load %arg7[%c0_41, %c19] : memref<224x32xf32, #tpu.memory_space<vmem>>, vector<32x13xf32>
    tpu.vector_store %arg7[%c0_41, %c19], %67 {strides = array<i32>} : memref<224x32xf32, #tpu.memory_space<vmem>>, vector<32x13xf32>,
    %c0_42 = arith.constant 0 : index
    %c0_43 = arith.constant 0 : index
    %69 = vector.load %arg10[%c0_42, %c0_43] : memref<32x32xf32, #tpu.memory_space<vmem>>, vector<32x14xf32>
    %c32 = arith.constant 32 : index
    %c2_44 = arith.constant 2 : index
    %70 = vector.load %arg7[%c32, %c2_44] : memref<224x32xf32, #tpu.memory_space<vmem>>, vector<32x14xf32>
    tpu.vector_store %arg7[%c32, %c2_44], %69 {strides = array<i32>} : memref<224x32xf32, #tpu.memory_space<vmem>>, vector<32x14xf32>,
    %c0_45 = arith.constant 0 : index
    %c16_46 = arith.constant 16 : index
    %71 = vector.load %arg10[%c0_45, %c16_46] : memref<32x32xf32, #tpu.memory_space<vmem>>, vector<32x14xf32>
    %c32_47 = arith.constant 32 : index
    %c18 = arith.constant 18 : index
    %72 = vector.load %arg7[%c32_47, %c18] : memref<224x32xf32, #tpu.memory_space<vmem>>, vector<32x14xf32>
    tpu.vector_store %arg7[%c32_47, %c18], %71 {strides = array<i32>} : memref<224x32xf32, #tpu.memory_space<vmem>>, vector<32x14xf32>,
    %c0_48 = arith.constant 0 : index
    %c0_49 = arith.constant 0 : index
    %73 = vector.load %arg10[%c0_48, %c0_49] : memref<32x32xf32, #tpu.memory_space<vmem>>, vector<32x15xf32>
    %c64 = arith.constant 64 : index
    %c1_50 = arith.constant 1 : index
    %74 = vector.load %arg7[%c64, %c1_50] : memref<224x32xf32, #tpu.memory_space<vmem>>, vector<32x15xf32>
    tpu.vector_store %arg7[%c64, %c1_50], %73 {strides = array<i32>} : memref<224x32xf32, #tpu.memory_space<vmem>>, vector<32x15xf32>,
    %c0_51 = arith.constant 0 : index
    %c16_52 = arith.constant 16 : index
    %75 = vector.load %arg10[%c0_51, %c16_52] : memref<32x32xf32, #tpu.memory_space<vmem>>, vector<32x15xf32>
    %c64_53 = arith.constant 64 : index
    %c17 = arith.constant 17 : index
    %76 = vector.load %arg7[%c64_53, %c17] : memref<224x32xf32, #tpu.memory_space<vmem>>, vector<32x15xf32>
    tpu.vector_store %arg7[%c64_53, %c17], %75 {strides = array<i32>} : memref<224x32xf32, #tpu.memory_space<vmem>>, vector<32x15xf32>,
    %c0_54 = arith.constant 0 : index
    %c0_55 = arith.constant 0 : index
    %77 = vector.load %arg10[%c0_54, %c0_55] : memref<32x32xf32, #tpu.memory_space<vmem>>, vector<32x16xf32>
    %c96 = arith.constant 96 : index
    %c0_56 = arith.constant 0 : index
    %78 = vector.load %arg7[%c96, %c0_56] : memref<224x32xf32, #tpu.memory_space<vmem>>, vector<32x16xf32>
    tpu.vector_store %arg7[%c96, %c0_56], %77 {strides = array<i32>} : memref<224x32xf32, #tpu.memory_space<vmem>>, vector<32x16xf32>,
    %c0_57 = arith.constant 0 : index
    %c16_58 = arith.constant 16 : index
    %79 = vector.load %arg10[%c0_57, %c16_58] : memref<32x32xf32, #tpu.memory_space<vmem>>, vector<32x16xf32>
    %c96_59 = arith.constant 96 : index
    %c16_60 = arith.constant 16 : index
    %80 = vector.load %arg7[%c96_59, %c16_60] : memref<224x32xf32, #tpu.memory_space<vmem>>, vector<32x16xf32>
    tpu.vector_store %arg7[%c96_59, %c16_60], %79 {strides = array<i32>} : memref<224x32xf32, #tpu.memory_space<vmem>>, vector<32x16xf32>,
    %c0_61 = arith.constant 0 : index
    %c1_62 = arith.constant 1 : index
    %81 = vector.load %arg10[%c0_61, %c1_62] : memref<32x32xf32, #tpu.memory_space<vmem>>, vector<32x15xf32>
    %c128 = arith.constant 128 : index
    %c0_63 = arith.constant 0 : index
    %82 = vector.load %arg7[%c128, %c0_63] : memref<224x32xf32, #tpu.memory_space<vmem>>, vector<32x15xf32>
    tpu.vector_store %arg7[%c128, %c0_63], %81 {strides = array<i32>} : memref<224x32xf32, #tpu.memory_space<vmem>>, vector<32x15xf32>,
    %c0_64 = arith.constant 0 : index
    %c17_65 = arith.constant 17 : index
    %83 = vector.load %arg10[%c0_64, %c17_65] : memref<32x32xf32, #tpu.memory_space<vmem>>, vector<32x15xf32>
    %c128_66 = arith.constant 128 : index
    %c16_67 = arith.constant 16 : index
    %84 = vector.load %arg7[%c128_66, %c16_67] : memref<224x32xf32, #tpu.memory_space<vmem>>, vector<32x15xf32>
    tpu.vector_store %arg7[%c128_66, %c16_67], %83 {strides = array<i32>} : memref<224x32xf32, #tpu.memory_space<vmem>>, vector<32x15xf32>,
    %c0_68 = arith.constant 0 : index
    %c2_69 = arith.constant 2 : index
    %85 = vector.load %arg10[%c0_68, %c2_69] : memref<32x32xf32, #tpu.memory_space<vmem>>, vector<32x14xf32>
    %c160 = arith.constant 160 : index
    %c0_70 = arith.constant 0 : index
    %86 = vector.load %arg7[%c160, %c0_70] : memref<224x32xf32, #tpu.memory_space<vmem>>, vector<32x14xf32>
    tpu.vector_store %arg7[%c160, %c0_70], %85 {strides = array<i32>} : memref<224x32xf32, #tpu.memory_space<vmem>>, vector<32x14xf32>,
    %c0_71 = arith.constant 0 : index
    %c18_72 = arith.constant 18 : index
    %87 = vector.load %arg10[%c0_71, %c18_72] : memref<32x32xf32, #tpu.memory_space<vmem>>, vector<32x14xf32>
    %c160_73 = arith.constant 160 : index
    %c16_74 = arith.constant 16 : index
    %88 = vector.load %arg7[%c160_73, %c16_74] : memref<224x32xf32, #tpu.memory_space<vmem>>, vector<32x14xf32>
    tpu.vector_store %arg7[%c160_73, %c16_74], %87 {strides = array<i32>} : memref<224x32xf32, #tpu.memory_space<vmem>>, vector<32x14xf32>,
    %c0_75 = arith.constant 0 : index
    %c3_76 = arith.constant 3 : index
    %89 = vector.load %arg10[%c0_75, %c3_76] : memref<32x32xf32, #tpu.memory_space<vmem>>, vector<32x13xf32>
    %c192 = arith.constant 192 : index
    %c0_77 = arith.constant 0 : index
    %90 = vector.load %arg7[%c192, %c0_77] : memref<224x32xf32, #tpu.memory_space<vmem>>, vector<32x13xf32>
    tpu.vector_store %arg7[%c192, %c0_77], %89 {strides = array<i32>} : memref<224x32xf32, #tpu.memory_space<vmem>>, vector<32x13xf32>,
    %c0_78 = arith.constant 0 : index
    %c19_79 = arith.constant 19 : index
    %91 = vector.load %arg10[%c0_78, %c19_79] : memref<32x32xf32, #tpu.memory_space<vmem>>, vector<32x13xf32>
    %c192_80 = arith.constant 192 : index
    %c16_81 = arith.constant 16 : index
    %92 = vector.load %arg7[%c192_80, %c16_81] : memref<224x32xf32, #tpu.memory_space<vmem>>, vector<32x13xf32>
    tpu.vector_store %arg7[%c192_80, %c16_81], %91 {strides = array<i32>} : memref<224x32xf32, #tpu.memory_space<vmem>>, vector<32x13xf32>,
    %c32_82 = arith.constant 32 : index
    %c0_83 = arith.constant 0 : index
    %93 = vector.load %arg2[%c32_82, %c0_83] : memref<318x224xf32, #tpu.memory_space<vmem>>, vector<10x224xf32>
    %c0_84 = arith.constant 0 : index
    %c0_85 = arith.constant 0 : index
    %94 = vector.load %arg7[%c0_84, %c0_85] : memref<224x32xf32, #tpu.memory_space<vmem>>, vector<224x32xf32>
    %cst_86 = arith.constant dense<0.000000e+00> : vector<10x32xf32>
    %95 = tpu.matmul %93, %94, %cst_86 {dimension_numbers = #tpu.dot_dimension_numbers<[1], [0], [0], [1], [0, 0, 1, 1], [], []>} : vector<10x224xf32>, vector<224x32xf32>, vector<10x32xf32> -> vector<10x32xf32>
    %c0_87 = arith.constant 0 : index
    %c5 = arith.constant 5 : index
    %96 = vector.load %arg1[%c0_87, %c5] : memref<56x48xf32, #tpu.memory_space<vmem>>, vector<10x1xf32>
    %97 = vector.broadcast %96 : vector<10x1xf32> to vector<10x32xf32>
    %98 = arith.addf %95, %97 : vector<10x32xf32>
    %c4_88 = arith.constant 4 : index
    %c0_89 = arith.constant 0 : index
    %99 = vector.load %arg4[%c4_88, %c0_89] : memref<34x32xf32, #tpu.memory_space<vmem>>, vector<10x32xf32>
    tpu.vector_store %arg4[%c4_88, %c0_89], %98 {strides = array<i32>} : memref<34x32xf32, #tpu.memory_space<vmem>>, vector<10x32xf32>,
    %c0_90 = arith.constant 0 : index
    %c0_91 = arith.constant 0 : index
    %100 = vector.load %arg4[%c0_90, %c0_91] : memref<34x32xf32, #tpu.memory_space<vmem>>, vector<14x32xf32>
    %cst_92 = arith.constant 0.000000e+00 : f32
    %101 = vector.broadcast %cst_92 : f32 to vector<14x32xf32>
    %102 = arith.maximumf %100, %101 : vector<14x32xf32>
    %cst_93 = arith.constant dense<0.000000e+00> : vector<14xf32>
    %103 = vector.multi_reduction <add>, %102, %cst_93 [1] : vector<14x32xf32> to vector<14xf32>
    %104 = vector.shape_cast %103 : vector<14xf32> to vector<14x1xf32>
    %cst_94 = arith.constant 3.200000e+01 : f32
    %105 = vector.broadcast %cst_94 : f32 to vector<14x1xf32>
    %106 = arith.divf %104, %105 : vector<14x1xf32>
    %107 = vector.broadcast %106 : vector<14x1xf32> to vector<14x32xf32>
    %108 = arith.subf %102, %107 : vector<14x32xf32>
    %109 = arith.mulf %108, %108 : vector<14x32xf32>
    %cst_95 = arith.constant dense<0.000000e+00> : vector<14xf32>
    %110 = vector.multi_reduction <add>, %109, %cst_95 [1] : vector<14x32xf32> to vector<14xf32>
    %111 = vector.shape_cast %110 : vector<14xf32> to vector<14x1xf32>
    %cst_96 = arith.constant 3.200000e+01 : f32
    %112 = vector.broadcast %cst_96 : f32 to vector<14x1xf32>
    %113 = arith.divf %111, %112 : vector<14x1xf32>
    %c0_97 = arith.constant 0 : index
    %c6 = arith.constant 6 : index
    %114 = vector.load %arg1[%c0_97, %c6] : memref<56x48xf32, #tpu.memory_space<vmem>>, vector<14x1xf32>
    %cst_98 = arith.constant 9.99999974E-6 : f32
    %115 = vector.broadcast %cst_98 : f32 to vector<14x1xf32>
    %116 = arith.addf %113, %115 : vector<14x1xf32>
    %117 = math.rsqrt %116 : vector<14x1xf32>
    %118 = arith.mulf %114, %117 : vector<14x1xf32>
    %c0_99 = arith.constant 0 : index
    %c7 = arith.constant 7 : index
    %119 = vector.load %arg1[%c0_99, %c7] : memref<56x48xf32, #tpu.memory_space<vmem>>, vector<14x1xf32>
    %120 = arith.mulf %106, %118 : vector<14x1xf32>
    %121 = arith.subf %119, %120 : vector<14x1xf32>
    %c42 = arith.constant 42 : index
    %c0_100 = arith.constant 0 : index
    %122 = vector.load %arg2[%c42, %c0_100] : memref<318x224xf32, #tpu.memory_space<vmem>>, vector<32x14xf32>
    %123 = vector.broadcast %118 : vector<14x1xf32> to vector<14x32xf32>
    %124 = arith.mulf %102, %123 : vector<14x32xf32>
    %125 = vector.broadcast %121 : vector<14x1xf32> to vector<14x32xf32>
    %126 = arith.addf %124, %125 : vector<14x32xf32>
    %cst_101 = arith.constant dense<0.000000e+00> : vector<32x32xf32>
    %127 = tpu.matmul %122, %126, %cst_101 {dimension_numbers = #tpu.dot_dimension_numbers<[1], [0], [0], [1], [0, 0, 1, 1], [], []>} : vector<32x14xf32>, vector<14x32xf32>, vector<32x32xf32> -> vector<32x32xf32>
    %c0_102 = arith.constant 0 : index
    %c8 = arith.constant 8 : index
    %128 = vector.load %arg1[%c0_102, %c8] : memref<56x48xf32, #tpu.memory_space<vmem>>, vector<32x1xf32>
    %129 = vector.broadcast %128 : vector<32x1xf32> to vector<32x32xf32>
    %130 = arith.addf %127, %129 : vector<32x32xf32>
    %cst_103 = arith.constant 0.000000e+00 : f32
    %131 = vector.broadcast %cst_103 : f32 to vector<32x32xf32>
    %132 = arith.maximumf %130, %131 : vector<32x32xf32>
    %cst_104 = arith.constant dense<0.000000e+00> : vector<32xf32>
    %133 = vector.multi_reduction <add>, %132, %cst_104 [1] : vector<32x32xf32> to vector<32xf32>
    %134 = vector.shape_cast %133 : vector<32xf32> to vector<32x1xf32>
    %cst_105 = arith.constant 3.200000e+01 : f32
    %135 = vector.broadcast %cst_105 : f32 to vector<32x1xf32>
    %136 = arith.divf %134, %135 : vector<32x1xf32>
    %137 = vector.broadcast %136 : vector<32x1xf32> to vector<32x32xf32>
    %138 = arith.subf %132, %137 : vector<32x32xf32>
    %139 = arith.mulf %138, %138 : vector<32x32xf32>
    %cst_106 = arith.constant dense<0.000000e+00> : vector<32xf32>
    %140 = vector.multi_reduction <add>, %139, %cst_106 [1] : vector<32x32xf32> to vector<32xf32>
    %141 = vector.shape_cast %140 : vector<32xf32> to vector<32x1xf32>
    %cst_107 = arith.constant 3.200000e+01 : f32
    %142 = vector.broadcast %cst_107 : f32 to vector<32x1xf32>
    %143 = arith.divf %141, %142 : vector<32x1xf32>
    %c0_108 = arith.constant 0 : index
    %c9 = arith.constant 9 : index
    %144 = vector.load %arg1[%c0_108, %c9] : memref<56x48xf32, #tpu.memory_space<vmem>>, vector<32x1xf32>
    %cst_109 = arith.constant 9.99999974E-6 : f32
    %145 = vector.broadcast %cst_109 : f32 to vector<32x1xf32>
    %146 = arith.addf %143, %145 : vector<32x1xf32>
    %147 = math.rsqrt %146 : vector<32x1xf32>
    %148 = arith.mulf %144, %147 : vector<32x1xf32>
    %c0_110 = arith.constant 0 : index
    %c10 = arith.constant 10 : index
    %149 = vector.load %arg1[%c0_110, %c10] : memref<56x48xf32, #tpu.memory_space<vmem>>, vector<32x1xf32>
    %150 = arith.mulf %136, %148 : vector<32x1xf32>
    %151 = arith.subf %149, %150 : vector<32x1xf32>
    %152 = vector.broadcast %148 : vector<32x1xf32> to vector<32x32xf32>
    %153 = arith.mulf %132, %152 : vector<32x32xf32>
    %154 = vector.broadcast %151 : vector<32x1xf32> to vector<32x32xf32>
    %155 = arith.addf %153, %154 : vector<32x32xf32>
    %c0_111 = arith.constant 0 : index
    %c0_112 = arith.constant 0 : index
    %156 = vector.load %arg10[%c0_111, %c0_112] : memref<32x32xf32, #tpu.memory_space<vmem>>, vector<32x32xf32>
    tpu.vector_store %arg10[%c0_111, %c0_112], %155 {strides = array<i32>} : memref<32x32xf32, #tpu.memory_space<vmem>>, vector<32x32xf32>,
    %c0_113 = arith.constant 0 : index
    %c0_114 = arith.constant 0 : index
    %157 = vector.load %arg10[%c0_113, %c0_114] : memref<32x32xf32, #tpu.memory_space<vmem>>, vector<32x13xf32>
    %c0_115 = arith.constant 0 : index
    %c3_116 = arith.constant 3 : index
    %158 = vector.load %arg7[%c0_115, %c3_116] : memref<224x32xf32, #tpu.memory_space<vmem>>, vector<32x13xf32>
    tpu.vector_store %arg7[%c0_115, %c3_116], %157 {strides = array<i32>} : memref<224x32xf32, #tpu.memory_space<vmem>>, vector<32x13xf32>,
    %c0_117 = arith.constant 0 : index
    %c16_118 = arith.constant 16 : index
    %159 = vector.load %arg10[%c0_117, %c16_118] : memref<32x32xf32, #tpu.memory_space<vmem>>, vector<32x13xf32>
    %c0_119 = arith.constant 0 : index
    %c19_120 = arith.constant 19 : index
    %160 = vector.load %arg7[%c0_119, %c19_120] : memref<224x32xf32, #tpu.memory_space<vmem>>, vector<32x13xf32>
    tpu.vector_store %arg7[%c0_119, %c19_120], %159 {strides = array<i32>} : memref<224x32xf32, #tpu.memory_space<vmem>>, vector<32x13xf32>,
    %c0_121 = arith.constant 0 : index
    %c0_122 = arith.constant 0 : index
    %161 = vector.load %arg10[%c0_121, %c0_122] : memref<32x32xf32, #tpu.memory_space<vmem>>, vector<32x14xf32>
    %c32_123 = arith.constant 32 : index
    %c2_124 = arith.constant 2 : index
    %162 = vector.load %arg7[%c32_123, %c2_124] : memref<224x32xf32, #tpu.memory_space<vmem>>, vector<32x14xf32>
    tpu.vector_store %arg7[%c32_123, %c2_124], %161 {strides = array<i32>} : memref<224x32xf32, #tpu.memory_space<vmem>>, vector<32x14xf32>,
    %c0_125 = arith.constant 0 : index
    %c16_126 = arith.constant 16 : index
    %163 = vector.load %arg10[%c0_125, %c16_126] : memref<32x32xf32, #tpu.memory_space<vmem>>, vector<32x14xf32>
    %c32_127 = arith.constant 32 : index
    %c18_128 = arith.constant 18 : index
    %164 = vector.load %arg7[%c32_127, %c18_128] : memref<224x32xf32, #tpu.memory_space<vmem>>, vector<32x14xf32>
    tpu.vector_store %arg7[%c32_127, %c18_128], %163 {strides = array<i32>} : memref<224x32xf32, #tpu.memory_space<vmem>>, vector<32x14xf32>,
    %c0_129 = arith.constant 0 : index
    %c0_130 = arith.constant 0 : index
    %165 = vector.load %arg10[%c0_129, %c0_130] : memref<32x32xf32, #tpu.memory_space<vmem>>, vector<32x15xf32>
    %c64_131 = arith.constant 64 : index
    %c1_132 = arith.constant 1 : index
    %166 = vector.load %arg7[%c64_131, %c1_132] : memref<224x32xf32, #tpu.memory_space<vmem>>, vector<32x15xf32>
    tpu.vector_store %arg7[%c64_131, %c1_132], %165 {strides = array<i32>} : memref<224x32xf32, #tpu.memory_space<vmem>>, vector<32x15xf32>,
    %c0_133 = arith.constant 0 : index
    %c16_134 = arith.constant 16 : index
    %167 = vector.load %arg10[%c0_133, %c16_134] : memref<32x32xf32, #tpu.memory_space<vmem>>, vector<32x15xf32>
    %c64_135 = arith.constant 64 : index
    %c17_136 = arith.constant 17 : index
    %168 = vector.load %arg7[%c64_135, %c17_136] : memref<224x32xf32, #tpu.memory_space<vmem>>, vector<32x15xf32>
    tpu.vector_store %arg7[%c64_135, %c17_136], %167 {strides = array<i32>} : memref<224x32xf32, #tpu.memory_space<vmem>>, vector<32x15xf32>,
    %c0_137 = arith.constant 0 : index
    %c0_138 = arith.constant 0 : index
    %169 = vector.load %arg10[%c0_137, %c0_138] : memref<32x32xf32, #tpu.memory_space<vmem>>, vector<32x16xf32>
    %c96_139 = arith.constant 96 : index
    %c0_140 = arith.constant 0 : index
    %170 = vector.load %arg7[%c96_139, %c0_140] : memref<224x32xf32, #tpu.memory_space<vmem>>, vector<32x16xf32>
    tpu.vector_store %arg7[%c96_139, %c0_140], %169 {strides = array<i32>} : memref<224x32xf32, #tpu.memory_space<vmem>>, vector<32x16xf32>,
    %c0_141 = arith.constant 0 : index
    %c16_142 = arith.constant 16 : index
    %171 = vector.load %arg10[%c0_141, %c16_142] : memref<32x32xf32, #tpu.memory_space<vmem>>, vector<32x16xf32>
    %c96_143 = arith.constant 96 : index
    %c16_144 = arith.constant 16 : index
    %172 = vector.load %arg7[%c96_143, %c16_144] : memref<224x32xf32, #tpu.memory_space<vmem>>, vector<32x16xf32>
    tpu.vector_store %arg7[%c96_143, %c16_144], %171 {strides = array<i32>} : memref<224x32xf32, #tpu.memory_space<vmem>>, vector<32x16xf32>,
    %c0_145 = arith.constant 0 : index
    %c1_146 = arith.constant 1 : index
    %173 = vector.load %arg10[%c0_145, %c1_146] : memref<32x32xf32, #tpu.memory_space<vmem>>, vector<32x15xf32>
    %c128_147 = arith.constant 128 : index
    %c0_148 = arith.constant 0 : index
    %174 = vector.load %arg7[%c128_147, %c0_148] : memref<224x32xf32, #tpu.memory_space<vmem>>, vector<32x15xf32>
    tpu.vector_store %arg7[%c128_147, %c0_148], %173 {strides = array<i32>} : memref<224x32xf32, #tpu.memory_space<vmem>>, vector<32x15xf32>,
    %c0_149 = arith.constant 0 : index
    %c17_150 = arith.constant 17 : index
    %175 = vector.load %arg10[%c0_149, %c17_150] : memref<32x32xf32, #tpu.memory_space<vmem>>, vector<32x15xf32>
    %c128_151 = arith.constant 128 : index
    %c16_152 = arith.constant 16 : index
    %176 = vector.load %arg7[%c128_151, %c16_152] : memref<224x32xf32, #tpu.memory_space<vmem>>, vector<32x15xf32>
    tpu.vector_store %arg7[%c128_151, %c16_152], %175 {strides = array<i32>} : memref<224x32xf32, #tpu.memory_space<vmem>>, vector<32x15xf32>,
    %c0_153 = arith.constant 0 : index
    %c2_154 = arith.constant 2 : index
    %177 = vector.load %arg10[%c0_153, %c2_154] : memref<32x32xf32, #tpu.memory_space<vmem>>, vector<32x14xf32>
    %c160_155 = arith.constant 160 : index
    %c0_156 = arith.constant 0 : index
    %178 = vector.load %arg7[%c160_155, %c0_156] : memref<224x32xf32, #tpu.memory_space<vmem>>, vector<32x14xf32>
    tpu.vector_store %arg7[%c160_155, %c0_156], %177 {strides = array<i32>} : memref<224x32xf32, #tpu.memory_space<vmem>>, vector<32x14xf32>,
    %c0_157 = arith.constant 0 : index
    %c18_158 = arith.constant 18 : index
    %179 = vector.load %arg10[%c0_157, %c18_158] : memref<32x32xf32, #tpu.memory_space<vmem>>, vector<32x14xf32>
    %c160_159 = arith.constant 160 : index
    %c16_160 = arith.constant 16 : index
    %180 = vector.load %arg7[%c160_159, %c16_160] : memref<224x32xf32, #tpu.memory_space<vmem>>, vector<32x14xf32>
    tpu.vector_store %arg7[%c160_159, %c16_160], %179 {strides = array<i32>} : memref<224x32xf32, #tpu.memory_space<vmem>>, vector<32x14xf32>,
    %c0_161 = arith.constant 0 : index
    %c3_162 = arith.constant 3 : index
    %181 = vector.load %arg10[%c0_161, %c3_162] : memref<32x32xf32, #tpu.memory_space<vmem>>, vector<32x13xf32>
    %c192_163 = arith.constant 192 : index
    %c0_164 = arith.constant 0 : index
    %182 = vector.load %arg7[%c192_163, %c0_164] : memref<224x32xf32, #tpu.memory_space<vmem>>, vector<32x13xf32>
    tpu.vector_store %arg7[%c192_163, %c0_164], %181 {strides = array<i32>} : memref<224x32xf32, #tpu.memory_space<vmem>>, vector<32x13xf32>,
    %c0_165 = arith.constant 0 : index
    %c19_166 = arith.constant 19 : index
    %183 = vector.load %arg10[%c0_165, %c19_166] : memref<32x32xf32, #tpu.memory_space<vmem>>, vector<32x13xf32>
    %c192_167 = arith.constant 192 : index
    %c16_168 = arith.constant 16 : index
    %184 = vector.load %arg7[%c192_167, %c16_168] : memref<224x32xf32, #tpu.memory_space<vmem>>, vector<32x13xf32>
    tpu.vector_store %arg7[%c192_167, %c16_168], %183 {strides = array<i32>} : memref<224x32xf32, #tpu.memory_space<vmem>>, vector<32x13xf32>,
    %c74 = arith.constant 74 : index
    %c0_169 = arith.constant 0 : index
    %185 = vector.load %arg2[%c74, %c0_169] : memref<318x224xf32, #tpu.memory_space<vmem>>, vector<10x224xf32>
    %c0_170 = arith.constant 0 : index
    %c0_171 = arith.constant 0 : index
    %186 = vector.load %arg7[%c0_170, %c0_171] : memref<224x32xf32, #tpu.memory_space<vmem>>, vector<224x32xf32>
    %cst_172 = arith.constant dense<0.000000e+00> : vector<10x32xf32>
    %187 = tpu.matmul %185, %186, %cst_172 {dimension_numbers = #tpu.dot_dimension_numbers<[1], [0], [0], [1], [0, 0, 1, 1], [], []>} : vector<10x224xf32>, vector<224x32xf32>, vector<10x32xf32> -> vector<10x32xf32>
    %c0_173 = arith.constant 0 : index
    %c11 = arith.constant 11 : index
    %188 = vector.load %arg1[%c0_173, %c11] : memref<56x48xf32, #tpu.memory_space<vmem>>, vector<10x1xf32>
    %189 = vector.broadcast %188 : vector<10x1xf32> to vector<10x32xf32>
    %190 = arith.addf %187, %189 : vector<10x32xf32>
    %c14 = arith.constant 14 : index
    %c0_174 = arith.constant 0 : index
    %191 = vector.load %arg4[%c14, %c0_174] : memref<34x32xf32, #tpu.memory_space<vmem>>, vector<10x32xf32>
    tpu.vector_store %arg4[%c14, %c0_174], %190 {strides = array<i32>} : memref<34x32xf32, #tpu.memory_space<vmem>>, vector<10x32xf32>,
    %c0_175 = arith.constant 0 : index
    %c0_176 = arith.constant 0 : index
    %192 = vector.load %arg4[%c0_175, %c0_176] : memref<34x32xf32, #tpu.memory_space<vmem>>, vector<24x32xf32>
    %cst_177 = arith.constant 0.000000e+00 : f32
    %193 = vector.broadcast %cst_177 : f32 to vector<24x32xf32>
    %194 = arith.maximumf %192, %193 : vector<24x32xf32>
    %cst_178 = arith.constant dense<0.000000e+00> : vector<24xf32>
    %195 = vector.multi_reduction <add>, %194, %cst_178 [1] : vector<24x32xf32> to vector<24xf32>
    %196 = vector.shape_cast %195 : vector<24xf32> to vector<24x1xf32>
    %cst_179 = arith.constant 3.200000e+01 : f32
    %197 = vector.broadcast %cst_179 : f32 to vector<24x1xf32>
    %198 = arith.divf %196, %197 : vector<24x1xf32>
    %199 = vector.broadcast %198 : vector<24x1xf32> to vector<24x32xf32>
    %200 = arith.subf %194, %199 : vector<24x32xf32>
    %201 = arith.mulf %200, %200 : vector<24x32xf32>
    %cst_180 = arith.constant dense<0.000000e+00> : vector<24xf32>
    %202 = vector.multi_reduction <add>, %201, %cst_180 [1] : vector<24x32xf32> to vector<24xf32>
    %203 = vector.shape_cast %202 : vector<24xf32> to vector<24x1xf32>
    %cst_181 = arith.constant 3.200000e+01 : f32
    %204 = vector.broadcast %cst_181 : f32 to vector<24x1xf32>
    %205 = arith.divf %203, %204 : vector<24x1xf32>
    %c0_182 = arith.constant 0 : index
    %c12 = arith.constant 12 : index
    %206 = vector.load %arg1[%c0_182, %c12] : memref<56x48xf32, #tpu.memory_space<vmem>>, vector<24x1xf32>
    %cst_183 = arith.constant 9.99999974E-6 : f32
    %207 = vector.broadcast %cst_183 : f32 to vector<24x1xf32>
    %208 = arith.addf %205, %207 : vector<24x1xf32>
    %209 = math.rsqrt %208 : vector<24x1xf32>
    %210 = arith.mulf %206, %209 : vector<24x1xf32>
    %c0_184 = arith.constant 0 : index
    %c13 = arith.constant 13 : index
    %211 = vector.load %arg1[%c0_184, %c13] : memref<56x48xf32, #tpu.memory_space<vmem>>, vector<24x1xf32>
    %212 = arith.mulf %198, %210 : vector<24x1xf32>
    %213 = arith.subf %211, %212 : vector<24x1xf32>
    %c84 = arith.constant 84 : index
    %c0_185 = arith.constant 0 : index
    %214 = vector.load %arg2[%c84, %c0_185] : memref<318x224xf32, #tpu.memory_space<vmem>>, vector<32x24xf32>
    %215 = vector.broadcast %210 : vector<24x1xf32> to vector<24x32xf32>
    %216 = arith.mulf %194, %215 : vector<24x32xf32>
    %217 = vector.broadcast %213 : vector<24x1xf32> to vector<24x32xf32>
    %218 = arith.addf %216, %217 : vector<24x32xf32>
    %cst_186 = arith.constant dense<0.000000e+00> : vector<32x32xf32>
    %219 = tpu.matmul %214, %218, %cst_186 {dimension_numbers = #tpu.dot_dimension_numbers<[1], [0], [0], [1], [0, 0, 1, 1], [], []>} : vector<32x24xf32>, vector<24x32xf32>, vector<32x32xf32> -> vector<32x32xf32>
    %c0_187 = arith.constant 0 : index
    %c14_188 = arith.constant 14 : index
    %220 = vector.load %arg1[%c0_187, %c14_188] : memref<56x48xf32, #tpu.memory_space<vmem>>, vector<32x1xf32>
    %221 = vector.broadcast %220 : vector<32x1xf32> to vector<32x32xf32>
    %222 = arith.addf %219, %221 : vector<32x32xf32>
    %cst_189 = arith.constant 0.000000e+00 : f32
    %223 = vector.broadcast %cst_189 : f32 to vector<32x32xf32>
    %224 = arith.maximumf %222, %223 : vector<32x32xf32>
    %cst_190 = arith.constant dense<0.000000e+00> : vector<32xf32>
    %225 = vector.multi_reduction <add>, %224, %cst_190 [1] : vector<32x32xf32> to vector<32xf32>
    %226 = vector.shape_cast %225 : vector<32xf32> to vector<32x1xf32>
    %cst_191 = arith.constant 3.200000e+01 : f32
    %227 = vector.broadcast %cst_191 : f32 to vector<32x1xf32>
    %228 = arith.divf %226, %227 : vector<32x1xf32>
    %229 = vector.broadcast %228 : vector<32x1xf32> to vector<32x32xf32>
    %230 = arith.subf %224, %229 : vector<32x32xf32>
    %231 = arith.mulf %230, %230 : vector<32x32xf32>
    %cst_192 = arith.constant dense<0.000000e+00> : vector<32xf32>
    %232 = vector.multi_reduction <add>, %231, %cst_192 [1] : vector<32x32xf32> to vector<32xf32>
    %233 = vector.shape_cast %232 : vector<32xf32> to vector<32x1xf32>
    %cst_193 = arith.constant 3.200000e+01 : f32
    %234 = vector.broadcast %cst_193 : f32 to vector<32x1xf32>
    %235 = arith.divf %233, %234 : vector<32x1xf32>
    %c0_194 = arith.constant 0 : index
    %c15 = arith.constant 15 : index
    %236 = vector.load %arg1[%c0_194, %c15] : memref<56x48xf32, #tpu.memory_space<vmem>>, vector<32x1xf32>
    %cst_195 = arith.constant 9.99999974E-6 : f32
    %237 = vector.broadcast %cst_195 : f32 to vector<32x1xf32>
    %238 = arith.addf %235, %237 : vector<32x1xf32>
    %239 = math.rsqrt %238 : vector<32x1xf32>
    %240 = arith.mulf %236, %239 : vector<32x1xf32>
    %c0_196 = arith.constant 0 : index
    %c16_197 = arith.constant 16 : index
    %241 = vector.load %arg1[%c0_196, %c16_197] : memref<56x48xf32, #tpu.memory_space<vmem>>, vector<32x1xf32>
    %242 = arith.mulf %228, %240 : vector<32x1xf32>
    %243 = arith.subf %241, %242 : vector<32x1xf32>
    %244 = vector.broadcast %240 : vector<32x1xf32> to vector<32x32xf32>
    %245 = arith.mulf %224, %244 : vector<32x32xf32>
    %246 = vector.broadcast %243 : vector<32x1xf32> to vector<32x32xf32>
    %247 = arith.addf %245, %246 : vector<32x32xf32>
    %c0_198 = arith.constant 0 : index
    %c0_199 = arith.constant 0 : index
    %248 = vector.load %arg10[%c0_198, %c0_199] : memref<32x32xf32, #tpu.memory_space<vmem>>, vector<32x32xf32>
    tpu.vector_store %arg10[%c0_198, %c0_199], %247 {strides = array<i32>} : memref<32x32xf32, #tpu.memory_space<vmem>>, vector<32x32xf32>,
    %c0_200 = arith.constant 0 : index
    %c0_201 = arith.constant 0 : index
    %249 = vector.load %arg10[%c0_200, %c0_201] : memref<32x32xf32, #tpu.memory_space<vmem>>, vector<32x13xf32>
    %c0_202 = arith.constant 0 : index
    %c3_203 = arith.constant 3 : index
    %250 = vector.load %arg7[%c0_202, %c3_203] : memref<224x32xf32, #tpu.memory_space<vmem>>, vector<32x13xf32>
    tpu.vector_store %arg7[%c0_202, %c3_203], %249 {strides = array<i32>} : memref<224x32xf32, #tpu.memory_space<vmem>>, vector<32x13xf32>,
    %c0_204 = arith.constant 0 : index
    %c16_205 = arith.constant 16 : index
    %251 = vector.load %arg10[%c0_204, %c16_205] : memref<32x32xf32, #tpu.memory_space<vmem>>, vector<32x13xf32>
    %c0_206 = arith.constant 0 : index
    %c19_207 = arith.constant 19 : index
    %252 = vector.load %arg7[%c0_206, %c19_207] : memref<224x32xf32, #tpu.memory_space<vmem>>, vector<32x13xf32>
    tpu.vector_store %arg7[%c0_206, %c19_207], %251 {strides = array<i32>} : memref<224x32xf32, #tpu.memory_space<vmem>>, vector<32x13xf32>,
    %c0_208 = arith.constant 0 : index
    %c0_209 = arith.constant 0 : index
    %253 = vector.load %arg10[%c0_208, %c0_209] : memref<32x32xf32, #tpu.memory_space<vmem>>, vector<32x14xf32>
    %c32_210 = arith.constant 32 : index
    %c2_211 = arith.constant 2 : index
    %254 = vector.load %arg7[%c32_210, %c2_211] : memref<224x32xf32, #tpu.memory_space<vmem>>, vector<32x14xf32>
    tpu.vector_store %arg7[%c32_210, %c2_211], %253 {strides = array<i32>} : memref<224x32xf32, #tpu.memory_space<vmem>>, vector<32x14xf32>,
    %c0_212 = arith.constant 0 : index
    %c16_213 = arith.constant 16 : index
    %255 = vector.load %arg10[%c0_212, %c16_213] : memref<32x32xf32, #tpu.memory_space<vmem>>, vector<32x14xf32>
    %c32_214 = arith.constant 32 : index
    %c18_215 = arith.constant 18 : index
    %256 = vector.load %arg7[%c32_214, %c18_215] : memref<224x32xf32, #tpu.memory_space<vmem>>, vector<32x14xf32>
    tpu.vector_store %arg7[%c32_214, %c18_215], %255 {strides = array<i32>} : memref<224x32xf32, #tpu.memory_space<vmem>>, vector<32x14xf32>,
    %c0_216 = arith.constant 0 : index
    %c0_217 = arith.constant 0 : index
    %257 = vector.load %arg10[%c0_216, %c0_217] : memref<32x32xf32, #tpu.memory_space<vmem>>, vector<32x15xf32>
    %c64_218 = arith.constant 64 : index
    %c1_219 = arith.constant 1 : index
    %258 = vector.load %arg7[%c64_218, %c1_219] : memref<224x32xf32, #tpu.memory_space<vmem>>, vector<32x15xf32>
    tpu.vector_store %arg7[%c64_218, %c1_219], %257 {strides = array<i32>} : memref<224x32xf32, #tpu.memory_space<vmem>>, vector<32x15xf32>,
    %c0_220 = arith.constant 0 : index
    %c16_221 = arith.constant 16 : index
    %259 = vector.load %arg10[%c0_220, %c16_221] : memref<32x32xf32, #tpu.memory_space<vmem>>, vector<32x15xf32>
    %c64_222 = arith.constant 64 : index
    %c17_223 = arith.constant 17 : index
    %260 = vector.load %arg7[%c64_222, %c17_223] : memref<224x32xf32, #tpu.memory_space<vmem>>, vector<32x15xf32>
    tpu.vector_store %arg7[%c64_222, %c17_223], %259 {strides = array<i32>} : memref<224x32xf32, #tpu.memory_space<vmem>>, vector<32x15xf32>,
    %c0_224 = arith.constant 0 : index
    %c0_225 = arith.constant 0 : index
    %261 = vector.load %arg10[%c0_224, %c0_225] : memref<32x32xf32, #tpu.memory_space<vmem>>, vector<32x16xf32>
    %c96_226 = arith.constant 96 : index
    %c0_227 = arith.constant 0 : index
    %262 = vector.load %arg7[%c96_226, %c0_227] : memref<224x32xf32, #tpu.memory_space<vmem>>, vector<32x16xf32>
    tpu.vector_store %arg7[%c96_226, %c0_227], %261 {strides = array<i32>} : memref<224x32xf32, #tpu.memory_space<vmem>>, vector<32x16xf32>,
    %c0_228 = arith.constant 0 : index
    %c16_229 = arith.constant 16 : index
    %263 = vector.load %arg10[%c0_228, %c16_229] : memref<32x32xf32, #tpu.memory_space<vmem>>, vector<32x16xf32>
    %c96_230 = arith.constant 96 : index
    %c16_231 = arith.constant 16 : index
    %264 = vector.load %arg7[%c96_230, %c16_231] : memref<224x32xf32, #tpu.memory_space<vmem>>, vector<32x16xf32>
    tpu.vector_store %arg7[%c96_230, %c16_231], %263 {strides = array<i32>} : memref<224x32xf32, #tpu.memory_space<vmem>>, vector<32x16xf32>,
    %c0_232 = arith.constant 0 : index
    %c1_233 = arith.constant 1 : index
    %265 = vector.load %arg10[%c0_232, %c1_233] : memref<32x32xf32, #tpu.memory_space<vmem>>, vector<32x15xf32>
    %c128_234 = arith.constant 128 : index
    %c0_235 = arith.constant 0 : index
    %266 = vector.load %arg7[%c128_234, %c0_235] : memref<224x32xf32, #tpu.memory_space<vmem>>, vector<32x15xf32>
    tpu.vector_store %arg7[%c128_234, %c0_235], %265 {strides = array<i32>} : memref<224x32xf32, #tpu.memory_space<vmem>>, vector<32x15xf32>,
    %c0_236 = arith.constant 0 : index
    %c17_237 = arith.constant 17 : index
    %267 = vector.load %arg10[%c0_236, %c17_237] : memref<32x32xf32, #tpu.memory_space<vmem>>, vector<32x15xf32>
    %c128_238 = arith.constant 128 : index
    %c16_239 = arith.constant 16 : index
    %268 = vector.load %arg7[%c128_238, %c16_239] : memref<224x32xf32, #tpu.memory_space<vmem>>, vector<32x15xf32>
    tpu.vector_store %arg7[%c128_238, %c16_239], %267 {strides = array<i32>} : memref<224x32xf32, #tpu.memory_space<vmem>>, vector<32x15xf32>,
    %c0_240 = arith.constant 0 : index
    %c2_241 = arith.constant 2 : index
    %269 = vector.load %arg10[%c0_240, %c2_241] : memref<32x32xf32, #tpu.memory_space<vmem>>, vector<32x14xf32>
    %c160_242 = arith.constant 160 : index
    %c0_243 = arith.constant 0 : index
    %270 = vector.load %arg7[%c160_242, %c0_243] : memref<224x32xf32, #tpu.memory_space<vmem>>, vector<32x14xf32>
    tpu.vector_store %arg7[%c160_242, %c0_243], %269 {strides = array<i32>} : memref<224x32xf32, #tpu.memory_space<vmem>>, vector<32x14xf32>,
    %c0_244 = arith.constant 0 : index
    %c18_245 = arith.constant 18 : index
    %271 = vector.load %arg10[%c0_244, %c18_245] : memref<32x32xf32, #tpu.memory_space<vmem>>, vector<32x14xf32>
    %c160_246 = arith.constant 160 : index
    %c16_247 = arith.constant 16 : index
    %272 = vector.load %arg7[%c160_246, %c16_247] : memref<224x32xf32, #tpu.memory_space<vmem>>, vector<32x14xf32>
    tpu.vector_store %arg7[%c160_246, %c16_247], %271 {strides = array<i32>} : memref<224x32xf32, #tpu.memory_space<vmem>>, vector<32x14xf32>,
    %c0_248 = arith.constant 0 : index
    %c3_249 = arith.constant 3 : index
    %273 = vector.load %arg10[%c0_248, %c3_249] : memref<32x32xf32, #tpu.memory_space<vmem>>, vector<32x13xf32>
    %c192_250 = arith.constant 192 : index
    %c0_251 = arith.constant 0 : index
    %274 = vector.load %arg7[%c192_250, %c0_251] : memref<224x32xf32, #tpu.memory_space<vmem>>, vector<32x13xf32>
    tpu.vector_store %arg7[%c192_250, %c0_251], %273 {strides = array<i32>} : memref<224x32xf32, #tpu.memory_space<vmem>>, vector<32x13xf32>,
    %c0_252 = arith.constant 0 : index
    %c19_253 = arith.constant 19 : index
    %275 = vector.load %arg10[%c0_252, %c19_253] : memref<32x32xf32, #tpu.memory_space<vmem>>, vector<32x13xf32>
    %c192_254 = arith.constant 192 : index
    %c16_255 = arith.constant 16 : index
    %276 = vector.load %arg7[%c192_254, %c16_255] : memref<224x32xf32, #tpu.memory_space<vmem>>, vector<32x13xf32>
    tpu.vector_store %arg7[%c192_254, %c16_255], %275 {strides = array<i32>} : memref<224x32xf32, #tpu.memory_space<vmem>>, vector<32x13xf32>,
    %c116 = arith.constant 116 : index
    %c0_256 = arith.constant 0 : index
    %277 = vector.load %arg2[%c116, %c0_256] : memref<318x224xf32, #tpu.memory_space<vmem>>, vector<10x224xf32>
    %c0_257 = arith.constant 0 : index
    %c0_258 = arith.constant 0 : index
    %278 = vector.load %arg7[%c0_257, %c0_258] : memref<224x32xf32, #tpu.memory_space<vmem>>, vector<224x32xf32>
    %cst_259 = arith.constant dense<0.000000e+00> : vector<10x32xf32>
    %279 = tpu.matmul %277, %278, %cst_259 {dimension_numbers = #tpu.dot_dimension_numbers<[1], [0], [0], [1], [0, 0, 1, 1], [], []>} : vector<10x224xf32>, vector<224x32xf32>, vector<10x32xf32> -> vector<10x32xf32>
    %c0_260 = arith.constant 0 : index
    %c17_261 = arith.constant 17 : index
    %280 = vector.load %arg1[%c0_260, %c17_261] : memref<56x48xf32, #tpu.memory_space<vmem>>, vector<10x1xf32>
    %281 = vector.broadcast %280 : vector<10x1xf32> to vector<10x32xf32>
    %282 = arith.addf %279, %281 : vector<10x32xf32>
    %c24 = arith.constant 24 : index
    %c0_262 = arith.constant 0 : index
    %283 = vector.load %arg4[%c24, %c0_262] : memref<34x32xf32, #tpu.memory_space<vmem>>, vector<10x32xf32>
    tpu.vector_store %arg4[%c24, %c0_262], %282 {strides = array<i32>} : memref<34x32xf32, #tpu.memory_space<vmem>>, vector<10x32xf32>,
    %c0_263 = arith.constant 0 : index
    %c0_264 = arith.constant 0 : index
    %284 = vector.load %arg4[%c0_263, %c0_264] : memref<34x32xf32, #tpu.memory_space<vmem>>, vector<34x32xf32>
    %cst_265 = arith.constant dense<0.000000e+00> : vector<34xf32>
    %285 = vector.multi_reduction <add>, %284, %cst_265 [1] : vector<34x32xf32> to vector<34xf32>
    %286 = vector.shape_cast %285 : vector<34xf32> to vector<34x1xf32>
    %cst_266 = arith.constant 3.200000e+01 : f32
    %287 = vector.broadcast %cst_266 : f32 to vector<34x1xf32>
    %288 = arith.divf %286, %287 : vector<34x1xf32>
    %289 = vector.broadcast %288 : vector<34x1xf32> to vector<34x32xf32>
    %290 = arith.subf %284, %289 : vector<34x32xf32>
    %291 = arith.mulf %290, %290 : vector<34x32xf32>
    %cst_267 = arith.constant dense<0.000000e+00> : vector<34xf32>
    %292 = vector.multi_reduction <add>, %291, %cst_267 [1] : vector<34x32xf32> to vector<34xf32>
    %293 = vector.shape_cast %292 : vector<34xf32> to vector<34x1xf32>
    %cst_268 = arith.constant 3.200000e+01 : f32
    %294 = vector.broadcast %cst_268 : f32 to vector<34x1xf32>
    %295 = arith.divf %293, %294 : vector<34x1xf32>
    %c0_269 = arith.constant 0 : index
    %c18_270 = arith.constant 18 : index
    %296 = vector.load %arg1[%c0_269, %c18_270] : memref<56x48xf32, #tpu.memory_space<vmem>>, vector<34x1xf32>
    %cst_271 = arith.constant 9.99999974E-6 : f32
    %297 = vector.broadcast %cst_271 : f32 to vector<34x1xf32>
    %298 = arith.addf %295, %297 : vector<34x1xf32>
    %299 = math.rsqrt %298 : vector<34x1xf32>
    %300 = arith.mulf %296, %299 : vector<34x1xf32>
    %c0_272 = arith.constant 0 : index
    %c19_273 = arith.constant 19 : index
    %301 = vector.load %arg1[%c0_272, %c19_273] : memref<56x48xf32, #tpu.memory_space<vmem>>, vector<34x1xf32>
    %302 = arith.mulf %288, %300 : vector<34x1xf32>
    %303 = arith.subf %301, %302 : vector<34x1xf32>
    %c0_274 = arith.constant 0 : index
    %c0_275 = arith.constant 0 : index
    %304 = vector.load %arg4[%c0_274, %c0_275] : memref<34x32xf32, #tpu.memory_space<vmem>>, vector<34x2xf32>
    %cst_276 = arith.constant dense<0.000000e+00> : vector<34xf32>
    %305 = vector.multi_reduction <add>, %304, %cst_276 [1] : vector<34x2xf32> to vector<34xf32>
    %306 = vector.shape_cast %305 : vector<34xf32> to vector<34x1xf32>
    %cst_277 = arith.constant 5.000000e-01 : f32
    %307 = vector.broadcast %cst_277 : f32 to vector<34x1xf32>
    %308 = arith.mulf %306, %307 : vector<34x1xf32>
    %c0_278 = arith.constant 0 : index
    %c0_279 = arith.constant 0 : index
    %309 = vector.load %arg11[%c0_278, %c0_279] : memref<56x16xf32, #tpu.memory_space<vmem>>, vector<34x1xf32>
    tpu.vector_store %arg11[%c0_278, %c0_279], %308 {strides = array<i32>} : memref<56x16xf32, #tpu.memory_space<vmem>>, vector<34x1xf32>,
    %c0_280 = arith.constant 0 : index
    %c2_281 = arith.constant 2 : index
    %310 = vector.load %arg4[%c0_280, %c2_281] : memref<34x32xf32, #tpu.memory_space<vmem>>, vector<34x2xf32>
    %cst_282 = arith.constant dense<0.000000e+00> : vector<34xf32>
    %311 = vector.multi_reduction <add>, %310, %cst_282 [1] : vector<34x2xf32> to vector<34xf32>
    %312 = vector.shape_cast %311 : vector<34xf32> to vector<34x1xf32>
    %cst_283 = arith.constant 5.000000e-01 : f32
    %313 = vector.broadcast %cst_283 : f32 to vector<34x1xf32>
    %314 = arith.mulf %312, %313 : vector<34x1xf32>
    %c0_284 = arith.constant 0 : index
    %c1_285 = arith.constant 1 : index
    %315 = vector.load %arg11[%c0_284, %c1_285] : memref<56x16xf32, #tpu.memory_space<vmem>>, vector<34x1xf32>
    tpu.vector_store %arg11[%c0_284, %c1_285], %314 {strides = array<i32>} : memref<56x16xf32, #tpu.memory_space<vmem>>, vector<34x1xf32>,
    %c0_286 = arith.constant 0 : index
    %c4_287 = arith.constant 4 : index
    %316 = vector.load %arg4[%c0_286, %c4_287] : memref<34x32xf32, #tpu.memory_space<vmem>>, vector<34x2xf32>
    %cst_288 = arith.constant dense<0.000000e+00> : vector<34xf32>
    %317 = vector.multi_reduction <add>, %316, %cst_288 [1] : vector<34x2xf32> to vector<34xf32>
    %318 = vector.shape_cast %317 : vector<34xf32> to vector<34x1xf32>
    %cst_289 = arith.constant 5.000000e-01 : f32
    %319 = vector.broadcast %cst_289 : f32 to vector<34x1xf32>
    %320 = arith.mulf %318, %319 : vector<34x1xf32>
    %c0_290 = arith.constant 0 : index
    %c2_291 = arith.constant 2 : index
    %321 = vector.load %arg11[%c0_290, %c2_291] : memref<56x16xf32, #tpu.memory_space<vmem>>, vector<34x1xf32>
    tpu.vector_store %arg11[%c0_290, %c2_291], %320 {strides = array<i32>} : memref<56x16xf32, #tpu.memory_space<vmem>>, vector<34x1xf32>,
    %c0_292 = arith.constant 0 : index
    %c6_293 = arith.constant 6 : index
    %322 = vector.load %arg4[%c0_292, %c6_293] : memref<34x32xf32, #tpu.memory_space<vmem>>, vector<34x2xf32>
    %cst_294 = arith.constant dense<0.000000e+00> : vector<34xf32>
    %323 = vector.multi_reduction <add>, %322, %cst_294 [1] : vector<34x2xf32> to vector<34xf32>
    %324 = vector.shape_cast %323 : vector<34xf32> to vector<34x1xf32>
    %cst_295 = arith.constant 5.000000e-01 : f32
    %325 = vector.broadcast %cst_295 : f32 to vector<34x1xf32>
    %326 = arith.mulf %324, %325 : vector<34x1xf32>
    %c0_296 = arith.constant 0 : index
    %c3_297 = arith.constant 3 : index
    %327 = vector.load %arg11[%c0_296, %c3_297] : memref<56x16xf32, #tpu.memory_space<vmem>>, vector<34x1xf32>
    tpu.vector_store %arg11[%c0_296, %c3_297], %326 {strides = array<i32>} : memref<56x16xf32, #tpu.memory_space<vmem>>, vector<34x1xf32>,
    %c0_298 = arith.constant 0 : index
    %c8_299 = arith.constant 8 : index
    %328 = vector.load %arg4[%c0_298, %c8_299] : memref<34x32xf32, #tpu.memory_space<vmem>>, vector<34x2xf32>
    %cst_300 = arith.constant dense<0.000000e+00> : vector<34xf32>
    %329 = vector.multi_reduction <add>, %328, %cst_300 [1] : vector<34x2xf32> to vector<34xf32>
    %330 = vector.shape_cast %329 : vector<34xf32> to vector<34x1xf32>
    %cst_301 = arith.constant 5.000000e-01 : f32
    %331 = vector.broadcast %cst_301 : f32 to vector<34x1xf32>
    %332 = arith.mulf %330, %331 : vector<34x1xf32>
    %c0_302 = arith.constant 0 : index
    %c4_303 = arith.constant 4 : index
    %333 = vector.load %arg11[%c0_302, %c4_303] : memref<56x16xf32, #tpu.memory_space<vmem>>, vector<34x1xf32>
    tpu.vector_store %arg11[%c0_302, %c4_303], %332 {strides = array<i32>} : memref<56x16xf32, #tpu.memory_space<vmem>>, vector<34x1xf32>,
    %c0_304 = arith.constant 0 : index
    %c10_305 = arith.constant 10 : index
    %334 = vector.load %arg4[%c0_304, %c10_305] : memref<34x32xf32, #tpu.memory_space<vmem>>, vector<34x2xf32>
    %cst_306 = arith.constant dense<0.000000e+00> : vector<34xf32>
    %335 = vector.multi_reduction <add>, %334, %cst_306 [1] : vector<34x2xf32> to vector<34xf32>
    %336 = vector.shape_cast %335 : vector<34xf32> to vector<34x1xf32>
    %cst_307 = arith.constant 5.000000e-01 : f32
    %337 = vector.broadcast %cst_307 : f32 to vector<34x1xf32>
    %338 = arith.mulf %336, %337 : vector<34x1xf32>
    %c0_308 = arith.constant 0 : index
    %c5_309 = arith.constant 5 : index
    %339 = vector.load %arg11[%c0_308, %c5_309] : memref<56x16xf32, #tpu.memory_space<vmem>>, vector<34x1xf32>
    tpu.vector_store %arg11[%c0_308, %c5_309], %338 {strides = array<i32>} : memref<56x16xf32, #tpu.memory_space<vmem>>, vector<34x1xf32>,
    %c0_310 = arith.constant 0 : index
    %c12_311 = arith.constant 12 : index
    %340 = vector.load %arg4[%c0_310, %c12_311] : memref<34x32xf32, #tpu.memory_space<vmem>>, vector<34x2xf32>
    %cst_312 = arith.constant dense<0.000000e+00> : vector<34xf32>
    %341 = vector.multi_reduction <add>, %340, %cst_312 [1] : vector<34x2xf32> to vector<34xf32>
    %342 = vector.shape_cast %341 : vector<34xf32> to vector<34x1xf32>
    %cst_313 = arith.constant 5.000000e-01 : f32
    %343 = vector.broadcast %cst_313 : f32 to vector<34x1xf32>
    %344 = arith.mulf %342, %343 : vector<34x1xf32>
    %c0_314 = arith.constant 0 : index
    %c6_315 = arith.constant 6 : index
    %345 = vector.load %arg11[%c0_314, %c6_315] : memref<56x16xf32, #tpu.memory_space<vmem>>, vector<34x1xf32>
    tpu.vector_store %arg11[%c0_314, %c6_315], %344 {strides = array<i32>} : memref<56x16xf32, #tpu.memory_space<vmem>>, vector<34x1xf32>,
    %c0_316 = arith.constant 0 : index
    %c14_317 = arith.constant 14 : index
    %346 = vector.load %arg4[%c0_316, %c14_317] : memref<34x32xf32, #tpu.memory_space<vmem>>, vector<34x2xf32>
    %cst_318 = arith.constant dense<0.000000e+00> : vector<34xf32>
    %347 = vector.multi_reduction <add>, %346, %cst_318 [1] : vector<34x2xf32> to vector<34xf32>
    %348 = vector.shape_cast %347 : vector<34xf32> to vector<34x1xf32>
    %cst_319 = arith.constant 5.000000e-01 : f32
    %349 = vector.broadcast %cst_319 : f32 to vector<34x1xf32>
    %350 = arith.mulf %348, %349 : vector<34x1xf32>
    %c0_320 = arith.constant 0 : index
    %c7_321 = arith.constant 7 : index
    %351 = vector.load %arg11[%c0_320, %c7_321] : memref<56x16xf32, #tpu.memory_space<vmem>>, vector<34x1xf32>
    tpu.vector_store %arg11[%c0_320, %c7_321], %350 {strides = array<i32>} : memref<56x16xf32, #tpu.memory_space<vmem>>, vector<34x1xf32>,
    %c0_322 = arith.constant 0 : index
    %c16_323 = arith.constant 16 : index
    %352 = vector.load %arg4[%c0_322, %c16_323] : memref<34x32xf32, #tpu.memory_space<vmem>>, vector<34x2xf32>
    %cst_324 = arith.constant dense<0.000000e+00> : vector<34xf32>
    %353 = vector.multi_reduction <add>, %352, %cst_324 [1] : vector<34x2xf32> to vector<34xf32>
    %354 = vector.shape_cast %353 : vector<34xf32> to vector<34x1xf32>
    %cst_325 = arith.constant 5.000000e-01 : f32
    %355 = vector.broadcast %cst_325 : f32 to vector<34x1xf32>
    %356 = arith.mulf %354, %355 : vector<34x1xf32>
    %c0_326 = arith.constant 0 : index
    %c8_327 = arith.constant 8 : index
    %357 = vector.load %arg11[%c0_326, %c8_327] : memref<56x16xf32, #tpu.memory_space<vmem>>, vector<34x1xf32>
    tpu.vector_store %arg11[%c0_326, %c8_327], %356 {strides = array<i32>} : memref<56x16xf32, #tpu.memory_space<vmem>>, vector<34x1xf32>,
    %c0_328 = arith.constant 0 : index
    %c18_329 = arith.constant 18 : index
    %358 = vector.load %arg4[%c0_328, %c18_329] : memref<34x32xf32, #tpu.memory_space<vmem>>, vector<34x2xf32>
    %cst_330 = arith.constant dense<0.000000e+00> : vector<34xf32>
    %359 = vector.multi_reduction <add>, %358, %cst_330 [1] : vector<34x2xf32> to vector<34xf32>
    %360 = vector.shape_cast %359 : vector<34xf32> to vector<34x1xf32>
    %cst_331 = arith.constant 5.000000e-01 : f32
    %361 = vector.broadcast %cst_331 : f32 to vector<34x1xf32>
    %362 = arith.mulf %360, %361 : vector<34x1xf32>
    %c0_332 = arith.constant 0 : index
    %c9_333 = arith.constant 9 : index
    %363 = vector.load %arg11[%c0_332, %c9_333] : memref<56x16xf32, #tpu.memory_space<vmem>>, vector<34x1xf32>
    tpu.vector_store %arg11[%c0_332, %c9_333], %362 {strides = array<i32>} : memref<56x16xf32, #tpu.memory_space<vmem>>, vector<34x1xf32>,
    %c0_334 = arith.constant 0 : index
    %c20 = arith.constant 20 : index
    %364 = vector.load %arg4[%c0_334, %c20] : memref<34x32xf32, #tpu.memory_space<vmem>>, vector<34x2xf32>
    %cst_335 = arith.constant dense<0.000000e+00> : vector<34xf32>
    %365 = vector.multi_reduction <add>, %364, %cst_335 [1] : vector<34x2xf32> to vector<34xf32>
    %366 = vector.shape_cast %365 : vector<34xf32> to vector<34x1xf32>
    %cst_336 = arith.constant 5.000000e-01 : f32
    %367 = vector.broadcast %cst_336 : f32 to vector<34x1xf32>
    %368 = arith.mulf %366, %367 : vector<34x1xf32>
    %c0_337 = arith.constant 0 : index
    %c10_338 = arith.constant 10 : index
    %369 = vector.load %arg11[%c0_337, %c10_338] : memref<56x16xf32, #tpu.memory_space<vmem>>, vector<34x1xf32>
    tpu.vector_store %arg11[%c0_337, %c10_338], %368 {strides = array<i32>} : memref<56x16xf32, #tpu.memory_space<vmem>>, vector<34x1xf32>,
    %c0_339 = arith.constant 0 : index
    %c22 = arith.constant 22 : index
    %370 = vector.load %arg4[%c0_339, %c22] : memref<34x32xf32, #tpu.memory_space<vmem>>, vector<34x2xf32>
    %cst_340 = arith.constant dense<0.000000e+00> : vector<34xf32>
    %371 = vector.multi_reduction <add>, %370, %cst_340 [1] : vector<34x2xf32> to vector<34xf32>
    %372 = vector.shape_cast %371 : vector<34xf32> to vector<34x1xf32>
    %cst_341 = arith.constant 5.000000e-01 : f32
    %373 = vector.broadcast %cst_341 : f32 to vector<34x1xf32>
    %374 = arith.mulf %372, %373 : vector<34x1xf32>
    %c0_342 = arith.constant 0 : index
    %c11_343 = arith.constant 11 : index
    %375 = vector.load %arg11[%c0_342, %c11_343] : memref<56x16xf32, #tpu.memory_space<vmem>>, vector<34x1xf32>
    tpu.vector_store %arg11[%c0_342, %c11_343], %374 {strides = array<i32>} : memref<56x16xf32, #tpu.memory_space<vmem>>, vector<34x1xf32>,
    %c0_344 = arith.constant 0 : index
    %c24_345 = arith.constant 24 : index
    %376 = vector.load %arg4[%c0_344, %c24_345] : memref<34x32xf32, #tpu.memory_space<vmem>>, vector<34x2xf32>
    %cst_346 = arith.constant dense<0.000000e+00> : vector<34xf32>
    %377 = vector.multi_reduction <add>, %376, %cst_346 [1] : vector<34x2xf32> to vector<34xf32>
    %378 = vector.shape_cast %377 : vector<34xf32> to vector<34x1xf32>
    %cst_347 = arith.constant 5.000000e-01 : f32
    %379 = vector.broadcast %cst_347 : f32 to vector<34x1xf32>
    %380 = arith.mulf %378, %379 : vector<34x1xf32>
    %c0_348 = arith.constant 0 : index
    %c12_349 = arith.constant 12 : index
    %381 = vector.load %arg11[%c0_348, %c12_349] : memref<56x16xf32, #tpu.memory_space<vmem>>, vector<34x1xf32>
    tpu.vector_store %arg11[%c0_348, %c12_349], %380 {strides = array<i32>} : memref<56x16xf32, #tpu.memory_space<vmem>>, vector<34x1xf32>,
    %c0_350 = arith.constant 0 : index
    %c26 = arith.constant 26 : index
    %382 = vector.load %arg4[%c0_350, %c26] : memref<34x32xf32, #tpu.memory_space<vmem>>, vector<34x2xf32>
    %cst_351 = arith.constant dense<0.000000e+00> : vector<34xf32>
    %383 = vector.multi_reduction <add>, %382, %cst_351 [1] : vector<34x2xf32> to vector<34xf32>
    %384 = vector.shape_cast %383 : vector<34xf32> to vector<34x1xf32>
    %cst_352 = arith.constant 5.000000e-01 : f32
    %385 = vector.broadcast %cst_352 : f32 to vector<34x1xf32>
    %386 = arith.mulf %384, %385 : vector<34x1xf32>
    %c0_353 = arith.constant 0 : index
    %c13_354 = arith.constant 13 : index
    %387 = vector.load %arg11[%c0_353, %c13_354] : memref<56x16xf32, #tpu.memory_space<vmem>>, vector<34x1xf32>
    tpu.vector_store %arg11[%c0_353, %c13_354], %386 {strides = array<i32>} : memref<56x16xf32, #tpu.memory_space<vmem>>, vector<34x1xf32>,
    %c0_355 = arith.constant 0 : index
    %c28 = arith.constant 28 : index
    %388 = vector.load %arg4[%c0_355, %c28] : memref<34x32xf32, #tpu.memory_space<vmem>>, vector<34x2xf32>
    %cst_356 = arith.constant dense<0.000000e+00> : vector<34xf32>
    %389 = vector.multi_reduction <add>, %388, %cst_356 [1] : vector<34x2xf32> to vector<34xf32>
    %390 = vector.shape_cast %389 : vector<34xf32> to vector<34x1xf32>
    %cst_357 = arith.constant 5.000000e-01 : f32
    %391 = vector.broadcast %cst_357 : f32 to vector<34x1xf32>
    %392 = arith.mulf %390, %391 : vector<34x1xf32>
    %c0_358 = arith.constant 0 : index
    %c14_359 = arith.constant 14 : index
    %393 = vector.load %arg11[%c0_358, %c14_359] : memref<56x16xf32, #tpu.memory_space<vmem>>, vector<34x1xf32>
    tpu.vector_store %arg11[%c0_358, %c14_359], %392 {strides = array<i32>} : memref<56x16xf32, #tpu.memory_space<vmem>>, vector<34x1xf32>,
    %c0_360 = arith.constant 0 : index
    %c30 = arith.constant 30 : index
    %394 = vector.load %arg4[%c0_360, %c30] : memref<34x32xf32, #tpu.memory_space<vmem>>, vector<34x2xf32>
    %cst_361 = arith.constant dense<0.000000e+00> : vector<34xf32>
    %395 = vector.multi_reduction <add>, %394, %cst_361 [1] : vector<34x2xf32> to vector<34xf32>
    %396 = vector.shape_cast %395 : vector<34xf32> to vector<34x1xf32>
    %cst_362 = arith.constant 5.000000e-01 : f32
    %397 = vector.broadcast %cst_362 : f32 to vector<34x1xf32>
    %398 = arith.mulf %396, %397 : vector<34x1xf32>
    %c0_363 = arith.constant 0 : index
    %c15_364 = arith.constant 15 : index
    %399 = vector.load %arg11[%c0_363, %c15_364] : memref<56x16xf32, #tpu.memory_space<vmem>>, vector<34x1xf32>
    tpu.vector_store %arg11[%c0_363, %c15_364], %398 {strides = array<i32>} : memref<56x16xf32, #tpu.memory_space<vmem>>, vector<34x1xf32>,
    %c0_365 = arith.constant 0 : index
    %c0_366 = arith.constant 0 : index
    %400 = vector.load %arg11[%c0_365, %c0_366] : memref<56x16xf32, #tpu.memory_space<vmem>>, vector<34x16xf32>
    %c126 = arith.constant 126 : index
    %c0_367 = arith.constant 0 : index
    %401 = vector.load %arg2[%c126, %c0_367] : memref<318x224xf32, #tpu.memory_space<vmem>>, vector<48x34xf32>
    %402 = vector.broadcast %300 : vector<34x1xf32> to vector<34x16xf32>
    %403 = arith.mulf %400, %402 : vector<34x16xf32>
    %404 = vector.broadcast %303 : vector<34x1xf32> to vector<34x16xf32>
    %405 = arith.addf %403, %404 : vector<34x16xf32>
    %cst_368 = arith.constant dense<0.000000e+00> : vector<48x16xf32>
    %406 = tpu.matmul %401, %405, %cst_368 {dimension_numbers = #tpu.dot_dimension_numbers<[1], [0], [0], [1], [0, 0, 1, 1], [], []>} : vector<48x34xf32>, vector<34x16xf32>, vector<48x16xf32> -> vector<48x16xf32>
    %c0_369 = arith.constant 0 : index
    %c20_370 = arith.constant 20 : index
    %407 = vector.load %arg1[%c0_369, %c20_370] : memref<56x48xf32, #tpu.memory_space<vmem>>, vector<48x1xf32>
    %408 = vector.broadcast %407 : vector<48x1xf32> to vector<48x16xf32>
    %409 = arith.addf %406, %408 : vector<48x16xf32>
    %c0_371 = arith.constant 0 : index
    %c0_372 = arith.constant 0 : index
    %410 = vector.load %arg5[%c0_371, %c0_372] : memref<56x16xf32, #tpu.memory_space<vmem>>, vector<48x16xf32>
    tpu.vector_store %arg5[%c0_371, %c0_372], %409 {strides = array<i32>} : memref<56x16xf32, #tpu.memory_space<vmem>>, vector<48x16xf32>,
    %cst_373 = arith.constant 0.000000e+00 : f32
    %411 = vector.broadcast %cst_373 : f32 to vector<60x16xf32>
    %c0_374 = arith.constant 0 : index
    %c0_375 = arith.constant 0 : index
    %412 = vector.load %arg8[%c0_374, %c0_375] : memref<60x16xf32, #tpu.memory_space<vmem>>, vector<60x16xf32>
    tpu.vector_store %arg8[%c0_374, %c0_375], %411 {strides = array<i32>} : memref<60x16xf32, #tpu.memory_space<vmem>>, vector<60x16xf32>,
    %c0_376 = arith.constant 0 : index
    %c0_377 = arith.constant 0 : index
    %413 = vector.load %arg5[%c0_376, %c0_377] : memref<56x16xf32, #tpu.memory_space<vmem>>, vector<48x16xf32>
    %cst_378 = arith.constant 0.000000e+00 : f32
    %414 = vector.broadcast %cst_378 : f32 to vector<48x16xf32>
    %415 = arith.maximumf %413, %414 : vector<48x16xf32>
    %cst_379 = arith.constant dense<0.000000e+00> : vector<48xf32>
    %416 = vector.multi_reduction <add>, %415, %cst_379 [1] : vector<48x16xf32> to vector<48xf32>
    %417 = vector.shape_cast %416 : vector<48xf32> to vector<48x1xf32>
    %cst_380 = arith.constant 1.600000e+01 : f32
    %418 = vector.broadcast %cst_380 : f32 to vector<48x1xf32>
    %419 = arith.divf %417, %418 : vector<48x1xf32>
    %420 = vector.broadcast %419 : vector<48x1xf32> to vector<48x16xf32>
    %421 = arith.subf %415, %420 : vector<48x16xf32>
    %422 = arith.mulf %421, %421 : vector<48x16xf32>
    %cst_381 = arith.constant dense<0.000000e+00> : vector<48xf32>
    %423 = vector.multi_reduction <add>, %422, %cst_381 [1] : vector<48x16xf32> to vector<48xf32>
    %424 = vector.shape_cast %423 : vector<48xf32> to vector<48x1xf32>
    %cst_382 = arith.constant 1.600000e+01 : f32
    %425 = vector.broadcast %cst_382 : f32 to vector<48x1xf32>
    %426 = arith.divf %424, %425 : vector<48x1xf32>
    %c0_383 = arith.constant 0 : index
    %c21 = arith.constant 21 : index
    %427 = vector.load %arg1[%c0_383, %c21] : memref<56x48xf32, #tpu.memory_space<vmem>>, vector<48x1xf32>
    %cst_384 = arith.constant 9.99999974E-6 : f32
    %428 = vector.broadcast %cst_384 : f32 to vector<48x1xf32>
    %429 = arith.addf %426, %428 : vector<48x1xf32>
    %430 = math.rsqrt %429 : vector<48x1xf32>
    %431 = arith.mulf %427, %430 : vector<48x1xf32>
    %c0_385 = arith.constant 0 : index
    %c22_386 = arith.constant 22 : index
    %432 = vector.load %arg1[%c0_385, %c22_386] : memref<56x48xf32, #tpu.memory_space<vmem>>, vector<48x1xf32>
    %433 = arith.mulf %419, %431 : vector<48x1xf32>
    %434 = arith.subf %432, %433 : vector<48x1xf32>
    %c174 = arith.constant 174 : index
    %c0_387 = arith.constant 0 : index
    %435 = vector.load %arg2[%c174, %c0_387] : memref<318x224xf32, #tpu.memory_space<vmem>>, vector<20x48xf32>
    %436 = vector.broadcast %431 : vector<48x1xf32> to vector<48x16xf32>
    %437 = arith.mulf %415, %436 : vector<48x16xf32>
    %438 = vector.broadcast %434 : vector<48x1xf32> to vector<48x16xf32>
    %439 = arith.addf %437, %438 : vector<48x16xf32>
    %cst_388 = arith.constant dense<0.000000e+00> : vector<20x16xf32>
    %440 = tpu.matmul %435, %439, %cst_388 {dimension_numbers = #tpu.dot_dimension_numbers<[1], [0], [0], [1], [0, 0, 1, 1], [], []>} : vector<20x48xf32>, vector<48x16xf32>, vector<20x16xf32> -> vector<20x16xf32>
    %c0_389 = arith.constant 0 : index
    %c23 = arith.constant 23 : index
    %441 = vector.load %arg1[%c0_389, %c23] : memref<56x48xf32, #tpu.memory_space<vmem>>, vector<20x1xf32>
    %442 = vector.broadcast %441 : vector<20x1xf32> to vector<20x16xf32>
    %443 = arith.addf %440, %442 : vector<20x16xf32>
    %cst_390 = arith.constant 0.000000e+00 : f32
    %444 = vector.broadcast %cst_390 : f32 to vector<20x16xf32>
    %445 = arith.maximumf %443, %444 : vector<20x16xf32>
    %cst_391 = arith.constant dense<0.000000e+00> : vector<20xf32>
    %446 = vector.multi_reduction <add>, %445, %cst_391 [1] : vector<20x16xf32> to vector<20xf32>
    %447 = vector.shape_cast %446 : vector<20xf32> to vector<20x1xf32>
    %cst_392 = arith.constant 1.600000e+01 : f32
    %448 = vector.broadcast %cst_392 : f32 to vector<20x1xf32>
    %449 = arith.divf %447, %448 : vector<20x1xf32>
    %450 = vector.broadcast %449 : vector<20x1xf32> to vector<20x16xf32>
    %451 = arith.subf %445, %450 : vector<20x16xf32>
    %452 = arith.mulf %451, %451 : vector<20x16xf32>
    %cst_393 = arith.constant dense<0.000000e+00> : vector<20xf32>
    %453 = vector.multi_reduction <add>, %452, %cst_393 [1] : vector<20x16xf32> to vector<20xf32>
    %454 = vector.shape_cast %453 : vector<20xf32> to vector<20x1xf32>
    %cst_394 = arith.constant 1.600000e+01 : f32
    %455 = vector.broadcast %cst_394 : f32 to vector<20x1xf32>
    %456 = arith.divf %454, %455 : vector<20x1xf32>
    %c0_395 = arith.constant 0 : index
    %c24_396 = arith.constant 24 : index
    %457 = vector.load %arg1[%c0_395, %c24_396] : memref<56x48xf32, #tpu.memory_space<vmem>>, vector<20x1xf32>
    %cst_397 = arith.constant 9.99999974E-6 : f32
    %458 = vector.broadcast %cst_397 : f32 to vector<20x1xf32>
    %459 = arith.addf %456, %458 : vector<20x1xf32>
    %460 = math.rsqrt %459 : vector<20x1xf32>
    %461 = arith.mulf %457, %460 : vector<20x1xf32>
    %c0_398 = arith.constant 0 : index
    %c25 = arith.constant 25 : index
    %462 = vector.load %arg1[%c0_398, %c25] : memref<56x48xf32, #tpu.memory_space<vmem>>, vector<20x1xf32>
    %463 = arith.mulf %449, %461 : vector<20x1xf32>
    %464 = arith.subf %462, %463 : vector<20x1xf32>
    %465 = vector.broadcast %461 : vector<20x1xf32> to vector<20x16xf32>
    %466 = arith.mulf %445, %465 : vector<20x16xf32>
    %467 = vector.broadcast %464 : vector<20x1xf32> to vector<20x16xf32>
    %468 = arith.addf %466, %467 : vector<20x16xf32>
    %c0_399 = arith.constant 0 : index
    %c0_400 = arith.constant 0 : index
    %469 = vector.load %arg10[%c0_399, %c0_400] : memref<32x32xf32, #tpu.memory_space<vmem>>, vector<20x16xf32>
    tpu.vector_store %arg10[%c0_399, %c0_400], %468 {strides = array<i32>} : memref<32x32xf32, #tpu.memory_space<vmem>>, vector<20x16xf32>,
    %c0_401 = arith.constant 0 : index
    %c0_402 = arith.constant 0 : index
    %470 = vector.load %arg10[%c0_401, %c0_402] : memref<32x32xf32, #tpu.memory_space<vmem>>, vector<20x7xf32>
    %c0_403 = arith.constant 0 : index
    %c1_404 = arith.constant 1 : index
    %471 = vector.load %arg8[%c0_403, %c1_404] : memref<60x16xf32, #tpu.memory_space<vmem>>, vector<20x7xf32>
    tpu.vector_store %arg8[%c0_403, %c1_404], %470 {strides = array<i32>} : memref<60x16xf32, #tpu.memory_space<vmem>>, vector<20x7xf32>,
    %c0_405 = arith.constant 0 : index
    %c8_406 = arith.constant 8 : index
    %472 = vector.load %arg10[%c0_405, %c8_406] : memref<32x32xf32, #tpu.memory_space<vmem>>, vector<20x7xf32>
    %c0_407 = arith.constant 0 : index
    %c9_408 = arith.constant 9 : index
    %473 = vector.load %arg8[%c0_407, %c9_408] : memref<60x16xf32, #tpu.memory_space<vmem>>, vector<20x7xf32>
    tpu.vector_store %arg8[%c0_407, %c9_408], %472 {strides = array<i32>} : memref<60x16xf32, #tpu.memory_space<vmem>>, vector<20x7xf32>,
    %c0_409 = arith.constant 0 : index
    %c0_410 = arith.constant 0 : index
    %474 = vector.load %arg10[%c0_409, %c0_410] : memref<32x32xf32, #tpu.memory_space<vmem>>, vector<20x8xf32>
    %c20_411 = arith.constant 20 : index
    %c0_412 = arith.constant 0 : index
    %475 = vector.load %arg8[%c20_411, %c0_412] : memref<60x16xf32, #tpu.memory_space<vmem>>, vector<20x8xf32>
    tpu.vector_store %arg8[%c20_411, %c0_412], %474 {strides = array<i32>} : memref<60x16xf32, #tpu.memory_space<vmem>>, vector<20x8xf32>,
    %c0_413 = arith.constant 0 : index
    %c8_414 = arith.constant 8 : index
    %476 = vector.load %arg10[%c0_413, %c8_414] : memref<32x32xf32, #tpu.memory_space<vmem>>, vector<20x8xf32>
    %c20_415 = arith.constant 20 : index
    %c8_416 = arith.constant 8 : index
    %477 = vector.load %arg8[%c20_415, %c8_416] : memref<60x16xf32, #tpu.memory_space<vmem>>, vector<20x8xf32>
    tpu.vector_store %arg8[%c20_415, %c8_416], %476 {strides = array<i32>} : memref<60x16xf32, #tpu.memory_space<vmem>>, vector<20x8xf32>,
    %c0_417 = arith.constant 0 : index
    %c1_418 = arith.constant 1 : index
    %478 = vector.load %arg10[%c0_417, %c1_418] : memref<32x32xf32, #tpu.memory_space<vmem>>, vector<20x7xf32>
    %c40 = arith.constant 40 : index
    %c0_419 = arith.constant 0 : index
    %479 = vector.load %arg8[%c40, %c0_419] : memref<60x16xf32, #tpu.memory_space<vmem>>, vector<20x7xf32>
    tpu.vector_store %arg8[%c40, %c0_419], %478 {strides = array<i32>} : memref<60x16xf32, #tpu.memory_space<vmem>>, vector<20x7xf32>,
    %c0_420 = arith.constant 0 : index
    %c9_421 = arith.constant 9 : index
    %480 = vector.load %arg10[%c0_420, %c9_421] : memref<32x32xf32, #tpu.memory_space<vmem>>, vector<20x7xf32>
    %c40_422 = arith.constant 40 : index
    %c8_423 = arith.constant 8 : index
    %481 = vector.load %arg8[%c40_422, %c8_423] : memref<60x16xf32, #tpu.memory_space<vmem>>, vector<20x7xf32>
    tpu.vector_store %arg8[%c40_422, %c8_423], %480 {strides = array<i32>} : memref<60x16xf32, #tpu.memory_space<vmem>>, vector<20x7xf32>,
    %c194 = arith.constant 194 : index
    %c0_424 = arith.constant 0 : index
    %482 = vector.load %arg2[%c194, %c0_424] : memref<318x224xf32, #tpu.memory_space<vmem>>, vector<4x60xf32>
    %c0_425 = arith.constant 0 : index
    %c0_426 = arith.constant 0 : index
    %483 = vector.load %arg8[%c0_425, %c0_426] : memref<60x16xf32, #tpu.memory_space<vmem>>, vector<60x16xf32>
    %cst_427 = arith.constant dense<0.000000e+00> : vector<4x16xf32>
    %484 = tpu.matmul %482, %483, %cst_427 {dimension_numbers = #tpu.dot_dimension_numbers<[1], [0], [0], [1], [0, 0, 1, 1], [], []>} : vector<4x60xf32>, vector<60x16xf32>, vector<4x16xf32> -> vector<4x16xf32>
    %c0_428 = arith.constant 0 : index
    %c26_429 = arith.constant 26 : index
    %485 = vector.load %arg1[%c0_428, %c26_429] : memref<56x48xf32, #tpu.memory_space<vmem>>, vector<4x1xf32>
    %486 = vector.broadcast %485 : vector<4x1xf32> to vector<4x16xf32>
    %487 = arith.addf %484, %486 : vector<4x16xf32>
    %c48 = arith.constant 48 : index
    %c0_430 = arith.constant 0 : index
    %488 = vector.load %arg5[%c48, %c0_430] : memref<56x16xf32, #tpu.memory_space<vmem>>, vector<4x16xf32>
    tpu.vector_store %arg5[%c48, %c0_430], %487 {strides = array<i32>} : memref<56x16xf32, #tpu.memory_space<vmem>>, vector<4x16xf32>,
    %c0_431 = arith.constant 0 : index
    %c0_432 = arith.constant 0 : index
    %489 = vector.load %arg5[%c0_431, %c0_432] : memref<56x16xf32, #tpu.memory_space<vmem>>, vector<52x16xf32>
    %cst_433 = arith.constant 0.000000e+00 : f32
    %490 = vector.broadcast %cst_433 : f32 to vector<52x16xf32>
    %491 = arith.maximumf %489, %490 : vector<52x16xf32>
    %cst_434 = arith.constant dense<0.000000e+00> : vector<52xf32>
    %492 = vector.multi_reduction <add>, %491, %cst_434 [1] : vector<52x16xf32> to vector<52xf32>
    %493 = vector.shape_cast %492 : vector<52xf32> to vector<52x1xf32>
    %cst_435 = arith.constant 1.600000e+01 : f32
    %494 = vector.broadcast %cst_435 : f32 to vector<52x1xf32>
    %495 = arith.divf %493, %494 : vector<52x1xf32>
    %496 = vector.broadcast %495 : vector<52x1xf32> to vector<52x16xf32>
    %497 = arith.subf %491, %496 : vector<52x16xf32>
    %498 = arith.mulf %497, %497 : vector<52x16xf32>
    %cst_436 = arith.constant dense<0.000000e+00> : vector<52xf32>
    %499 = vector.multi_reduction <add>, %498, %cst_436 [1] : vector<52x16xf32> to vector<52xf32>
    %500 = vector.shape_cast %499 : vector<52xf32> to vector<52x1xf32>
    %cst_437 = arith.constant 1.600000e+01 : f32
    %501 = vector.broadcast %cst_437 : f32 to vector<52x1xf32>
    %502 = arith.divf %500, %501 : vector<52x1xf32>
    %c0_438 = arith.constant 0 : index
    %c27 = arith.constant 27 : index
    %503 = vector.load %arg1[%c0_438, %c27] : memref<56x48xf32, #tpu.memory_space<vmem>>, vector<52x1xf32>
    %cst_439 = arith.constant 9.99999974E-6 : f32
    %504 = vector.broadcast %cst_439 : f32 to vector<52x1xf32>
    %505 = arith.addf %502, %504 : vector<52x1xf32>
    %506 = math.rsqrt %505 : vector<52x1xf32>
    %507 = arith.mulf %503, %506 : vector<52x1xf32>
    %c0_440 = arith.constant 0 : index
    %c28_441 = arith.constant 28 : index
    %508 = vector.load %arg1[%c0_440, %c28_441] : memref<56x48xf32, #tpu.memory_space<vmem>>, vector<52x1xf32>
    %509 = arith.mulf %495, %507 : vector<52x1xf32>
    %510 = arith.subf %508, %509 : vector<52x1xf32>
    %c198 = arith.constant 198 : index
    %c0_442 = arith.constant 0 : index
    %511 = vector.load %arg2[%c198, %c0_442] : memref<318x224xf32, #tpu.memory_space<vmem>>, vector<20x52xf32>
    %512 = vector.broadcast %507 : vector<52x1xf32> to vector<52x16xf32>
    %513 = arith.mulf %491, %512 : vector<52x16xf32>
    %514 = vector.broadcast %510 : vector<52x1xf32> to vector<52x16xf32>
    %515 = arith.addf %513, %514 : vector<52x16xf32>
    %cst_443 = arith.constant dense<0.000000e+00> : vector<20x16xf32>
    %516 = tpu.matmul %511, %515, %cst_443 {dimension_numbers = #tpu.dot_dimension_numbers<[1], [0], [0], [1], [0, 0, 1, 1], [], []>} : vector<20x52xf32>, vector<52x16xf32>, vector<20x16xf32> -> vector<20x16xf32>
    %c0_444 = arith.constant 0 : index
    %c29 = arith.constant 29 : index
    %517 = vector.load %arg1[%c0_444, %c29] : memref<56x48xf32, #tpu.memory_space<vmem>>, vector<20x1xf32>
    %518 = vector.broadcast %517 : vector<20x1xf32> to vector<20x16xf32>
    %519 = arith.addf %516, %518 : vector<20x16xf32>
    %cst_445 = arith.constant 0.000000e+00 : f32
    %520 = vector.broadcast %cst_445 : f32 to vector<20x16xf32>
    %521 = arith.maximumf %519, %520 : vector<20x16xf32>
    %cst_446 = arith.constant dense<0.000000e+00> : vector<20xf32>
    %522 = vector.multi_reduction <add>, %521, %cst_446 [1] : vector<20x16xf32> to vector<20xf32>
    %523 = vector.shape_cast %522 : vector<20xf32> to vector<20x1xf32>
    %cst_447 = arith.constant 1.600000e+01 : f32
    %524 = vector.broadcast %cst_447 : f32 to vector<20x1xf32>
    %525 = arith.divf %523, %524 : vector<20x1xf32>
    %526 = vector.broadcast %525 : vector<20x1xf32> to vector<20x16xf32>
    %527 = arith.subf %521, %526 : vector<20x16xf32>
    %528 = arith.mulf %527, %527 : vector<20x16xf32>
    %cst_448 = arith.constant dense<0.000000e+00> : vector<20xf32>
    %529 = vector.multi_reduction <add>, %528, %cst_448 [1] : vector<20x16xf32> to vector<20xf32>
    %530 = vector.shape_cast %529 : vector<20xf32> to vector<20x1xf32>
    %cst_449 = arith.constant 1.600000e+01 : f32
    %531 = vector.broadcast %cst_449 : f32 to vector<20x1xf32>
    %532 = arith.divf %530, %531 : vector<20x1xf32>
    %c0_450 = arith.constant 0 : index
    %c30_451 = arith.constant 30 : index
    %533 = vector.load %arg1[%c0_450, %c30_451] : memref<56x48xf32, #tpu.memory_space<vmem>>, vector<20x1xf32>
    %cst_452 = arith.constant 9.99999974E-6 : f32
    %534 = vector.broadcast %cst_452 : f32 to vector<20x1xf32>
    %535 = arith.addf %532, %534 : vector<20x1xf32>
    %536 = math.rsqrt %535 : vector<20x1xf32>
    %537 = arith.mulf %533, %536 : vector<20x1xf32>
    %c0_453 = arith.constant 0 : index
    %c31 = arith.constant 31 : index
    %538 = vector.load %arg1[%c0_453, %c31] : memref<56x48xf32, #tpu.memory_space<vmem>>, vector<20x1xf32>
    %539 = arith.mulf %525, %537 : vector<20x1xf32>
    %540 = arith.subf %538, %539 : vector<20x1xf32>
    %541 = vector.broadcast %537 : vector<20x1xf32> to vector<20x16xf32>
    %542 = arith.mulf %521, %541 : vector<20x16xf32>
    %543 = vector.broadcast %540 : vector<20x1xf32> to vector<20x16xf32>
    %544 = arith.addf %542, %543 : vector<20x16xf32>
    %c0_454 = arith.constant 0 : index
    %c0_455 = arith.constant 0 : index
    %545 = vector.load %arg10[%c0_454, %c0_455] : memref<32x32xf32, #tpu.memory_space<vmem>>, vector<20x16xf32>
    tpu.vector_store %arg10[%c0_454, %c0_455], %544 {strides = array<i32>} : memref<32x32xf32, #tpu.memory_space<vmem>>, vector<20x16xf32>,
    %c0_456 = arith.constant 0 : index
    %c0_457 = arith.constant 0 : index
    %546 = vector.load %arg10[%c0_456, %c0_457] : memref<32x32xf32, #tpu.memory_space<vmem>>, vector<20x7xf32>
    %c0_458 = arith.constant 0 : index
    %c1_459 = arith.constant 1 : index
    %547 = vector.load %arg8[%c0_458, %c1_459] : memref<60x16xf32, #tpu.memory_space<vmem>>, vector<20x7xf32>
    tpu.vector_store %arg8[%c0_458, %c1_459], %546 {strides = array<i32>} : memref<60x16xf32, #tpu.memory_space<vmem>>, vector<20x7xf32>,
    %c0_460 = arith.constant 0 : index
    %c8_461 = arith.constant 8 : index
    %548 = vector.load %arg10[%c0_460, %c8_461] : memref<32x32xf32, #tpu.memory_space<vmem>>, vector<20x7xf32>
    %c0_462 = arith.constant 0 : index
    %c9_463 = arith.constant 9 : index
    %549 = vector.load %arg8[%c0_462, %c9_463] : memref<60x16xf32, #tpu.memory_space<vmem>>, vector<20x7xf32>
    tpu.vector_store %arg8[%c0_462, %c9_463], %548 {strides = array<i32>} : memref<60x16xf32, #tpu.memory_space<vmem>>, vector<20x7xf32>,
    %c0_464 = arith.constant 0 : index
    %c0_465 = arith.constant 0 : index
    %550 = vector.load %arg10[%c0_464, %c0_465] : memref<32x32xf32, #tpu.memory_space<vmem>>, vector<20x8xf32>
    %c20_466 = arith.constant 20 : index
    %c0_467 = arith.constant 0 : index
    %551 = vector.load %arg8[%c20_466, %c0_467] : memref<60x16xf32, #tpu.memory_space<vmem>>, vector<20x8xf32>
    tpu.vector_store %arg8[%c20_466, %c0_467], %550 {strides = array<i32>} : memref<60x16xf32, #tpu.memory_space<vmem>>, vector<20x8xf32>,
    %c0_468 = arith.constant 0 : index
    %c8_469 = arith.constant 8 : index
    %552 = vector.load %arg10[%c0_468, %c8_469] : memref<32x32xf32, #tpu.memory_space<vmem>>, vector<20x8xf32>
    %c20_470 = arith.constant 20 : index
    %c8_471 = arith.constant 8 : index
    %553 = vector.load %arg8[%c20_470, %c8_471] : memref<60x16xf32, #tpu.memory_space<vmem>>, vector<20x8xf32>
    tpu.vector_store %arg8[%c20_470, %c8_471], %552 {strides = array<i32>} : memref<60x16xf32, #tpu.memory_space<vmem>>, vector<20x8xf32>,
    %c0_472 = arith.constant 0 : index
    %c1_473 = arith.constant 1 : index
    %554 = vector.load %arg10[%c0_472, %c1_473] : memref<32x32xf32, #tpu.memory_space<vmem>>, vector<20x7xf32>
    %c40_474 = arith.constant 40 : index
    %c0_475 = arith.constant 0 : index
    %555 = vector.load %arg8[%c40_474, %c0_475] : memref<60x16xf32, #tpu.memory_space<vmem>>, vector<20x7xf32>
    tpu.vector_store %arg8[%c40_474, %c0_475], %554 {strides = array<i32>} : memref<60x16xf32, #tpu.memory_space<vmem>>, vector<20x7xf32>,
    %c0_476 = arith.constant 0 : index
    %c9_477 = arith.constant 9 : index
    %556 = vector.load %arg10[%c0_476, %c9_477] : memref<32x32xf32, #tpu.memory_space<vmem>>, vector<20x7xf32>
    %c40_478 = arith.constant 40 : index
    %c8_479 = arith.constant 8 : index
    %557 = vector.load %arg8[%c40_478, %c8_479] : memref<60x16xf32, #tpu.memory_space<vmem>>, vector<20x7xf32>
    tpu.vector_store %arg8[%c40_478, %c8_479], %556 {strides = array<i32>} : memref<60x16xf32, #tpu.memory_space<vmem>>, vector<20x7xf32>,
    %c218 = arith.constant 218 : index
    %c0_480 = arith.constant 0 : index
    %558 = vector.load %arg2[%c218, %c0_480] : memref<318x224xf32, #tpu.memory_space<vmem>>, vector<4x60xf32>
    %c0_481 = arith.constant 0 : index
    %c0_482 = arith.constant 0 : index
    %559 = vector.load %arg8[%c0_481, %c0_482] : memref<60x16xf32, #tpu.memory_space<vmem>>, vector<60x16xf32>
    %cst_483 = arith.constant dense<0.000000e+00> : vector<4x16xf32>
    %560 = tpu.matmul %558, %559, %cst_483 {dimension_numbers = #tpu.dot_dimension_numbers<[1], [0], [0], [1], [0, 0, 1, 1], [], []>} : vector<4x60xf32>, vector<60x16xf32>, vector<4x16xf32> -> vector<4x16xf32>
    %c0_484 = arith.constant 0 : index
    %c32_485 = arith.constant 32 : index
    %561 = vector.load %arg1[%c0_484, %c32_485] : memref<56x48xf32, #tpu.memory_space<vmem>>, vector<4x1xf32>
    %562 = vector.broadcast %561 : vector<4x1xf32> to vector<4x16xf32>
    %563 = arith.addf %560, %562 : vector<4x16xf32>
    %c52 = arith.constant 52 : index
    %c0_486 = arith.constant 0 : index
    %564 = vector.load %arg5[%c52, %c0_486] : memref<56x16xf32, #tpu.memory_space<vmem>>, vector<4x16xf32>
    tpu.vector_store %arg5[%c52, %c0_486], %563 {strides = array<i32>} : memref<56x16xf32, #tpu.memory_space<vmem>>, vector<4x16xf32>,
    %c0_487 = arith.constant 0 : index
    %c0_488 = arith.constant 0 : index
    %565 = vector.load %arg5[%c0_487, %c0_488] : memref<56x16xf32, #tpu.memory_space<vmem>>, vector<56x16xf32>
    %cst_489 = arith.constant dense<0.000000e+00> : vector<56xf32>
    %566 = vector.multi_reduction <add>, %565, %cst_489 [1] : vector<56x16xf32> to vector<56xf32>
    %567 = vector.shape_cast %566 : vector<56xf32> to vector<56x1xf32>
    %cst_490 = arith.constant 1.600000e+01 : f32
    %568 = vector.broadcast %cst_490 : f32 to vector<56x1xf32>
    %569 = arith.divf %567, %568 : vector<56x1xf32>
    %570 = vector.broadcast %569 : vector<56x1xf32> to vector<56x16xf32>
    %571 = arith.subf %565, %570 : vector<56x16xf32>
    %572 = arith.mulf %571, %571 : vector<56x16xf32>
    %cst_491 = arith.constant dense<0.000000e+00> : vector<56xf32>
    %573 = vector.multi_reduction <add>, %572, %cst_491 [1] : vector<56x16xf32> to vector<56xf32>
    %574 = vector.shape_cast %573 : vector<56xf32> to vector<56x1xf32>
    %cst_492 = arith.constant 1.600000e+01 : f32
    %575 = vector.broadcast %cst_492 : f32 to vector<56x1xf32>
    %576 = arith.divf %574, %575 : vector<56x1xf32>
    %c0_493 = arith.constant 0 : index
    %c33 = arith.constant 33 : index
    %577 = vector.load %arg1[%c0_493, %c33] : memref<56x48xf32, #tpu.memory_space<vmem>>, vector<56x1xf32>
    %cst_494 = arith.constant 9.99999974E-6 : f32
    %578 = vector.broadcast %cst_494 : f32 to vector<56x1xf32>
    %579 = arith.addf %576, %578 : vector<56x1xf32>
    %580 = math.rsqrt %579 : vector<56x1xf32>
    %581 = arith.mulf %577, %580 : vector<56x1xf32>
    %c0_495 = arith.constant 0 : index
    %c34 = arith.constant 34 : index
    %582 = vector.load %arg1[%c0_495, %c34] : memref<56x48xf32, #tpu.memory_space<vmem>>, vector<56x1xf32>
    %583 = arith.mulf %569, %581 : vector<56x1xf32>
    %584 = arith.subf %582, %583 : vector<56x1xf32>
    %c0_496 = arith.constant 0 : index
    %c0_497 = arith.constant 0 : index
    %585 = vector.load %arg5[%c0_496, %c0_497] : memref<56x16xf32, #tpu.memory_space<vmem>>, vector<56x2xf32>
    %cst_498 = arith.constant dense<0.000000e+00> : vector<56xf32>
    %586 = vector.multi_reduction <add>, %585, %cst_498 [1] : vector<56x2xf32> to vector<56xf32>
    %587 = vector.shape_cast %586 : vector<56xf32> to vector<56x1xf32>
    %cst_499 = arith.constant 5.000000e-01 : f32
    %588 = vector.broadcast %cst_499 : f32 to vector<56x1xf32>
    %589 = arith.mulf %587, %588 : vector<56x1xf32>
    %c0_500 = arith.constant 0 : index
    %c0_501 = arith.constant 0 : index
    %590 = vector.load %arg11[%c0_500, %c0_501] : memref<56x16xf32, #tpu.memory_space<vmem>>, vector<56x1xf32>
    tpu.vector_store %arg11[%c0_500, %c0_501], %589 {strides = array<i32>} : memref<56x16xf32, #tpu.memory_space<vmem>>, vector<56x1xf32>,
    %c0_502 = arith.constant 0 : index
    %c2_503 = arith.constant 2 : index
    %591 = vector.load %arg5[%c0_502, %c2_503] : memref<56x16xf32, #tpu.memory_space<vmem>>, vector<56x2xf32>
    %cst_504 = arith.constant dense<0.000000e+00> : vector<56xf32>
    %592 = vector.multi_reduction <add>, %591, %cst_504 [1] : vector<56x2xf32> to vector<56xf32>
    %593 = vector.shape_cast %592 : vector<56xf32> to vector<56x1xf32>
    %cst_505 = arith.constant 5.000000e-01 : f32
    %594 = vector.broadcast %cst_505 : f32 to vector<56x1xf32>
    %595 = arith.mulf %593, %594 : vector<56x1xf32>
    %c0_506 = arith.constant 0 : index
    %c1_507 = arith.constant 1 : index
    %596 = vector.load %arg11[%c0_506, %c1_507] : memref<56x16xf32, #tpu.memory_space<vmem>>, vector<56x1xf32>
    tpu.vector_store %arg11[%c0_506, %c1_507], %595 {strides = array<i32>} : memref<56x16xf32, #tpu.memory_space<vmem>>, vector<56x1xf32>,
    %c0_508 = arith.constant 0 : index
    %c4_509 = arith.constant 4 : index
    %597 = vector.load %arg5[%c0_508, %c4_509] : memref<56x16xf32, #tpu.memory_space<vmem>>, vector<56x2xf32>
    %cst_510 = arith.constant dense<0.000000e+00> : vector<56xf32>
    %598 = vector.multi_reduction <add>, %597, %cst_510 [1] : vector<56x2xf32> to vector<56xf32>
    %599 = vector.shape_cast %598 : vector<56xf32> to vector<56x1xf32>
    %cst_511 = arith.constant 5.000000e-01 : f32
    %600 = vector.broadcast %cst_511 : f32 to vector<56x1xf32>
    %601 = arith.mulf %599, %600 : vector<56x1xf32>
    %c0_512 = arith.constant 0 : index
    %c2_513 = arith.constant 2 : index
    %602 = vector.load %arg11[%c0_512, %c2_513] : memref<56x16xf32, #tpu.memory_space<vmem>>, vector<56x1xf32>
    tpu.vector_store %arg11[%c0_512, %c2_513], %601 {strides = array<i32>} : memref<56x16xf32, #tpu.memory_space<vmem>>, vector<56x1xf32>,
    %c0_514 = arith.constant 0 : index
    %c6_515 = arith.constant 6 : index
    %603 = vector.load %arg5[%c0_514, %c6_515] : memref<56x16xf32, #tpu.memory_space<vmem>>, vector<56x2xf32>
    %cst_516 = arith.constant dense<0.000000e+00> : vector<56xf32>
    %604 = vector.multi_reduction <add>, %603, %cst_516 [1] : vector<56x2xf32> to vector<56xf32>
    %605 = vector.shape_cast %604 : vector<56xf32> to vector<56x1xf32>
    %cst_517 = arith.constant 5.000000e-01 : f32
    %606 = vector.broadcast %cst_517 : f32 to vector<56x1xf32>
    %607 = arith.mulf %605, %606 : vector<56x1xf32>
    %c0_518 = arith.constant 0 : index
    %c3_519 = arith.constant 3 : index
    %608 = vector.load %arg11[%c0_518, %c3_519] : memref<56x16xf32, #tpu.memory_space<vmem>>, vector<56x1xf32>
    tpu.vector_store %arg11[%c0_518, %c3_519], %607 {strides = array<i32>} : memref<56x16xf32, #tpu.memory_space<vmem>>, vector<56x1xf32>,
    %c0_520 = arith.constant 0 : index
    %c8_521 = arith.constant 8 : index
    %609 = vector.load %arg5[%c0_520, %c8_521] : memref<56x16xf32, #tpu.memory_space<vmem>>, vector<56x2xf32>
    %cst_522 = arith.constant dense<0.000000e+00> : vector<56xf32>
    %610 = vector.multi_reduction <add>, %609, %cst_522 [1] : vector<56x2xf32> to vector<56xf32>
    %611 = vector.shape_cast %610 : vector<56xf32> to vector<56x1xf32>
    %cst_523 = arith.constant 5.000000e-01 : f32
    %612 = vector.broadcast %cst_523 : f32 to vector<56x1xf32>
    %613 = arith.mulf %611, %612 : vector<56x1xf32>
    %c0_524 = arith.constant 0 : index
    %c4_525 = arith.constant 4 : index
    %614 = vector.load %arg11[%c0_524, %c4_525] : memref<56x16xf32, #tpu.memory_space<vmem>>, vector<56x1xf32>
    tpu.vector_store %arg11[%c0_524, %c4_525], %613 {strides = array<i32>} : memref<56x16xf32, #tpu.memory_space<vmem>>, vector<56x1xf32>,
    %c0_526 = arith.constant 0 : index
    %c10_527 = arith.constant 10 : index
    %615 = vector.load %arg5[%c0_526, %c10_527] : memref<56x16xf32, #tpu.memory_space<vmem>>, vector<56x2xf32>
    %cst_528 = arith.constant dense<0.000000e+00> : vector<56xf32>
    %616 = vector.multi_reduction <add>, %615, %cst_528 [1] : vector<56x2xf32> to vector<56xf32>
    %617 = vector.shape_cast %616 : vector<56xf32> to vector<56x1xf32>
    %cst_529 = arith.constant 5.000000e-01 : f32
    %618 = vector.broadcast %cst_529 : f32 to vector<56x1xf32>
    %619 = arith.mulf %617, %618 : vector<56x1xf32>
    %c0_530 = arith.constant 0 : index
    %c5_531 = arith.constant 5 : index
    %620 = vector.load %arg11[%c0_530, %c5_531] : memref<56x16xf32, #tpu.memory_space<vmem>>, vector<56x1xf32>
    tpu.vector_store %arg11[%c0_530, %c5_531], %619 {strides = array<i32>} : memref<56x16xf32, #tpu.memory_space<vmem>>, vector<56x1xf32>,
    %c0_532 = arith.constant 0 : index
    %c12_533 = arith.constant 12 : index
    %621 = vector.load %arg5[%c0_532, %c12_533] : memref<56x16xf32, #tpu.memory_space<vmem>>, vector<56x2xf32>
    %cst_534 = arith.constant dense<0.000000e+00> : vector<56xf32>
    %622 = vector.multi_reduction <add>, %621, %cst_534 [1] : vector<56x2xf32> to vector<56xf32>
    %623 = vector.shape_cast %622 : vector<56xf32> to vector<56x1xf32>
    %cst_535 = arith.constant 5.000000e-01 : f32
    %624 = vector.broadcast %cst_535 : f32 to vector<56x1xf32>
    %625 = arith.mulf %623, %624 : vector<56x1xf32>
    %c0_536 = arith.constant 0 : index
    %c6_537 = arith.constant 6 : index
    %626 = vector.load %arg11[%c0_536, %c6_537] : memref<56x16xf32, #tpu.memory_space<vmem>>, vector<56x1xf32>
    tpu.vector_store %arg11[%c0_536, %c6_537], %625 {strides = array<i32>} : memref<56x16xf32, #tpu.memory_space<vmem>>, vector<56x1xf32>,
    %c0_538 = arith.constant 0 : index
    %c14_539 = arith.constant 14 : index
    %627 = vector.load %arg5[%c0_538, %c14_539] : memref<56x16xf32, #tpu.memory_space<vmem>>, vector<56x2xf32>
    %cst_540 = arith.constant dense<0.000000e+00> : vector<56xf32>
    %628 = vector.multi_reduction <add>, %627, %cst_540 [1] : vector<56x2xf32> to vector<56xf32>
    %629 = vector.shape_cast %628 : vector<56xf32> to vector<56x1xf32>
    %cst_541 = arith.constant 5.000000e-01 : f32
    %630 = vector.broadcast %cst_541 : f32 to vector<56x1xf32>
    %631 = arith.mulf %629, %630 : vector<56x1xf32>
    %c0_542 = arith.constant 0 : index
    %c7_543 = arith.constant 7 : index
    %632 = vector.load %arg11[%c0_542, %c7_543] : memref<56x16xf32, #tpu.memory_space<vmem>>, vector<56x1xf32>
    tpu.vector_store %arg11[%c0_542, %c7_543], %631 {strides = array<i32>} : memref<56x16xf32, #tpu.memory_space<vmem>>, vector<56x1xf32>,
    %c0_544 = arith.constant 0 : index
    %c0_545 = arith.constant 0 : index
    %633 = vector.load %arg11[%c0_544, %c0_545] : memref<56x16xf32, #tpu.memory_space<vmem>>, vector<56x8xf32>
    %c222 = arith.constant 222 : index
    %c0_546 = arith.constant 0 : index
    %634 = vector.load %arg2[%c222, %c0_546] : memref<318x224xf32, #tpu.memory_space<vmem>>, vector<48x56xf32>
    %635 = vector.broadcast %581 : vector<56x1xf32> to vector<56x8xf32>
    %636 = arith.mulf %633, %635 : vector<56x8xf32>
    %637 = vector.broadcast %584 : vector<56x1xf32> to vector<56x8xf32>
    %638 = arith.addf %636, %637 : vector<56x8xf32>
    %cst_547 = arith.constant dense<0.000000e+00> : vector<48x8xf32>
    %639 = tpu.matmul %634, %638, %cst_547 {dimension_numbers = #tpu.dot_dimension_numbers<[1], [0], [0], [1], [0, 0, 1, 1], [], []>} : vector<48x56xf32>, vector<56x8xf32>, vector<48x8xf32> -> vector<48x8xf32>
    %c0_548 = arith.constant 0 : index
    %c35 = arith.constant 35 : index
    %640 = vector.load %arg1[%c0_548, %c35] : memref<56x48xf32, #tpu.memory_space<vmem>>, vector<48x1xf32>
    %641 = vector.broadcast %640 : vector<48x1xf32> to vector<48x8xf32>
    %642 = arith.addf %639, %641 : vector<48x8xf32>
    %c0_549 = arith.constant 0 : index
    %c0_550 = arith.constant 0 : index
    %643 = vector.load %arg6[%c0_549, %c0_550] : memref<56x8xf32, #tpu.memory_space<vmem>>, vector<48x8xf32>
    tpu.vector_store %arg6[%c0_549, %c0_550], %642 {strides = array<i32>} : memref<56x8xf32, #tpu.memory_space<vmem>>, vector<48x8xf32>,
    %cst_551 = arith.constant 0.000000e+00 : f32
    %644 = vector.broadcast %cst_551 : f32 to vector<60x8xf32>
    %c0_552 = arith.constant 0 : index
    %c0_553 = arith.constant 0 : index
    %645 = vector.load %arg9[%c0_552, %c0_553] : memref<60x8xf32, #tpu.memory_space<vmem>>, vector<60x8xf32>
    tpu.vector_store %arg9[%c0_552, %c0_553], %644 {strides = array<i32>} : memref<60x8xf32, #tpu.memory_space<vmem>>, vector<60x8xf32>,
    %c0_554 = arith.constant 0 : index
    %c0_555 = arith.constant 0 : index
    %646 = vector.load %arg6[%c0_554, %c0_555] : memref<56x8xf32, #tpu.memory_space<vmem>>, vector<48x8xf32>
    %cst_556 = arith.constant 0.000000e+00 : f32
    %647 = vector.broadcast %cst_556 : f32 to vector<48x8xf32>
    %648 = arith.maximumf %646, %647 : vector<48x8xf32>
    %cst_557 = arith.constant dense<0.000000e+00> : vector<48xf32>
    %649 = vector.multi_reduction <add>, %648, %cst_557 [1] : vector<48x8xf32> to vector<48xf32>
    %650 = vector.shape_cast %649 : vector<48xf32> to vector<48x1xf32>
    %cst_558 = arith.constant 8.000000e+00 : f32
    %651 = vector.broadcast %cst_558 : f32 to vector<48x1xf32>
    %652 = arith.divf %650, %651 : vector<48x1xf32>
    %653 = vector.broadcast %652 : vector<48x1xf32> to vector<48x8xf32>
    %654 = arith.subf %648, %653 : vector<48x8xf32>
    %655 = arith.mulf %654, %654 : vector<48x8xf32>
    %cst_559 = arith.constant dense<0.000000e+00> : vector<48xf32>
    %656 = vector.multi_reduction <add>, %655, %cst_559 [1] : vector<48x8xf32> to vector<48xf32>
    %657 = vector.shape_cast %656 : vector<48xf32> to vector<48x1xf32>
    %cst_560 = arith.constant 8.000000e+00 : f32
    %658 = vector.broadcast %cst_560 : f32 to vector<48x1xf32>
    %659 = arith.divf %657, %658 : vector<48x1xf32>
    %c0_561 = arith.constant 0 : index
    %c36 = arith.constant 36 : index
    %660 = vector.load %arg1[%c0_561, %c36] : memref<56x48xf32, #tpu.memory_space<vmem>>, vector<48x1xf32>
    %cst_562 = arith.constant 9.99999974E-6 : f32
    %661 = vector.broadcast %cst_562 : f32 to vector<48x1xf32>
    %662 = arith.addf %659, %661 : vector<48x1xf32>
    %663 = math.rsqrt %662 : vector<48x1xf32>
    %664 = arith.mulf %660, %663 : vector<48x1xf32>
    %c0_563 = arith.constant 0 : index
    %c37 = arith.constant 37 : index
    %665 = vector.load %arg1[%c0_563, %c37] : memref<56x48xf32, #tpu.memory_space<vmem>>, vector<48x1xf32>
    %666 = arith.mulf %652, %664 : vector<48x1xf32>
    %667 = arith.subf %665, %666 : vector<48x1xf32>
    %c270 = arith.constant 270 : index
    %c0_564 = arith.constant 0 : index
    %668 = vector.load %arg2[%c270, %c0_564] : memref<318x224xf32, #tpu.memory_space<vmem>>, vector<20x48xf32>
    %669 = vector.broadcast %664 : vector<48x1xf32> to vector<48x8xf32>
    %670 = arith.mulf %648, %669 : vector<48x8xf32>
    %671 = vector.broadcast %667 : vector<48x1xf32> to vector<48x8xf32>
    %672 = arith.addf %670, %671 : vector<48x8xf32>
    %cst_565 = arith.constant dense<0.000000e+00> : vector<20x8xf32>
    %673 = tpu.matmul %668, %672, %cst_565 {dimension_numbers = #tpu.dot_dimension_numbers<[1], [0], [0], [1], [0, 0, 1, 1], [], []>} : vector<20x48xf32>, vector<48x8xf32>, vector<20x8xf32> -> vector<20x8xf32>
    %c0_566 = arith.constant 0 : index
    %c38 = arith.constant 38 : index
    %674 = vector.load %arg1[%c0_566, %c38] : memref<56x48xf32, #tpu.memory_space<vmem>>, vector<20x1xf32>
    %675 = vector.broadcast %674 : vector<20x1xf32> to vector<20x8xf32>
    %676 = arith.addf %673, %675 : vector<20x8xf32>
    %cst_567 = arith.constant 0.000000e+00 : f32
    %677 = vector.broadcast %cst_567 : f32 to vector<20x8xf32>
    %678 = arith.maximumf %676, %677 : vector<20x8xf32>
    %cst_568 = arith.constant dense<0.000000e+00> : vector<20xf32>
    %679 = vector.multi_reduction <add>, %678, %cst_568 [1] : vector<20x8xf32> to vector<20xf32>
    %680 = vector.shape_cast %679 : vector<20xf32> to vector<20x1xf32>
    %cst_569 = arith.constant 8.000000e+00 : f32
    %681 = vector.broadcast %cst_569 : f32 to vector<20x1xf32>
    %682 = arith.divf %680, %681 : vector<20x1xf32>
    %683 = vector.broadcast %682 : vector<20x1xf32> to vector<20x8xf32>
    %684 = arith.subf %678, %683 : vector<20x8xf32>
    %685 = arith.mulf %684, %684 : vector<20x8xf32>
    %cst_570 = arith.constant dense<0.000000e+00> : vector<20xf32>
    %686 = vector.multi_reduction <add>, %685, %cst_570 [1] : vector<20x8xf32> to vector<20xf32>
    %687 = vector.shape_cast %686 : vector<20xf32> to vector<20x1xf32>
    %cst_571 = arith.constant 8.000000e+00 : f32
    %688 = vector.broadcast %cst_571 : f32 to vector<20x1xf32>
    %689 = arith.divf %687, %688 : vector<20x1xf32>
    %c0_572 = arith.constant 0 : index
    %c39 = arith.constant 39 : index
    %690 = vector.load %arg1[%c0_572, %c39] : memref<56x48xf32, #tpu.memory_space<vmem>>, vector<20x1xf32>
    %cst_573 = arith.constant 9.99999974E-6 : f32
    %691 = vector.broadcast %cst_573 : f32 to vector<20x1xf32>
    %692 = arith.addf %689, %691 : vector<20x1xf32>
    %693 = math.rsqrt %692 : vector<20x1xf32>
    %694 = arith.mulf %690, %693 : vector<20x1xf32>
    %c0_574 = arith.constant 0 : index
    %c40_575 = arith.constant 40 : index
    %695 = vector.load %arg1[%c0_574, %c40_575] : memref<56x48xf32, #tpu.memory_space<vmem>>, vector<20x1xf32>
    %696 = arith.mulf %682, %694 : vector<20x1xf32>
    %697 = arith.subf %695, %696 : vector<20x1xf32>
    %698 = vector.broadcast %694 : vector<20x1xf32> to vector<20x8xf32>
    %699 = arith.mulf %678, %698 : vector<20x8xf32>
    %700 = vector.broadcast %697 : vector<20x1xf32> to vector<20x8xf32>
    %701 = arith.addf %699, %700 : vector<20x8xf32>
    %c0_576 = arith.constant 0 : index
    %c0_577 = arith.constant 0 : index
    %702 = vector.load %arg10[%c0_576, %c0_577] : memref<32x32xf32, #tpu.memory_space<vmem>>, vector<20x8xf32>
    tpu.vector_store %arg10[%c0_576, %c0_577], %701 {strides = array<i32>} : memref<32x32xf32, #tpu.memory_space<vmem>>, vector<20x8xf32>,
    %c0_578 = arith.constant 0 : index
    %c0_579 = arith.constant 0 : index
    %703 = vector.load %arg10[%c0_578, %c0_579] : memref<32x32xf32, #tpu.memory_space<vmem>>, vector<20x3xf32>
    %c0_580 = arith.constant 0 : index
    %c1_581 = arith.constant 1 : index
    %704 = vector.load %arg9[%c0_580, %c1_581] : memref<60x8xf32, #tpu.memory_space<vmem>>, vector<20x3xf32>
    tpu.vector_store %arg9[%c0_580, %c1_581], %703 {strides = array<i32>} : memref<60x8xf32, #tpu.memory_space<vmem>>, vector<20x3xf32>,
    %c0_582 = arith.constant 0 : index
    %c4_583 = arith.constant 4 : index
    %705 = vector.load %arg10[%c0_582, %c4_583] : memref<32x32xf32, #tpu.memory_space<vmem>>, vector<20x3xf32>
    %c0_584 = arith.constant 0 : index
    %c5_585 = arith.constant 5 : index
    %706 = vector.load %arg9[%c0_584, %c5_585] : memref<60x8xf32, #tpu.memory_space<vmem>>, vector<20x3xf32>
    tpu.vector_store %arg9[%c0_584, %c5_585], %705 {strides = array<i32>} : memref<60x8xf32, #tpu.memory_space<vmem>>, vector<20x3xf32>,
    %c0_586 = arith.constant 0 : index
    %c0_587 = arith.constant 0 : index
    %707 = vector.load %arg10[%c0_586, %c0_587] : memref<32x32xf32, #tpu.memory_space<vmem>>, vector<20x4xf32>
    %c20_588 = arith.constant 20 : index
    %c0_589 = arith.constant 0 : index
    %708 = vector.load %arg9[%c20_588, %c0_589] : memref<60x8xf32, #tpu.memory_space<vmem>>, vector<20x4xf32>
    tpu.vector_store %arg9[%c20_588, %c0_589], %707 {strides = array<i32>} : memref<60x8xf32, #tpu.memory_space<vmem>>, vector<20x4xf32>,
    %c0_590 = arith.constant 0 : index
    %c4_591 = arith.constant 4 : index
    %709 = vector.load %arg10[%c0_590, %c4_591] : memref<32x32xf32, #tpu.memory_space<vmem>>, vector<20x4xf32>
    %c20_592 = arith.constant 20 : index
    %c4_593 = arith.constant 4 : index
    %710 = vector.load %arg9[%c20_592, %c4_593] : memref<60x8xf32, #tpu.memory_space<vmem>>, vector<20x4xf32>
    tpu.vector_store %arg9[%c20_592, %c4_593], %709 {strides = array<i32>} : memref<60x8xf32, #tpu.memory_space<vmem>>, vector<20x4xf32>,
    %c0_594 = arith.constant 0 : index
    %c1_595 = arith.constant 1 : index
    %711 = vector.load %arg10[%c0_594, %c1_595] : memref<32x32xf32, #tpu.memory_space<vmem>>, vector<20x3xf32>
    %c40_596 = arith.constant 40 : index
    %c0_597 = arith.constant 0 : index
    %712 = vector.load %arg9[%c40_596, %c0_597] : memref<60x8xf32, #tpu.memory_space<vmem>>, vector<20x3xf32>
    tpu.vector_store %arg9[%c40_596, %c0_597], %711 {strides = array<i32>} : memref<60x8xf32, #tpu.memory_space<vmem>>, vector<20x3xf32>,
    %c0_598 = arith.constant 0 : index
    %c5_599 = arith.constant 5 : index
    %713 = vector.load %arg10[%c0_598, %c5_599] : memref<32x32xf32, #tpu.memory_space<vmem>>, vector<20x3xf32>
    %c40_600 = arith.constant 40 : index
    %c4_601 = arith.constant 4 : index
    %714 = vector.load %arg9[%c40_600, %c4_601] : memref<60x8xf32, #tpu.memory_space<vmem>>, vector<20x3xf32>
    tpu.vector_store %arg9[%c40_600, %c4_601], %713 {strides = array<i32>} : memref<60x8xf32, #tpu.memory_space<vmem>>, vector<20x3xf32>,
    %c290 = arith.constant 290 : index
    %c0_602 = arith.constant 0 : index
    %715 = vector.load %arg2[%c290, %c0_602] : memref<318x224xf32, #tpu.memory_space<vmem>>, vector<4x60xf32>
    %c0_603 = arith.constant 0 : index
    %c0_604 = arith.constant 0 : index
    %716 = vector.load %arg9[%c0_603, %c0_604] : memref<60x8xf32, #tpu.memory_space<vmem>>, vector<60x8xf32>
    %cst_605 = arith.constant dense<0.000000e+00> : vector<4x8xf32>
    %717 = tpu.matmul %715, %716, %cst_605 {dimension_numbers = #tpu.dot_dimension_numbers<[1], [0], [0], [1], [0, 0, 1, 1], [], []>} : vector<4x60xf32>, vector<60x8xf32>, vector<4x8xf32> -> vector<4x8xf32>
    %c0_606 = arith.constant 0 : index
    %c41 = arith.constant 41 : index
    %718 = vector.load %arg1[%c0_606, %c41] : memref<56x48xf32, #tpu.memory_space<vmem>>, vector<4x1xf32>
    %719 = vector.broadcast %718 : vector<4x1xf32> to vector<4x8xf32>
    %720 = arith.addf %717, %719 : vector<4x8xf32>
    %c48_607 = arith.constant 48 : index
    %c0_608 = arith.constant 0 : index
    %721 = vector.load %arg6[%c48_607, %c0_608] : memref<56x8xf32, #tpu.memory_space<vmem>>, vector<4x8xf32>
    tpu.vector_store %arg6[%c48_607, %c0_608], %720 {strides = array<i32>} : memref<56x8xf32, #tpu.memory_space<vmem>>, vector<4x8xf32>,
    %c0_609 = arith.constant 0 : index
    %c0_610 = arith.constant 0 : index
    %722 = vector.load %arg6[%c0_609, %c0_610] : memref<56x8xf32, #tpu.memory_space<vmem>>, vector<52x8xf32>
    %cst_611 = arith.constant 0.000000e+00 : f32
    %723 = vector.broadcast %cst_611 : f32 to vector<52x8xf32>
    %724 = arith.maximumf %722, %723 : vector<52x8xf32>
    %cst_612 = arith.constant dense<0.000000e+00> : vector<52xf32>
    %725 = vector.multi_reduction <add>, %724, %cst_612 [1] : vector<52x8xf32> to vector<52xf32>
    %726 = vector.shape_cast %725 : vector<52xf32> to vector<52x1xf32>
    %cst_613 = arith.constant 8.000000e+00 : f32
    %727 = vector.broadcast %cst_613 : f32 to vector<52x1xf32>
    %728 = arith.divf %726, %727 : vector<52x1xf32>
    %729 = vector.broadcast %728 : vector<52x1xf32> to vector<52x8xf32>
    %730 = arith.subf %724, %729 : vector<52x8xf32>
    %731 = arith.mulf %730, %730 : vector<52x8xf32>
    %cst_614 = arith.constant dense<0.000000e+00> : vector<52xf32>
    %732 = vector.multi_reduction <add>, %731, %cst_614 [1] : vector<52x8xf32> to vector<52xf32>
    %733 = vector.shape_cast %732 : vector<52xf32> to vector<52x1xf32>
    %cst_615 = arith.constant 8.000000e+00 : f32
    %734 = vector.broadcast %cst_615 : f32 to vector<52x1xf32>
    %735 = arith.divf %733, %734 : vector<52x1xf32>
    %c0_616 = arith.constant 0 : index
    %c42_617 = arith.constant 42 : index
    %736 = vector.load %arg1[%c0_616, %c42_617] : memref<56x48xf32, #tpu.memory_space<vmem>>, vector<52x1xf32>
    %cst_618 = arith.constant 9.99999974E-6 : f32
    %737 = vector.broadcast %cst_618 : f32 to vector<52x1xf32>
    %738 = arith.addf %735, %737 : vector<52x1xf32>
    %739 = math.rsqrt %738 : vector<52x1xf32>
    %740 = arith.mulf %736, %739 : vector<52x1xf32>
    %c0_619 = arith.constant 0 : index
    %c43 = arith.constant 43 : index
    %741 = vector.load %arg1[%c0_619, %c43] : memref<56x48xf32, #tpu.memory_space<vmem>>, vector<52x1xf32>
    %742 = arith.mulf %728, %740 : vector<52x1xf32>
    %743 = arith.subf %741, %742 : vector<52x1xf32>
    %c294 = arith.constant 294 : index
    %c0_620 = arith.constant 0 : index
    %744 = vector.load %arg2[%c294, %c0_620] : memref<318x224xf32, #tpu.memory_space<vmem>>, vector<20x52xf32>
    %745 = vector.broadcast %740 : vector<52x1xf32> to vector<52x8xf32>
    %746 = arith.mulf %724, %745 : vector<52x8xf32>
    %747 = vector.broadcast %743 : vector<52x1xf32> to vector<52x8xf32>
    %748 = arith.addf %746, %747 : vector<52x8xf32>
    %cst_621 = arith.constant dense<0.000000e+00> : vector<20x8xf32>
    %749 = tpu.matmul %744, %748, %cst_621 {dimension_numbers = #tpu.dot_dimension_numbers<[1], [0], [0], [1], [0, 0, 1, 1], [], []>} : vector<20x52xf32>, vector<52x8xf32>, vector<20x8xf32> -> vector<20x8xf32>
    %c0_622 = arith.constant 0 : index
    %c44 = arith.constant 44 : index
    %750 = vector.load %arg1[%c0_622, %c44] : memref<56x48xf32, #tpu.memory_space<vmem>>, vector<20x1xf32>
    %751 = vector.broadcast %750 : vector<20x1xf32> to vector<20x8xf32>
    %752 = arith.addf %749, %751 : vector<20x8xf32>
    %cst_623 = arith.constant 0.000000e+00 : f32
    %753 = vector.broadcast %cst_623 : f32 to vector<20x8xf32>
    %754 = arith.maximumf %752, %753 : vector<20x8xf32>
    %cst_624 = arith.constant dense<0.000000e+00> : vector<20xf32>
    %755 = vector.multi_reduction <add>, %754, %cst_624 [1] : vector<20x8xf32> to vector<20xf32>
    %756 = vector.shape_cast %755 : vector<20xf32> to vector<20x1xf32>
    %cst_625 = arith.constant 8.000000e+00 : f32
    %757 = vector.broadcast %cst_625 : f32 to vector<20x1xf32>
    %758 = arith.divf %756, %757 : vector<20x1xf32>
    %759 = vector.broadcast %758 : vector<20x1xf32> to vector<20x8xf32>
    %760 = arith.subf %754, %759 : vector<20x8xf32>
    %761 = arith.mulf %760, %760 : vector<20x8xf32>
    %cst_626 = arith.constant dense<0.000000e+00> : vector<20xf32>
    %762 = vector.multi_reduction <add>, %761, %cst_626 [1] : vector<20x8xf32> to vector<20xf32>
    %763 = vector.shape_cast %762 : vector<20xf32> to vector<20x1xf32>
    %cst_627 = arith.constant 8.000000e+00 : f32
    %764 = vector.broadcast %cst_627 : f32 to vector<20x1xf32>
    %765 = arith.divf %763, %764 : vector<20x1xf32>
    %c0_628 = arith.constant 0 : index
    %c45 = arith.constant 45 : index
    %766 = vector.load %arg1[%c0_628, %c45] : memref<56x48xf32, #tpu.memory_space<vmem>>, vector<20x1xf32>
    %cst_629 = arith.constant 9.99999974E-6 : f32
    %767 = vector.broadcast %cst_629 : f32 to vector<20x1xf32>
    %768 = arith.addf %765, %767 : vector<20x1xf32>
    %769 = math.rsqrt %768 : vector<20x1xf32>
    %770 = arith.mulf %766, %769 : vector<20x1xf32>
    %c0_630 = arith.constant 0 : index
    %c46 = arith.constant 46 : index
    %771 = vector.load %arg1[%c0_630, %c46] : memref<56x48xf32, #tpu.memory_space<vmem>>, vector<20x1xf32>
    %772 = arith.mulf %758, %770 : vector<20x1xf32>
    %773 = arith.subf %771, %772 : vector<20x1xf32>
    %774 = vector.broadcast %770 : vector<20x1xf32> to vector<20x8xf32>
    %775 = arith.mulf %754, %774 : vector<20x8xf32>
    %776 = vector.broadcast %773 : vector<20x1xf32> to vector<20x8xf32>
    %777 = arith.addf %775, %776 : vector<20x8xf32>
    %c0_631 = arith.constant 0 : index
    %c0_632 = arith.constant 0 : index
    %778 = vector.load %arg10[%c0_631, %c0_632] : memref<32x32xf32, #tpu.memory_space<vmem>>, vector<20x8xf32>
    tpu.vector_store %arg10[%c0_631, %c0_632], %777 {strides = array<i32>} : memref<32x32xf32, #tpu.memory_space<vmem>>, vector<20x8xf32>,
    %c0_633 = arith.constant 0 : index
    %c0_634 = arith.constant 0 : index
    %779 = vector.load %arg10[%c0_633, %c0_634] : memref<32x32xf32, #tpu.memory_space<vmem>>, vector<20x3xf32>
    %c0_635 = arith.constant 0 : index
    %c1_636 = arith.constant 1 : index
    %780 = vector.load %arg9[%c0_635, %c1_636] : memref<60x8xf32, #tpu.memory_space<vmem>>, vector<20x3xf32>
    tpu.vector_store %arg9[%c0_635, %c1_636], %779 {strides = array<i32>} : memref<60x8xf32, #tpu.memory_space<vmem>>, vector<20x3xf32>,
    %c0_637 = arith.constant 0 : index
    %c4_638 = arith.constant 4 : index
    %781 = vector.load %arg10[%c0_637, %c4_638] : memref<32x32xf32, #tpu.memory_space<vmem>>, vector<20x3xf32>
    %c0_639 = arith.constant 0 : index
    %c5_640 = arith.constant 5 : index
    %782 = vector.load %arg9[%c0_639, %c5_640] : memref<60x8xf32, #tpu.memory_space<vmem>>, vector<20x3xf32>
    tpu.vector_store %arg9[%c0_639, %c5_640], %781 {strides = array<i32>} : memref<60x8xf32, #tpu.memory_space<vmem>>, vector<20x3xf32>,
    %c0_641 = arith.constant 0 : index
    %c0_642 = arith.constant 0 : index
    %783 = vector.load %arg10[%c0_641, %c0_642] : memref<32x32xf32, #tpu.memory_space<vmem>>, vector<20x4xf32>
    %c20_643 = arith.constant 20 : index
    %c0_644 = arith.constant 0 : index
    %784 = vector.load %arg9[%c20_643, %c0_644] : memref<60x8xf32, #tpu.memory_space<vmem>>, vector<20x4xf32>
    tpu.vector_store %arg9[%c20_643, %c0_644], %783 {strides = array<i32>} : memref<60x8xf32, #tpu.memory_space<vmem>>, vector<20x4xf32>,
    %c0_645 = arith.constant 0 : index
    %c4_646 = arith.constant 4 : index
    %785 = vector.load %arg10[%c0_645, %c4_646] : memref<32x32xf32, #tpu.memory_space<vmem>>, vector<20x4xf32>
    %c20_647 = arith.constant 20 : index
    %c4_648 = arith.constant 4 : index
    %786 = vector.load %arg9[%c20_647, %c4_648] : memref<60x8xf32, #tpu.memory_space<vmem>>, vector<20x4xf32>
    tpu.vector_store %arg9[%c20_647, %c4_648], %785 {strides = array<i32>} : memref<60x8xf32, #tpu.memory_space<vmem>>, vector<20x4xf32>,
    %c0_649 = arith.constant 0 : index
    %c1_650 = arith.constant 1 : index
    %787 = vector.load %arg10[%c0_649, %c1_650] : memref<32x32xf32, #tpu.memory_space<vmem>>, vector<20x3xf32>
    %c40_651 = arith.constant 40 : index
    %c0_652 = arith.constant 0 : index
    %788 = vector.load %arg9[%c40_651, %c0_652] : memref<60x8xf32, #tpu.memory_space<vmem>>, vector<20x3xf32>
    tpu.vector_store %arg9[%c40_651, %c0_652], %787 {strides = array<i32>} : memref<60x8xf32, #tpu.memory_space<vmem>>, vector<20x3xf32>,
    %c0_653 = arith.constant 0 : index
    %c5_654 = arith.constant 5 : index
    %789 = vector.load %arg10[%c0_653, %c5_654] : memref<32x32xf32, #tpu.memory_space<vmem>>, vector<20x3xf32>
    %c40_655 = arith.constant 40 : index
    %c4_656 = arith.constant 4 : index
    %790 = vector.load %arg9[%c40_655, %c4_656] : memref<60x8xf32, #tpu.memory_space<vmem>>, vector<20x3xf32>
    tpu.vector_store %arg9[%c40_655, %c4_656], %789 {strides = array<i32>} : memref<60x8xf32, #tpu.memory_space<vmem>>, vector<20x3xf32>,
    %c314 = arith.constant 314 : index
    %c0_657 = arith.constant 0 : index
    %791 = vector.load %arg2[%c314, %c0_657] : memref<318x224xf32, #tpu.memory_space<vmem>>, vector<4x60xf32>
    %c0_658 = arith.constant 0 : index
    %c0_659 = arith.constant 0 : index
    %792 = vector.load %arg9[%c0_658, %c0_659] : memref<60x8xf32, #tpu.memory_space<vmem>>, vector<60x8xf32>
    %cst_660 = arith.constant dense<0.000000e+00> : vector<4x8xf32>
    %793 = tpu.matmul %791, %792, %cst_660 {dimension_numbers = #tpu.dot_dimension_numbers<[1], [0], [0], [1], [0, 0, 1, 1], [], []>} : vector<4x60xf32>, vector<60x8xf32>, vector<4x8xf32> -> vector<4x8xf32>
    %c0_661 = arith.constant 0 : index
    %c47 = arith.constant 47 : index
    %794 = vector.load %arg1[%c0_661, %c47] : memref<56x48xf32, #tpu.memory_space<vmem>>, vector<4x1xf32>
    %795 = vector.broadcast %794 : vector<4x1xf32> to vector<4x8xf32>
    %796 = arith.addf %793, %795 : vector<4x8xf32>
    %c52_662 = arith.constant 52 : index
    %c0_663 = arith.constant 0 : index
    %797 = vector.load %arg6[%c52_662, %c0_663] : memref<56x8xf32, #tpu.memory_space<vmem>>, vector<4x8xf32>
    tpu.vector_store %arg6[%c52_662, %c0_663], %796 {strides = array<i32>} : memref<56x8xf32, #tpu.memory_space<vmem>>, vector<4x8xf32>,
    %c0_664 = arith.constant 0 : index
    %c0_665 = arith.constant 0 : index
    %798 = vector.load %arg6[%c0_664, %c0_665] : memref<56x8xf32, #tpu.memory_space<vmem>>, vector<56x4xf32>
    %c0_666 = arith.constant 0 : index
    %c0_667 = arith.constant 0 : index
    %c0_668 = arith.constant 0 : index
    %799 = vector.load %arg3[%c0_666, %c0_667, %c0_668] : memref<2x56x4xf32, #tpu.memory_space<vmem>>, vector<1x56x4xf32>
    %800 = vector.shape_cast %799 : vector<1x56x4xf32> to vector<56x4xf32>
    %801 = vector.shape_cast %798 : vector<56x4xf32> to vector<1x56x4xf32>
    tpu.vector_store %arg3[%c0_666, %c0_667, %c0_668], %801 {strides = array<i32>} : memref<2x56x4xf32, #tpu.memory_space<vmem>>, vector<1x56x4xf32>,
    %c0_669 = arith.constant 0 : index
    %c4_670 = arith.constant 4 : index
    %802 = vector.load %arg6[%c0_669, %c4_670] : memref<56x8xf32, #tpu.memory_space<vmem>>, vector<56x4xf32>
    %c1_671 = arith.constant 1 : index
    %c0_672 = arith.constant 0 : index
    %c0_673 = arith.constant 0 : index
    %803 = vector.load %arg3[%c1_671, %c0_672, %c0_673] : memref<2x56x4xf32, #tpu.memory_space<vmem>>, vector<1x56x4xf32>
    %804 = vector.shape_cast %803 : vector<1x56x4xf32> to vector<56x4xf32>
    %805 = vector.shape_cast %802 : vector<56x4xf32> to vector<1x56x4xf32>
    tpu.vector_store %arg3[%c1_671, %c0_672, %c0_673], %805 {strides = array<i32>} : memref<2x56x4xf32, #tpu.memory_space<vmem>>, vector<1x56x4xf32>,
    return
  }
}

</mosaic_0001>

<llo_original>
// kernel: fwd.1
$region0: #{fwd.1}
  #allocation0 [shape = 'u32[]', space=smem, size = 0x4, offset = 0x4, fixed_abs, tag = 'smem constant byte address 0x4 - core index']
  #allocation1 [shape = 'u32[144,128]{1,0:T(1,128)}', space=vmem, size = 0x12000, scoped, tag = 'internal scratch']
  #allocation2 [shape = 'f32[34,32]{1,0:T(8,128)}', space=vmem, size = 0x5000, scoped, tag = 'scratch operand']
  #allocation3 [shape = 'f32[56,16]{1,0:T(8,128)}', space=vmem, size = 0x7000, scoped, tag = 'scratch operand']
  #allocation4 [shape = 'f32[56,8]{1,0:T(8,128)}', space=vmem, size = 0x7000, scoped, tag = 'scratch operand']
  #allocation5 [shape = 'f32[224,32]{1,0:T(8,128)}', space=vmem, size = 0x1c000, scoped, tag = 'scratch operand']
  #allocation6 [shape = 'f32[60,16]{1,0:T(8,128)}', space=vmem, size = 0x8000, scoped, tag = 'scratch operand']
  #allocation7 [shape = 'f32[60,8]{1,0:T(8,128)}', space=vmem, size = 0x8000, scoped, tag = 'scratch operand']
  #allocation8 [shape = 'f32[32,32]{1,0:T(8,128)}', space=vmem, size = 0x4000, scoped, tag = 'scratch operand']
  #allocation9 [shape = 'f32[56,16]{1,0:T(8,128)}', space=vmem, size = 0x7000, scoped, tag = 'scratch operand']
  %s0 = inlined_call_operand.vmem [shape: f32[2,4,16], index: 0, kind: input, shape index: {}]
  %s1 = inlined_call_operand.vmem [shape: f32[56,48], index: 1, kind: input, shape index: {}]
  %s2 = inlined_call_operand.hbm [shape: f32[318,224], index: 2, kind: input, shape index: {}]
  %s3 = inlined_call_operand.vmem [shape: f32[2,56,4], index: 3, kind: output, shape index: {}]
  %s4 = sld [smem:[#allocation0]]
  $region26: #{fwd.1} parent=0
    _
  %s6 = ssub.s32 1, %s4
  %s7 = scalar_select 0, %s6, %s4
  $region1: #{fwd.1} parent=0
    #allocation10 [shape = 'u8[327680]{0}', space=vmem, size = 0x50000, scoped, tag = 'input window, operand 2, single buffered']
    #allocation11 [shape = 's32[1]{0}', space=sflag, size = 0x4, scoped, tag = 'scoped memory for fwd.1']
    %8 = vsyncpa [#allocation11], 0
    // Predicated region
    $region2: #{fwd.1} parent=1 // pred_check
      _
    $region3: #{fwd.1} parent=1 // pred_check_branch
      %10 = sbr.rel (0) target = $region5
    $region4: #{fwd.1} parent=1 // pred_region
      _
    $region5: #{fwd.1} parent=1 // pred_fallthru
      _
    // Predicated region
    $region6: #{fwd.1} parent=1 // pred_check
      _
    $region7: #{fwd.1} parent=1 // pred_check_branch
      %12 = sbr.rel (0) target = $region9
    $region8: #{fwd.1} parent=1 // pred_region
      _
    $region9: #{fwd.1} parent=1 // pred_fallthru
      _
    // Predicated region
    $region10: #{fwd.1} parent=1 // pred_check
      _
    $region11: #{fwd.1} parent=1 // pred_check_branch
      %14 = sbr.rel (0) target = $region13
    $region12: #{fwd.1} parent=1 // pred_region
      %s16 = ssub.s32 10240, 10240
      %17 = vsyncadd [#allocation11], %s16
      %s18 = sshll.u32 [#allocation10], 4
      %s19 = int_to_ptr.vmem [resolvable:$true] %s18
      %24 = dma.hbm_to_vmem [thread:$0]  %s2, 10240, %s19, [#allocation11], 256, 256, 16
    $region13: #{fwd.1} parent=1 // pred_fallthru
      _
    // Predicated region
    $region14: #{fwd.1} parent=1 // pred_check
      _
    $region15: #{fwd.1} parent=1 // pred_check_branch
      %26 = sbr.rel (0) target = $region17
    $region16: #{fwd.1} parent=1 // pred_region
      %27 = dma.done [#allocation11], 10240
    $region17: #{fwd.1} parent=1 // pred_fallthru
      _
    %v28 = vld [vmem:[%s0] sm:$0xf]
    %vm29 = vcmask 125952
    %30 = vst.msk [vmem:[#allocation2] sm:$0xf] %vm29, %v28
    %s31 = scalar_lea.vmem %s0, 4
    %v32 = vld [vmem:[%s31] sm:$0xf]
    %34 = vrot.lane.b32.xlu0 %v32, 16
    %v35 = vpop.permute.xlu0 %34
    %vm37 = vcmask 257152
    %38 = vst.msk [vmem:[#allocation2] sm:$0xf] %vm37, %v35
    %vm39 = vcmask 261120
    %40 = vst.msk [vmem:[#allocation5] sm:$0xff] %vm39, 0.0
    %41 = vst.msk [vmem:[#allocation5 + $0x8] sm:$0xff] %vm39, 0.0
    %42 = vst.msk [vmem:[#allocation5 + $0x10] sm:$0xff] %vm39, 0.0
    %43 = vst.msk [vmem:[#allocation5 + $0x18] sm:$0xff] %vm39, 0.0
    %44 = vst.msk [vmem:[#allocation5 + $0x20] sm:$0xff] %vm39, 0.0
    %45 = vst.msk [vmem:[#allocation5 + $0x28] sm:$0xff] %vm39, 0.0
    %46 = vst.msk [vmem:[#allocation5 + $0x30] sm:$0xff] %vm39, 0.0
    %47 = vst.msk [vmem:[#allocation5 + $0x38] sm:$0xff] %vm39, 0.0
    %48 = vst.msk [vmem:[#allocation5 + $0x40] sm:$0xff] %vm39, 0.0
    %49 = vst.msk [vmem:[#allocation5 + $0x48] sm:$0xff] %vm39, 0.0
    %50 = vst.msk [vmem:[#allocation5 + $0x50] sm:$0xff] %vm39, 0.0
    %51 = vst.msk [vmem:[#allocation5 + $0x58] sm:$0xff] %vm39, 0.0
    %52 = vst.msk [vmem:[#allocation5 + $0x60] sm:$0xff] %vm39, 0.0
    %53 = vst.msk [vmem:[#allocation5 + $0x68] sm:$0xff] %vm39, 0.0
    %54 = vst.msk [vmem:[#allocation5 + $0x70] sm:$0xff] %vm39, 0.0
    %55 = vst.msk [vmem:[#allocation5 + $0x78] sm:$0xff] %vm39, 0.0
    %56 = vst.msk [vmem:[#allocation5 + $0x80] sm:$0xff] %vm39, 0.0
    %57 = vst.msk [vmem:[#allocation5 + $0x88] sm:$0xff] %vm39, 0.0
    %58 = vst.msk [vmem:[#allocation5 + $0x90] sm:$0xff] %vm39, 0.0
    %59 = vst.msk [vmem:[#allocation5 + $0x98] sm:$0xff] %vm39, 0.0
    %60 = vst.msk [vmem:[#allocation5 + $0xa0] sm:$0xff] %vm39, 0.0
    %61 = vst.msk [vmem:[#allocation5 + $0xa8] sm:$0xff] %vm39, 0.0
    %62 = vst.msk [vmem:[#allocation5 + $0xb0] sm:$0xff] %vm39, 0.0
    %63 = vst.msk [vmem:[#allocation5 + $0xb8] sm:$0xff] %vm39, 0.0
    %64 = vst.msk [vmem:[#allocation5 + $0xc0] sm:$0xff] %vm39, 0.0
    %65 = vst.msk [vmem:[#allocation5 + $0xc8] sm:$0xff] %vm39, 0.0
    %66 = vst.msk [vmem:[#allocation5 + $0xd0] sm:$0xff] %vm39, 0.0
    %67 = vst.msk [vmem:[#allocation5 + $0xd8] sm:$0xff] %vm39, 0.0
    %v68 = vld [vmem:[#allocation2] sm:$0xf]
    %v69 = vmax.f32 %v68, 0.0
    %vm70 = vcmask 257024
    %v71 = vsel %vm70, %v69, 0.0
    %72 = vadd.xlane.f32.xlu0 %v71
    %v73 = vpop.xlane.xlu0 %72
    %v74 = vrcp.pop 32.0
    %v75 = vmul.f32 %v73, %v74
    %v76 = vsub.f32 %v69, %v75
    %v77 = vmul.f32 %v76, %v76
    %v78 = vsel %vm70, %v77, 0.0
    %79 = vadd.xlane.f32.xlu0 %v78
    %v80 = vpop.xlane.xlu0 %79
    %v81 = vmul.f32 %v80, %v74
    %v82 = vld [vmem:[%s1] sm:$0xf]
    %v83 = vadd.f32 %v81, 1e-05
    %v84 = vrsqrt.pop %v83
    %v85 = vmul.f32 %v82, %v84
    %v86 = vmul.f32 %v75, %v85
    %88 = vrot.lane.b32.xlu0 %v86, 1
    %v89 = vpop.permute.xlu0 %88
    %v91 = vsub.f32 %v82, %v89
    %v92 = vld [vmem:[#allocation10] sm:$0xff]
    %v93 = vld [vmem:[#allocation10 + $0x10] sm:$0xff]
    %v94 = vld [vmem:[#allocation10 + $0x20] sm:$0xff]
    %v95 = vld [vmem:[#allocation10 + $0x30] sm:$0xff]
    %97 = vset.pattern.permute.xlu0 0
    %98 = vperm.xlu0 %97, %v85
    %v99 = vpop.permute.xlu0 %98
    %v101 = vmul.f32 %v69, %v99
    %103 = vset.pattern.permute.xlu0 1
    %104 = vperm.xlu0 %103, %v91
    %v105 = vpop.permute.xlu0 %104
    %v107 = vadd.f32 %v101, %v105
    %v108 = vld [vmem:[%s1] sm:$0xff]
    %v109 = vld [vmem:[%s1 + $0x8] sm:$0xff]
    %v110 = vld [vmem:[%s1 + $0x10] sm:$0xff]
    %v111 = vld [vmem:[%s1 + $0x18] sm:$0xff]
    %113 = vset.pattern.permute.xlu0 2
    %114 = vperm.xlu0 %113, %v108
    %v115 = vpop.permute.xlu0 %114
    %118 = vset.pattern.permute.xlu0 2
    %119 = vperm.xlu0 %118, %v109
    %v120 = vpop.permute.xlu0 %119
    %123 = vset.pattern.permute.xlu0 2
    %124 = vperm.xlu0 %123, %v110
    %v125 = vpop.permute.xlu0 %124
    %128 = vset.pattern.permute.xlu0 2
    %129 = vperm.xlu0 %128, %v111
    %v130 = vpop.permute.xlu0 %129
    %vm132 = vcmask 31744
    %v134 = vsel %vm132, %v92, 0
    %v137 = vsel %vm132, %v93, 0
    %v140 = vsel %vm132, %v94, 0
    %v143 = vsel %vm132, %v95, 0
    %vm145 = vcmask 1043456
    %v147 = vsel %vm145, %v107, 0
    %149 = vmatprep.subr.mxu0 0.0
    %150 = vmatpush1.msra.mxu0 %v147
    %151 = vmatprep.subr.mxu0 0.0
    %152 = vmatpush1.msra.mxu0 0.0
    %153 = vmatprep.subr.mxu0 0.0
    %154 = vmatpush1.msra.mxu0 0.0
    %155 = vmatprep.subr.mxu0 0.0
    %156 = vmatpush1.msra.mxu0 0.0
    %157 = vmatprep.subr.mxu0 0.0
    %158 = vmatpush1.msra.mxu0 0.0
    %159 = vmatprep.subr.mxu0 0.0
    %160 = vmatpush1.msra.mxu0 0.0
    %161 = vmatprep.subr.mxu0 0.0
    %162 = vmatpush1.msra.mxu0 0.0
    %163 = vmatprep.subr.mxu0 0.0
    %164 = vmatpush1.msra.mxu0 0.0
    %165 = vmatprep.subr.mxu0 0.0
    %166 = vmatpush1.msra.mxu0 0.0
    %167 = vmatprep.subr.mxu0 0.0
    %168 = vmatpush1.msra.mxu0 0.0
    %169 = vmatprep.subr.mxu0 0.0
    %170 = vmatpush1.msra.mxu0 0.0
    %171 = vmatprep.subr.mxu0 0.0
    %172 = vmatpush1.msra.mxu0 0.0
    %173 = vmatprep.subr.mxu0 0.0
    %174 = vmatpush1.msra.mxu0 0.0
    %175 = vmatprep.subr.mxu0 0.0
    %176 = vmatpush1.msra.mxu0 0.0
    %177 = vmatprep.subr.mxu0 0.0
    %178 = vmatpush1.msra.mxu0 0.0
    %179 = vmatprep.subr.mxu0 0.0
    %180 = vmatpush1.msra.mxu0 0.0
    %181 = vmatprep.subr.mxu0 0.0
    %182 = vmatpush1.msra.mxu0 0.0
    %183 = vmatprep.subr.mxu0 0.0
    %184 = vmatpush1.msra.mxu0 0.0
    %185 = vmatprep.subr.mxu0 0.0
    %186 = vmatpush1.msra.mxu0 0.0
    %187 = vmatprep.subr.mxu0 0.0
    %188 = vmatpush1.msra.mxu0 0.0
    %189 = vmatprep.subr.mxu0 0.0
    %190 = vmatpush1.msra.mxu0 0.0
    %191 = vmatprep.subr.mxu0 0.0
    %192 = vmatpush1.msra.mxu0 0.0
    %193 = vmatprep.subr.mxu0 0.0
    %194 = vmatpush1.msra.mxu0 0.0
    %195 = vmatprep.subr.mxu0 0.0
    %196 = vmatpush1.msra.mxu0 0.0
    %197 = vmatprep.subr.mxu0 0.0
    %198 = vmatpush1.msra.mxu0 0.0
    %199 = vmatprep.subr.mxu0 0.0
    %200 = vmatpush1.msra.mxu0 0.0
    %201 = vmatprep.subr.mxu0 0.0
    %202 = vmatpush1.msra.mxu0 0.0
    %203 = vmatprep.subr.mxu0 0.0
    %204 = vmatpush1.msra.mxu0 0.0
    %205 = vmatprep.subr.mxu0 0.0
    %206 = vmatpush1.msra.mxu0 0.0
    %207 = vmatprep.subr.mxu0 0.0
    %208 = vmatpush1.msra.mxu0 0.0
    %209 = vmatprep.subr.mxu0 0.0
    %210 = vmatpush1.msra.mxu0 0.0
    %211 = vmatprep.subr.mxu0 0.0
    %212 = vmatpush1.msra.mxu0 0.0
    %213 = vmatprep.mubr.f32.mxu0 0.0
    %214 = vmatmul.mubr.f32.gmra.mrb[0].mxu0 %v134
    %v215 = vpop.f32.mrb[0].mxu0
    %v216 = vadd.f32 %v115, %v215
    %v217 = vpop.f32.mrb[0].mxu0
    %218 = vmatprep.mubr.f32.mxu0 0.0
    %219 = vmatmul.mubr.f32.gmra.mrb[0].mxu0 %v137
    %v220 = vpop.f32.mrb[0].mxu0
    %v221 = vadd.f32 %v120, %v220
    %v222 = vpop.f32.mrb[0].mxu0
    %223 = vmatprep.mubr.f32.mxu0 0.0
    %224 = vmatmul.mubr.f32.gmra.mrb[0].mxu0 %v140
    %v225 = vpop.f32.mrb[0].mxu0
    %v226 = vadd.f32 %v125, %v225
    %v227 = vpop.f32.mrb[0].mxu0
    %228 = vmatprep.mubr.f32.mxu0 0.0
    %229 = vmatmul.mubr.f32.gmra.mrb[0].mxu0 %v143
    %v230 = vpop.f32.mrb[0].mxu0
    %v231 = vadd.f32 %v130, %v230
    %v232 = vpop.f32.mrb[0].mxu0
    %233 = vdwg.mxu0
    %v234 = vmax.f32 %v216, 0.0
    %v235 = vmax.f32 %v221, 0.0
    %v236 = vmax.f32 %v226, 0.0
    %v237 = vmax.f32 %v231, 0.0
    %v238 = vsel %vm39, %v234, 0.0
    %239 = vadd.xlane.f32.xlu0 %v238
    %v240 = vpop.xlane.xlu0 %239
    %v241 = vsel %vm39, %v235, 0.0
    %242 = vadd.xlane.f32.xlu0 %v241
    %v243 = vpop.xlane.xlu0 %242
    %v244 = vsel %vm39, %v236, 0.0
    %245 = vadd.xlane.f32.xlu0 %v244
    %v246 = vpop.xlane.xlu0 %245
    %v247 = vsel %vm39, %v237, 0.0
    %248 = vadd.xlane.f32.xlu0 %v247
    %v249 = vpop.xlane.xlu0 %248
    %v250 = vmul.f32 %v240, %v74
    %v251 = vmul.f32 %v243, %v74
    %v252 = vmul.f32 %v246, %v74
    %v253 = vmul.f32 %v249, %v74
    %v254 = vsub.f32 %v234, %v250
    %v255 = vsub.f32 %v235, %v251
    %v256 = vsub.f32 %v236, %v252
    %v257 = vsub.f32 %v237, %v253
    %v258 = vmul.f32 %v254, %v254
    %v259 = vmul.f32 %v255, %v255
    %v260 = vmul.f32 %v256, %v256
    %v261 = vmul.f32 %v257, %v257
    %v262 = vsel %vm39, %v258, 0.0
    %263 = vadd.xlane.f32.xlu0 %v262
    %v264 = vpop.xlane.xlu0 %263
    %v265 = vsel %vm39, %v259, 0.0
    %266 = vadd.xlane.f32.xlu0 %v265
    %v267 = vpop.xlane.xlu0 %266
    %v268 = vsel %vm39, %v260, 0.0
    %269 = vadd.xlane.f32.xlu0 %v268
    %v270 = vpop.xlane.xlu0 %269
    %v271 = vsel %vm39, %v261, 0.0
    %272 = vadd.xlane.f32.xlu0 %v271
    %v273 = vpop.xlane.xlu0 %272
    %v274 = vmul.f32 %v264, %v74
    %v275 = vmul.f32 %v267, %v74
    %v276 = vmul.f32 %v270, %v74
    %v277 = vmul.f32 %v273, %v74
    %v278 = vadd.f32 %v274, 1e-05
    %v279 = vadd.f32 %v275, 1e-05
    %v280 = vadd.f32 %v276, 1e-05
    %v281 = vadd.f32 %v277, 1e-05
    %v282 = vrsqrt.pop %v278
    %v283 = vrsqrt.pop %v279
    %v284 = vrsqrt.pop %v280
    %v285 = vrsqrt.pop %v281
    %v286 = vmul.f32 %v108, %v282
    %v287 = vmul.f32 %v109, %v283
    %v288 = vmul.f32 %v110, %v284
    %v289 = vmul.f32 %v111, %v285
    %v290 = vmul.f32 %v250, %v286
    %v291 = vmul.f32 %v251, %v287
    %v292 = vmul.f32 %v252, %v288
    %v293 = vmul.f32 %v253, %v289
    %298 = vrot.lane.b32.xlu0 %v290, 1
    %v299 = vpop.permute.xlu0 %298
    %300 = vrot.lane.b32.xlu0 %v291, 1
    %v301 = vpop.permute.xlu0 %300
    %302 = vrot.lane.b32.xlu0 %v292, 1
    %v303 = vpop.permute.xlu0 %302
    %304 = vrot.lane.b32.xlu0 %v293, 1
    %v305 = vpop.permute.xlu0 %304
    %v310 = vsub.f32 %v108, %v299
    %v311 = vsub.f32 %v109, %v301
    %v312 = vsub.f32 %v110, %v303
    %v313 = vsub.f32 %v111, %v305
    %315 = vset.pattern.permute.xlu0 3
    %316 = vperm.xlu0 %315, %v286
    %v317 = vpop.permute.xlu0 %316
    %320 = vset.pattern.permute.xlu0 3
    %321 = vperm.xlu0 %320, %v287
    %v322 = vpop.permute.xlu0 %321
    %325 = vset.pattern.permute.xlu0 3
    %326 = vperm.xlu0 %325, %v288
    %v327 = vpop.permute.xlu0 %326
    %330 = vset.pattern.permute.xlu0 3
    %331 = vperm.xlu0 %330, %v289
    %v332 = vpop.permute.xlu0 %331
    %v334 = vmul.f32 %v234, %v317
    %v335 = vmul.f32 %v235, %v322
    %v336 = vmul.f32 %v236, %v327
    %v337 = vmul.f32 %v237, %v332
    %339 = vset.pattern.permute.xlu0 4
    %340 = vperm.xlu0 %339, %v310
    %v341 = vpop.permute.xlu0 %340
    %344 = vset.pattern.permute.xlu0 4
    %345 = vperm.xlu0 %344, %v311
    %v346 = vpop.permute.xlu0 %345
    %349 = vset.pattern.permute.xlu0 4
    %350 = vperm.xlu0 %349, %v312
    %v351 = vpop.permute.xlu0 %350
    %354 = vset.pattern.permute.xlu0 4
    %355 = vperm.xlu0 %354, %v313
    %v356 = vpop.permute.xlu0 %355
    %v358 = vadd.f32 %v334, %v341
    %v359 = vadd.f32 %v335, %v346
    %v360 = vadd.f32 %v336, %v351
    %v361 = vadd.f32 %v337, %v356
    %362 = vst.msk [vmem:[#allocation8] sm:$0xff] %vm39, %v358
    %363 = vst.msk [vmem:[#allocation8 + $0x8] sm:$0xff] %vm39, %v359
    %364 = vst.msk [vmem:[#allocation8 + $0x10] sm:$0xff] %vm39, %v360
    %365 = vst.msk [vmem:[#allocation8 + $0x18] sm:$0xff] %vm39, %v361
    %v366 = vld [vmem:[#allocation8] sm:$0xff]
    %v367 = vld [vmem:[#allocation8 + $0x8] sm:$0xff]
    %v368 = vld [vmem:[#allocation8 + $0x10] sm:$0xff]
    %v369 = vld [vmem:[#allocation8 + $0x18] sm:$0xff]
    %374 = vrot.lane.b32.xlu0 %v366, 3
    %v375 = vpop.permute.xlu0 %374
    %376 = vrot.lane.b32.xlu0 %v367, 3
    %v377 = vpop.permute.xlu0 %376
    %378 = vrot.lane.b32.xlu0 %v368, 3
    %v379 = vpop.permute.xlu0 %378
    %380 = vrot.lane.b32.xlu0 %v369, 3
    %v381 = vpop.permute.xlu0 %380
    %vm386 = vcmask 130072
    %387 = vst.msk [vmem:[#allocation5] sm:$0xff] %vm386, %v375
    %388 = vst.msk [vmem:[#allocation5 + $0x8] sm:$0xff] %vm386, %v377
    %389 = vst.msk [vmem:[#allocation5 + $0x10] sm:$0xff] %vm386, %v379
    %390 = vst.msk [vmem:[#allocation5 + $0x18] sm:$0xff] %vm386, %v381
    %v391 = vld [vmem:[#allocation8] sm:$0xff]
    %v392 = vld [vmem:[#allocation8 + $0x8] sm:$0xff]
    %v393 = vld [vmem:[#allocation8 + $0x10] sm:$0xff]
    %v394 = vld [vmem:[#allocation8 + $0x18] sm:$0xff]
    %399 = vrot.lane.b32.xlu0 %v391, 3
    %v400 = vpop.permute.xlu0 %399
    %401 = vrot.lane.b32.xlu0 %v392, 3
    %v402 = vpop.permute.xlu0 %401
    %403 = vrot.lane.b32.xlu0 %v393, 3
    %v404 = vpop.permute.xlu0 %403
    %405 = vrot.lane.b32.xlu0 %v394, 3
    %v406 = vpop.permute.xlu0 %405
    %vm411 = vcmask 261272
    %412 = vst.msk [vmem:[#allocation5] sm:$0xff] %vm411, %v400
    %413 = vst.msk [vmem:[#allocation5 + $0x8] sm:$0xff] %vm411, %v402
    %414 = vst.msk [vmem:[#allocation5 + $0x10] sm:$0xff] %vm411, %v404
    %415 = vst.msk [vmem:[#allocation5 + $0x18] sm:$0xff] %vm411, %v406
    %v416 = vld [vmem:[#allocation8] sm:$0xff]
    %v417 = vld [vmem:[#allocation8 + $0x8] sm:$0xff]
    %v418 = vld [vmem:[#allocation8 + $0x10] sm:$0xff]
    %v419 = vld [vmem:[#allocation8 + $0x18] sm:$0xff]
    %424 = vrot.lane.b32.xlu0 %v416, 2
    %v425 = vpop.permute.xlu0 %424
    %426 = vrot.lane.b32.xlu0 %v417, 2
    %v427 = vpop.permute.xlu0 %426
    %428 = vrot.lane.b32.xlu0 %v418, 2
    %v429 = vpop.permute.xlu0 %428
    %430 = vrot.lane.b32.xlu0 %v419, 2
    %v431 = vpop.permute.xlu0 %430
    %vm436 = vcmask 130064
    %437 = vst.msk [vmem:[#allocation5 + $0x20] sm:$0xff] %vm436, %v425
    %438 = vst.msk [vmem:[#allocation5 + $0x28] sm:$0xff] %vm436, %v427
    %439 = vst.msk [vmem:[#allocation5 + $0x30] sm:$0xff] %vm436, %v429
    %440 = vst.msk [vmem:[#allocation5 + $0x38] sm:$0xff] %vm436, %v431
    %v441 = vld [vmem:[#allocation8] sm:$0xff]
    %v442 = vld [vmem:[#allocation8 + $0x8] sm:$0xff]
    %v443 = vld [vmem:[#allocation8 + $0x10] sm:$0xff]
    %v444 = vld [vmem:[#allocation8 + $0x18] sm:$0xff]
    %449 = vrot.lane.b32.xlu0 %v441, 2
    %v450 = vpop.permute.xlu0 %449
    %451 = vrot.lane.b32.xlu0 %v442, 2
    %v452 = vpop.permute.xlu0 %451
    %453 = vrot.lane.b32.xlu0 %v443, 2
    %v454 = vpop.permute.xlu0 %453
    %455 = vrot.lane.b32.xlu0 %v444, 2
    %v456 = vpop.permute.xlu0 %455
    %vm461 = vcmask 261264
    %462 = vst.msk [vmem:[#allocation5 + $0x20] sm:$0xff] %vm461, %v450
    %463 = vst.msk [vmem:[#allocation5 + $0x28] sm:$0xff] %vm461, %v452
    %464 = vst.msk [vmem:[#allocation5 + $0x30] sm:$0xff] %vm461, %v454
    %465 = vst.msk [vmem:[#allocation5 + $0x38] sm:$0xff] %vm461, %v456
    %v466 = vld [vmem:[#allocation8] sm:$0xff]
    %v467 = vld [vmem:[#allocation8 + $0x8] sm:$0xff]
    %v468 = vld [vmem:[#allocation8 + $0x10] sm:$0xff]
    %v469 = vld [vmem:[#allocation8 + $0x18] sm:$0xff]
    %474 = vrot.lane.b32.xlu0 %v466, 1
    %v475 = vpop.permute.xlu0 %474
    %476 = vrot.lane.b32.xlu0 %v467, 1
    %v477 = vpop.permute.xlu0 %476
    %478 = vrot.lane.b32.xlu0 %v468, 1
    %v479 = vpop.permute.xlu0 %478
    %480 = vrot.lane.b32.xlu0 %v469, 1
    %v481 = vpop.permute.xlu0 %480
    %vm486 = vcmask 130056
    %487 = vst.msk [vmem:[#allocation5 + $0x40] sm:$0xff] %vm486, %v475
    %488 = vst.msk [vmem:[#allocation5 + $0x48] sm:$0xff] %vm486, %v477
    %489 = vst.msk [vmem:[#allocation5 + $0x50] sm:$0xff] %vm486, %v479
    %490 = vst.msk [vmem:[#allocation5 + $0x58] sm:$0xff] %vm486, %v481
    %v491 = vld [vmem:[#allocation8] sm:$0xff]
    %v492 = vld [vmem:[#allocation8 + $0x8] sm:$0xff]
    %v493 = vld [vmem:[#allocation8 + $0x10] sm:$0xff]
    %v494 = vld [vmem:[#allocation8 + $0x18] sm:$0xff]
    %499 = vrot.lane.b32.xlu0 %v491, 1
    %v500 = vpop.permute.xlu0 %499
    %501 = vrot.lane.b32.xlu0 %v492, 1
    %v502 = vpop.permute.xlu0 %501
    %503 = vrot.lane.b32.xlu0 %v493, 1
    %v504 = vpop.permute.xlu0 %503
    %505 = vrot.lane.b32.xlu0 %v494, 1
    %v506 = vpop.permute.xlu0 %505
    %vm511 = vcmask 261256
    %512 = vst.msk [vmem:[#allocation5 + $0x40] sm:$0xff] %vm511, %v500
    %513 = vst.msk [vmem:[#allocation5 + $0x48] sm:$0xff] %vm511, %v502
    %514 = vst.msk [vmem:[#allocation5 + $0x50] sm:$0xff] %vm511, %v504
    %515 = vst.msk [vmem:[#allocation5 + $0x58] sm:$0xff] %vm511, %v506
    %v516 = vld [vmem:[#allocation8] sm:$0xff]
    %v517 = vld [vmem:[#allocation8 + $0x8] sm:$0xff]
    %v518 = vld [vmem:[#allocation8 + $0x10] sm:$0xff]
    %v519 = vld [vmem:[#allocation8 + $0x18] sm:$0xff]
    %vm520 = vcmask 130048
    %521 = vst.msk [vmem:[#allocation5 + $0x60] sm:$0xff] %vm520, %v516
    %522 = vst.msk [vmem:[#allocation5 + $0x68] sm:$0xff] %vm520, %v517
    %523 = vst.msk [vmem:[#allocation5 + $0x70] sm:$0xff] %vm520, %v518
    %524 = vst.msk [vmem:[#allocation5 + $0x78] sm:$0xff] %vm520, %v519
    %v525 = vld [vmem:[#allocation8] sm:$0xff]
    %v526 = vld [vmem:[#allocation8 + $0x8] sm:$0xff]
    %v527 = vld [vmem:[#allocation8 + $0x10] sm:$0xff]
    %v528 = vld [vmem:[#allocation8 + $0x18] sm:$0xff]
    %vm529 = vcmask 261248
    %530 = vst.msk [vmem:[#allocation5 + $0x60] sm:$0xff] %vm529, %v525
    %531 = vst.msk [vmem:[#allocation5 + $0x68] sm:$0xff] %vm529, %v526
    %532 = vst.msk [vmem:[#allocation5 + $0x70] sm:$0xff] %vm529, %v527
    %533 = vst.msk [vmem:[#allocation5 + $0x78] sm:$0xff] %vm529, %v528
    %v534 = vld [vmem:[#allocation8] sm:$0xff]
    %v535 = vld [vmem:[#allocation8 + $0x8] sm:$0xff]
    %v536 = vld [vmem:[#allocation8 + $0x10] sm:$0xff]
    %v537 = vld [vmem:[#allocation8 + $0x18] sm:$0xff]
    %542 = vrot.lane.b32.xlu0 %v534, 127
    %v543 = vpop.permute.xlu0 %542
    %544 = vrot.lane.b32.xlu0 %v535, 127
    %v545 = vpop.permute.xlu0 %544
    %546 = vrot.lane.b32.xlu0 %v536, 127
    %v547 = vpop.permute.xlu0 %546
    %548 = vrot.lane.b32.xlu0 %v537, 127
    %v549 = vpop.permute.xlu0 %548
    %vm554 = vcmask 121856
    %555 = vst.msk [vmem:[#allocation5 + $0x80] sm:$0xff] %vm554, %v543
    %556 = vst.msk [vmem:[#allocation5 + $0x88] sm:$0xff] %vm554, %v545
    %557 = vst.msk [vmem:[#allocation5 + $0x90] sm:$0xff] %vm554, %v547
    %558 = vst.msk [vmem:[#allocation5 + $0x98] sm:$0xff] %vm554, %v549
    %v559 = vld [vmem:[#allocation8] sm:$0xff]
    %v560 = vld [vmem:[#allocation8 + $0x8] sm:$0xff]
    %v561 = vld [vmem:[#allocation8 + $0x10] sm:$0xff]
    %v562 = vld [vmem:[#allocation8 + $0x18] sm:$0xff]
    %567 = vrot.lane.b32.xlu0 %v559, 127
    %v568 = vpop.permute.xlu0 %567
    %569 = vrot.lane.b32.xlu0 %v560, 127
    %v570 = vpop.permute.xlu0 %569
    %571 = vrot.lane.b32.xlu0 %v561, 127
    %v572 = vpop.permute.xlu0 %571
    %573 = vrot.lane.b32.xlu0 %v562, 127
    %v574 = vpop.permute.xlu0 %573
    %vm579 = vcmask 253056
    %580 = vst.msk [vmem:[#allocation5 + $0x80] sm:$0xff] %vm579, %v568
    %581 = vst.msk [vmem:[#allocation5 + $0x88] sm:$0xff] %vm579, %v570
    %582 = vst.msk [vmem:[#allocation5 + $0x90] sm:$0xff] %vm579, %v572
    %583 = vst.msk [vmem:[#allocation5 + $0x98] sm:$0xff] %vm579, %v574
    %v584 = vld [vmem:[#allocation8] sm:$0xff]
    %v585 = vld [vmem:[#allocation8 + $0x8] sm:$0xff]
    %v586 = vld [vmem:[#allocation8 + $0x10] sm:$0xff]
    %v587 = vld [vmem:[#allocation8 + $0x18] sm:$0xff]
    %592 = vrot.lane.b32.xlu0 %v584, 126
    %v593 = vpop.permute.xlu0 %592
    %594 = vrot.lane.b32.xlu0 %v585, 126
    %v595 = vpop.permute.xlu0 %594
    %596 = vrot.lane.b32.xlu0 %v586, 126
    %v597 = vpop.permute.xlu0 %596
    %598 = vrot.lane.b32.xlu0 %v587, 126
    %v599 = vpop.permute.xlu0 %598
    %vm604 = vcmask 113664
    %605 = vst.msk [vmem:[#allocation5 + $0xa0] sm:$0xff] %vm604, %v593
    %606 = vst.msk [vmem:[#allocation5 + $0xa8] sm:$0xff] %vm604, %v595
    %607 = vst.msk [vmem:[#allocation5 + $0xb0] sm:$0xff] %vm604, %v597
    %608 = vst.msk [vmem:[#allocation5 + $0xb8] sm:$0xff] %vm604, %v599
    %v609 = vld [vmem:[#allocation8] sm:$0xff]
    %v610 = vld [vmem:[#allocation8 + $0x8] sm:$0xff]
    %v611 = vld [vmem:[#allocation8 + $0x10] sm:$0xff]
    %v612 = vld [vmem:[#allocation8 + $0x18] sm:$0xff]
    %617 = vrot.lane.b32.xlu0 %v609, 126
    %v618 = vpop.permute.xlu0 %617
    %619 = vrot.lane.b32.xlu0 %v610, 126
    %v620 = vpop.permute.xlu0 %619
    %621 = vrot.lane.b32.xlu0 %v611, 126
    %v622 = vpop.permute.xlu0 %621
    %623 = vrot.lane.b32.xlu0 %v612, 126
    %v624 = vpop.permute.xlu0 %623
    %vm629 = vcmask 244864
    %630 = vst.msk [vmem:[#allocation5 + $0xa0] sm:$0xff] %vm629, %v618
    %631 = vst.msk [vmem:[#allocation5 + $0xa8] sm:$0xff] %vm629, %v620
    %632 = vst.msk [vmem:[#allocation5 + $0xb0] sm:$0xff] %vm629, %v622
    %633 = vst.msk [vmem:[#allocation5 + $0xb8] sm:$0xff] %vm629, %v624
    %v634 = vld [vmem:[#allocation8] sm:$0xff]
    %v635 = vld [vmem:[#allocation8 + $0x8] sm:$0xff]
    %v636 = vld [vmem:[#allocation8 + $0x10] sm:$0xff]
    %v637 = vld [vmem:[#allocation8 + $0x18] sm:$0xff]
    %642 = vrot.lane.b32.xlu0 %v634, 125
    %v643 = vpop.permute.xlu0 %642
    %644 = vrot.lane.b32.xlu0 %v635, 125
    %v645 = vpop.permute.xlu0 %644
    %646 = vrot.lane.b32.xlu0 %v636, 125
    %v647 = vpop.permute.xlu0 %646
    %648 = vrot.lane.b32.xlu0 %v637, 125
    %v649 = vpop.permute.xlu0 %648
    %vm654 = vcmask 105472
    %655 = vst.msk [vmem:[#allocation5 + $0xc0] sm:$0xff] %vm654, %v643
    %656 = vst.msk [vmem:[#allocation5 + $0xc8] sm:$0xff] %vm654, %v645
    %657 = vst.msk [vmem:[#allocation5 + $0xd0] sm:$0xff] %vm654, %v647
    %658 = vst.msk [vmem:[#allocation5 + $0xd8] sm:$0xff] %vm654, %v649
    %v659 = vld [vmem:[#allocation8] sm:$0xff]
    %v660 = vld [vmem:[#allocation8 + $0x8] sm:$0xff]
    %v661 = vld [vmem:[#allocation8 + $0x10] sm:$0xff]
    %v662 = vld [vmem:[#allocation8 + $0x18] sm:$0xff]
    %667 = vrot.lane.b32.xlu0 %v659, 125
    %v668 = vpop.permute.xlu0 %667
    %669 = vrot.lane.b32.xlu0 %v660, 125
    %v670 = vpop.permute.xlu0 %669
    %671 = vrot.lane.b32.xlu0 %v661, 125
    %v672 = vpop.permute.xlu0 %671
    %673 = vrot.lane.b32.xlu0 %v662, 125
    %v674 = vpop.permute.xlu0 %673
    %vm679 = vcmask 236672
    %680 = vst.msk [vmem:[#allocation5 + $0xc0] sm:$0xff] %vm679, %v668
    %681 = vst.msk [vmem:[#allocation5 + $0xc8] sm:$0xff] %vm679, %v670
    %682 = vst.msk [vmem:[#allocation5 + $0xd0] sm:$0xff] %vm679, %v672
    %683 = vst.msk [vmem:[#allocation5 + $0xd8] sm:$0xff] %vm679, %v674
    %v684 = vld [vmem:[#allocation10 + $0x40] sm:$0xff]
    %v685 = vld [vmem:[#allocation10 + $0x48] sm:$0xff]
    %v686 = vld [vmem:[#allocation10 + $0x50] sm:$0x3]
    %v687 = vld [vmem:[#allocation10 + $0x58] sm:$0x3]
    %v688 = vld [vmem:[#allocation5] sm:$0xff]
    %v689 = vld [vmem:[#allocation5 + $0x8] sm:$0xff]
    %v690 = vld [vmem:[#allocation5 + $0x10] sm:$0xff]
    %v691 = vld [vmem:[#allocation5 + $0x18] sm:$0xff]
    %v692 = vld [vmem:[#allocation5 + $0x20] sm:$0xff]
    %v693 = vld [vmem:[#allocation5 + $0x28] sm:$0xff]
    %v694 = vld [vmem:[#allocation5 + $0x30] sm:$0xff]
    %v695 = vld [vmem:[#allocation5 + $0x38] sm:$0xff]
    %v696 = vld [vmem:[#allocation5 + $0x40] sm:$0xff]
    %v697 = vld [vmem:[#allocation5 + $0x48] sm:$0xff]
    %v698 = vld [vmem:[#allocation5 + $0x50] sm:$0xff]
    %v699 = vld [vmem:[#allocation5 + $0x58] sm:$0xff]
    %v700 = vld [vmem:[#allocation5 + $0x60] sm:$0xff]
    %v701 = vld [vmem:[#allocation5 + $0x68] sm:$0xff]
    %v702 = vld [vmem:[#allocation5 + $0x70] sm:$0xff]
    %v703 = vld [vmem:[#allocation5 + $0x78] sm:$0xff]
    %v704 = vld [vmem:[#allocation5 + $0x80] sm:$0xff]
    %v705 = vld [vmem:[#allocation5 + $0x88] sm:$0xff]
    %v706 = vld [vmem:[#allocation5 + $0x90] sm:$0xff]
    %v707 = vld [vmem:[#allocation5 + $0x98] sm:$0xff]
    %v708 = vld [vmem:[#allocation5 + $0xa0] sm:$0xff]
    %v709 = vld [vmem:[#allocation5 + $0xa8] sm:$0xff]
    %v710 = vld [vmem:[#allocation5 + $0xb0] sm:$0xff]
    %v711 = vld [vmem:[#allocation5 + $0xb8] sm:$0xff]
    %v712 = vld [vmem:[#allocation5 + $0xc0] sm:$0xff]
    %v713 = vld [vmem:[#allocation5 + $0xc8] sm:$0xff]
    %v714 = vld [vmem:[#allocation5 + $0xd0] sm:$0xff]
    %v715 = vld [vmem:[#allocation5 + $0xd8] sm:$0xff]
    %v716 = vld [vmem:[%s1] sm:$0xff]
    %v717 = vld [vmem:[%s1 + $0x8] sm:$0x3]
    %719 = vset.pattern.permute.xlu0 5
    %720 = vperm.xlu0 %719, %v716
    %v721 = vpop.permute.xlu0 %720
    %724 = vset.pattern.permute.xlu0 5
    %725 = vperm.xlu0 %724, %v717
    %v726 = vpop.permute.xlu0 %725
    %vm728 = vcmask 785408
    %v730 = vsel %vm728, %v685, 0
    %v733 = vsel %vm728, %v687, 0
    %735 = vmatprep.subr.mxu0 0.0
    %736 = vmatpush1.msra.mxu0 %v688
    %737 = vmatprep.subr.mxu0 0.0
    %738 = vmatpush1.msra.mxu0 %v689
    %739 = vmatprep.subr.mxu0 0.0
    %740 = vmatpush1.msra.mxu0 %v690
    %741 = vmatprep.subr.mxu0 0.0
    %742 = vmatpush1.msra.mxu0 %v691
    %743 = vmatprep.subr.mxu0 0.0
    %744 = vmatpush1.msra.mxu0 %v692
    %745 = vmatprep.subr.mxu0 0.0
    %746 = vmatpush1.msra.mxu0 %v693
    %747 = vmatprep.subr.mxu0 0.0
    %748 = vmatpush1.msra.mxu0 %v694
    %749 = vmatprep.subr.mxu0 0.0
    %750 = vmatpush1.msra.mxu0 %v695
    %751 = vmatprep.subr.mxu0 0.0
    %752 = vmatpush1.msra.mxu0 %v696
    %753 = vmatprep.subr.mxu0 0.0
    %754 = vmatpush1.msra.mxu0 %v697
    %755 = vmatprep.subr.mxu0 0.0
    %756 = vmatpush1.msra.mxu0 %v698
    %757 = vmatprep.subr.mxu0 0.0
    %758 = vmatpush1.msra.mxu0 %v699
    %759 = vmatprep.subr.mxu0 0.0
    %760 = vmatpush1.msra.mxu0 %v700
    %761 = vmatprep.subr.mxu0 0.0
    %762 = vmatpush1.msra.mxu0 %v701
    %763 = vmatprep.subr.mxu0 0.0
    %764 = vmatpush1.msra.mxu0 %v702
    %765 = vmatprep.subr.mxu0 0.0
    %766 = vmatpush1.msra.mxu0 %v703
    %767 = vmatprep.subr.mxu0 0.0
    %768 = vmatpush1.msra.mxu0 %v704
    %769 = vmatprep.subr.mxu0 0.0
    %770 = vmatpush1.msra.mxu0 %v705
    %771 = vmatprep.subr.mxu0 0.0
    %772 = vmatpush1.msra.mxu0 %v706
    %773 = vmatprep.subr.mxu0 0.0
    %774 = vmatpush1.msra.mxu0 %v707
    %775 = vmatprep.subr.mxu0 0.0
    %776 = vmatpush1.msra.mxu0 %v708
    %777 = vmatprep.subr.mxu0 0.0
    %778 = vmatpush1.msra.mxu0 %v709
    %779 = vmatprep.subr.mxu0 0.0
    %780 = vmatpush1.msra.mxu0 %v710
    %781 = vmatprep.subr.mxu0 0.0
    %782 = vmatpush1.msra.mxu0 %v711
    %783 = vmatprep.subr.mxu0 0.0
    %784 = vmatpush1.msra.mxu0 %v712
    %785 = vmatprep.subr.mxu0 0.0
    %786 = vmatpush1.msra.mxu0 %v713
    %787 = vmatprep.subr.mxu0 0.0
    %788 = vmatpush1.msra.mxu0 %v714
    %789 = vmatprep.subr.mxu0 0.0
    %790 = vmatpush1.msra.mxu0 %v715
    %791 = vmatprep.subr.mxu0 0.0
    %792 = vmatpush1.msra.mxu0 0.0
    %793 = vmatprep.subr.mxu0 0.0
    %794 = vmatpush1.msra.mxu0 0.0
    %795 = vmatprep.subr.mxu0 0.0
    %796 = vmatpush1.msra.mxu0 0.0
    %797 = vmatprep.subr.mxu0 0.0
    %798 = vmatpush1.msra.mxu0 0.0
    %799 = vmatprep.mubr.f32.mxu0 %v730
    %800 = vmatmul.mubr.f32.gmra.mrb[0].mxu0 %v684
    %v801 = vpop.f32.mrb[0].mxu0
    %v802 = vadd.f32 %v721, %v801
    %v803 = vpop.f32.mrb[0].mxu0
    %804 = vmatprep.mubr.f32.mxu0 %v733
    %805 = vmatmul.mubr.f32.gmra.mrb[0].mxu0 %v686
    %v806 = vpop.f32.mrb[0].mxu0
    %v807 = vadd.f32 %v726, %v806
    %v808 = vpop.f32.mrb[0].mxu0
    %809 = vdwg.mxu0
    %810 = vst.msk [vmem:[#allocation2 + $0x4] sm:$0xff] %vm39, %v802
    %vm811 = vcmask 254976
    %812 = vst.msk [vmem:[#allocation2 + $0xc] sm:$0x3] %vm811, %v807
    %v813 = vld [vmem:[#allocation2] sm:$0xff]
    %v814 = vld [vmem:[#allocation2 + $0x8] sm:$0x3f]
    %v815 = vmax.f32 %v813, 0.0
    %v816 = vmax.f32 %v814, 0.0
    %v817 = vsel %vm39, %v815, 0.0
    %818 = vadd.xlane.f32.xlu0 %v817
    %v819 = vpop.xlane.xlu0 %818
    %vm820 = vcmask 259072
    %v821 = vsel %vm820, %v816, 0.0
    %822 = vadd.xlane.f32.xlu0 %v821
    %v823 = vpop.xlane.xlu0 %822
    %v824 = vmul.f32 %v819, %v74
    %v825 = vmul.f32 %v823, %v74
    %v826 = vsub.f32 %v815, %v824
    %v827 = vsub.f32 %v816, %v825
    %v828 = vmul.f32 %v826, %v826
    %v829 = vmul.f32 %v827, %v827
    %v830 = vsel %vm39, %v828, 0.0
    %831 = vadd.xlane.f32.xlu0 %v830
    %v832 = vpop.xlane.xlu0 %831
    %v833 = vsel %vm820, %v829, 0.0
    %834 = vadd.xlane.f32.xlu0 %v833
    %v835 = vpop.xlane.xlu0 %834
    %v836 = vmul.f32 %v832, %v74
    %v837 = vmul.f32 %v835, %v74
    %v838 = vld [vmem:[%s1] sm:$0xff]
    %v839 = vld [vmem:[%s1 + $0x8] sm:$0x3f]
    %v840 = vadd.f32 %v836, 1e-05
    %v841 = vadd.f32 %v837, 1e-05
    %v842 = vrsqrt.pop %v840
    %v843 = vrsqrt.pop %v841
    %v844 = vmul.f32 %v838, %v842
    %v845 = vmul.f32 %v839, %v843
    %v846 = vmul.f32 %v824, %v844
    %v847 = vmul.f32 %v825, %v845
    %850 = vrot.lane.b32.xlu0 %v846, 1
    %v851 = vpop.permute.xlu0 %850
    %852 = vrot.lane.b32.xlu0 %v847, 1
    %v853 = vpop.permute.xlu0 %852
    %v856 = vsub.f32 %v838, %v851
    %v857 = vsub.f32 %v839, %v853
    %v858 = vld [vmem:[#allocation10 + $0x50] sm:$0xfc]
    %v859 = vld [vmem:[#allocation10 + $0x60] sm:$0xff]
    %v860 = vld [vmem:[#allocation10 + $0x70] sm:$0xff]
    %v861 = vld [vmem:[#allocation10 + $0x80] sm:$0xff]
    %v862 = vld [vmem:[#allocation10 + $0x90] sm:$0x3]
    %864 = vset.pattern.permute.xlu0 6
    %865 = vperm.xlu0 %864, %v844
    %v866 = vpop.permute.xlu0 %865
    %869 = vset.pattern.permute.xlu0 6
    %870 = vperm.xlu0 %869, %v845
    %v871 = vpop.permute.xlu0 %870
    %v873 = vmul.f32 %v815, %v866
    %v874 = vmul.f32 %v816, %v871
    %876 = vset.pattern.permute.xlu0 7
    %877 = vperm.xlu0 %876, %v856
    %v878 = vpop.permute.xlu0 %877
    %881 = vset.pattern.permute.xlu0 7
    %882 = vperm.xlu0 %881, %v857
    %v883 = vpop.permute.xlu0 %882
    %v885 = vadd.f32 %v873, %v878
    %v886 = vadd.f32 %v874, %v883
    %v887 = vld [vmem:[%s1] sm:$0xff]
    %v888 = vld [vmem:[%s1 + $0x8] sm:$0xff]
    %v889 = vld [vmem:[%s1 + $0x10] sm:$0xff]
    %v890 = vld [vmem:[%s1 + $0x18] sm:$0xff]
    %892 = vset.pattern.permute.xlu0 8
    %893 = vperm.xlu0 %892, %v887
    %v894 = vpop.permute.xlu0 %893
    %897 = vset.pattern.permute.xlu0 8
    %898 = vperm.xlu0 %897, %v888
    %v899 = vpop.permute.xlu0 %898
    %902 = vset.pattern.permute.xlu0 8
    %903 = vperm.xlu0 %902, %v889
    %v904 = vpop.permute.xlu0 %903
    %907 = vset.pattern.permute.xlu0 8
    %908 = vperm.xlu0 %907, %v890
    %v909 = vpop.permute.xlu0 %908
    %vm916 = vcmask 1045504
    %v917 = vrot.slane %v858, 2
    %v918 = vrot.slane %v859, 2
    %v919 = vsel %vm916, %v917, %v918
    %v920 = vrot.slane %v860, 2
    %v921 = vsel %vm916, %v918, %v920
    %v922 = vrot.slane %v861, 2
    %v923 = vsel %vm916, %v920, %v922
    %v924 = vrot.slane %v862, 2
    %v925 = vsel %vm916, %v922, %v924
    %v926 = vsel %vm604, %v919, 0
    %v928 = vsel %vm604, %v921, 0
    %v930 = vsel %vm604, %v923, 0
    %v932 = vsel %vm604, %v925, 0
    %v935 = vsel %vm916, %v886, 0
    %937 = vmatprep.subr.mxu0 0.0
    %938 = vmatpush1.msra.mxu0 %v885
    %939 = vmatprep.subr.mxu0 0.0
    %940 = vmatpush1.msra.mxu0 %v935
    %941 = vmatprep.subr.mxu0 0.0
    %942 = vmatpush1.msra.mxu0 0.0
    %943 = vmatprep.subr.mxu0 0.0
    %944 = vmatpush1.msra.mxu0 0.0
    %945 = vmatprep.subr.mxu0 0.0
    %946 = vmatpush1.msra.mxu0 0.0
    %947 = vmatprep.subr.mxu0 0.0
    %948 = vmatpush1.msra.mxu0 0.0
    %949 = vmatprep.subr.mxu0 0.0
    %950 = vmatpush1.msra.mxu0 0.0
    %951 = vmatprep.subr.mxu0 0.0
    %952 = vmatpush1.msra.mxu0 0.0
    %953 = vmatprep.subr.mxu0 0.0
    %954 = vmatpush1.msra.mxu0 0.0
    %955 = vmatprep.subr.mxu0 0.0
    %956 = vmatpush1.msra.mxu0 0.0
    %957 = vmatprep.subr.mxu0 0.0
    %958 = vmatpush1.msra.mxu0 0.0
    %959 = vmatprep.subr.mxu0 0.0
    %960 = vmatpush1.msra.mxu0 0.0
    %961 = vmatprep.subr.mxu0 0.0
    %962 = vmatpush1.msra.mxu0 0.0
    %963 = vmatprep.subr.mxu0 0.0
    %964 = vmatpush1.msra.mxu0 0.0
    %965 = vmatprep.subr.mxu0 0.0
    %966 = vmatpush1.msra.mxu0 0.0
    %967 = vmatprep.subr.mxu0 0.0
    %968 = vmatpush1.msra.mxu0 0.0
    %969 = vmatprep.subr.mxu0 0.0
    %970 = vmatpush1.msra.mxu0 0.0
    %971 = vmatprep.subr.mxu0 0.0
    %972 = vmatpush1.msra.mxu0 0.0
    %973 = vmatprep.subr.mxu0 0.0
    %974 = vmatpush1.msra.mxu0 0.0
    %975 = vmatprep.subr.mxu0 0.0
    %976 = vmatpush1.msra.mxu0 0.0
    %977 = vmatprep.subr.mxu0 0.0
    %978 = vmatpush1.msra.mxu0 0.0
    %979 = vmatprep.subr.mxu0 0.0
    %980 = vmatpush1.msra.mxu0 0.0
    %981 = vmatprep.subr.mxu0 0.0
    %982 = vmatpush1.msra.mxu0 0.0
    %983 = vmatprep.subr.mxu0 0.0
    %984 = vmatpush1.msra.mxu0 0.0
    %985 = vmatprep.subr.mxu0 0.0
    %986 = vmatpush1.msra.mxu0 0.0
    %987 = vmatprep.subr.mxu0 0.0
    %988 = vmatpush1.msra.mxu0 0.0
    %989 = vmatprep.subr.mxu0 0.0
    %990 = vmatpush1.msra.mxu0 0.0
    %991 = vmatprep.subr.mxu0 0.0
    %992 = vmatpush1.msra.mxu0 0.0
    %993 = vmatprep.subr.mxu0 0.0
    %994 = vmatpush1.msra.mxu0 0.0
    %995 = vmatprep.subr.mxu0 0.0
    %996 = vmatpush1.msra.mxu0 0.0
    %997 = vmatprep.subr.mxu0 0.0
    %998 = vmatpush1.msra.mxu0 0.0
    %999 = vmatprep.subr.mxu0 0.0
    %1000 = vmatpush1.msra.mxu0 0.0
    %1001 = vmatprep.mubr.f32.mxu0 0.0
    %1002 = vmatmul.mubr.f32.gmra.mrb[0].mxu0 %v926
    %v1003 = vpop.f32.mrb[0].mxu0
    %v1004 = vadd.f32 %v894, %v1003
    %v1005 = vpop.f32.mrb[0].mxu0
    %1006 = vmatprep.mubr.f32.mxu0 0.0
    %1007 = vmatmul.mubr.f32.gmra.mrb[0].mxu0 %v928
    %v1008 = vpop.f32.mrb[0].mxu0
    %v1009 = vadd.f32 %v899, %v1008
    %v1010 = vpop.f32.mrb[0].mxu0
    %1011 = vmatprep.mubr.f32.mxu0 0.0
    %1012 = vmatmul.mubr.f32.gmra.mrb[0].mxu0 %v930
    %v1013 = vpop.f32.mrb[0].mxu0
    %v1014 = vadd.f32 %v904, %v1013
    %v1015 = vpop.f32.mrb[0].mxu0
    %1016 = vmatprep.mubr.f32.mxu0 0.0
    %1017 = vmatmul.mubr.f32.gmra.mrb[0].mxu0 %v932
    %v1018 = vpop.f32.mrb[0].mxu0
    %v1019 = vadd.f32 %v909, %v1018
    %v1020 = vpop.f32.mrb[0].mxu0
    %1021 = vdwg.mxu0
    %v1022 = vmax.f32 %v1004, 0.0
    %v1023 = vmax.f32 %v1009, 0.0
    %v1024 = vmax.f32 %v1014, 0.0
    %v1025 = vmax.f32 %v1019, 0.0
    %v1026 = vsel %vm39, %v1022, 0.0
    %1027 = vadd.xlane.f32.xlu0 %v1026
    %v1028 = vpop.xlane.xlu0 %1027
    %v1029 = vsel %vm39, %v1023, 0.0
    %1030 = vadd.xlane.f32.xlu0 %v1029
    %v1031 = vpop.xlane.xlu0 %1030
    %v1032 = vsel %vm39, %v1024, 0.0
    %1033 = vadd.xlane.f32.xlu0 %v1032
    %v1034 = vpop.xlane.xlu0 %1033
    %v1035 = vsel %vm39, %v1025, 0.0
    %1036 = vadd.xlane.f32.xlu0 %v1035
    %v1037 = vpop.xlane.xlu0 %1036
    %v1038 = vmul.f32 %v1028, %v74
    %v1039 = vmul.f32 %v1031, %v74
    %v1040 = vmul.f32 %v1034, %v74
    %v1041 = vmul.f32 %v1037, %v74
    %v1042 = vsub.f32 %v1022, %v1038
    %v1043 = vsub.f32 %v1023, %v1039
    %v1044 = vsub.f32 %v1024, %v1040
    %v1045 = vsub.f32 %v1025, %v1041
    %v1046 = vmul.f32 %v1042, %v1042
    %v1047 = vmul.f32 %v1043, %v1043
    %v1048 = vmul.f32 %v1044, %v1044
    %v1049 = vmul.f32 %v1045, %v1045
    %v1050 = vsel %vm39, %v1046, 0.0
    %1051 = vadd.xlane.f32.xlu0 %v1050
    %v1052 = vpop.xlane.xlu0 %1051
    %v1053 = vsel %vm39, %v1047, 0.0
    %1054 = vadd.xlane.f32.xlu0 %v1053
    %v1055 = vpop.xlane.xlu0 %1054
    %v1056 = vsel %vm39, %v1048, 0.0
    %1057 = vadd.xlane.f32.xlu0 %v1056
    %v1058 = vpop.xlane.xlu0 %1057
    %v1059 = vsel %vm39, %v1049, 0.0
    %1060 = vadd.xlane.f32.xlu0 %v1059
    %v1061 = vpop.xlane.xlu0 %1060
    %v1062 = vmul.f32 %v1052, %v74
    %v1063 = vmul.f32 %v1055, %v74
    %v1064 = vmul.f32 %v1058, %v74
    %v1065 = vmul.f32 %v1061, %v74
    %v1066 = vadd.f32 %v1062, 1e-05
    %v1067 = vadd.f32 %v1063, 1e-05
    %v1068 = vadd.f32 %v1064, 1e-05
    %v1069 = vadd.f32 %v1065, 1e-05
    %v1070 = vrsqrt.pop %v1066
    %v1071 = vrsqrt.pop %v1067
    %v1072 = vrsqrt.pop %v1068
    %v1073 = vrsqrt.pop %v1069
    %v1074 = vmul.f32 %v887, %v1070
    %v1075 = vmul.f32 %v888, %v1071
    %v1076 = vmul.f32 %v889, %v1072
    %v1077 = vmul.f32 %v890, %v1073
    %v1078 = vmul.f32 %v1038, %v1074
    %v1079 = vmul.f32 %v1039, %v1075
    %v1080 = vmul.f32 %v1040, %v1076
    %v1081 = vmul.f32 %v1041, %v1077
    %1086 = vrot.lane.b32.xlu0 %v1078, 1
    %v1087 = vpop.permute.xlu0 %1086
    %1088 = vrot.lane.b32.xlu0 %v1079, 1
    %v1089 = vpop.permute.xlu0 %1088
    %1090 = vrot.lane.b32.xlu0 %v1080, 1
    %v1091 = vpop.permute.xlu0 %1090
    %1092 = vrot.lane.b32.xlu0 %v1081, 1
    %v1093 = vpop.permute.xlu0 %1092
    %v1098 = vsub.f32 %v887, %v1087
    %v1099 = vsub.f32 %v888, %v1089
    %v1100 = vsub.f32 %v889, %v1091
    %v1101 = vsub.f32 %v890, %v1093
    %1103 = vset.pattern.permute.xlu0 9
    %1104 = vperm.xlu0 %1103, %v1074
    %v1105 = vpop.permute.xlu0 %1104
    %1108 = vset.pattern.permute.xlu0 9
    %1109 = vperm.xlu0 %1108, %v1075
    %v1110 = vpop.permute.xlu0 %1109
    %1113 = vset.pattern.permute.xlu0 9
    %1114 = vperm.xlu0 %1113, %v1076
    %v1115 = vpop.permute.xlu0 %1114
    %1118 = vset.pattern.permute.xlu0 9
    %1119 = vperm.xlu0 %1118, %v1077
    %v1120 = vpop.permute.xlu0 %1119
    %v1122 = vmul.f32 %v1022, %v1105
    %v1123 = vmul.f32 %v1023, %v1110
    %v1124 = vmul.f32 %v1024, %v1115
    %v1125 = vmul.f32 %v1025, %v1120
    %1127 = vset.pattern.permute.xlu0 10
    %1128 = vperm.xlu0 %1127, %v1098
    %v1129 = vpop.permute.xlu0 %1128
    %1132 = vset.pattern.permute.xlu0 10
    %1133 = vperm.xlu0 %1132, %v1099
    %v1134 = vpop.permute.xlu0 %1133
    %1137 = vset.pattern.permute.xlu0 10
    %1138 = vperm.xlu0 %1137, %v1100
    %v1139 = vpop.permute.xlu0 %1138
    %1142 = vset.pattern.permute.xlu0 10
    %1143 = vperm.xlu0 %1142, %v1101
    %v1144 = vpop.permute.xlu0 %1143
    %v1146 = vadd.f32 %v1122, %v1129
    %v1147 = vadd.f32 %v1123, %v1134
    %v1148 = vadd.f32 %v1124, %v1139
    %v1149 = vadd.f32 %v1125, %v1144
    %1150 = vst.msk [vmem:[#allocation8] sm:$0xff] %vm39, %v1146
    %1151 = vst.msk [vmem:[#allocation8 + $0x8] sm:$0xff] %vm39, %v1147
    %1152 = vst.msk [vmem:[#allocation8 + $0x10] sm:$0xff] %vm39, %v1148
    %1153 = vst.msk [vmem:[#allocation8 + $0x18] sm:$0xff] %vm39, %v1149
    %v1154 = vld [vmem:[#allocation8] sm:$0xff]
    %v1155 = vld [vmem:[#allocation8 + $0x8] sm:$0xff]
    %v1156 = vld [vmem:[#allocation8 + $0x10] sm:$0xff]
    %v1157 = vld [vmem:[#allocation8 + $0x18] sm:$0xff]
    %1162 = vrot.lane.b32.xlu0 %v1154, 3
    %v1163 = vpop.permute.xlu0 %1162
    %1164 = vrot.lane.b32.xlu0 %v1155, 3
    %v1165 = vpop.permute.xlu0 %1164
    %1166 = vrot.lane.b32.xlu0 %v1156, 3
    %v1167 = vpop.permute.xlu0 %1166
    %1168 = vrot.lane.b32.xlu0 %v1157, 3
    %v1169 = vpop.permute.xlu0 %1168
    %1174 = vst.msk [vmem:[#allocation5] sm:$0xff] %vm386, %v1163
    %1175 = vst.msk [vmem:[#allocation5 + $0x8] sm:$0xff] %vm386, %v1165
    %1176 = vst.msk [vmem:[#allocation5 + $0x10] sm:$0xff] %vm386, %v1167
    %1177 = vst.msk [vmem:[#allocation5 + $0x18] sm:$0xff] %vm386, %v1169
    %v1178 = vld [vmem:[#allocation8] sm:$0xff]
    %v1179 = vld [vmem:[#allocation8 + $0x8] sm:$0xff]
    %v1180 = vld [vmem:[#allocation8 + $0x10] sm:$0xff]
    %v1181 = vld [vmem:[#allocation8 + $0x18] sm:$0xff]
    %1186 = vrot.lane.b32.xlu0 %v1178, 3
    %v1187 = vpop.permute.xlu0 %1186
    %1188 = vrot.lane.b32.xlu0 %v1179, 3
    %v1189 = vpop.permute.xlu0 %1188
    %1190 = vrot.lane.b32.xlu0 %v1180, 3
    %v1191 = vpop.permute.xlu0 %1190
    %1192 = vrot.lane.b32.xlu0 %v1181, 3
    %v1193 = vpop.permute.xlu0 %1192
    %1198 = vst.msk [vmem:[#allocation5] sm:$0xff] %vm411, %v1187
    %1199 = vst.msk [vmem:[#allocation5 + $0x8] sm:$0xff] %vm411, %v1189
    %1200 = vst.msk [vmem:[#allocation5 + $0x10] sm:$0xff] %vm411, %v1191
    %1201 = vst.msk [vmem:[#allocation5 + $0x18] sm:$0xff] %vm411, %v1193
    %v1202 = vld [vmem:[#allocation8] sm:$0xff]
    %v1203 = vld [vmem:[#allocation8 + $0x8] sm:$0xff]
    %v1204 = vld [vmem:[#allocation8 + $0x10] sm:$0xff]
    %v1205 = vld [vmem:[#allocation8 + $0x18] sm:$0xff]
    %1210 = vrot.lane.b32.xlu0 %v1202, 2
    %v1211 = vpop.permute.xlu0 %1210
    %1212 = vrot.lane.b32.xlu0 %v1203, 2
    %v1213 = vpop.permute.xlu0 %1212
    %1214 = vrot.lane.b32.xlu0 %v1204, 2
    %v1215 = vpop.permute.xlu0 %1214
    %1216 = vrot.lane.b32.xlu0 %v1205, 2
    %v1217 = vpop.permute.xlu0 %1216
    %1222 = vst.msk [vmem:[#allocation5 + $0x20] sm:$0xff] %vm436, %v1211
    %1223 = vst.msk [vmem:[#allocation5 + $0x28] sm:$0xff] %vm436, %v1213
    %1224 = vst.msk [vmem:[#allocation5 + $0x30] sm:$0xff] %vm436, %v1215
    %1225 = vst.msk [vmem:[#allocation5 + $0x38] sm:$0xff] %vm436, %v1217
    %v1226 = vld [vmem:[#allocation8] sm:$0xff]
    %v1227 = vld [vmem:[#allocation8 + $0x8] sm:$0xff]
    %v1228 = vld [vmem:[#allocation8 + $0x10] sm:$0xff]
    %v1229 = vld [vmem:[#allocation8 + $0x18] sm:$0xff]
    %1234 = vrot.lane.b32.xlu0 %v1226, 2
    %v1235 = vpop.permute.xlu0 %1234
    %1236 = vrot.lane.b32.xlu0 %v1227, 2
    %v1237 = vpop.permute.xlu0 %1236
    %1238 = vrot.lane.b32.xlu0 %v1228, 2
    %v1239 = vpop.permute.xlu0 %1238
    %1240 = vrot.lane.b32.xlu0 %v1229, 2
    %v1241 = vpop.permute.xlu0 %1240
    %1246 = vst.msk [vmem:[#allocation5 + $0x20] sm:$0xff] %vm461, %v1235
    %1247 = vst.msk [vmem:[#allocation5 + $0x28] sm:$0xff] %vm461, %v1237
    %1248 = vst.msk [vmem:[#allocation5 + $0x30] sm:$0xff] %vm461, %v1239
    %1249 = vst.msk [vmem:[#allocation5 + $0x38] sm:$0xff] %vm461, %v1241
    %v1250 = vld [vmem:[#allocation8] sm:$0xff]
    %v1251 = vld [vmem:[#allocation8 + $0x8] sm:$0xff]
    %v1252 = vld [vmem:[#allocation8 + $0x10] sm:$0xff]
    %v1253 = vld [vmem:[#allocation8 + $0x18] sm:$0xff]
    %1258 = vrot.lane.b32.xlu0 %v1250, 1
    %v1259 = vpop.permute.xlu0 %1258
    %1260 = vrot.lane.b32.xlu0 %v1251, 1
    %v1261 = vpop.permute.xlu0 %1260
    %1262 = vrot.lane.b32.xlu0 %v1252, 1
    %v1263 = vpop.permute.xlu0 %1262
    %1264 = vrot.lane.b32.xlu0 %v1253, 1
    %v1265 = vpop.permute.xlu0 %1264
    %1270 = vst.msk [vmem:[#allocation5 + $0x40] sm:$0xff] %vm486, %v1259
    %1271 = vst.msk [vmem:[#allocation5 + $0x48] sm:$0xff] %vm486, %v1261
    %1272 = vst.msk [vmem:[#allocation5 + $0x50] sm:$0xff] %vm486, %v1263
    %1273 = vst.msk [vmem:[#allocation5 + $0x58] sm:$0xff] %vm486, %v1265
    %v1274 = vld [vmem:[#allocation8] sm:$0xff]
    %v1275 = vld [vmem:[#allocation8 + $0x8] sm:$0xff]
    %v1276 = vld [vmem:[#allocation8 + $0x10] sm:$0xff]
    %v1277 = vld [vmem:[#allocation8 + $0x18] sm:$0xff]
    %1282 = vrot.lane.b32.xlu0 %v1274, 1
    %v1283 = vpop.permute.xlu0 %1282
    %1284 = vrot.lane.b32.xlu0 %v1275, 1
    %v1285 = vpop.permute.xlu0 %1284
    %1286 = vrot.lane.b32.xlu0 %v1276, 1
    %v1287 = vpop.permute.xlu0 %1286
    %1288 = vrot.lane.b32.xlu0 %v1277, 1
    %v1289 = vpop.permute.xlu0 %1288
    %1294 = vst.msk [vmem:[#allocation5 + $0x40] sm:$0xff] %vm511, %v1283
    %1295 = vst.msk [vmem:[#allocation5 + $0x48] sm:$0xff] %vm511, %v1285
    %1296 = vst.msk [vmem:[#allocation5 + $0x50] sm:$0xff] %vm511, %v1287
    %1297 = vst.msk [vmem:[#allocation5 + $0x58] sm:$0xff] %vm511, %v1289
    %v1298 = vld [vmem:[#allocation8] sm:$0xff]
    %v1299 = vld [vmem:[#allocation8 + $0x8] sm:$0xff]
    %v1300 = vld [vmem:[#allocation8 + $0x10] sm:$0xff]
    %v1301 = vld [vmem:[#allocation8 + $0x18] sm:$0xff]
    %1302 = vst.msk [vmem:[#allocation5 + $0x60] sm:$0xff] %vm520, %v1298
    %1303 = vst.msk [vmem:[#allocation5 + $0x68] sm:$0xff] %vm520, %v1299
    %1304 = vst.msk [vmem:[#allocation5 + $0x70] sm:$0xff] %vm520, %v1300
    %1305 = vst.msk [vmem:[#allocation5 + $0x78] sm:$0xff] %vm520, %v1301
    %v1306 = vld [vmem:[#allocation8] sm:$0xff]
    %v1307 = vld [vmem:[#allocation8 + $0x8] sm:$0xff]
    %v1308 = vld [vmem:[#allocation8 + $0x10] sm:$0xff]
    %v1309 = vld [vmem:[#allocation8 + $0x18] sm:$0xff]
    %1310 = vst.msk [vmem:[#allocation5 + $0x60] sm:$0xff] %vm529, %v1306
    %1311 = vst.msk [vmem:[#allocation5 + $0x68] sm:$0xff] %vm529, %v1307
    %1312 = vst.msk [vmem:[#allocation5 + $0x70] sm:$0xff] %vm529, %v1308
    %1313 = vst.msk [vmem:[#allocation5 + $0x78] sm:$0xff] %vm529, %v1309
    %v1314 = vld [vmem:[#allocation8] sm:$0xff]
    %v1315 = vld [vmem:[#allocation8 + $0x8] sm:$0xff]
    %v1316 = vld [vmem:[#allocation8 + $0x10] sm:$0xff]
    %v1317 = vld [vmem:[#allocation8 + $0x18] sm:$0xff]
    %1322 = vrot.lane.b32.xlu0 %v1314, 127
    %v1323 = vpop.permute.xlu0 %1322
    %1324 = vrot.lane.b32.xlu0 %v1315, 127
    %v1325 = vpop.permute.xlu0 %1324
    %1326 = vrot.lane.b32.xlu0 %v1316, 127
    %v1327 = vpop.permute.xlu0 %1326
    %1328 = vrot.lane.b32.xlu0 %v1317, 127
    %v1329 = vpop.permute.xlu0 %1328
    %1334 = vst.msk [vmem:[#allocation5 + $0x80] sm:$0xff] %vm554, %v1323
    %1335 = vst.msk [vmem:[#allocation5 + $0x88] sm:$0xff] %vm554, %v1325
    %1336 = vst.msk [vmem:[#allocation5 + $0x90] sm:$0xff] %vm554, %v1327
    %1337 = vst.msk [vmem:[#allocation5 + $0x98] sm:$0xff] %vm554, %v1329
    %v1338 = vld [vmem:[#allocation8] sm:$0xff]
    %v1339 = vld [vmem:[#allocation8 + $0x8] sm:$0xff]
    %v1340 = vld [vmem:[#allocation8 + $0x10] sm:$0xff]
    %v1341 = vld [vmem:[#allocation8 + $0x18] sm:$0xff]
    %1346 = vrot.lane.b32.xlu0 %v1338, 127
    %v1347 = vpop.permute.xlu0 %1346
    %1348 = vrot.lane.b32.xlu0 %v1339, 127
    %v1349 = vpop.permute.xlu0 %1348
    %1350 = vrot.lane.b32.xlu0 %v1340, 127
    %v1351 = vpop.permute.xlu0 %1350
    %1352 = vrot.lane.b32.xlu0 %v1341, 127
    %v1353 = vpop.permute.xlu0 %1352
    %1358 = vst.msk [vmem:[#allocation5 + $0x80] sm:$0xff] %vm579, %v1347
    %1359 = vst.msk [vmem:[#allocation5 + $0x88] sm:$0xff] %vm579, %v1349
    %1360 = vst.msk [vmem:[#allocation5 + $0x90] sm:$0xff] %vm579, %v1351
    %1361 = vst.msk [vmem:[#allocation5 + $0x98] sm:$0xff] %vm579, %v1353
    %v1362 = vld [vmem:[#allocation8] sm:$0xff]
    %v1363 = vld [vmem:[#allocation8 + $0x8] sm:$0xff]
    %v1364 = vld [vmem:[#allocation8 + $0x10] sm:$0xff]
    %v1365 = vld [vmem:[#allocation8 + $0x18] sm:$0xff]
    %1370 = vrot.lane.b32.xlu0 %v1362, 126
    %v1371 = vpop.permute.xlu0 %1370
    %1372 = vrot.lane.b32.xlu0 %v1363, 126
    %v1373 = vpop.permute.xlu0 %1372
    %1374 = vrot.lane.b32.xlu0 %v1364, 126
    %v1375 = vpop.permute.xlu0 %1374
    %1376 = vrot.lane.b32.xlu0 %v1365, 126
    %v1377 = vpop.permute.xlu0 %1376
    %1382 = vst.msk [vmem:[#allocation5 + $0xa0] sm:$0xff] %vm604, %v1371
    %1383 = vst.msk [vmem:[#allocation5 + $0xa8] sm:$0xff] %vm604, %v1373
    %1384 = vst.msk [vmem:[#allocation5 + $0xb0] sm:$0xff] %vm604, %v1375
    %1385 = vst.msk [vmem:[#allocation5 + $0xb8] sm:$0xff] %vm604, %v1377
    %v1386 = vld [vmem:[#allocation8] sm:$0xff]
    %v1387 = vld [vmem:[#allocation8 + $0x8] sm:$0xff]
    %v1388 = vld [vmem:[#allocation8 + $0x10] sm:$0xff]
    %v1389 = vld [vmem:[#allocation8 + $0x18] sm:$0xff]
    %1394 = vrot.lane.b32.xlu0 %v1386, 126
    %v1395 = vpop.permute.xlu0 %1394
    %1396 = vrot.lane.b32.xlu0 %v1387, 126
    %v1397 = vpop.permute.xlu0 %1396
    %1398 = vrot.lane.b32.xlu0 %v1388, 126
    %v1399 = vpop.permute.xlu0 %1398
    %1400 = vrot.lane.b32.xlu0 %v1389, 126
    %v1401 = vpop.permute.xlu0 %1400
    %1406 = vst.msk [vmem:[#allocation5 + $0xa0] sm:$0xff] %vm629, %v1395
    %1407 = vst.msk [vmem:[#allocation5 + $0xa8] sm:$0xff] %vm629, %v1397
    %1408 = vst.msk [vmem:[#allocation5 + $0xb0] sm:$0xff] %vm629, %v1399
    %1409 = vst.msk [vmem:[#allocation5 + $0xb8] sm:$0xff] %vm629, %v1401
    %v1410 = vld [vmem:[#allocation8] sm:$0xff]
    %v1411 = vld [vmem:[#allocation8 + $0x8] sm:$0xff]
    %v1412 = vld [vmem:[#allocation8 + $0x10] sm:$0xff]
    %v1413 = vld [vmem:[#allocation8 + $0x18] sm:$0xff]
    %1418 = vrot.lane.b32.xlu0 %v1410, 125
    %v1419 = vpop.permute.xlu0 %1418
    %1420 = vrot.lane.b32.xlu0 %v1411, 125
    %v1421 = vpop.permute.xlu0 %1420
    %1422 = vrot.lane.b32.xlu0 %v1412, 125
    %v1423 = vpop.permute.xlu0 %1422
    %1424 = vrot.lane.b32.xlu0 %v1413, 125
    %v1425 = vpop.permute.xlu0 %1424
    %1430 = vst.msk [vmem:[#allocation5 + $0xc0] sm:$0xff] %vm654, %v1419
    %1431 = vst.msk [vmem:[#allocation5 + $0xc8] sm:$0xff] %vm654, %v1421
    %1432 = vst.msk [vmem:[#allocation5 + $0xd0] sm:$0xff] %vm654, %v1423
    %1433 = vst.msk [vmem:[#allocation5 + $0xd8] sm:$0xff] %vm654, %v1425
    %v1434 = vld [vmem:[#allocation8] sm:$0xff]
    %v1435 = vld [vmem:[#allocation8 + $0x8] sm:$0xff]
    %v1436 = vld [vmem:[#allocation8 + $0x10] sm:$0xff]
    %v1437 = vld [vmem:[#allocation8 + $0x18] sm:$0xff]
    %1442 = vrot.lane.b32.xlu0 %v1434, 125
    %v1443 = vpop.permute.xlu0 %1442
    %1444 = vrot.lane.b32.xlu0 %v1435, 125
    %v1445 = vpop.permute.xlu0 %1444
    %1446 = vrot.lane.b32.xlu0 %v1436, 125
    %v1447 = vpop.permute.xlu0 %1446
    %1448 = vrot.lane.b32.xlu0 %v1437, 125
    %v1449 = vpop.permute.xlu0 %1448
    %1454 = vst.msk [vmem:[#allocation5 + $0xc0] sm:$0xff] %vm679, %v1443
    %1455 = vst.msk [vmem:[#allocation5 + $0xc8] sm:$0xff] %vm679, %v1445
    %1456 = vst.msk [vmem:[#allocation5 + $0xd0] sm:$0xff] %vm679, %v1447
    %1457 = vst.msk [vmem:[#allocation5 + $0xd8] sm:$0xff] %vm679, %v1449
    %v1458 = vld [vmem:[#allocation10 + $0x90] sm:$0xfc]
    %v1459 = vld [vmem:[#allocation10 + $0x98] sm:$0xfc]
    %v1460 = vld [vmem:[#allocation10 + $0xa0] sm:$0xf]
    %v1461 = vld [vmem:[#allocation10 + $0xa8] sm:$0xf]
    %v1462 = vld [vmem:[#allocation5] sm:$0xff]
    %v1463 = vld [vmem:[#allocation5 + $0x8] sm:$0xff]
    %v1464 = vld [vmem:[#allocation5 + $0x10] sm:$0xff]
    %v1465 = vld [vmem:[#allocation5 + $0x18] sm:$0xff]
    %v1466 = vld [vmem:[#allocation5 + $0x20] sm:$0xff]
    %v1467 = vld [vmem:[#allocation5 + $0x28] sm:$0xff]
    %v1468 = vld [vmem:[#allocation5 + $0x30] sm:$0xff]
    %v1469 = vld [vmem:[#allocation5 + $0x38] sm:$0xff]
    %v1470 = vld [vmem:[#allocation5 + $0x40] sm:$0xff]
    %v1471 = vld [vmem:[#allocation5 + $0x48] sm:$0xff]
    %v1472 = vld [vmem:[#allocation5 + $0x50] sm:$0xff]
    %v1473 = vld [vmem:[#allocation5 + $0x58] sm:$0xff]
    %v1474 = vld [vmem:[#allocation5 + $0x60] sm:$0xff]
    %v1475 = vld [vmem:[#allocation5 + $0x68] sm:$0xff]
    %v1476 = vld [vmem:[#allocation5 + $0x70] sm:$0xff]
    %v1477 = vld [vmem:[#allocation5 + $0x78] sm:$0xff]
    %v1478 = vld [vmem:[#allocation5 + $0x80] sm:$0xff]
    %v1479 = vld [vmem:[#allocation5 + $0x88] sm:$0xff]
    %v1480 = vld [vmem:[#allocation5 + $0x90] sm:$0xff]
    %v1481 = vld [vmem:[#allocation5 + $0x98] sm:$0xff]
    %v1482 = vld [vmem:[#allocation5 + $0xa0] sm:$0xff]
    %v1483 = vld [vmem:[#allocation5 + $0xa8] sm:$0xff]
    %v1484 = vld [vmem:[#allocation5 + $0xb0] sm:$0xff]
    %v1485 = vld [vmem:[#allocation5 + $0xb8] sm:$0xff]
    %v1486 = vld [vmem:[#allocation5 + $0xc0] sm:$0xff]
    %v1487 = vld [vmem:[#allocation5 + $0xc8] sm:$0xff]
    %v1488 = vld [vmem:[#allocation5 + $0xd0] sm:$0xff]
    %v1489 = vld [vmem:[#allocation5 + $0xd8] sm:$0xff]
    %v1490 = vld [vmem:[%s1] sm:$0xff]
    %v1491 = vld [vmem:[%s1 + $0x8] sm:$0x3]
    %1493 = vset.pattern.permute.xlu0 11
    %1494 = vperm.xlu0 %1493, %v1490
    %v1495 = vpop.permute.xlu0 %1494
    %1498 = vset.pattern.permute.xlu0 11
    %1499 = vperm.xlu0 %1498, %v1491
    %v1500 = vpop.permute.xlu0 %1499
    %v1506 = vrot.slane %v1458, 2
    %v1507 = vrot.slane %v1460, 2
    %v1508 = vsel %vm916, %v1506, %v1507
    %v1509 = vrot.slane %v1459, 2
    %v1510 = vrot.slane %v1461, 2
    %v1511 = vsel %vm916, %v1509, %v1510
    %v1514 = vsel %vm728, %v1511, 0
    %v1516 = vsel %vm728, %v1510, 0
    %1518 = vmatprep.subr.mxu0 0.0
    %1519 = vmatpush1.msra.mxu0 %v1462
    %1520 = vmatprep.subr.mxu0 0.0
    %1521 = vmatpush1.msra.mxu0 %v1463
    %1522 = vmatprep.subr.mxu0 0.0
    %1523 = vmatpush1.msra.mxu0 %v1464
    %1524 = vmatprep.subr.mxu0 0.0
    %1525 = vmatpush1.msra.mxu0 %v1465
    %1526 = vmatprep.subr.mxu0 0.0
    %1527 = vmatpush1.msra.mxu0 %v1466
    %1528 = vmatprep.subr.mxu0 0.0
    %1529 = vmatpush1.msra.mxu0 %v1467
    %1530 = vmatprep.subr.mxu0 0.0
    %1531 = vmatpush1.msra.mxu0 %v1468
    %1532 = vmatprep.subr.mxu0 0.0
    %1533 = vmatpush1.msra.mxu0 %v1469
    %1534 = vmatprep.subr.mxu0 0.0
    %1535 = vmatpush1.msra.mxu0 %v1470
    %1536 = vmatprep.subr.mxu0 0.0
    %1537 = vmatpush1.msra.mxu0 %v1471
    %1538 = vmatprep.subr.mxu0 0.0
    %1539 = vmatpush1.msra.mxu0 %v1472
    %1540 = vmatprep.subr.mxu0 0.0
    %1541 = vmatpush1.msra.mxu0 %v1473
    %1542 = vmatprep.subr.mxu0 0.0
    %1543 = vmatpush1.msra.mxu0 %v1474
    %1544 = vmatprep.subr.mxu0 0.0
    %1545 = vmatpush1.msra.mxu0 %v1475
    %1546 = vmatprep.subr.mxu0 0.0
    %1547 = vmatpush1.msra.mxu0 %v1476
    %1548 = vmatprep.subr.mxu0 0.0
    %1549 = vmatpush1.msra.mxu0 %v1477
    %1550 = vmatprep.subr.mxu0 0.0
    %1551 = vmatpush1.msra.mxu0 %v1478
    %1552 = vmatprep.subr.mxu0 0.0
    %1553 = vmatpush1.msra.mxu0 %v1479
    %1554 = vmatprep.subr.mxu0 0.0
    %1555 = vmatpush1.msra.mxu0 %v1480
    %1556 = vmatprep.subr.mxu0 0.0
    %1557 = vmatpush1.msra.mxu0 %v1481
    %1558 = vmatprep.subr.mxu0 0.0
    %1559 = vmatpush1.msra.mxu0 %v1482
    %1560 = vmatprep.subr.mxu0 0.0
    %1561 = vmatpush1.msra.mxu0 %v1483
    %1562 = vmatprep.subr.mxu0 0.0
    %1563 = vmatpush1.msra.mxu0 %v1484
    %1564 = vmatprep.subr.mxu0 0.0
    %1565 = vmatpush1.msra.mxu0 %v1485
    %1566 = vmatprep.subr.mxu0 0.0
    %1567 = vmatpush1.msra.mxu0 %v1486
    %1568 = vmatprep.subr.mxu0 0.0
    %1569 = vmatpush1.msra.mxu0 %v1487
    %1570 = vmatprep.subr.mxu0 0.0
    %1571 = vmatpush1.msra.mxu0 %v1488
    %1572 = vmatprep.subr.mxu0 0.0
    %1573 = vmatpush1.msra.mxu0 %v1489
    %1574 = vmatprep.subr.mxu0 0.0
    %1575 = vmatpush1.msra.mxu0 0.0
    %1576 = vmatprep.subr.mxu0 0.0
    %1577 = vmatpush1.msra.mxu0 0.0
    %1578 = vmatprep.subr.mxu0 0.0
    %1579 = vmatpush1.msra.mxu0 0.0
    %1580 = vmatprep.subr.mxu0 0.0
    %1581 = vmatpush1.msra.mxu0 0.0
    %1582 = vmatprep.mubr.f32.mxu0 %v1514
    %1583 = vmatmul.mubr.f32.gmra.mrb[0].mxu0 %v1508
    %v1584 = vpop.f32.mrb[0].mxu0
    %v1585 = vadd.f32 %v1495, %v1584
    %v1586 = vpop.f32.mrb[0].mxu0
    %1587 = vmatprep.mubr.f32.mxu0 %v1516
    %1588 = vmatmul.mubr.f32.gmra.mrb[0].mxu0 %v1507
    %v1589 = vpop.f32.mrb[0].mxu0
    %v1590 = vadd.f32 %v1500, %v1589
    %v1591 = vpop.f32.mrb[0].mxu0
    %1592 = vdwg.mxu0
    %1593 = vst.msk [vmem:[#allocation2 + $0xe] sm:$0xff] %vm39, %v1585
    %1594 = vst.msk [vmem:[#allocation2 + $0x16] sm:$0x3] %vm811, %v1590
    %v1595 = vld [vmem:[#allocation2] sm:$0xff]
    %v1596 = vld [vmem:[#allocation2 + $0x8] sm:$0xff]
    %v1597 = vld [vmem:[#allocation2 + $0x10] sm:$0xff]
    %v1598 = vmax.f32 %v1595, 0.0
    %v1599 = vmax.f32 %v1596, 0.0
    %v1600 = vmax.f32 %v1597, 0.0
    %v1601 = vsel %vm39, %v1598, 0.0
    %1602 = vadd.xlane.f32.xlu0 %v1601
    %v1603 = vpop.xlane.xlu0 %1602
    %v1604 = vsel %vm39, %v1599, 0.0
    %1605 = vadd.xlane.f32.xlu0 %v1604
    %v1606 = vpop.xlane.xlu0 %1605
    %v1607 = vsel %vm39, %v1600, 0.0
    %1608 = vadd.xlane.f32.xlu0 %v1607
    %v1609 = vpop.xlane.xlu0 %1608
    %v1610 = vmul.f32 %v1603, %v74
    %v1611 = vmul.f32 %v1606, %v74
    %v1612 = vmul.f32 %v1609, %v74
    %v1613 = vsub.f32 %v1598, %v1610
    %v1614 = vsub.f32 %v1599, %v1611
    %v1615 = vsub.f32 %v1600, %v1612
    %v1616 = vmul.f32 %v1613, %v1613
    %v1617 = vmul.f32 %v1614, %v1614
    %v1618 = vmul.f32 %v1615, %v1615
    %v1619 = vsel %vm39, %v1616, 0.0
    %1620 = vadd.xlane.f32.xlu0 %v1619
    %v1621 = vpop.xlane.xlu0 %1620
    %v1622 = vsel %vm39, %v1617, 0.0
    %1623 = vadd.xlane.f32.xlu0 %v1622
    %v1624 = vpop.xlane.xlu0 %1623
    %v1625 = vsel %vm39, %v1618, 0.0
    %1626 = vadd.xlane.f32.xlu0 %v1625
    %v1627 = vpop.xlane.xlu0 %1626
    %v1628 = vmul.f32 %v1621, %v74
    %v1629 = vmul.f32 %v1624, %v74
    %v1630 = vmul.f32 %v1627, %v74
    %v1631 = vld [vmem:[%s1] sm:$0xff]
    %v1632 = vld [vmem:[%s1 + $0x8] sm:$0xff]
    %v1633 = vld [vmem:[%s1 + $0x10] sm:$0xff]
    %v1634 = vadd.f32 %v1628, 1e-05
    %v1635 = vadd.f32 %v1629, 1e-05
    %v1636 = vadd.f32 %v1630, 1e-05
    %v1637 = vrsqrt.pop %v1634
    %v1638 = vrsqrt.pop %v1635
    %v1639 = vrsqrt.pop %v1636
    %v1640 = vmul.f32 %v1631, %v1637
    %v1641 = vmul.f32 %v1632, %v1638
    %v1642 = vmul.f32 %v1633, %v1639
    %v1643 = vmul.f32 %v1610, %v1640
    %v1644 = vmul.f32 %v1611, %v1641
    %v1645 = vmul.f32 %v1612, %v1642
    %1649 = vrot.lane.b32.xlu0 %v1643, 1
    %v1650 = vpop.permute.xlu0 %1649
    %1651 = vrot.lane.b32.xlu0 %v1644, 1
    %v1652 = vpop.permute.xlu0 %1651
    %1653 = vrot.lane.b32.xlu0 %v1645, 1
    %v1654 = vpop.permute.xlu0 %1653
    %v1658 = vsub.f32 %v1631, %v1650
    %v1659 = vsub.f32 %v1632, %v1652
    %v1660 = vsub.f32 %v1633, %v1654
    %v1661 = vld [vmem:[#allocation10 + $0xa0] sm:$0xf0]
    %v1662 = vld [vmem:[#allocation10 + $0xb0] sm:$0xff]
    %v1663 = vld [vmem:[#allocation10 + $0xc0] sm:$0xff]
    %v1664 = vld [vmem:[#allocation10 + $0xd0] sm:$0xff]
    %v1665 = vld [vmem:[#allocation10 + $0xe0] sm:$0xf]
    %1667 = vset.pattern.permute.xlu0 12
    %1668 = vperm.xlu0 %1667, %v1640
    %v1669 = vpop.permute.xlu0 %1668
    %1672 = vset.pattern.permute.xlu0 12
    %1673 = vperm.xlu0 %1672, %v1641
    %v1674 = vpop.permute.xlu0 %1673
    %1677 = vset.pattern.permute.xlu0 12
    %1678 = vperm.xlu0 %1677, %v1642
    %v1679 = vpop.permute.xlu0 %1678
    %v1681 = vmul.f32 %v1598, %v1669
    %v1682 = vmul.f32 %v1599, %v1674
    %v1683 = vmul.f32 %v1600, %v1679
    %1685 = vset.pattern.permute.xlu0 13
    %1686 = vperm.xlu0 %1685, %v1658
    %v1687 = vpop.permute.xlu0 %1686
    %1690 = vset.pattern.permute.xlu0 13
    %1691 = vperm.xlu0 %1690, %v1659
    %v1692 = vpop.permute.xlu0 %1691
    %1695 = vset.pattern.permute.xlu0 13
    %1696 = vperm.xlu0 %1695, %v1660
    %v1697 = vpop.permute.xlu0 %1696
    %v1699 = vadd.f32 %v1681, %v1687
    %v1700 = vadd.f32 %v1682, %v1692
    %v1701 = vadd.f32 %v1683, %v1697
    %v1702 = vld [vmem:[%s1] sm:$0xff]
    %v1703 = vld [vmem:[%s1 + $0x8] sm:$0xff]
    %v1704 = vld [vmem:[%s1 + $0x10] sm:$0xff]
    %v1705 = vld [vmem:[%s1 + $0x18] sm:$0xff]
    %1707 = vset.pattern.permute.xlu0 14
    %1708 = vperm.xlu0 %1707, %v1702
    %v1709 = vpop.permute.xlu0 %1708
    %1712 = vset.pattern.permute.xlu0 14
    %1713 = vperm.xlu0 %1712, %v1703
    %v1714 = vpop.permute.xlu0 %1713
    %1717 = vset.pattern.permute.xlu0 14
    %1718 = vperm.xlu0 %1717, %v1704
    %v1719 = vpop.permute.xlu0 %1718
    %1722 = vset.pattern.permute.xlu0 14
    %1723 = vperm.xlu0 %1722, %v1705
    %v1724 = vpop.permute.xlu0 %1723
    %v1731 = vrot.slane %v1661, 4
    %v1732 = vrot.slane %v1662, 4
    %v1733 = vsel %vm145, %v1731, %v1732
    %v1734 = vrot.slane %v1663, 4
    %v1735 = vsel %vm145, %v1732, %v1734
    %v1736 = vrot.slane %v1664, 4
    %v1737 = vsel %vm145, %v1734, %v1736
    %v1738 = vrot.slane %v1665, 4
    %v1739 = vsel %vm145, %v1736, %v1738
    %vm1740 = vcmask 195584
    %v1741 = vsel %vm1740, %v1733, 0
    %v1743 = vsel %vm1740, %v1735, 0
    %v1745 = vsel %vm1740, %v1737, 0
    %v1747 = vsel %vm1740, %v1739, 0
    %1749 = vmatprep.subr.mxu0 0.0
    %1750 = vmatpush1.msra.mxu0 %v1699
    %1751 = vmatprep.subr.mxu0 0.0
    %1752 = vmatpush1.msra.mxu0 %v1700
    %1753 = vmatprep.subr.mxu0 0.0
    %1754 = vmatpush1.msra.mxu0 %v1701
    %1755 = vmatprep.subr.mxu0 0.0
    %1756 = vmatpush1.msra.mxu0 0.0
    %1757 = vmatprep.subr.mxu0 0.0
    %1758 = vmatpush1.msra.mxu0 0.0
    %1759 = vmatprep.subr.mxu0 0.0
    %1760 = vmatpush1.msra.mxu0 0.0
    %1761 = vmatprep.subr.mxu0 0.0
    %1762 = vmatpush1.msra.mxu0 0.0
    %1763 = vmatprep.subr.mxu0 0.0
    %1764 = vmatpush1.msra.mxu0 0.0
    %1765 = vmatprep.subr.mxu0 0.0
    %1766 = vmatpush1.msra.mxu0 0.0
    %1767 = vmatprep.subr.mxu0 0.0
    %1768 = vmatpush1.msra.mxu0 0.0
    %1769 = vmatprep.subr.mxu0 0.0
    %1770 = vmatpush1.msra.mxu0 0.0
    %1771 = vmatprep.subr.mxu0 0.0
    %1772 = vmatpush1.msra.mxu0 0.0
    %1773 = vmatprep.subr.mxu0 0.0
    %1774 = vmatpush1.msra.mxu0 0.0
    %1775 = vmatprep.subr.mxu0 0.0
    %1776 = vmatpush1.msra.mxu0 0.0
    %1777 = vmatprep.subr.mxu0 0.0
    %1778 = vmatpush1.msra.mxu0 0.0
    %1779 = vmatprep.subr.mxu0 0.0
    %1780 = vmatpush1.msra.mxu0 0.0
    %1781 = vmatprep.subr.mxu0 0.0
    %1782 = vmatpush1.msra.mxu0 0.0
    %1783 = vmatprep.subr.mxu0 0.0
    %1784 = vmatpush1.msra.mxu0 0.0
    %1785 = vmatprep.subr.mxu0 0.0
    %1786 = vmatpush1.msra.mxu0 0.0
    %1787 = vmatprep.subr.mxu0 0.0
    %1788 = vmatpush1.msra.mxu0 0.0
    %1789 = vmatprep.subr.mxu0 0.0
    %1790 = vmatpush1.msra.mxu0 0.0
    %1791 = vmatprep.subr.mxu0 0.0
    %1792 = vmatpush1.msra.mxu0 0.0
    %1793 = vmatprep.subr.mxu0 0.0
    %1794 = vmatpush1.msra.mxu0 0.0
    %1795 = vmatprep.subr.mxu0 0.0
    %1796 = vmatpush1.msra.mxu0 0.0
    %1797 = vmatprep.subr.mxu0 0.0
    %1798 = vmatpush1.msra.mxu0 0.0
    %1799 = vmatprep.subr.mxu0 0.0
    %1800 = vmatpush1.msra.mxu0 0.0
    %1801 = vmatprep.subr.mxu0 0.0
    %1802 = vmatpush1.msra.mxu0 0.0
    %1803 = vmatprep.subr.mxu0 0.0
    %1804 = vmatpush1.msra.mxu0 0.0
    %1805 = vmatprep.subr.mxu0 0.0
    %1806 = vmatpush1.msra.mxu0 0.0
    %1807 = vmatprep.subr.mxu0 0.0
    %1808 = vmatpush1.msra.mxu0 0.0
    %1809 = vmatprep.subr.mxu0 0.0
    %1810 = vmatpush1.msra.mxu0 0.0
    %1811 = vmatprep.subr.mxu0 0.0
    %1812 = vmatpush1.msra.mxu0 0.0
    %1813 = vmatprep.mubr.f32.mxu0 0.0
    %1814 = vmatmul.mubr.f32.gmra.mrb[0].mxu0 %v1741
    %v1815 = vpop.f32.mrb[0].mxu0
    %v1816 = vadd.f32 %v1709, %v1815
    %v1817 = vpop.f32.mrb[0].mxu0
    %1818 = vmatprep.mubr.f32.mxu0 0.0
    %1819 = vmatmul.mubr.f32.gmra.mrb[0].mxu0 %v1743
    %v1820 = vpop.f32.mrb[0].mxu0
    %v1821 = vadd.f32 %v1714, %v1820
    %v1822 = vpop.f32.mrb[0].mxu0
    %1823 = vmatprep.mubr.f32.mxu0 0.0
    %1824 = vmatmul.mubr.f32.gmra.mrb[0].mxu0 %v1745
    %v1825 = vpop.f32.mrb[0].mxu0
    %v1826 = vadd.f32 %v1719, %v1825
    %v1827 = vpop.f32.mrb[0].mxu0
    %1828 = vmatprep.mubr.f32.mxu0 0.0
    %1829 = vmatmul.mubr.f32.gmra.mrb[0].mxu0 %v1747
    %v1830 = vpop.f32.mrb[0].mxu0
    %v1831 = vadd.f32 %v1724, %v1830
    %v1832 = vpop.f32.mrb[0].mxu0
    %1833 = vdwg.mxu0
    %v1834 = vmax.f32 %v1816, 0.0
    %v1835 = vmax.f32 %v1821, 0.0
    %v1836 = vmax.f32 %v1826, 0.0
    %v1837 = vmax.f32 %v1831, 0.0
    %v1838 = vsel %vm39, %v1834, 0.0
    %1839 = vadd.xlane.f32.xlu0 %v1838
    %v1840 = vpop.xlane.xlu0 %1839
    %v1841 = vsel %vm39, %v1835, 0.0
    %1842 = vadd.xlane.f32.xlu0 %v1841
    %v1843 = vpop.xlane.xlu0 %1842
    %v1844 = vsel %vm39, %v1836, 0.0
    %1845 = vadd.xlane.f32.xlu0 %v1844
    %v1846 = vpop.xlane.xlu0 %1845
    %v1847 = vsel %vm39, %v1837, 0.0
    %1848 = vadd.xlane.f32.xlu0 %v1847
    %v1849 = vpop.xlane.xlu0 %1848
    %v1850 = vmul.f32 %v1840, %v74
    %v1851 = vmul.f32 %v1843, %v74
    %v1852 = vmul.f32 %v1846, %v74
    %v1853 = vmul.f32 %v1849, %v74
    %v1854 = vsub.f32 %v1834, %v1850
    %v1855 = vsub.f32 %v1835, %v1851
    %v1856 = vsub.f32 %v1836, %v1852
    %v1857 = vsub.f32 %v1837, %v1853
    %v1858 = vmul.f32 %v1854, %v1854
    %v1859 = vmul.f32 %v1855, %v1855
    %v1860 = vmul.f32 %v1856, %v1856
    %v1861 = vmul.f32 %v1857, %v1857
    %v1862 = vsel %vm39, %v1858, 0.0
    %1863 = vadd.xlane.f32.xlu0 %v1862
    %v1864 = vpop.xlane.xlu0 %1863
    %v1865 = vsel %vm39, %v1859, 0.0
    %1866 = vadd.xlane.f32.xlu0 %v1865
    %v1867 = vpop.xlane.xlu0 %1866
    %v1868 = vsel %vm39, %v1860, 0.0
    %1869 = vadd.xlane.f32.xlu0 %v1868
    %v1870 = vpop.xlane.xlu0 %1869
    %v1871 = vsel %vm39, %v1861, 0.0
    %1872 = vadd.xlane.f32.xlu0 %v1871
    %v1873 = vpop.xlane.xlu0 %1872
    %v1874 = vmul.f32 %v1864, %v74
    %v1875 = vmul.f32 %v1867, %v74
    %v1876 = vmul.f32 %v1870, %v74
    %v1877 = vmul.f32 %v1873, %v74
    %v1878 = vadd.f32 %v1874, 1e-05
    %v1879 = vadd.f32 %v1875, 1e-05
    %v1880 = vadd.f32 %v1876, 1e-05
    %v1881 = vadd.f32 %v1877, 1e-05
    %v1882 = vrsqrt.pop %v1878
    %v1883 = vrsqrt.pop %v1879
    %v1884 = vrsqrt.pop %v1880
    %v1885 = vrsqrt.pop %v1881
    %v1886 = vmul.f32 %v1702, %v1882
    %v1887 = vmul.f32 %v1703, %v1883
    %v1888 = vmul.f32 %v1704, %v1884
    %v1889 = vmul.f32 %v1705, %v1885
    %v1890 = vmul.f32 %v1850, %v1886
    %v1891 = vmul.f32 %v1851, %v1887
    %v1892 = vmul.f32 %v1852, %v1888
    %v1893 = vmul.f32 %v1853, %v1889
    %1898 = vrot.lane.b32.xlu0 %v1890, 1
    %v1899 = vpop.permute.xlu0 %1898
    %1900 = vrot.lane.b32.xlu0 %v1891, 1
    %v1901 = vpop.permute.xlu0 %1900
    %1902 = vrot.lane.b32.xlu0 %v1892, 1
    %v1903 = vpop.permute.xlu0 %1902
    %1904 = vrot.lane.b32.xlu0 %v1893, 1
    %v1905 = vpop.permute.xlu0 %1904
    %v1910 = vsub.f32 %v1702, %v1899
    %v1911 = vsub.f32 %v1703, %v1901
    %v1912 = vsub.f32 %v1704, %v1903
    %v1913 = vsub.f32 %v1705, %v1905
    %1915 = vset.pattern.permute.xlu0 15
    %1916 = vperm.xlu0 %1915, %v1886
    %v1917 = vpop.permute.xlu0 %1916
    %1920 = vset.pattern.permute.xlu0 15
    %1921 = vperm.xlu0 %1920, %v1887
    %v1922 = vpop.permute.xlu0 %1921
    %1925 = vset.pattern.permute.xlu0 15
    %1926 = vperm.xlu0 %1925, %v1888
    %v1927 = vpop.permute.xlu0 %1926
    %1930 = vset.pattern.permute.xlu0 15
    %1931 = vperm.xlu0 %1930, %v1889
    %v1932 = vpop.permute.xlu0 %1931
    %v1934 = vmul.f32 %v1834, %v1917
    %v1935 = vmul.f32 %v1835, %v1922
    %v1936 = vmul.f32 %v1836, %v1927
    %v1937 = vmul.f32 %v1837, %v1932
    %1939 = vset.pattern.permute.xlu0 16
    %1940 = vperm.xlu0 %1939, %v1910
    %v1941 = vpop.permute.xlu0 %1940
    %1944 = vset.pattern.permute.xlu0 16
    %1945 = vperm.xlu0 %1944, %v1911
    %v1946 = vpop.permute.xlu0 %1945
    %1949 = vset.pattern.permute.xlu0 16
    %1950 = vperm.xlu0 %1949, %v1912
    %v1951 = vpop.permute.xlu0 %1950
    %1954 = vset.pattern.permute.xlu0 16
    %1955 = vperm.xlu0 %1954, %v1913
    %v1956 = vpop.permute.xlu0 %1955
    %v1958 = vadd.f32 %v1934, %v1941
    %v1959 = vadd.f32 %v1935, %v1946
    %v1960 = vadd.f32 %v1936, %v1951
    %v1961 = vadd.f32 %v1937, %v1956
    %1962 = vst.msk [vmem:[#allocation8] sm:$0xff] %vm39, %v1958
    %1963 = vst.msk [vmem:[#allocation8 + $0x8] sm:$0xff] %vm39, %v1959
    %1964 = vst.msk [vmem:[#allocation8 + $0x10] sm:$0xff] %vm39, %v1960
    %1965 = vst.msk [vmem:[#allocation8 + $0x18] sm:$0xff] %vm39, %v1961
    %v1966 = vld [vmem:[#allocation8] sm:$0xff]
    %v1967 = vld [vmem:[#allocation8 + $0x8] sm:$0xff]
    %v1968 = vld [vmem:[#allocation8 + $0x10] sm:$0xff]
    %v1969 = vld [vmem:[#allocation8 + $0x18] sm:$0xff]
    %1974 = vrot.lane.b32.xlu0 %v1966, 3
    %v1975 = vpop.permute.xlu0 %1974
    %1976 = vrot.lane.b32.xlu0 %v1967, 3
    %v1977 = vpop.permute.xlu0 %1976
    %1978 = vrot.lane.b32.xlu0 %v1968, 3
    %v1979 = vpop.permute.xlu0 %1978
    %1980 = vrot.lane.b32.xlu0 %v1969, 3
    %v1981 = vpop.permute.xlu0 %1980
    %1986 = vst.msk [vmem:[#allocation5] sm:$0xff] %vm386, %v1975
    %1987 = vst.msk [vmem:[#allocation5 + $0x8] sm:$0xff] %vm386, %v1977
    %1988 = vst.msk [vmem:[#allocation5 + $0x10] sm:$0xff] %vm386, %v1979
    %1989 = vst.msk [vmem:[#allocation5 + $0x18] sm:$0xff] %vm386, %v1981
    %v1990 = vld [vmem:[#allocation8] sm:$0xff]
    %v1991 = vld [vmem:[#allocation8 + $0x8] sm:$0xff]
    %v1992 = vld [vmem:[#allocation8 + $0x10] sm:$0xff]
    %v1993 = vld [vmem:[#allocation8 + $0x18] sm:$0xff]
    %1998 = vrot.lane.b32.xlu0 %v1990, 3
    %v1999 = vpop.permute.xlu0 %1998
    %2000 = vrot.lane.b32.xlu0 %v1991, 3
    %v2001 = vpop.permute.xlu0 %2000
    %2002 = vrot.lane.b32.xlu0 %v1992, 3
    %v2003 = vpop.permute.xlu0 %2002
    %2004 = vrot.lane.b32.xlu0 %v1993, 3
    %v2005 = vpop.permute.xlu0 %2004
    %2010 = vst.msk [vmem:[#allocation5] sm:$0xff] %vm411, %v1999
    %2011 = vst.msk [vmem:[#allocation5 + $0x8] sm:$0xff] %vm411, %v2001
    %2012 = vst.msk [vmem:[#allocation5 + $0x10] sm:$0xff] %vm411, %v2003
    %2013 = vst.msk [vmem:[#allocation5 + $0x18] sm:$0xff] %vm411, %v2005
    %v2014 = vld [vmem:[#allocation8] sm:$0xff]
    %v2015 = vld [vmem:[#allocation8 + $0x8] sm:$0xff]
    %v2016 = vld [vmem:[#allocation8 + $0x10] sm:$0xff]
    %v2017 = vld [vmem:[#allocation8 + $0x18] sm:$0xff]
    %2022 = vrot.lane.b32.xlu0 %v2014, 2
    %v2023 = vpop.permute.xlu0 %2022
    %2024 = vrot.lane.b32.xlu0 %v2015, 2
    %v2025 = vpop.permute.xlu0 %2024
    %2026 = vrot.lane.b32.xlu0 %v2016, 2
    %v2027 = vpop.permute.xlu0 %2026
    %2028 = vrot.lane.b32.xlu0 %v2017, 2
    %v2029 = vpop.permute.xlu0 %2028
    %2034 = vst.msk [vmem:[#allocation5 + $0x20] sm:$0xff] %vm436, %v2023
    %2035 = vst.msk [vmem:[#allocation5 + $0x28] sm:$0xff] %vm436, %v2025
    %2036 = vst.msk [vmem:[#allocation5 + $0x30] sm:$0xff] %vm436, %v2027
    %2037 = vst.msk [vmem:[#allocation5 + $0x38] sm:$0xff] %vm436, %v2029
    %v2038 = vld [vmem:[#allocation8] sm:$0xff]
    %v2039 = vld [vmem:[#allocation8 + $0x8] sm:$0xff]
    %v2040 = vld [vmem:[#allocation8 + $0x10] sm:$0xff]
    %v2041 = vld [vmem:[#allocation8 + $0x18] sm:$0xff]
    %2046 = vrot.lane.b32.xlu0 %v2038, 2
    %v2047 = vpop.permute.xlu0 %2046
    %2048 = vrot.lane.b32.xlu0 %v2039, 2
    %v2049 = vpop.permute.xlu0 %2048
    %2050 = vrot.lane.b32.xlu0 %v2040, 2
    %v2051 = vpop.permute.xlu0 %2050
    %2052 = vrot.lane.b32.xlu0 %v2041, 2
    %v2053 = vpop.permute.xlu0 %2052
    %2058 = vst.msk [vmem:[#allocation5 + $0x20] sm:$0xff] %vm461, %v2047
    %2059 = vst.msk [vmem:[#allocation5 + $0x28] sm:$0xff] %vm461, %v2049
    %2060 = vst.msk [vmem:[#allocation5 + $0x30] sm:$0xff] %vm461, %v2051
    %2061 = vst.msk [vmem:[#allocation5 + $0x38] sm:$0xff] %vm461, %v2053
    %v2062 = vld [vmem:[#allocation8] sm:$0xff]
    %v2063 = vld [vmem:[#allocation8 + $0x8] sm:$0xff]
    %v2064 = vld [vmem:[#allocation8 + $0x10] sm:$0xff]
    %v2065 = vld [vmem:[#allocation8 + $0x18] sm:$0xff]
    %2070 = vrot.lane.b32.xlu0 %v2062, 1
    %v2071 = vpop.permute.xlu0 %2070
    %2072 = vrot.lane.b32.xlu0 %v2063, 1
    %v2073 = vpop.permute.xlu0 %2072
    %2074 = vrot.lane.b32.xlu0 %v2064, 1
    %v2075 = vpop.permute.xlu0 %2074
    %2076 = vrot.lane.b32.xlu0 %v2065, 1
    %v2077 = vpop.permute.xlu0 %2076
    %2082 = vst.msk [vmem:[#allocation5 + $0x40] sm:$0xff] %vm486, %v2071
    %2083 = vst.msk [vmem:[#allocation5 + $0x48] sm:$0xff] %vm486, %v2073
    %2084 = vst.msk [vmem:[#allocation5 + $0x50] sm:$0xff] %vm486, %v2075
    %2085 = vst.msk [vmem:[#allocation5 + $0x58] sm:$0xff] %vm486, %v2077
    %v2086 = vld [vmem:[#allocation8] sm:$0xff]
    %v2087 = vld [vmem:[#allocation8 + $0x8] sm:$0xff]
    %v2088 = vld [vmem:[#allocation8 + $0x10] sm:$0xff]
    %v2089 = vld [vmem:[#allocation8 + $0x18] sm:$0xff]
    %2094 = vrot.lane.b32.xlu0 %v2086, 1
    %v2095 = vpop.permute.xlu0 %2094
    %2096 = vrot.lane.b32.xlu0 %v2087, 1
    %v2097 = vpop.permute.xlu0 %2096
    %2098 = vrot.lane.b32.xlu0 %v2088, 1
    %v2099 = vpop.permute.xlu0 %2098
    %2100 = vrot.lane.b32.xlu0 %v2089, 1
    %v2101 = vpop.permute.xlu0 %2100
    %2106 = vst.msk [vmem:[#allocation5 + $0x40] sm:$0xff] %vm511, %v2095
    %2107 = vst.msk [vmem:[#allocation5 + $0x48] sm:$0xff] %vm511, %v2097
    %2108 = vst.msk [vmem:[#allocation5 + $0x50] sm:$0xff] %vm511, %v2099
    %2109 = vst.msk [vmem:[#allocation5 + $0x58] sm:$0xff] %vm511, %v2101
    %v2110 = vld [vmem:[#allocation8] sm:$0xff]
    %v2111 = vld [vmem:[#allocation8 + $0x8] sm:$0xff]
    %v2112 = vld [vmem:[#allocation8 + $0x10] sm:$0xff]
    %v2113 = vld [vmem:[#allocation8 + $0x18] sm:$0xff]
    %2114 = vst.msk [vmem:[#allocation5 + $0x60] sm:$0xff] %vm520, %v2110
    %2115 = vst.msk [vmem:[#allocation5 + $0x68] sm:$0xff] %vm520, %v2111
    %2116 = vst.msk [vmem:[#allocation5 + $0x70] sm:$0xff] %vm520, %v2112
    %2117 = vst.msk [vmem:[#allocation5 + $0x78] sm:$0xff] %vm520, %v2113
    %v2118 = vld [vmem:[#allocation8] sm:$0xff]
    %v2119 = vld [vmem:[#allocation8 + $0x8] sm:$0xff]
    %v2120 = vld [vmem:[#allocation8 + $0x10] sm:$0xff]
    %v2121 = vld [vmem:[#allocation8 + $0x18] sm:$0xff]
    %2122 = vst.msk [vmem:[#allocation5 + $0x60] sm:$0xff] %vm529, %v2118
    %2123 = vst.msk [vmem:[#allocation5 + $0x68] sm:$0xff] %vm529, %v2119
    %2124 = vst.msk [vmem:[#allocation5 + $0x70] sm:$0xff] %vm529, %v2120
    %2125 = vst.msk [vmem:[#allocation5 + $0x78] sm:$0xff] %vm529, %v2121
    %v2126 = vld [vmem:[#allocation8] sm:$0xff]
    %v2127 = vld [vmem:[#allocation8 + $0x8] sm:$0xff]
    %v2128 = vld [vmem:[#allocation8 + $0x10] sm:$0xff]
    %v2129 = vld [vmem:[#allocation8 + $0x18] sm:$0xff]
    %2134 = vrot.lane.b32.xlu0 %v2126, 127
    %v2135 = vpop.permute.xlu0 %2134
    %2136 = vrot.lane.b32.xlu0 %v2127, 127
    %v2137 = vpop.permute.xlu0 %2136
    %2138 = vrot.lane.b32.xlu0 %v2128, 127
    %v2139 = vpop.permute.xlu0 %2138
    %2140 = vrot.lane.b32.xlu0 %v2129, 127
    %v2141 = vpop.permute.xlu0 %2140
    %2146 = vst.msk [vmem:[#allocation5 + $0x80] sm:$0xff] %vm554, %v2135
    %2147 = vst.msk [vmem:[#allocation5 + $0x88] sm:$0xff] %vm554, %v2137
    %2148 = vst.msk [vmem:[#allocation5 + $0x90] sm:$0xff] %vm554, %v2139
    %2149 = vst.msk [vmem:[#allocation5 + $0x98] sm:$0xff] %vm554, %v2141
    %v2150 = vld [vmem:[#allocation8] sm:$0xff]
    %v2151 = vld [vmem:[#allocation8 + $0x8] sm:$0xff]
    %v2152 = vld [vmem:[#allocation8 + $0x10] sm:$0xff]
    %v2153 = vld [vmem:[#allocation8 + $0x18] sm:$0xff]
    %2158 = vrot.lane.b32.xlu0 %v2150, 127
    %v2159 = vpop.permute.xlu0 %2158
    %2160 = vrot.lane.b32.xlu0 %v2151, 127
    %v2161 = vpop.permute.xlu0 %2160
    %2162 = vrot.lane.b32.xlu0 %v2152, 127
    %v2163 = vpop.permute.xlu0 %2162
    %2164 = vrot.lane.b32.xlu0 %v2153, 127
    %v2165 = vpop.permute.xlu0 %2164
    %2170 = vst.msk [vmem:[#allocation5 + $0x80] sm:$0xff] %vm579, %v2159
    %2171 = vst.msk [vmem:[#allocation5 + $0x88] sm:$0xff] %vm579, %v2161
    %2172 = vst.msk [vmem:[#allocation5 + $0x90] sm:$0xff] %vm579, %v2163
    %2173 = vst.msk [vmem:[#allocation5 + $0x98] sm:$0xff] %vm579, %v2165
    %v2174 = vld [vmem:[#allocation8] sm:$0xff]
    %v2175 = vld [vmem:[#allocation8 + $0x8] sm:$0xff]
    %v2176 = vld [vmem:[#allocation8 + $0x10] sm:$0xff]
    %v2177 = vld [vmem:[#allocation8 + $0x18] sm:$0xff]
    %2182 = vrot.lane.b32.xlu0 %v2174, 126
    %v2183 = vpop.permute.xlu0 %2182
    %2184 = vrot.lane.b32.xlu0 %v2175, 126
    %v2185 = vpop.permute.xlu0 %2184
    %2186 = vrot.lane.b32.xlu0 %v2176, 126
    %v2187 = vpop.permute.xlu0 %2186
    %2188 = vrot.lane.b32.xlu0 %v2177, 126
    %v2189 = vpop.permute.xlu0 %2188
    %2194 = vst.msk [vmem:[#allocation5 + $0xa0] sm:$0xff] %vm604, %v2183
    %2195 = vst.msk [vmem:[#allocation5 + $0xa8] sm:$0xff] %vm604, %v2185
    %2196 = vst.msk [vmem:[#allocation5 + $0xb0] sm:$0xff] %vm604, %v2187
    %2197 = vst.msk [vmem:[#allocation5 + $0xb8] sm:$0xff] %vm604, %v2189
    %v2198 = vld [vmem:[#allocation8] sm:$0xff]
    %v2199 = vld [vmem:[#allocation8 + $0x8] sm:$0xff]
    %v2200 = vld [vmem:[#allocation8 + $0x10] sm:$0xff]
    %v2201 = vld [vmem:[#allocation8 + $0x18] sm:$0xff]
    %2206 = vrot.lane.b32.xlu0 %v2198, 126
    %v2207 = vpop.permute.xlu0 %2206
    %2208 = vrot.lane.b32.xlu0 %v2199, 126
    %v2209 = vpop.permute.xlu0 %2208
    %2210 = vrot.lane.b32.xlu0 %v2200, 126
    %v2211 = vpop.permute.xlu0 %2210
    %2212 = vrot.lane.b32.xlu0 %v2201, 126
    %v2213 = vpop.permute.xlu0 %2212
    %2218 = vst.msk [vmem:[#allocation5 + $0xa0] sm:$0xff] %vm629, %v2207
    %2219 = vst.msk [vmem:[#allocation5 + $0xa8] sm:$0xff] %vm629, %v2209
    %2220 = vst.msk [vmem:[#allocation5 + $0xb0] sm:$0xff] %vm629, %v2211
    %2221 = vst.msk [vmem:[#allocation5 + $0xb8] sm:$0xff] %vm629, %v2213
    %v2222 = vld [vmem:[#allocation8] sm:$0xff]
    %v2223 = vld [vmem:[#allocation8 + $0x8] sm:$0xff]
    %v2224 = vld [vmem:[#allocation8 + $0x10] sm:$0xff]
    %v2225 = vld [vmem:[#allocation8 + $0x18] sm:$0xff]
    %2230 = vrot.lane.b32.xlu0 %v2222, 125
    %v2231 = vpop.permute.xlu0 %2230
    %2232 = vrot.lane.b32.xlu0 %v2223, 125
    %v2233 = vpop.permute.xlu0 %2232
    %2234 = vrot.lane.b32.xlu0 %v2224, 125
    %v2235 = vpop.permute.xlu0 %2234
    %2236 = vrot.lane.b32.xlu0 %v2225, 125
    %v2237 = vpop.permute.xlu0 %2236
    %2242 = vst.msk [vmem:[#allocation5 + $0xc0] sm:$0xff] %vm654, %v2231
    %2243 = vst.msk [vmem:[#allocation5 + $0xc8] sm:$0xff] %vm654, %v2233
    %2244 = vst.msk [vmem:[#allocation5 + $0xd0] sm:$0xff] %vm654, %v2235
    %2245 = vst.msk [vmem:[#allocation5 + $0xd8] sm:$0xff] %vm654, %v2237
    %v2246 = vld [vmem:[#allocation8] sm:$0xff]
    %v2247 = vld [vmem:[#allocation8 + $0x8] sm:$0xff]
    %v2248 = vld [vmem:[#allocation8 + $0x10] sm:$0xff]
    %v2249 = vld [vmem:[#allocation8 + $0x18] sm:$0xff]
    %2254 = vrot.lane.b32.xlu0 %v2246, 125
    %v2255 = vpop.permute.xlu0 %2254
    %2256 = vrot.lane.b32.xlu0 %v2247, 125
    %v2257 = vpop.permute.xlu0 %2256
    %2258 = vrot.lane.b32.xlu0 %v2248, 125
    %v2259 = vpop.permute.xlu0 %2258
    %2260 = vrot.lane.b32.xlu0 %v2249, 125
    %v2261 = vpop.permute.xlu0 %2260
    %2266 = vst.msk [vmem:[#allocation5 + $0xc0] sm:$0xff] %vm679, %v2255
    %2267 = vst.msk [vmem:[#allocation5 + $0xc8] sm:$0xff] %vm679, %v2257
    %2268 = vst.msk [vmem:[#allocation5 + $0xd0] sm:$0xff] %vm679, %v2259
    %2269 = vst.msk [vmem:[#allocation5 + $0xd8] sm:$0xff] %vm679, %v2261
    %v2270 = vld [vmem:[#allocation10 + $0xe0] sm:$0xf0]
    %v2271 = vld [vmem:[#allocation10 + $0xe8] sm:$0xf0]
    %v2272 = vld [vmem:[#allocation10 + $0xf0] sm:$0x3f]
    %v2273 = vld [vmem:[#allocation10 + $0xf8] sm:$0x3f]
    %v2274 = vld [vmem:[#allocation5] sm:$0xff]
    %v2275 = vld [vmem:[#allocation5 + $0x8] sm:$0xff]
    %v2276 = vld [vmem:[#allocation5 + $0x10] sm:$0xff]
    %v2277 = vld [vmem:[#allocation5 + $0x18] sm:$0xff]
    %v2278 = vld [vmem:[#allocation5 + $0x20] sm:$0xff]
    %v2279 = vld [vmem:[#allocation5 + $0x28] sm:$0xff]
    %v2280 = vld [vmem:[#allocation5 + $0x30] sm:$0xff]
    %v2281 = vld [vmem:[#allocation5 + $0x38] sm:$0xff]
    %v2282 = vld [vmem:[#allocation5 + $0x40] sm:$0xff]
    %v2283 = vld [vmem:[#allocation5 + $0x48] sm:$0xff]
    %v2284 = vld [vmem:[#allocation5 + $0x50] sm:$0xff]
    %v2285 = vld [vmem:[#allocation5 + $0x58] sm:$0xff]
    %v2286 = vld [vmem:[#allocation5 + $0x60] sm:$0xff]
    %v2287 = vld [vmem:[#allocation5 + $0x68] sm:$0xff]
    %v2288 = vld [vmem:[#allocation5 + $0x70] sm:$0xff]
    %v2289 = vld [vmem:[#allocation5 + $0x78] sm:$0xff]
    %v2290 = vld [vmem:[#allocation5 + $0x80] sm:$0xff]
    %v2291 = vld [vmem:[#allocation5 + $0x88] sm:$0xff]
    %v2292 = vld [vmem:[#allocation5 + $0x90] sm:$0xff]
    %v2293 = vld [vmem:[#allocation5 + $0x98] sm:$0xff]
    %v2294 = vld [vmem:[#allocation5 + $0xa0] sm:$0xff]
    %v2295 = vld [vmem:[#allocation5 + $0xa8] sm:$0xff]
    %v2296 = vld [vmem:[#allocation5 + $0xb0] sm:$0xff]
    %v2297 = vld [vmem:[#allocation5 + $0xb8] sm:$0xff]
    %v2298 = vld [vmem:[#allocation5 + $0xc0] sm:$0xff]
    %v2299 = vld [vmem:[#allocation5 + $0xc8] sm:$0xff]
    %v2300 = vld [vmem:[#allocation5 + $0xd0] sm:$0xff]
    %v2301 = vld [vmem:[#allocation5 + $0xd8] sm:$0xff]
    %v2302 = vld [vmem:[%s1] sm:$0xff]
    %v2303 = vld [vmem:[%s1 + $0x8] sm:$0x3]
    %2305 = vset.pattern.permute.xlu0 17
    %2306 = vperm.xlu0 %2305, %v2302
    %v2307 = vpop.permute.xlu0 %2306
    %2310 = vset.pattern.permute.xlu0 17
    %2311 = vperm.xlu0 %2310, %v2303
    %v2312 = vpop.permute.xlu0 %2311
    %v2318 = vrot.slane %v2270, 4
    %v2319 = vrot.slane %v2272, 4
    %v2320 = vsel %vm145, %v2318, %v2319
    %v2321 = vrot.slane %v2271, 4
    %v2322 = vrot.slane %v2273, 4
    %v2323 = vsel %vm145, %v2321, %v2322
    %v2326 = vsel %vm728, %v2323, 0
    %v2328 = vsel %vm728, %v2322, 0
    %2330 = vmatprep.subr.mxu0 0.0
    %2331 = vmatpush1.msra.mxu0 %v2274
    %2332 = vmatprep.subr.mxu0 0.0
    %2333 = vmatpush1.msra.mxu0 %v2275
    %2334 = vmatprep.subr.mxu0 0.0
    %2335 = vmatpush1.msra.mxu0 %v2276
    %2336 = vmatprep.subr.mxu0 0.0
    %2337 = vmatpush1.msra.mxu0 %v2277
    %2338 = vmatprep.subr.mxu0 0.0
    %2339 = vmatpush1.msra.mxu0 %v2278
    %2340 = vmatprep.subr.mxu0 0.0
    %2341 = vmatpush1.msra.mxu0 %v2279
    %2342 = vmatprep.subr.mxu0 0.0
    %2343 = vmatpush1.msra.mxu0 %v2280
    %2344 = vmatprep.subr.mxu0 0.0
    %2345 = vmatpush1.msra.mxu0 %v2281
    %2346 = vmatprep.subr.mxu0 0.0
    %2347 = vmatpush1.msra.mxu0 %v2282
    %2348 = vmatprep.subr.mxu0 0.0
    %2349 = vmatpush1.msra.mxu0 %v2283
    %2350 = vmatprep.subr.mxu0 0.0
    %2351 = vmatpush1.msra.mxu0 %v2284
    %2352 = vmatprep.subr.mxu0 0.0
    %2353 = vmatpush1.msra.mxu0 %v2285
    %2354 = vmatprep.subr.mxu0 0.0
    %2355 = vmatpush1.msra.mxu0 %v2286
    %2356 = vmatprep.subr.mxu0 0.0
    %2357 = vmatpush1.msra.mxu0 %v2287
    %2358 = vmatprep.subr.mxu0 0.0
    %2359 = vmatpush1.msra.mxu0 %v2288
    %2360 = vmatprep.subr.mxu0 0.0
    %2361 = vmatpush1.msra.mxu0 %v2289
    %2362 = vmatprep.subr.mxu0 0.0
    %2363 = vmatpush1.msra.mxu0 %v2290
    %2364 = vmatprep.subr.mxu0 0.0
    %2365 = vmatpush1.msra.mxu0 %v2291
    %2366 = vmatprep.subr.mxu0 0.0
    %2367 = vmatpush1.msra.mxu0 %v2292
    %2368 = vmatprep.subr.mxu0 0.0
    %2369 = vmatpush1.msra.mxu0 %v2293
    %2370 = vmatprep.subr.mxu0 0.0
    %2371 = vmatpush1.msra.mxu0 %v2294
    %2372 = vmatprep.subr.mxu0 0.0
    %2373 = vmatpush1.msra.mxu0 %v2295
    %2374 = vmatprep.subr.mxu0 0.0
    %2375 = vmatpush1.msra.mxu0 %v2296
    %2376 = vmatprep.subr.mxu0 0.0
    %2377 = vmatpush1.msra.mxu0 %v2297
    %2378 = vmatprep.subr.mxu0 0.0
    %2379 = vmatpush1.msra.mxu0 %v2298
    %2380 = vmatprep.subr.mxu0 0.0
    %2381 = vmatpush1.msra.mxu0 %v2299
    %2382 = vmatprep.subr.mxu0 0.0
    %2383 = vmatpush1.msra.mxu0 %v2300
    %2384 = vmatprep.subr.mxu0 0.0
    %2385 = vmatpush1.msra.mxu0 %v2301
    %2386 = vmatprep.subr.mxu0 0.0
    %2387 = vmatpush1.msra.mxu0 0.0
    %2388 = vmatprep.subr.mxu0 0.0
    %2389 = vmatpush1.msra.mxu0 0.0
    %2390 = vmatprep.subr.mxu0 0.0
    %2391 = vmatpush1.msra.mxu0 0.0
    %2392 = vmatprep.subr.mxu0 0.0
    %2393 = vmatpush1.msra.mxu0 0.0
    %2394 = vmatprep.mubr.f32.mxu0 %v2326
    %2395 = vmatmul.mubr.f32.gmra.mrb[0].mxu0 %v2320
    %v2396 = vpop.f32.mrb[0].mxu0
    %v2397 = vadd.f32 %v2307, %v2396
    %v2398 = vpop.f32.mrb[0].mxu0
    %2399 = vmatprep.mubr.f32.mxu0 %v2328
    %2400 = vmatmul.mubr.f32.gmra.mrb[0].mxu0 %v2319
    %v2401 = vpop.f32.mrb[0].mxu0
    %v2402 = vadd.f32 %v2312, %v2401
    %v2403 = vpop.f32.mrb[0].mxu0
    %2404 = vdwg.mxu0
    %2405 = vst.msk [vmem:[#allocation2 + $0x18] sm:$0xff] %vm39, %v2397
    %2406 = vst.msk [vmem:[#allocation2 + $0x20] sm:$0x3] %vm811, %v2402
    %v2407 = vld [vmem:[#allocation2] sm:$0xff]
    %v2408 = vld [vmem:[#allocation2 + $0x8] sm:$0xff]
    %v2409 = vld [vmem:[#allocation2 + $0x10] sm:$0xff]
    %v2410 = vld [vmem:[#allocation2 + $0x18] sm:$0xff]
    %v2411 = vld [vmem:[#allocation2 + $0x20] sm:$0x3]
    %v2412 = vsel %vm39, %v2407, 0.0
    %2413 = vadd.xlane.f32.xlu0 %v2412
    %v2414 = vpop.xlane.xlu0 %2413
    %v2415 = vsel %vm39, %v2408, 0.0
    %2416 = vadd.xlane.f32.xlu0 %v2415
    %v2417 = vpop.xlane.xlu0 %2416
    %v2418 = vsel %vm39, %v2409, 0.0
    %2419 = vadd.xlane.f32.xlu0 %v2418
    %v2420 = vpop.xlane.xlu0 %2419
    %v2421 = vsel %vm39, %v2410, 0.0
    %2422 = vadd.xlane.f32.xlu0 %v2421
    %v2423 = vpop.xlane.xlu0 %2422
    %v2424 = vsel %vm811, %v2411, 0.0
    %2425 = vadd.xlane.f32.xlu0 %v2424
    %v2426 = vpop.xlane.xlu0 %2425
    %v2427 = vmul.f32 %v2414, %v74
    %v2428 = vmul.f32 %v2417, %v74
    %v2429 = vmul.f32 %v2420, %v74
    %v2430 = vmul.f32 %v2423, %v74
    %v2431 = vmul.f32 %v2426, %v74
    %v2432 = vsub.f32 %v2407, %v2427
    %v2433 = vsub.f32 %v2408, %v2428
    %v2434 = vsub.f32 %v2409, %v2429
    %v2435 = vsub.f32 %v2410, %v2430
    %v2436 = vsub.f32 %v2411, %v2431
    %v2437 = vmul.f32 %v2432, %v2432
    %v2438 = vmul.f32 %v2433, %v2433
    %v2439 = vmul.f32 %v2434, %v2434
    %v2440 = vmul.f32 %v2435, %v2435
    %v2441 = vmul.f32 %v2436, %v2436
    %v2442 = vsel %vm39, %v2437, 0.0
    %2443 = vadd.xlane.f32.xlu0 %v2442
    %v2444 = vpop.xlane.xlu0 %2443
    %v2445 = vsel %vm39, %v2438, 0.0
    %2446 = vadd.xlane.f32.xlu0 %v2445
    %v2447 = vpop.xlane.xlu0 %2446
    %v2448 = vsel %vm39, %v2439, 0.0
    %2449 = vadd.xlane.f32.xlu0 %v2448
    %v2450 = vpop.xlane.xlu0 %2449
    %v2451 = vsel %vm39, %v2440, 0.0
    %2452 = vadd.xlane.f32.xlu0 %v2451
    %v2453 = vpop.xlane.xlu0 %2452
    %v2454 = vsel %vm811, %v2441, 0.0
    %2455 = vadd.xlane.f32.xlu0 %v2454
    %v2456 = vpop.xlane.xlu0 %2455
    %v2457 = vmul.f32 %v2444, %v74
    %v2458 = vmul.f32 %v2447, %v74
    %v2459 = vmul.f32 %v2450, %v74
    %v2460 = vmul.f32 %v2453, %v74
    %v2461 = vmul.f32 %v2456, %v74
    %v2462 = vld [vmem:[%s1] sm:$0xff]
    %v2463 = vld [vmem:[%s1 + $0x8] sm:$0xff]
    %v2464 = vld [vmem:[%s1 + $0x10] sm:$0xff]
    %v2465 = vld [vmem:[%s1 + $0x18] sm:$0xff]
    %v2466 = vld [vmem:[%s1 + $0x20] sm:$0x3]
    %v2467 = vadd.f32 %v2457, 1e-05
    %v2468 = vadd.f32 %v2458, 1e-05
    %v2469 = vadd.f32 %v2459, 1e-05
    %v2470 = vadd.f32 %v2460, 1e-05
    %v2471 = vadd.f32 %v2461, 1e-05
    %v2472 = vrsqrt.pop %v2467
    %v2473 = vrsqrt.pop %v2468
    %v2474 = vrsqrt.pop %v2469
    %v2475 = vrsqrt.pop %v2470
    %v2476 = vrsqrt.pop %v2471
    %v2477 = vmul.f32 %v2462, %v2472
    %v2478 = vmul.f32 %v2463, %v2473
    %v2479 = vmul.f32 %v2464, %v2474
    %v2480 = vmul.f32 %v2465, %v2475
    %v2481 = vmul.f32 %v2466, %v2476
    %v2482 = vmul.f32 %v2427, %v2477
    %v2483 = vmul.f32 %v2428, %v2478
    %v2484 = vmul.f32 %v2429, %v2479
    %v2485 = vmul.f32 %v2430, %v2480
    %v2486 = vmul.f32 %v2431, %v2481
    %2492 = vrot.lane.b32.xlu0 %v2482, 1
    %v2493 = vpop.permute.xlu0 %2492
    %2494 = vrot.lane.b32.xlu0 %v2483, 1
    %v2495 = vpop.permute.xlu0 %2494
    %2496 = vrot.lane.b32.xlu0 %v2484, 1
    %v2497 = vpop.permute.xlu0 %2496
    %2498 = vrot.lane.b32.xlu0 %v2485, 1
    %v2499 = vpop.permute.xlu0 %2498
    %2500 = vrot.lane.b32.xlu0 %v2486, 1
    %v2501 = vpop.permute.xlu0 %2500
    %v2507 = vsub.f32 %v2462, %v2493
    %v2508 = vsub.f32 %v2463, %v2495
    %v2509 = vsub.f32 %v2464, %v2497
    %v2510 = vsub.f32 %v2465, %v2499
    %v2511 = vsub.f32 %v2466, %v2501
    %vm2512 = vcmask 15360
    %v2513 = vsel %vm2512, %v2407, 0.0
    %2514 = vadd.xlane.f32.xlu0 %v2513
    %v2515 = vpop.xlane.xlu0 %2514
    %v2516 = vsel %vm2512, %v2408, 0.0
    %2517 = vadd.xlane.f32.xlu0 %v2516
    %v2518 = vpop.xlane.xlu0 %2517
    %v2519 = vsel %vm2512, %v2409, 0.0
    %2520 = vadd.xlane.f32.xlu0 %v2519
    %v2521 = vpop.xlane.xlu0 %2520
    %v2522 = vsel %vm2512, %v2410, 0.0
    %2523 = vadd.xlane.f32.xlu0 %v2522
    %v2524 = vpop.xlane.xlu0 %2523
    %vm2525 = vcmask 9216
    %v2526 = vsel %vm2525, %v2411, 0.0
    %2527 = vadd.xlane.f32.xlu0 %v2526
    %v2528 = vpop.xlane.xlu0 %2527
    %v2529 = vmul.f32 %v2515, 0.5
    %v2530 = vmul.f32 %v2518, 0.5
    %v2531 = vmul.f32 %v2521, 0.5
    %v2532 = vmul.f32 %v2524, 0.5
    %v2533 = vmul.f32 %v2528, 0.5
    %vm2534 = vcmask 7168
    %2535 = vst.msk [vmem:[#allocation9] sm:$0xff] %vm2534, %v2529
    %2536 = vst.msk [vmem:[#allocation9 + $0x8] sm:$0xff] %vm2534, %v2530
    %2537 = vst.msk [vmem:[#allocation9 + $0x10] sm:$0xff] %vm2534, %v2531
    %2538 = vst.msk [vmem:[#allocation9 + $0x18] sm:$0xff] %vm2534, %v2532
    %vm2539 = vcmask 1024
    %2540 = vst.msk [vmem:[#allocation9 + $0x20] sm:$0x3] %vm2539, %v2533
    %v2541 = vld [vmem:[#allocation2] sm:$0xff]
    %v2542 = vld [vmem:[#allocation2 + $0x8] sm:$0xff]
    %v2543 = vld [vmem:[#allocation2 + $0x10] sm:$0xff]
    %v2544 = vld [vmem:[#allocation2 + $0x18] sm:$0xff]
    %v2545 = vld [vmem:[#allocation2 + $0x20] sm:$0x3]
    %2551 = vrot.lane.b32.xlu0 %v2541, 126
    %v2552 = vpop.permute.xlu0 %2551
    %2553 = vrot.lane.b32.xlu0 %v2542, 126
    %v2554 = vpop.permute.xlu0 %2553
    %2555 = vrot.lane.b32.xlu0 %v2543, 126
    %v2556 = vpop.permute.xlu0 %2555
    %2557 = vrot.lane.b32.xlu0 %v2544, 126
    %v2558 = vpop.permute.xlu0 %2557
    %2559 = vrot.lane.b32.xlu0 %v2545, 126
    %v2560 = vpop.permute.xlu0 %2559
    %v2566 = vsel %vm2512, %v2552, 0.0
    %2567 = vadd.xlane.f32.xlu0 %v2566
    %v2568 = vpop.xlane.xlu0 %2567
    %v2569 = vsel %vm2512, %v2554, 0.0
    %2570 = vadd.xlane.f32.xlu0 %v2569
    %v2571 = vpop.xlane.xlu0 %2570
    %v2572 = vsel %vm2512, %v2556, 0.0
    %2573 = vadd.xlane.f32.xlu0 %v2572
    %v2574 = vpop.xlane.xlu0 %2573
    %v2575 = vsel %vm2512, %v2558, 0.0
    %2576 = vadd.xlane.f32.xlu0 %v2575
    %v2577 = vpop.xlane.xlu0 %2576
    %v2578 = vsel %vm2525, %v2560, 0.0
    %2579 = vadd.xlane.f32.xlu0 %v2578
    %v2580 = vpop.xlane.xlu0 %2579
    %v2581 = vmul.f32 %v2568, 0.5
    %v2582 = vmul.f32 %v2571, 0.5
    %v2583 = vmul.f32 %v2574, 0.5
    %v2584 = vmul.f32 %v2577, 0.5
    %v2585 = vmul.f32 %v2580, 0.5
    %vm2586 = vcmask 15368
    %2587 = vst.msk [vmem:[#allocation9] sm:$0xff] %vm2586, %v2581
    %2588 = vst.msk [vmem:[#allocation9 + $0x8] sm:$0xff] %vm2586, %v2582
    %2589 = vst.msk [vmem:[#allocation9 + $0x10] sm:$0xff] %vm2586, %v2583
    %2590 = vst.msk [vmem:[#allocation9 + $0x18] sm:$0xff] %vm2586, %v2584
    %vm2591 = vcmask 9224
    %2592 = vst.msk [vmem:[#allocation9 + $0x20] sm:$0x3] %vm2591, %v2585
    %v2593 = vld [vmem:[#allocation2] sm:$0xff]
    %v2594 = vld [vmem:[#allocation2 + $0x8] sm:$0xff]
    %v2595 = vld [vmem:[#allocation2 + $0x10] sm:$0xff]
    %v2596 = vld [vmem:[#allocation2 + $0x18] sm:$0xff]
    %v2597 = vld [vmem:[#allocation2 + $0x20] sm:$0x3]
    %2603 = vrot.lane.b32.xlu0 %v2593, 124
    %v2604 = vpop.permute.xlu0 %2603
    %2605 = vrot.lane.b32.xlu0 %v2594, 124
    %v2606 = vpop.permute.xlu0 %2605
    %2607 = vrot.lane.b32.xlu0 %v2595, 124
    %v2608 = vpop.permute.xlu0 %2607
    %2609 = vrot.lane.b32.xlu0 %v2596, 124
    %v2610 = vpop.permute.xlu0 %2609
    %2611 = vrot.lane.b32.xlu0 %v2597, 124
    %v2612 = vpop.permute.xlu0 %2611
    %v2618 = vsel %vm2512, %v2604, 0.0
    %2619 = vadd.xlane.f32.xlu0 %v2618
    %v2620 = vpop.xlane.xlu0 %2619
    %v2621 = vsel %vm2512, %v2606, 0.0
    %2622 = vadd.xlane.f32.xlu0 %v2621
    %v2623 = vpop.xlane.xlu0 %2622
    %v2624 = vsel %vm2512, %v2608, 0.0
    %2625 = vadd.xlane.f32.xlu0 %v2624
    %v2626 = vpop.xlane.xlu0 %2625
    %v2627 = vsel %vm2512, %v2610, 0.0
    %2628 = vadd.xlane.f32.xlu0 %v2627
    %v2629 = vpop.xlane.xlu0 %2628
    %v2630 = vsel %vm2525, %v2612, 0.0
    %2631 = vadd.xlane.f32.xlu0 %v2630
    %v2632 = vpop.xlane.xlu0 %2631
    %v2633 = vmul.f32 %v2620, 0.5
    %v2634 = vmul.f32 %v2623, 0.5
    %v2635 = vmul.f32 %v2626, 0.5
    %v2636 = vmul.f32 %v2629, 0.5
    %v2637 = vmul.f32 %v2632, 0.5
    %vm2638 = vcmask 23568
    %2639 = vst.msk [vmem:[#allocation9] sm:$0xff] %vm2638, %v2633
    %2640 = vst.msk [vmem:[#allocation9 + $0x8] sm:$0xff] %vm2638, %v2634
    %2641 = vst.msk [vmem:[#allocation9 + $0x10] sm:$0xff] %vm2638, %v2635
    %2642 = vst.msk [vmem:[#allocation9 + $0x18] sm:$0xff] %vm2638, %v2636
    %vm2643 = vcmask 17424
    %2644 = vst.msk [vmem:[#allocation9 + $0x20] sm:$0x3] %vm2643, %v2637
    %v2645 = vld [vmem:[#allocation2] sm:$0xff]
    %v2646 = vld [vmem:[#allocation2 + $0x8] sm:$0xff]
    %v2647 = vld [vmem:[#allocation2 + $0x10] sm:$0xff]
    %v2648 = vld [vmem:[#allocation2 + $0x18] sm:$0xff]
    %v2649 = vld [vmem:[#allocation2 + $0x20] sm:$0x3]
    %2655 = vrot.lane.b32.xlu0 %v2645, 122
    %v2656 = vpop.permute.xlu0 %2655
    %2657 = vrot.lane.b32.xlu0 %v2646, 122
    %v2658 = vpop.permute.xlu0 %2657
    %2659 = vrot.lane.b32.xlu0 %v2647, 122
    %v2660 = vpop.permute.xlu0 %2659
    %2661 = vrot.lane.b32.xlu0 %v2648, 122
    %v2662 = vpop.permute.xlu0 %2661
    %2663 = vrot.lane.b32.xlu0 %v2649, 122
    %v2664 = vpop.permute.xlu0 %2663
    %v2670 = vsel %vm2512, %v2656, 0.0
    %2671 = vadd.xlane.f32.xlu0 %v2670
    %v2672 = vpop.xlane.xlu0 %2671
    %v2673 = vsel %vm2512, %v2658, 0.0
    %2674 = vadd.xlane.f32.xlu0 %v2673
    %v2675 = vpop.xlane.xlu0 %2674
    %v2676 = vsel %vm2512, %v2660, 0.0
    %2677 = vadd.xlane.f32.xlu0 %v2676
    %v2678 = vpop.xlane.xlu0 %2677
    %v2679 = vsel %vm2512, %v2662, 0.0
    %2680 = vadd.xlane.f32.xlu0 %v2679
    %v2681 = vpop.xlane.xlu0 %2680
    %v2682 = vsel %vm2525, %v2664, 0.0
    %2683 = vadd.xlane.f32.xlu0 %v2682
    %v2684 = vpop.xlane.xlu0 %2683
    %v2685 = vmul.f32 %v2672, 0.5
    %v2686 = vmul.f32 %v2675, 0.5
    %v2687 = vmul.f32 %v2678, 0.5
    %v2688 = vmul.f32 %v2681, 0.5
    %v2689 = vmul.f32 %v2684, 0.5
    %vm2690 = vcmask 31768
    %2691 = vst.msk [vmem:[#allocation9] sm:$0xff] %vm2690, %v2685
    %2692 = vst.msk [vmem:[#allocation9 + $0x8] sm:$0xff] %vm2690, %v2686
    %2693 = vst.msk [vmem:[#allocation9 + $0x10] sm:$0xff] %vm2690, %v2687
    %2694 = vst.msk [vmem:[#allocation9 + $0x18] sm:$0xff] %vm2690, %v2688
    %vm2695 = vcmask 25624
    %2696 = vst.msk [vmem:[#allocation9 + $0x20] sm:$0x3] %vm2695, %v2689
    %v2697 = vld [vmem:[#allocation2] sm:$0xff]
    %v2698 = vld [vmem:[#allocation2 + $0x8] sm:$0xff]
    %v2699 = vld [vmem:[#allocation2 + $0x10] sm:$0xff]
    %v2700 = vld [vmem:[#allocation2 + $0x18] sm:$0xff]
    %v2701 = vld [vmem:[#allocation2 + $0x20] sm:$0x3]
    %2707 = vrot.lane.b32.xlu0 %v2697, 120
    %v2708 = vpop.permute.xlu0 %2707
    %2709 = vrot.lane.b32.xlu0 %v2698, 120
    %v2710 = vpop.permute.xlu0 %2709
    %2711 = vrot.lane.b32.xlu0 %v2699, 120
    %v2712 = vpop.permute.xlu0 %2711
    %2713 = vrot.lane.b32.xlu0 %v2700, 120
    %v2714 = vpop.permute.xlu0 %2713
    %2715 = vrot.lane.b32.xlu0 %v2701, 120
    %v2716 = vpop.permute.xlu0 %2715
    %v2722 = vsel %vm2512, %v2708, 0.0
    %2723 = vadd.xlane.f32.xlu0 %v2722
    %v2724 = vpop.xlane.xlu0 %2723
    %v2725 = vsel %vm2512, %v2710, 0.0
    %2726 = vadd.xlane.f32.xlu0 %v2725
    %v2727 = vpop.xlane.xlu0 %2726
    %v2728 = vsel %vm2512, %v2712, 0.0
    %2729 = vadd.xlane.f32.xlu0 %v2728
    %v2730 = vpop.xlane.xlu0 %2729
    %v2731 = vsel %vm2512, %v2714, 0.0
    %2732 = vadd.xlane.f32.xlu0 %v2731
    %v2733 = vpop.xlane.xlu0 %2732
    %v2734 = vsel %vm2525, %v2716, 0.0
    %2735 = vadd.xlane.f32.xlu0 %v2734
    %v2736 = vpop.xlane.xlu0 %2735
    %v2737 = vmul.f32 %v2724, 0.5
    %v2738 = vmul.f32 %v2727, 0.5
    %v2739 = vmul.f32 %v2730, 0.5
    %v2740 = vmul.f32 %v2733, 0.5
    %v2741 = vmul.f32 %v2736, 0.5
    %vm2742 = vcmask 39968
    %2743 = vst.msk [vmem:[#allocation9] sm:$0xff] %vm2742, %v2737
    %2744 = vst.msk [vmem:[#allocation9 + $0x8] sm:$0xff] %vm2742, %v2738
    %2745 = vst.msk [vmem:[#allocation9 + $0x10] sm:$0xff] %vm2742, %v2739
    %2746 = vst.msk [vmem:[#allocation9 + $0x18] sm:$0xff] %vm2742, %v2740
    %vm2747 = vcmask 33824
    %2748 = vst.msk [vmem:[#allocation9 + $0x20] sm:$0x3] %vm2747, %v2741
    %v2749 = vld [vmem:[#allocation2] sm:$0xff]
    %v2750 = vld [vmem:[#allocation2 + $0x8] sm:$0xff]
    %v2751 = vld [vmem:[#allocation2 + $0x10] sm:$0xff]
    %v2752 = vld [vmem:[#allocation2 + $0x18] sm:$0xff]
    %v2753 = vld [vmem:[#allocation2 + $0x20] sm:$0x3]
    %2759 = vrot.lane.b32.xlu0 %v2749, 118
    %v2760 = vpop.permute.xlu0 %2759
    %2761 = vrot.lane.b32.xlu0 %v2750, 118
    %v2762 = vpop.permute.xlu0 %2761
    %2763 = vrot.lane.b32.xlu0 %v2751, 118
    %v2764 = vpop.permute.xlu0 %2763
    %2765 = vrot.lane.b32.xlu0 %v2752, 118
    %v2766 = vpop.permute.xlu0 %2765
    %2767 = vrot.lane.b32.xlu0 %v2753, 118
    %v2768 = vpop.permute.xlu0 %2767
    %v2774 = vsel %vm2512, %v2760, 0.0
    %2775 = vadd.xlane.f32.xlu0 %v2774
    %v2776 = vpop.xlane.xlu0 %2775
    %v2777 = vsel %vm2512, %v2762, 0.0
    %2778 = vadd.xlane.f32.xlu0 %v2777
    %v2779 = vpop.xlane.xlu0 %2778
    %v2780 = vsel %vm2512, %v2764, 0.0
    %2781 = vadd.xlane.f32.xlu0 %v2780
    %v2782 = vpop.xlane.xlu0 %2781
    %v2783 = vsel %vm2512, %v2766, 0.0
    %2784 = vadd.xlane.f32.xlu0 %v2783
    %v2785 = vpop.xlane.xlu0 %2784
    %v2786 = vsel %vm2525, %v2768, 0.0
    %2787 = vadd.xlane.f32.xlu0 %v2786
    %v2788 = vpop.xlane.xlu0 %2787
    %v2789 = vmul.f32 %v2776, 0.5
    %v2790 = vmul.f32 %v2779, 0.5
    %v2791 = vmul.f32 %v2782, 0.5
    %v2792 = vmul.f32 %v2785, 0.5
    %v2793 = vmul.f32 %v2788, 0.5
    %vm2794 = vcmask 48168
    %2795 = vst.msk [vmem:[#allocation9] sm:$0xff] %vm2794, %v2789
    %2796 = vst.msk [vmem:[#allocation9 + $0x8] sm:$0xff] %vm2794, %v2790
    %2797 = vst.msk [vmem:[#allocation9 + $0x10] sm:$0xff] %vm2794, %v2791
    %2798 = vst.msk [vmem:[#allocation9 + $0x18] sm:$0xff] %vm2794, %v2792
    %vm2799 = vcmask 42024
    %2800 = vst.msk [vmem:[#allocation9 + $0x20] sm:$0x3] %vm2799, %v2793
    %v2801 = vld [vmem:[#allocation2] sm:$0xff]
    %v2802 = vld [vmem:[#allocation2 + $0x8] sm:$0xff]
    %v2803 = vld [vmem:[#allocation2 + $0x10] sm:$0xff]
    %v2804 = vld [vmem:[#allocation2 + $0x18] sm:$0xff]
    %v2805 = vld [vmem:[#allocation2 + $0x20] sm:$0x3]
    %2811 = vrot.lane.b32.xlu0 %v2801, 116
    %v2812 = vpop.permute.xlu0 %2811
    %2813 = vrot.lane.b32.xlu0 %v2802, 116
    %v2814 = vpop.permute.xlu0 %2813
    %2815 = vrot.lane.b32.xlu0 %v2803, 116
    %v2816 = vpop.permute.xlu0 %2815
    %2817 = vrot.lane.b32.xlu0 %v2804, 116
    %v2818 = vpop.permute.xlu0 %2817
    %2819 = vrot.lane.b32.xlu0 %v2805, 116
    %v2820 = vpop.permute.xlu0 %2819
    %v2826 = vsel %vm2512, %v2812, 0.0
    %2827 = vadd.xlane.f32.xlu0 %v2826
    %v2828 = vpop.xlane.xlu0 %2827
    %v2829 = vsel %vm2512, %v2814, 0.0
    %2830 = vadd.xlane.f32.xlu0 %v2829
    %v2831 = vpop.xlane.xlu0 %2830
    %v2832 = vsel %vm2512, %v2816, 0.0
    %2833 = vadd.xlane.f32.xlu0 %v2832
    %v2834 = vpop.xlane.xlu0 %2833
    %v2835 = vsel %vm2512, %v2818, 0.0
    %2836 = vadd.xlane.f32.xlu0 %v2835
    %v2837 = vpop.xlane.xlu0 %2836
    %v2838 = vsel %vm2525, %v2820, 0.0
    %2839 = vadd.xlane.f32.xlu0 %v2838
    %v2840 = vpop.xlane.xlu0 %2839
    %v2841 = vmul.f32 %v2828, 0.5
    %v2842 = vmul.f32 %v2831, 0.5
    %v2843 = vmul.f32 %v2834, 0.5
    %v2844 = vmul.f32 %v2837, 0.5
    %v2845 = vmul.f32 %v2840, 0.5
    %vm2846 = vcmask 56368
    %2847 = vst.msk [vmem:[#allocation9] sm:$0xff] %vm2846, %v2841
    %2848 = vst.msk [vmem:[#allocation9 + $0x8] sm:$0xff] %vm2846, %v2842
    %2849 = vst.msk [vmem:[#allocation9 + $0x10] sm:$0xff] %vm2846, %v2843
    %2850 = vst.msk [vmem:[#allocation9 + $0x18] sm:$0xff] %vm2846, %v2844
    %vm2851 = vcmask 50224
    %2852 = vst.msk [vmem:[#allocation9 + $0x20] sm:$0x3] %vm2851, %v2845
    %v2853 = vld [vmem:[#allocation2] sm:$0xff]
    %v2854 = vld [vmem:[#allocation2 + $0x8] sm:$0xff]
    %v2855 = vld [vmem:[#allocation2 + $0x10] sm:$0xff]
    %v2856 = vld [vmem:[#allocation2 + $0x18] sm:$0xff]
    %v2857 = vld [vmem:[#allocation2 + $0x20] sm:$0x3]
    %2863 = vrot.lane.b32.xlu0 %v2853, 114
    %v2864 = vpop.permute.xlu0 %2863
    %2865 = vrot.lane.b32.xlu0 %v2854, 114
    %v2866 = vpop.permute.xlu0 %2865
    %2867 = vrot.lane.b32.xlu0 %v2855, 114
    %v2868 = vpop.permute.xlu0 %2867
    %2869 = vrot.lane.b32.xlu0 %v2856, 114
    %v2870 = vpop.permute.xlu0 %2869
    %2871 = vrot.lane.b32.xlu0 %v2857, 114
    %v2872 = vpop.permute.xlu0 %2871
    %v2878 = vsel %vm2512, %v2864, 0.0
    %2879 = vadd.xlane.f32.xlu0 %v2878
    %v2880 = vpop.xlane.xlu0 %2879
    %v2881 = vsel %vm2512, %v2866, 0.0
    %2882 = vadd.xlane.f32.xlu0 %v2881
    %v2883 = vpop.xlane.xlu0 %2882
    %v2884 = vsel %vm2512, %v2868, 0.0
    %2885 = vadd.xlane.f32.xlu0 %v2884
    %v2886 = vpop.xlane.xlu0 %2885
    %v2887 = vsel %vm2512, %v2870, 0.0
    %2888 = vadd.xlane.f32.xlu0 %v2887
    %v2889 = vpop.xlane.xlu0 %2888
    %v2890 = vsel %vm2525, %v2872, 0.0
    %2891 = vadd.xlane.f32.xlu0 %v2890
    %v2892 = vpop.xlane.xlu0 %2891
    %v2893 = vmul.f32 %v2880, 0.5
    %v2894 = vmul.f32 %v2883, 0.5
    %v2895 = vmul.f32 %v2886, 0.5
    %v2896 = vmul.f32 %v2889, 0.5
    %v2897 = vmul.f32 %v2892, 0.5
    %vm2898 = vcmask 64568
    %2899 = vst.msk [vmem:[#allocation9] sm:$0xff] %vm2898, %v2893
    %2900 = vst.msk [vmem:[#allocation9 + $0x8] sm:$0xff] %vm2898, %v2894
    %2901 = vst.msk [vmem:[#allocation9 + $0x10] sm:$0xff] %vm2898, %v2895
    %2902 = vst.msk [vmem:[#allocation9 + $0x18] sm:$0xff] %vm2898, %v2896
    %vm2903 = vcmask 58424
    %2904 = vst.msk [vmem:[#allocation9 + $0x20] sm:$0x3] %vm2903, %v2897
    %v2905 = vld [vmem:[#allocation2] sm:$0xff]
    %v2906 = vld [vmem:[#allocation2 + $0x8] sm:$0xff]
    %v2907 = vld [vmem:[#allocation2 + $0x10] sm:$0xff]
    %v2908 = vld [vmem:[#allocation2 + $0x18] sm:$0xff]
    %v2909 = vld [vmem:[#allocation2 + $0x20] sm:$0x3]
    %2915 = vrot.lane.b32.xlu0 %v2905, 112
    %v2916 = vpop.permute.xlu0 %2915
    %2917 = vrot.lane.b32.xlu0 %v2906, 112
    %v2918 = vpop.permute.xlu0 %2917
    %2919 = vrot.lane.b32.xlu0 %v2907, 112
    %v2920 = vpop.permute.xlu0 %2919
    %2921 = vrot.lane.b32.xlu0 %v2908, 112
    %v2922 = vpop.permute.xlu0 %2921
    %2923 = vrot.lane.b32.xlu0 %v2909, 112
    %v2924 = vpop.permute.xlu0 %2923
    %v2930 = vsel %vm2512, %v2916, 0.0
    %2931 = vadd.xlane.f32.xlu0 %v2930
    %v2932 = vpop.xlane.xlu0 %2931
    %v2933 = vsel %vm2512, %v2918, 0.0
    %2934 = vadd.xlane.f32.xlu0 %v2933
    %v2935 = vpop.xlane.xlu0 %2934
    %v2936 = vsel %vm2512, %v2920, 0.0
    %2937 = vadd.xlane.f32.xlu0 %v2936
    %v2938 = vpop.xlane.xlu0 %2937
    %v2939 = vsel %vm2512, %v2922, 0.0
    %2940 = vadd.xlane.f32.xlu0 %v2939
    %v2941 = vpop.xlane.xlu0 %2940
    %v2942 = vsel %vm2525, %v2924, 0.0
    %2943 = vadd.xlane.f32.xlu0 %v2942
    %v2944 = vpop.xlane.xlu0 %2943
    %v2945 = vmul.f32 %v2932, 0.5
    %v2946 = vmul.f32 %v2935, 0.5
    %v2947 = vmul.f32 %v2938, 0.5
    %v2948 = vmul.f32 %v2941, 0.5
    %v2949 = vmul.f32 %v2944, 0.5
    %vm2950 = vcmask 72768
    %2951 = vst.msk [vmem:[#allocation9] sm:$0xff] %vm2950, %v2945
    %2952 = vst.msk [vmem:[#allocation9 + $0x8] sm:$0xff] %vm2950, %v2946
    %2953 = vst.msk [vmem:[#allocation9 + $0x10] sm:$0xff] %vm2950, %v2947
    %2954 = vst.msk [vmem:[#allocation9 + $0x18] sm:$0xff] %vm2950, %v2948
    %vm2955 = vcmask 66624
    %2956 = vst.msk [vmem:[#allocation9 + $0x20] sm:$0x3] %vm2955, %v2949
    %v2957 = vld [vmem:[#allocation2] sm:$0xff]
    %v2958 = vld [vmem:[#allocation2 + $0x8] sm:$0xff]
    %v2959 = vld [vmem:[#allocation2 + $0x10] sm:$0xff]
    %v2960 = vld [vmem:[#allocation2 + $0x18] sm:$0xff]
    %v2961 = vld [vmem:[#allocation2 + $0x20] sm:$0x3]
    %2967 = vrot.lane.b32.xlu0 %v2957, 110
    %v2968 = vpop.permute.xlu0 %2967
    %2969 = vrot.lane.b32.xlu0 %v2958, 110
    %v2970 = vpop.permute.xlu0 %2969
    %2971 = vrot.lane.b32.xlu0 %v2959, 110
    %v2972 = vpop.permute.xlu0 %2971
    %2973 = vrot.lane.b32.xlu0 %v2960, 110
    %v2974 = vpop.permute.xlu0 %2973
    %2975 = vrot.lane.b32.xlu0 %v2961, 110
    %v2976 = vpop.permute.xlu0 %2975
    %v2982 = vsel %vm2512, %v2968, 0.0
    %2983 = vadd.xlane.f32.xlu0 %v2982
    %v2984 = vpop.xlane.xlu0 %2983
    %v2985 = vsel %vm2512, %v2970, 0.0
    %2986 = vadd.xlane.f32.xlu0 %v2985
    %v2987 = vpop.xlane.xlu0 %2986
    %v2988 = vsel %vm2512, %v2972, 0.0
    %2989 = vadd.xlane.f32.xlu0 %v2988
    %v2990 = vpop.xlane.xlu0 %2989
    %v2991 = vsel %vm2512, %v2974, 0.0
    %2992 = vadd.xlane.f32.xlu0 %v2991
    %v2993 = vpop.xlane.xlu0 %2992
    %v2994 = vsel %vm2525, %v2976, 0.0
    %2995 = vadd.xlane.f32.xlu0 %v2994
    %v2996 = vpop.xlane.xlu0 %2995
    %v2997 = vmul.f32 %v2984, 0.5
    %v2998 = vmul.f32 %v2987, 0.5
    %v2999 = vmul.f32 %v2990, 0.5
    %v3000 = vmul.f32 %v2993, 0.5
    %v3001 = vmul.f32 %v2996, 0.5
    %vm3002 = vcmask 80968
    %3003 = vst.msk [vmem:[#allocation9] sm:$0xff] %vm3002, %v2997
    %3004 = vst.msk [vmem:[#allocation9 + $0x8] sm:$0xff] %vm3002, %v2998
    %3005 = vst.msk [vmem:[#allocation9 + $0x10] sm:$0xff] %vm3002, %v2999
    %3006 = vst.msk [vmem:[#allocation9 + $0x18] sm:$0xff] %vm3002, %v3000
    %vm3007 = vcmask 74824
    %3008 = vst.msk [vmem:[#allocation9 + $0x20] sm:$0x3] %vm3007, %v3001
    %v3009 = vld [vmem:[#allocation2] sm:$0xff]
    %v3010 = vld [vmem:[#allocation2 + $0x8] sm:$0xff]
    %v3011 = vld [vmem:[#allocation2 + $0x10] sm:$0xff]
    %v3012 = vld [vmem:[#allocation2 + $0x18] sm:$0xff]
    %v3013 = vld [vmem:[#allocation2 + $0x20] sm:$0x3]
    %3019 = vrot.lane.b32.xlu0 %v3009, 108
    %v3020 = vpop.permute.xlu0 %3019
    %3021 = vrot.lane.b32.xlu0 %v3010, 108
    %v3022 = vpop.permute.xlu0 %3021
    %3023 = vrot.lane.b32.xlu0 %v3011, 108
    %v3024 = vpop.permute.xlu0 %3023
    %3025 = vrot.lane.b32.xlu0 %v3012, 108
    %v3026 = vpop.permute.xlu0 %3025
    %3027 = vrot.lane.b32.xlu0 %v3013, 108
    %v3028 = vpop.permute.xlu0 %3027
    %v3034 = vsel %vm2512, %v3020, 0.0
    %3035 = vadd.xlane.f32.xlu0 %v3034
    %v3036 = vpop.xlane.xlu0 %3035
    %v3037 = vsel %vm2512, %v3022, 0.0
    %3038 = vadd.xlane.f32.xlu0 %v3037
    %v3039 = vpop.xlane.xlu0 %3038
    %v3040 = vsel %vm2512, %v3024, 0.0
    %3041 = vadd.xlane.f32.xlu0 %v3040
    %v3042 = vpop.xlane.xlu0 %3041
    %v3043 = vsel %vm2512, %v3026, 0.0
    %3044 = vadd.xlane.f32.xlu0 %v3043
    %v3045 = vpop.xlane.xlu0 %3044
    %v3046 = vsel %vm2525, %v3028, 0.0
    %3047 = vadd.xlane.f32.xlu0 %v3046
    %v3048 = vpop.xlane.xlu0 %3047
    %v3049 = vmul.f32 %v3036, 0.5
    %v3050 = vmul.f32 %v3039, 0.5
    %v3051 = vmul.f32 %v3042, 0.5
    %v3052 = vmul.f32 %v3045, 0.5
    %v3053 = vmul.f32 %v3048, 0.5
    %vm3054 = vcmask 89168
    %3055 = vst.msk [vmem:[#allocation9] sm:$0xff] %vm3054, %v3049
    %3056 = vst.msk [vmem:[#allocation9 + $0x8] sm:$0xff] %vm3054, %v3050
    %3057 = vst.msk [vmem:[#allocation9 + $0x10] sm:$0xff] %vm3054, %v3051
    %3058 = vst.msk [vmem:[#allocation9 + $0x18] sm:$0xff] %vm3054, %v3052
    %vm3059 = vcmask 83024
    %3060 = vst.msk [vmem:[#allocation9 + $0x20] sm:$0x3] %vm3059, %v3053
    %v3061 = vld [vmem:[#allocation2] sm:$0xff]
    %v3062 = vld [vmem:[#allocation2 + $0x8] sm:$0xff]
    %v3063 = vld [vmem:[#allocation2 + $0x10] sm:$0xff]
    %v3064 = vld [vmem:[#allocation2 + $0x18] sm:$0xff]
    %v3065 = vld [vmem:[#allocation2 + $0x20] sm:$0x3]
    %3071 = vrot.lane.b32.xlu0 %v3061, 106
    %v3072 = vpop.permute.xlu0 %3071
    %3073 = vrot.lane.b32.xlu0 %v3062, 106
    %v3074 = vpop.permute.xlu0 %3073
    %3075 = vrot.lane.b32.xlu0 %v3063, 106
    %v3076 = vpop.permute.xlu0 %3075
    %3077 = vrot.lane.b32.xlu0 %v3064, 106
    %v3078 = vpop.permute.xlu0 %3077
    %3079 = vrot.lane.b32.xlu0 %v3065, 106
    %v3080 = vpop.permute.xlu0 %3079
    %v3086 = vsel %vm2512, %v3072, 0.0
    %3087 = vadd.xlane.f32.xlu0 %v3086
    %v3088 = vpop.xlane.xlu0 %3087
    %v3089 = vsel %vm2512, %v3074, 0.0
    %3090 = vadd.xlane.f32.xlu0 %v3089
    %v3091 = vpop.xlane.xlu0 %3090
    %v3092 = vsel %vm2512, %v3076, 0.0
    %3093 = vadd.xlane.f32.xlu0 %v3092
    %v3094 = vpop.xlane.xlu0 %3093
    %v3095 = vsel %vm2512, %v3078, 0.0
    %3096 = vadd.xlane.f32.xlu0 %v3095
    %v3097 = vpop.xlane.xlu0 %3096
    %v3098 = vsel %vm2525, %v3080, 0.0
    %3099 = vadd.xlane.f32.xlu0 %v3098
    %v3100 = vpop.xlane.xlu0 %3099
    %v3101 = vmul.f32 %v3088, 0.5
    %v3102 = vmul.f32 %v3091, 0.5
    %v3103 = vmul.f32 %v3094, 0.5
    %v3104 = vmul.f32 %v3097, 0.5
    %v3105 = vmul.f32 %v3100, 0.5
    %vm3106 = vcmask 97368
    %3107 = vst.msk [vmem:[#allocation9] sm:$0xff] %vm3106, %v3101
    %3108 = vst.msk [vmem:[#allocation9 + $0x8] sm:$0xff] %vm3106, %v3102
    %3109 = vst.msk [vmem:[#allocation9 + $0x10] sm:$0xff] %vm3106, %v3103
    %3110 = vst.msk [vmem:[#allocation9 + $0x18] sm:$0xff] %vm3106, %v3104
    %vm3111 = vcmask 91224
    %3112 = vst.msk [vmem:[#allocation9 + $0x20] sm:$0x3] %vm3111, %v3105
    %v3113 = vld [vmem:[#allocation2] sm:$0xff]
    %v3114 = vld [vmem:[#allocation2 + $0x8] sm:$0xff]
    %v3115 = vld [vmem:[#allocation2 + $0x10] sm:$0xff]
    %v3116 = vld [vmem:[#allocation2 + $0x18] sm:$0xff]
    %v3117 = vld [vmem:[#allocation2 + $0x20] sm:$0x3]
    %3123 = vrot.lane.b32.xlu0 %v3113, 104
    %v3124 = vpop.permute.xlu0 %3123
    %3125 = vrot.lane.b32.xlu0 %v3114, 104
    %v3126 = vpop.permute.xlu0 %3125
    %3127 = vrot.lane.b32.xlu0 %v3115, 104
    %v3128 = vpop.permute.xlu0 %3127
    %3129 = vrot.lane.b32.xlu0 %v3116, 104
    %v3130 = vpop.permute.xlu0 %3129
    %3131 = vrot.lane.b32.xlu0 %v3117, 104
    %v3132 = vpop.permute.xlu0 %3131
    %v3138 = vsel %vm2512, %v3124, 0.0
    %3139 = vadd.xlane.f32.xlu0 %v3138
    %v3140 = vpop.xlane.xlu0 %3139
    %v3141 = vsel %vm2512, %v3126, 0.0
    %3142 = vadd.xlane.f32.xlu0 %v3141
    %v3143 = vpop.xlane.xlu0 %3142
    %v3144 = vsel %vm2512, %v3128, 0.0
    %3145 = vadd.xlane.f32.xlu0 %v3144
    %v3146 = vpop.xlane.xlu0 %3145
    %v3147 = vsel %vm2512, %v3130, 0.0
    %3148 = vadd.xlane.f32.xlu0 %v3147
    %v3149 = vpop.xlane.xlu0 %3148
    %v3150 = vsel %vm2525, %v3132, 0.0
    %3151 = vadd.xlane.f32.xlu0 %v3150
    %v3152 = vpop.xlane.xlu0 %3151
    %v3153 = vmul.f32 %v3140, 0.5
    %v3154 = vmul.f32 %v3143, 0.5
    %v3155 = vmul.f32 %v3146, 0.5
    %v3156 = vmul.f32 %v3149, 0.5
    %v3157 = vmul.f32 %v3152, 0.5
    %vm3158 = vcmask 105568
    %3159 = vst.msk [vmem:[#allocation9] sm:$0xff] %vm3158, %v3153
    %3160 = vst.msk [vmem:[#allocation9 + $0x8] sm:$0xff] %vm3158, %v3154
    %3161 = vst.msk [vmem:[#allocation9 + $0x10] sm:$0xff] %vm3158, %v3155
    %3162 = vst.msk [vmem:[#allocation9 + $0x18] sm:$0xff] %vm3158, %v3156
    %vm3163 = vcmask 99424
    %3164 = vst.msk [vmem:[#allocation9 + $0x20] sm:$0x3] %vm3163, %v3157
    %v3165 = vld [vmem:[#allocation2] sm:$0xff]
    %v3166 = vld [vmem:[#allocation2 + $0x8] sm:$0xff]
    %v3167 = vld [vmem:[#allocation2 + $0x10] sm:$0xff]
    %v3168 = vld [vmem:[#allocation2 + $0x18] sm:$0xff]
    %v3169 = vld [vmem:[#allocation2 + $0x20] sm:$0x3]
    %3175 = vrot.lane.b32.xlu0 %v3165, 102
    %v3176 = vpop.permute.xlu0 %3175
    %3177 = vrot.lane.b32.xlu0 %v3166, 102
    %v3178 = vpop.permute.xlu0 %3177
    %3179 = vrot.lane.b32.xlu0 %v3167, 102
    %v3180 = vpop.permute.xlu0 %3179
    %3181 = vrot.lane.b32.xlu0 %v3168, 102
    %v3182 = vpop.permute.xlu0 %3181
    %3183 = vrot.lane.b32.xlu0 %v3169, 102
    %v3184 = vpop.permute.xlu0 %3183
    %v3190 = vsel %vm2512, %v3176, 0.0
    %3191 = vadd.xlane.f32.xlu0 %v3190
    %v3192 = vpop.xlane.xlu0 %3191
    %v3193 = vsel %vm2512, %v3178, 0.0
    %3194 = vadd.xlane.f32.xlu0 %v3193
    %v3195 = vpop.xlane.xlu0 %3194
    %v3196 = vsel %vm2512, %v3180, 0.0
    %3197 = vadd.xlane.f32.xlu0 %v3196
    %v3198 = vpop.xlane.xlu0 %3197
    %v3199 = vsel %vm2512, %v3182, 0.0
    %3200 = vadd.xlane.f32.xlu0 %v3199
    %v3201 = vpop.xlane.xlu0 %3200
    %v3202 = vsel %vm2525, %v3184, 0.0
    %3203 = vadd.xlane.f32.xlu0 %v3202
    %v3204 = vpop.xlane.xlu0 %3203
    %v3205 = vmul.f32 %v3192, 0.5
    %v3206 = vmul.f32 %v3195, 0.5
    %v3207 = vmul.f32 %v3198, 0.5
    %v3208 = vmul.f32 %v3201, 0.5
    %v3209 = vmul.f32 %v3204, 0.5
    %vm3210 = vcmask 113768
    %3211 = vst.msk [vmem:[#allocation9] sm:$0xff] %vm3210, %v3205
    %3212 = vst.msk [vmem:[#allocation9 + $0x8] sm:$0xff] %vm3210, %v3206
    %3213 = vst.msk [vmem:[#allocation9 + $0x10] sm:$0xff] %vm3210, %v3207
    %3214 = vst.msk [vmem:[#allocation9 + $0x18] sm:$0xff] %vm3210, %v3208
    %vm3215 = vcmask 107624
    %3216 = vst.msk [vmem:[#allocation9 + $0x20] sm:$0x3] %vm3215, %v3209
    %v3217 = vld [vmem:[#allocation2] sm:$0xff]
    %v3218 = vld [vmem:[#allocation2 + $0x8] sm:$0xff]
    %v3219 = vld [vmem:[#allocation2 + $0x10] sm:$0xff]
    %v3220 = vld [vmem:[#allocation2 + $0x18] sm:$0xff]
    %v3221 = vld [vmem:[#allocation2 + $0x20] sm:$0x3]
    %3227 = vrot.lane.b32.xlu0 %v3217, 100
    %v3228 = vpop.permute.xlu0 %3227
    %3229 = vrot.lane.b32.xlu0 %v3218, 100
    %v3230 = vpop.permute.xlu0 %3229
    %3231 = vrot.lane.b32.xlu0 %v3219, 100
    %v3232 = vpop.permute.xlu0 %3231
    %3233 = vrot.lane.b32.xlu0 %v3220, 100
    %v3234 = vpop.permute.xlu0 %3233
    %3235 = vrot.lane.b32.xlu0 %v3221, 100
    %v3236 = vpop.permute.xlu0 %3235
    %v3242 = vsel %vm2512, %v3228, 0.0
    %3243 = vadd.xlane.f32.xlu0 %v3242
    %v3244 = vpop.xlane.xlu0 %3243
    %v3245 = vsel %vm2512, %v3230, 0.0
    %3246 = vadd.xlane.f32.xlu0 %v3245
    %v3247 = vpop.xlane.xlu0 %3246
    %v3248 = vsel %vm2512, %v3232, 0.0
    %3249 = vadd.xlane.f32.xlu0 %v3248
    %v3250 = vpop.xlane.xlu0 %3249
    %v3251 = vsel %vm2512, %v3234, 0.0
    %3252 = vadd.xlane.f32.xlu0 %v3251
    %v3253 = vpop.xlane.xlu0 %3252
    %v3254 = vsel %vm2525, %v3236, 0.0
    %3255 = vadd.xlane.f32.xlu0 %v3254
    %v3256 = vpop.xlane.xlu0 %3255
    %v3257 = vmul.f32 %v3244, 0.5
    %v3258 = vmul.f32 %v3247, 0.5
    %v3259 = vmul.f32 %v3250, 0.5
    %v3260 = vmul.f32 %v3253, 0.5
    %v3261 = vmul.f32 %v3256, 0.5
    %vm3262 = vcmask 121968
    %3263 = vst.msk [vmem:[#allocation9] sm:$0xff] %vm3262, %v3257
    %3264 = vst.msk [vmem:[#allocation9 + $0x8] sm:$0xff] %vm3262, %v3258
    %3265 = vst.msk [vmem:[#allocation9 + $0x10] sm:$0xff] %vm3262, %v3259
    %3266 = vst.msk [vmem:[#allocation9 + $0x18] sm:$0xff] %vm3262, %v3260
    %vm3267 = vcmask 115824
    %3268 = vst.msk [vmem:[#allocation9 + $0x20] sm:$0x3] %vm3267, %v3261
    %v3269 = vld [vmem:[#allocation2] sm:$0xff]
    %v3270 = vld [vmem:[#allocation2 + $0x8] sm:$0xff]
    %v3271 = vld [vmem:[#allocation2 + $0x10] sm:$0xff]
    %v3272 = vld [vmem:[#allocation2 + $0x18] sm:$0xff]
    %v3273 = vld [vmem:[#allocation2 + $0x20] sm:$0x3]
    %3279 = vrot.lane.b32.xlu0 %v3269, 98
    %v3280 = vpop.permute.xlu0 %3279
    %3281 = vrot.lane.b32.xlu0 %v3270, 98
    %v3282 = vpop.permute.xlu0 %3281
    %3283 = vrot.lane.b32.xlu0 %v3271, 98
    %v3284 = vpop.permute.xlu0 %3283
    %3285 = vrot.lane.b32.xlu0 %v3272, 98
    %v3286 = vpop.permute.xlu0 %3285
    %3287 = vrot.lane.b32.xlu0 %v3273, 98
    %v3288 = vpop.permute.xlu0 %3287
    %v3294 = vsel %vm2512, %v3280, 0.0
    %3295 = vadd.xlane.f32.xlu0 %v3294
    %v3296 = vpop.xlane.xlu0 %3295
    %v3297 = vsel %vm2512, %v3282, 0.0
    %3298 = vadd.xlane.f32.xlu0 %v3297
    %v3299 = vpop.xlane.xlu0 %3298
    %v3300 = vsel %vm2512, %v3284, 0.0
    %3301 = vadd.xlane.f32.xlu0 %v3300
    %v3302 = vpop.xlane.xlu0 %3301
    %v3303 = vsel %vm2512, %v3286, 0.0
    %3304 = vadd.xlane.f32.xlu0 %v3303
    %v3305 = vpop.xlane.xlu0 %3304
    %v3306 = vsel %vm2525, %v3288, 0.0
    %3307 = vadd.xlane.f32.xlu0 %v3306
    %v3308 = vpop.xlane.xlu0 %3307
    %v3309 = vmul.f32 %v3296, 0.5
    %v3310 = vmul.f32 %v3299, 0.5
    %v3311 = vmul.f32 %v3302, 0.5
    %v3312 = vmul.f32 %v3305, 0.5
    %v3313 = vmul.f32 %v3308, 0.5
    %vm3314 = vcmask 130168
    %3315 = vst.msk [vmem:[#allocation9] sm:$0xff] %vm3314, %v3309
    %3316 = vst.msk [vmem:[#allocation9 + $0x8] sm:$0xff] %vm3314, %v3310
    %3317 = vst.msk [vmem:[#allocation9 + $0x10] sm:$0xff] %vm3314, %v3311
    %3318 = vst.msk [vmem:[#allocation9 + $0x18] sm:$0xff] %vm3314, %v3312
    %vm3319 = vcmask 124024
    %3320 = vst.msk [vmem:[#allocation9 + $0x20] sm:$0x3] %vm3319, %v3313
    %v3321 = vld [vmem:[#allocation9] sm:$0xff]
    %v3322 = vld [vmem:[#allocation9 + $0x8] sm:$0xff]
    %v3323 = vld [vmem:[#allocation9 + $0x10] sm:$0xff]
    %v3324 = vld [vmem:[#allocation9 + $0x18] sm:$0xff]
    %v3325 = vld [vmem:[#allocation9 + $0x20] sm:$0x3]
    %v3326 = vld [vmem:[#allocation10 + $0xf0] sm:$0xc0]
    %v3327 = vld [vmem:[#allocation10 + $0x100] sm:$0xff]
    %v3328 = vld [vmem:[#allocation10 + $0x110] sm:$0xff]
    %v3329 = vld [vmem:[#allocation10 + $0x120] sm:$0xff]
    %v3330 = vld [vmem:[#allocation10 + $0x130] sm:$0xff]
    %v3331 = vld [vmem:[#allocation10 + $0x140] sm:$0xff]
    %v3332 = vld [vmem:[#allocation10 + $0x150] sm:$0x3f]
    %3334 = vset.pattern.permute.xlu0 18
    %3335 = vperm.xlu0 %3334, %v2477
    %v3336 = vpop.permute.xlu0 %3335
    %3339 = vset.pattern.permute.xlu0 18
    %3340 = vperm.xlu0 %3339, %v2478
    %v3341 = vpop.permute.xlu0 %3340
    %3344 = vset.pattern.permute.xlu0 18
    %3345 = vperm.xlu0 %3344, %v2479
    %v3346 = vpop.permute.xlu0 %3345
    %3349 = vset.pattern.permute.xlu0 18
    %3350 = vperm.xlu0 %3349, %v2480
    %v3351 = vpop.permute.xlu0 %3350
    %3354 = vset.pattern.permute.xlu0 18
    %3355 = vperm.xlu0 %3354, %v2481
    %v3356 = vpop.permute.xlu0 %3355
    %v3358 = vmul.f32 %v3321, %v3336
    %v3359 = vmul.f32 %v3322, %v3341
    %v3360 = vmul.f32 %v3323, %v3346
    %v3361 = vmul.f32 %v3324, %v3351
    %v3362 = vmul.f32 %v3325, %v3356
    %3364 = vset.pattern.permute.xlu0 19
    %3365 = vperm.xlu0 %3364, %v2507
    %v3366 = vpop.permute.xlu0 %3365
    %3369 = vset.pattern.permute.xlu0 19
    %3370 = vperm.xlu0 %3369, %v2508
    %v3371 = vpop.permute.xlu0 %3370
    %3374 = vset.pattern.permute.xlu0 19
    %3375 = vperm.xlu0 %3374, %v2509
    %v3376 = vpop.permute.xlu0 %3375
    %3379 = vset.pattern.permute.xlu0 19
    %3380 = vperm.xlu0 %3379, %v2510
    %v3381 = vpop.permute.xlu0 %3380
    %3384 = vset.pattern.permute.xlu0 19
    %3385 = vperm.xlu0 %3384, %v2511
    %v3386 = vpop.permute.xlu0 %3385
    %v3388 = vadd.f32 %v3358, %v3366
    %v3389 = vadd.f32 %v3359, %v3371
    %v3390 = vadd.f32 %v3360, %v3376
    %v3391 = vadd.f32 %v3361, %v3381
    %v3392 = vadd.f32 %v3362, %v3386
    %v3393 = vld [vmem:[%s1] sm:$0xff]
    %v3394 = vld [vmem:[%s1 + $0x8] sm:$0xff]
    %v3395 = vld [vmem:[%s1 + $0x10] sm:$0xff]
    %v3396 = vld [vmem:[%s1 + $0x18] sm:$0xff]
    %v3397 = vld [vmem:[%s1 + $0x20] sm:$0xff]
    %v3398 = vld [vmem:[%s1 + $0x28] sm:$0xff]
    %3400 = vset.pattern.permute.xlu0 20
    %3401 = vperm.xlu0 %3400, %v3393
    %v3402 = vpop.permute.xlu0 %3401
    %3405 = vset.pattern.permute.xlu0 20
    %3406 = vperm.xlu0 %3405, %v3394
    %v3407 = vpop.permute.xlu0 %3406
    %3410 = vset.pattern.permute.xlu0 20
    %3411 = vperm.xlu0 %3410, %v3395
    %v3412 = vpop.permute.xlu0 %3411
    %3415 = vset.pattern.permute.xlu0 20
    %3416 = vperm.xlu0 %3415, %v3396
    %v3417 = vpop.permute.xlu0 %3416
    %3420 = vset.pattern.permute.xlu0 20
    %3421 = vperm.xlu0 %3420, %v3397
    %v3422 = vpop.permute.xlu0 %3421
    %3425 = vset.pattern.permute.xlu0 20
    %3426 = vperm.xlu0 %3425, %v3398
    %v3427 = vpop.permute.xlu0 %3426
    %vm3436 = vcmask 1041408
    %v3437 = vrot.slane %v3326, 6
    %v3438 = vrot.slane %v3327, 6
    %v3439 = vsel %vm3436, %v3437, %v3438
    %v3440 = vrot.slane %v3328, 6
    %v3441 = vsel %vm3436, %v3438, %v3440
    %v3442 = vrot.slane %v3329, 6
    %v3443 = vsel %vm3436, %v3440, %v3442
    %v3444 = vrot.slane %v3330, 6
    %v3445 = vsel %vm3436, %v3442, %v3444
    %v3446 = vrot.slane %v3331, 6
    %v3447 = vsel %vm3436, %v3444, %v3446
    %v3448 = vrot.slane %v3332, 6
    %v3449 = vsel %vm3436, %v3446, %v3448
    %vm3450 = vcmask 277504
    %v3451 = vsel %vm3450, %v3439, 0
    %v3453 = vsel %vm3450, %v3441, 0
    %v3455 = vsel %vm3450, %v3443, 0
    %v3457 = vsel %vm3450, %v3445, 0
    %v3459 = vsel %vm3450, %v3447, 0
    %v3461 = vsel %vm3450, %v3449, 0
    %v3464 = vsel %vm3436, %v3392, 0
    %3466 = vmatprep.subr.mxu0 0.0
    %3467 = vmatpush1.msra.mxu0 %v3388
    %3468 = vmatprep.subr.mxu0 0.0
    %3469 = vmatpush1.msra.mxu0 %v3389
    %3470 = vmatprep.subr.mxu0 0.0
    %3471 = vmatpush1.msra.mxu0 %v3390
    %3472 = vmatprep.subr.mxu0 0.0
    %3473 = vmatpush1.msra.mxu0 %v3391
    %3474 = vmatprep.subr.mxu0 0.0
    %3475 = vmatpush1.msra.mxu0 %v3464
    %3476 = vmatprep.subr.mxu0 0.0
    %3477 = vmatpush1.msra.mxu0 0.0
    %3478 = vmatprep.subr.mxu0 0.0
    %3479 = vmatpush1.msra.mxu0 0.0
    %3480 = vmatprep.subr.mxu0 0.0
    %3481 = vmatpush1.msra.mxu0 0.0
    %3482 = vmatprep.subr.mxu0 0.0
    %3483 = vmatpush1.msra.mxu0 0.0
    %3484 = vmatprep.subr.mxu0 0.0
    %3485 = vmatpush1.msra.mxu0 0.0
    %3486 = vmatprep.subr.mxu0 0.0
    %3487 = vmatpush1.msra.mxu0 0.0
    %3488 = vmatprep.subr.mxu0 0.0
    %3489 = vmatpush1.msra.mxu0 0.0
    %3490 = vmatprep.subr.mxu0 0.0
    %3491 = vmatpush1.msra.mxu0 0.0
    %3492 = vmatprep.subr.mxu0 0.0
    %3493 = vmatpush1.msra.mxu0 0.0
    %3494 = vmatprep.subr.mxu0 0.0
    %3495 = vmatpush1.msra.mxu0 0.0
    %3496 = vmatprep.subr.mxu0 0.0
    %3497 = vmatpush1.msra.mxu0 0.0
    %3498 = vmatprep.subr.mxu0 0.0
    %3499 = vmatpush1.msra.mxu0 0.0
    %3500 = vmatprep.subr.mxu0 0.0
    %3501 = vmatpush1.msra.mxu0 0.0
    %3502 = vmatprep.subr.mxu0 0.0
    %3503 = vmatpush1.msra.mxu0 0.0
    %3504 = vmatprep.subr.mxu0 0.0
    %3505 = vmatpush1.msra.mxu0 0.0
    %3506 = vmatprep.subr.mxu0 0.0
    %3507 = vmatpush1.msra.mxu0 0.0
    %3508 = vmatprep.subr.mxu0 0.0
    %3509 = vmatpush1.msra.mxu0 0.0
    %3510 = vmatprep.subr.mxu0 0.0
    %3511 = vmatpush1.msra.mxu0 0.0
    %3512 = vmatprep.subr.mxu0 0.0
    %3513 = vmatpush1.msra.mxu0 0.0
    %3514 = vmatprep.subr.mxu0 0.0
    %3515 = vmatpush1.msra.mxu0 0.0
    %3516 = vmatprep.subr.mxu0 0.0
    %3517 = vmatpush1.msra.mxu0 0.0
    %3518 = vmatprep.subr.mxu0 0.0
    %3519 = vmatpush1.msra.mxu0 0.0
    %3520 = vmatprep.subr.mxu0 0.0
    %3521 = vmatpush1.msra.mxu0 0.0
    %3522 = vmatprep.subr.mxu0 0.0
    %3523 = vmatpush1.msra.mxu0 0.0
    %3524 = vmatprep.subr.mxu0 0.0
    %3525 = vmatpush1.msra.mxu0 0.0
    %3526 = vmatprep.subr.mxu0 0.0
    %3527 = vmatpush1.msra.mxu0 0.0
    %3528 = vmatprep.subr.mxu0 0.0
    %3529 = vmatpush1.msra.mxu0 0.0
    %3530 = vmatprep.mubr.f32.mxu0 0.0
    %3531 = vmatmul.mubr.f32.gmra.mrb[0].mxu0 %v3451
    %v3532 = vpop.f32.mrb[0].mxu0
    %v3533 = vadd.f32 %v3402, %v3532
    %v3534 = vpop.f32.mrb[0].mxu0
    %3535 = vmatprep.mubr.f32.mxu0 0.0
    %3536 = vmatmul.mubr.f32.gmra.mrb[0].mxu0 %v3453
    %v3537 = vpop.f32.mrb[0].mxu0
    %v3538 = vadd.f32 %v3407, %v3537
    %v3539 = vpop.f32.mrb[0].mxu0
    %3540 = vmatprep.mubr.f32.mxu0 0.0
    %3541 = vmatmul.mubr.f32.gmra.mrb[0].mxu0 %v3455
    %v3542 = vpop.f32.mrb[0].mxu0
    %v3543 = vadd.f32 %v3412, %v3542
    %v3544 = vpop.f32.mrb[0].mxu0
    %3545 = vmatprep.mubr.f32.mxu0 0.0
    %3546 = vmatmul.mubr.f32.gmra.mrb[0].mxu0 %v3457
    %v3547 = vpop.f32.mrb[0].mxu0
    %v3548 = vadd.f32 %v3417, %v3547
    %v3549 = vpop.f32.mrb[0].mxu0
    %3550 = vmatprep.mubr.f32.mxu0 0.0
    %3551 = vmatmul.mubr.f32.gmra.mrb[0].mxu0 %v3459
    %v3552 = vpop.f32.mrb[0].mxu0
    %v3553 = vadd.f32 %v3422, %v3552
    %v3554 = vpop.f32.mrb[0].mxu0
    %3555 = vmatprep.mubr.f32.mxu0 0.0
    %3556 = vmatmul.mubr.f32.gmra.mrb[0].mxu0 %v3461
    %v3557 = vpop.f32.mrb[0].mxu0
    %v3558 = vadd.f32 %v3427, %v3557
    %v3559 = vpop.f32.mrb[0].mxu0
    %3560 = vdwg.mxu0
    %3561 = vst.msk [vmem:[#allocation3] sm:$0xff] %vm520, %v3533
    %3562 = vst.msk [vmem:[#allocation3 + $0x8] sm:$0xff] %vm520, %v3538
    %3563 = vst.msk [vmem:[#allocation3 + $0x10] sm:$0xff] %vm520, %v3543
    %3564 = vst.msk [vmem:[#allocation3 + $0x18] sm:$0xff] %vm520, %v3548
    %3565 = vst.msk [vmem:[#allocation3 + $0x20] sm:$0xff] %vm520, %v3553
    %3566 = vst.msk [vmem:[#allocation3 + $0x28] sm:$0xff] %vm520, %v3558
    %3567 = vst.msk [vmem:[#allocation6] sm:$0xff] %vm520, 0.0
    %3568 = vst.msk [vmem:[#allocation6 + $0x8] sm:$0xff] %vm520, 0.0
    %3569 = vst.msk [vmem:[#allocation6 + $0x10] sm:$0xff] %vm520, 0.0
    %3570 = vst.msk [vmem:[#allocation6 + $0x18] sm:$0xff] %vm520, 0.0
    %3571 = vst.msk [vmem:[#allocation6 + $0x20] sm:$0xff] %vm520, 0.0
    %3572 = vst.msk [vmem:[#allocation6 + $0x28] sm:$0xff] %vm520, 0.0
    %3573 = vst.msk [vmem:[#allocation6 + $0x30] sm:$0xff] %vm520, 0.0
    %3574 = vst.msk [vmem:[#allocation6 + $0x38] sm:$0xf] %vm29, 0.0
    %v3575 = vld [vmem:[#allocation3] sm:$0xff]
    %v3576 = vld [vmem:[#allocation3 + $0x8] sm:$0xff]
    %v3577 = vld [vmem:[#allocation3 + $0x10] sm:$0xff]
    %v3578 = vld [vmem:[#allocation3 + $0x18] sm:$0xff]
    %v3579 = vld [vmem:[#allocation3 + $0x20] sm:$0xff]
    %v3580 = vld [vmem:[#allocation3 + $0x28] sm:$0xff]
    %v3581 = vmax.f32 %v3575, 0.0
    %v3582 = vmax.f32 %v3576, 0.0
    %v3583 = vmax.f32 %v3577, 0.0
    %v3584 = vmax.f32 %v3578, 0.0
    %v3585 = vmax.f32 %v3579, 0.0
    %v3586 = vmax.f32 %v3580, 0.0
    %v3587 = vsel %vm520, %v3581, 0.0
    %3588 = vadd.xlane.f32.xlu0 %v3587
    %v3589 = vpop.xlane.xlu0 %3588
    %v3590 = vsel %vm520, %v3582, 0.0
    %3591 = vadd.xlane.f32.xlu0 %v3590
    %v3592 = vpop.xlane.xlu0 %3591
    %v3593 = vsel %vm520, %v3583, 0.0
    %3594 = vadd.xlane.f32.xlu0 %v3593
    %v3595 = vpop.xlane.xlu0 %3594
    %v3596 = vsel %vm520, %v3584, 0.0
    %3597 = vadd.xlane.f32.xlu0 %v3596
    %v3598 = vpop.xlane.xlu0 %3597
    %v3599 = vsel %vm520, %v3585, 0.0
    %3600 = vadd.xlane.f32.xlu0 %v3599
    %v3601 = vpop.xlane.xlu0 %3600
    %v3602 = vsel %vm520, %v3586, 0.0
    %3603 = vadd.xlane.f32.xlu0 %v3602
    %v3604 = vpop.xlane.xlu0 %3603
    %v3605 = vrcp.pop 16.0
    %v3606 = vmul.f32 %v3589, %v3605
    %v3607 = vmul.f32 %v3592, %v3605
    %v3608 = vmul.f32 %v3595, %v3605
    %v3609 = vmul.f32 %v3598, %v3605
    %v3610 = vmul.f32 %v3601, %v3605
    %v3611 = vmul.f32 %v3604, %v3605
    %v3612 = vsub.f32 %v3581, %v3606
    %v3613 = vsub.f32 %v3582, %v3607
    %v3614 = vsub.f32 %v3583, %v3608
    %v3615 = vsub.f32 %v3584, %v3609
    %v3616 = vsub.f32 %v3585, %v3610
    %v3617 = vsub.f32 %v3586, %v3611
    %v3618 = vmul.f32 %v3612, %v3612
    %v3619 = vmul.f32 %v3613, %v3613
    %v3620 = vmul.f32 %v3614, %v3614
    %v3621 = vmul.f32 %v3615, %v3615
    %v3622 = vmul.f32 %v3616, %v3616
    %v3623 = vmul.f32 %v3617, %v3617
    %v3624 = vsel %vm520, %v3618, 0.0
    %3625 = vadd.xlane.f32.xlu0 %v3624
    %v3626 = vpop.xlane.xlu0 %3625
    %v3627 = vsel %vm520, %v3619, 0.0
    %3628 = vadd.xlane.f32.xlu0 %v3627
    %v3629 = vpop.xlane.xlu0 %3628
    %v3630 = vsel %vm520, %v3620, 0.0
    %3631 = vadd.xlane.f32.xlu0 %v3630
    %v3632 = vpop.xlane.xlu0 %3631
    %v3633 = vsel %vm520, %v3621, 0.0
    %3634 = vadd.xlane.f32.xlu0 %v3633
    %v3635 = vpop.xlane.xlu0 %3634
    %v3636 = vsel %vm520, %v3622, 0.0
    %3637 = vadd.xlane.f32.xlu0 %v3636
    %v3638 = vpop.xlane.xlu0 %3637
    %v3639 = vsel %vm520, %v3623, 0.0
    %3640 = vadd.xlane.f32.xlu0 %v3639
    %v3641 = vpop.xlane.xlu0 %3640
    %v3642 = vmul.f32 %v3626, %v3605
    %v3643 = vmul.f32 %v3629, %v3605
    %v3644 = vmul.f32 %v3632, %v3605
    %v3645 = vmul.f32 %v3635, %v3605
    %v3646 = vmul.f32 %v3638, %v3605
    %v3647 = vmul.f32 %v3641, %v3605
    %v3648 = vld [vmem:[%s1] sm:$0xff]
    %v3649 = vld [vmem:[%s1 + $0x8] sm:$0xff]
    %v3650 = vld [vmem:[%s1 + $0x10] sm:$0xff]
    %v3651 = vld [vmem:[%s1 + $0x18] sm:$0xff]
    %v3652 = vld [vmem:[%s1 + $0x20] sm:$0xff]
    %v3653 = vld [vmem:[%s1 + $0x28] sm:$0xff]
    %v3654 = vadd.f32 %v3642, 1e-05
    %v3655 = vadd.f32 %v3643, 1e-05
    %v3656 = vadd.f32 %v3644, 1e-05
    %v3657 = vadd.f32 %v3645, 1e-05
    %v3658 = vadd.f32 %v3646, 1e-05
    %v3659 = vadd.f32 %v3647, 1e-05
    %v3660 = vrsqrt.pop %v3654
    %v3661 = vrsqrt.pop %v3655
    %v3662 = vrsqrt.pop %v3656
    %v3663 = vrsqrt.pop %v3657
    %v3664 = vrsqrt.pop %v3658
    %v3665 = vrsqrt.pop %v3659
    %v3666 = vmul.f32 %v3648, %v3660
    %v3667 = vmul.f32 %v3649, %v3661
    %v3668 = vmul.f32 %v3650, %v3662
    %v3669 = vmul.f32 %v3651, %v3663
    %v3670 = vmul.f32 %v3652, %v3664
    %v3671 = vmul.f32 %v3653, %v3665
    %v3672 = vmul.f32 %v3606, %v3666
    %v3673 = vmul.f32 %v3607, %v3667
    %v3674 = vmul.f32 %v3608, %v3668
    %v3675 = vmul.f32 %v3609, %v3669
    %v3676 = vmul.f32 %v3610, %v3670
    %v3677 = vmul.f32 %v3611, %v3671
    %3684 = vrot.lane.b32.xlu0 %v3672, 1
    %v3685 = vpop.permute.xlu0 %3684
    %3686 = vrot.lane.b32.xlu0 %v3673, 1
    %v3687 = vpop.permute.xlu0 %3686
    %3688 = vrot.lane.b32.xlu0 %v3674, 1
    %v3689 = vpop.permute.xlu0 %3688
    %3690 = vrot.lane.b32.xlu0 %v3675, 1
    %v3691 = vpop.permute.xlu0 %3690
    %3692 = vrot.lane.b32.xlu0 %v3676, 1
    %v3693 = vpop.permute.xlu0 %3692
    %3694 = vrot.lane.b32.xlu0 %v3677, 1
    %v3695 = vpop.permute.xlu0 %3694
    %v3702 = vsub.f32 %v3648, %v3685
    %v3703 = vsub.f32 %v3649, %v3687
    %v3704 = vsub.f32 %v3650, %v3689
    %v3705 = vsub.f32 %v3651, %v3691
    %v3706 = vsub.f32 %v3652, %v3693
    %v3707 = vsub.f32 %v3653, %v3695
    %v3708 = vld [vmem:[#allocation10 + $0x150] sm:$0xc0]
    %v3709 = vld [vmem:[#allocation10 + $0x160] sm:$0xff]
    %v3710 = vld [vmem:[#allocation10 + $0x170] sm:$0xff]
    %v3711 = vld [vmem:[#allocation10 + $0x180] sm:$0x3]
    %3713 = vset.pattern.permute.xlu0 21
    %3714 = vperm.xlu0 %3713, %v3666
    %v3715 = vpop.permute.xlu0 %3714
    %3718 = vset.pattern.permute.xlu0 21
    %3719 = vperm.xlu0 %3718, %v3667
    %v3720 = vpop.permute.xlu0 %3719
    %3723 = vset.pattern.permute.xlu0 21
    %3724 = vperm.xlu0 %3723, %v3668
    %v3725 = vpop.permute.xlu0 %3724
    %3728 = vset.pattern.permute.xlu0 21
    %3729 = vperm.xlu0 %3728, %v3669
    %v3730 = vpop.permute.xlu0 %3729
    %3733 = vset.pattern.permute.xlu0 21
    %3734 = vperm.xlu0 %3733, %v3670
    %v3735 = vpop.permute.xlu0 %3734
    %3738 = vset.pattern.permute.xlu0 21
    %3739 = vperm.xlu0 %3738, %v3671
    %v3740 = vpop.permute.xlu0 %3739
    %v3742 = vmul.f32 %v3581, %v3715
    %v3743 = vmul.f32 %v3582, %v3720
    %v3744 = vmul.f32 %v3583, %v3725
    %v3745 = vmul.f32 %v3584, %v3730
    %v3746 = vmul.f32 %v3585, %v3735
    %v3747 = vmul.f32 %v3586, %v3740
    %3749 = vset.pattern.permute.xlu0 22
    %3750 = vperm.xlu0 %3749, %v3702
    %v3751 = vpop.permute.xlu0 %3750
    %3754 = vset.pattern.permute.xlu0 22
    %3755 = vperm.xlu0 %3754, %v3703
    %v3756 = vpop.permute.xlu0 %3755
    %3759 = vset.pattern.permute.xlu0 22
    %3760 = vperm.xlu0 %3759, %v3704
    %v3761 = vpop.permute.xlu0 %3760
    %3764 = vset.pattern.permute.xlu0 22
    %3765 = vperm.xlu0 %3764, %v3705
    %v3766 = vpop.permute.xlu0 %3765
    %3769 = vset.pattern.permute.xlu0 22
    %3770 = vperm.xlu0 %3769, %v3706
    %v3771 = vpop.permute.xlu0 %3770
    %3774 = vset.pattern.permute.xlu0 22
    %3775 = vperm.xlu0 %3774, %v3707
    %v3776 = vpop.permute.xlu0 %3775
    %v3778 = vadd.f32 %v3742, %v3751
    %v3779 = vadd.f32 %v3743, %v3756
    %v3780 = vadd.f32 %v3744, %v3761
    %v3781 = vadd.f32 %v3745, %v3766
    %v3782 = vadd.f32 %v3746, %v3771
    %v3783 = vadd.f32 %v3747, %v3776
    %v3784 = vld [vmem:[%s1] sm:$0xff]
    %v3785 = vld [vmem:[%s1 + $0x8] sm:$0xff]
    %v3786 = vld [vmem:[%s1 + $0x10] sm:$0xf]
    %3788 = vset.pattern.permute.xlu0 23
    %3789 = vperm.xlu0 %3788, %v3784
    %v3790 = vpop.permute.xlu0 %3789
    %3793 = vset.pattern.permute.xlu0 23
    %3794 = vperm.xlu0 %3793, %v3785
    %v3795 = vpop.permute.xlu0 %3794
    %3798 = vset.pattern.permute.xlu0 23
    %3799 = vperm.xlu0 %3798, %v3786
    %v3800 = vpop.permute.xlu0 %3799
    %v3806 = vrot.slane %v3708, 6
    %v3807 = vrot.slane %v3709, 6
    %v3808 = vsel %vm3436, %v3806, %v3807
    %v3809 = vrot.slane %v3710, 6
    %v3810 = vsel %vm3436, %v3807, %v3809
    %v3811 = vrot.slane %v3711, 6
    %v3812 = vsel %vm3436, %v3809, %v3811
    %vm3813 = vcmask 392192
    %v3814 = vsel %vm3813, %v3808, 0
    %v3816 = vsel %vm3813, %v3810, 0
    %v3818 = vsel %vm3813, %v3812, 0
    %3820 = vmatprep.subr.mxu0 0.0
    %3821 = vmatpush1.msra.mxu0 %v3778
    %3822 = vmatprep.subr.mxu0 0.0
    %3823 = vmatpush1.msra.mxu0 %v3779
    %3824 = vmatprep.subr.mxu0 0.0
    %3825 = vmatpush1.msra.mxu0 %v3780
    %3826 = vmatprep.subr.mxu0 0.0
    %3827 = vmatpush1.msra.mxu0 %v3781
    %3828 = vmatprep.subr.mxu0 0.0
    %3829 = vmatpush1.msra.mxu0 %v3782
    %3830 = vmatprep.subr.mxu0 0.0
    %3831 = vmatpush1.msra.mxu0 %v3783
    %3832 = vmatprep.subr.mxu0 0.0
    %3833 = vmatpush1.msra.mxu0 0.0
    %3834 = vmatprep.subr.mxu0 0.0
    %3835 = vmatpush1.msra.mxu0 0.0
    %3836 = vmatprep.subr.mxu0 0.0
    %3837 = vmatpush1.msra.mxu0 0.0
    %3838 = vmatprep.subr.mxu0 0.0
    %3839 = vmatpush1.msra.mxu0 0.0
    %3840 = vmatprep.subr.mxu0 0.0
    %3841 = vmatpush1.msra.mxu0 0.0
    %3842 = vmatprep.subr.mxu0 0.0
    %3843 = vmatpush1.msra.mxu0 0.0
    %3844 = vmatprep.subr.mxu0 0.0
    %3845 = vmatpush1.msra.mxu0 0.0
    %3846 = vmatprep.subr.mxu0 0.0
    %3847 = vmatpush1.msra.mxu0 0.0
    %3848 = vmatprep.subr.mxu0 0.0
    %3849 = vmatpush1.msra.mxu0 0.0
    %3850 = vmatprep.subr.mxu0 0.0
    %3851 = vmatpush1.msra.mxu0 0.0
    %3852 = vmatprep.subr.mxu0 0.0
    %3853 = vmatpush1.msra.mxu0 0.0
    %3854 = vmatprep.subr.mxu0 0.0
    %3855 = vmatpush1.msra.mxu0 0.0
    %3856 = vmatprep.subr.mxu0 0.0
    %3857 = vmatpush1.msra.mxu0 0.0
    %3858 = vmatprep.subr.mxu0 0.0
    %3859 = vmatpush1.msra.mxu0 0.0
    %3860 = vmatprep.subr.mxu0 0.0
    %3861 = vmatpush1.msra.mxu0 0.0
    %3862 = vmatprep.subr.mxu0 0.0
    %3863 = vmatpush1.msra.mxu0 0.0
    %3864 = vmatprep.subr.mxu0 0.0
    %3865 = vmatpush1.msra.mxu0 0.0
    %3866 = vmatprep.subr.mxu0 0.0
    %3867 = vmatpush1.msra.mxu0 0.0
    %3868 = vmatprep.subr.mxu0 0.0
    %3869 = vmatpush1.msra.mxu0 0.0
    %3870 = vmatprep.subr.mxu0 0.0
    %3871 = vmatpush1.msra.mxu0 0.0
    %3872 = vmatprep.subr.mxu0 0.0
    %3873 = vmatpush1.msra.mxu0 0.0
    %3874 = vmatprep.subr.mxu0 0.0
    %3875 = vmatpush1.msra.mxu0 0.0
    %3876 = vmatprep.subr.mxu0 0.0
    %3877 = vmatpush1.msra.mxu0 0.0
    %3878 = vmatprep.subr.mxu0 0.0
    %3879 = vmatpush1.msra.mxu0 0.0
    %3880 = vmatprep.subr.mxu0 0.0
    %3881 = vmatpush1.msra.mxu0 0.0
    %3882 = vmatprep.subr.mxu0 0.0
    %3883 = vmatpush1.msra.mxu0 0.0
    %3884 = vmatprep.mubr.f32.mxu0 0.0
    %3885 = vmatmul.mubr.f32.gmra.mrb[0].mxu0 %v3814
    %v3886 = vpop.f32.mrb[0].mxu0
    %v3887 = vadd.f32 %v3790, %v3886
    %v3888 = vpop.f32.mrb[0].mxu0
    %3889 = vmatprep.mubr.f32.mxu0 0.0
    %3890 = vmatmul.mubr.f32.gmra.mrb[0].mxu0 %v3816
    %v3891 = vpop.f32.mrb[0].mxu0
    %v3892 = vadd.f32 %v3795, %v3891
    %v3893 = vpop.f32.mrb[0].mxu0
    %3894 = vmatprep.mubr.f32.mxu0 0.0
    %3895 = vmatmul.mubr.f32.gmra.mrb[0].mxu0 %v3818
    %v3896 = vpop.f32.mrb[0].mxu0
    %v3897 = vadd.f32 %v3800, %v3896
    %v3898 = vpop.f32.mrb[0].mxu0
    %3899 = vdwg.mxu0
    %v3900 = vmax.f32 %v3887, 0.0
    %v3901 = vmax.f32 %v3892, 0.0
    %v3902 = vmax.f32 %v3897, 0.0
    %v3903 = vsel %vm520, %v3900, 0.0
    %3904 = vadd.xlane.f32.xlu0 %v3903
    %v3905 = vpop.xlane.xlu0 %3904
    %v3906 = vsel %vm520, %v3901, 0.0
    %3907 = vadd.xlane.f32.xlu0 %v3906
    %v3908 = vpop.xlane.xlu0 %3907
    %v3909 = vsel %vm29, %v3902, 0.0
    %3910 = vadd.xlane.f32.xlu0 %v3909
    %v3911 = vpop.xlane.xlu0 %3910
    %v3912 = vmul.f32 %v3905, %v3605
    %v3913 = vmul.f32 %v3908, %v3605
    %v3914 = vmul.f32 %v3911, %v3605
    %v3915 = vsub.f32 %v3900, %v3912
    %v3916 = vsub.f32 %v3901, %v3913
    %v3917 = vsub.f32 %v3902, %v3914
    %v3918 = vmul.f32 %v3915, %v3915
    %v3919 = vmul.f32 %v3916, %v3916
    %v3920 = vmul.f32 %v3917, %v3917
    %v3921 = vsel %vm520, %v3918, 0.0
    %3922 = vadd.xlane.f32.xlu0 %v3921
    %v3923 = vpop.xlane.xlu0 %3922
    %v3924 = vsel %vm520, %v3919, 0.0
    %3925 = vadd.xlane.f32.xlu0 %v3924
    %v3926 = vpop.xlane.xlu0 %3925
    %v3927 = vsel %vm29, %v3920, 0.0
    %3928 = vadd.xlane.f32.xlu0 %v3927
    %v3929 = vpop.xlane.xlu0 %3928
    %v3930 = vmul.f32 %v3923, %v3605
    %v3931 = vmul.f32 %v3926, %v3605
    %v3932 = vmul.f32 %v3929, %v3605
    %v3933 = vadd.f32 %v3930, 1e-05
    %v3934 = vadd.f32 %v3931, 1e-05
    %v3935 = vadd.f32 %v3932, 1e-05
    %v3936 = vrsqrt.pop %v3933
    %v3937 = vrsqrt.pop %v3934
    %v3938 = vrsqrt.pop %v3935
    %v3939 = vmul.f32 %v3784, %v3936
    %v3940 = vmul.f32 %v3785, %v3937
    %v3941 = vmul.f32 %v3786, %v3938
    %v3942 = vmul.f32 %v3912, %v3939
    %v3943 = vmul.f32 %v3913, %v3940
    %v3944 = vmul.f32 %v3914, %v3941
    %3948 = vrot.lane.b32.xlu0 %v3942, 1
    %v3949 = vpop.permute.xlu0 %3948
    %3950 = vrot.lane.b32.xlu0 %v3943, 1
    %v3951 = vpop.permute.xlu0 %3950
    %3952 = vrot.lane.b32.xlu0 %v3944, 1
    %v3953 = vpop.permute.xlu0 %3952
    %v3957 = vsub.f32 %v3784, %v3949
    %v3958 = vsub.f32 %v3785, %v3951
    %v3959 = vsub.f32 %v3786, %v3953
    %3961 = vset.pattern.permute.xlu0 24
    %3962 = vperm.xlu0 %3961, %v3939
    %v3963 = vpop.permute.xlu0 %3962
    %3966 = vset.pattern.permute.xlu0 24
    %3967 = vperm.xlu0 %3966, %v3940
    %v3968 = vpop.permute.xlu0 %3967
    %3971 = vset.pattern.permute.xlu0 24
    %3972 = vperm.xlu0 %3971, %v3941
    %v3973 = vpop.permute.xlu0 %3972
    %v3975 = vmul.f32 %v3900, %v3963
    %v3976 = vmul.f32 %v3901, %v3968
    %v3977 = vmul.f32 %v3902, %v3973
    %3979 = vset.pattern.permute.xlu0 25
    %3980 = vperm.xlu0 %3979, %v3957
    %v3981 = vpop.permute.xlu0 %3980
    %3984 = vset.pattern.permute.xlu0 25
    %3985 = vperm.xlu0 %3984, %v3958
    %v3986 = vpop.permute.xlu0 %3985
    %3989 = vset.pattern.permute.xlu0 25
    %3990 = vperm.xlu0 %3989, %v3959
    %v3991 = vpop.permute.xlu0 %3990
    %v3993 = vadd.f32 %v3975, %v3981
    %v3994 = vadd.f32 %v3976, %v3986
    %v3995 = vadd.f32 %v3977, %v3991
    %3996 = vst.msk [vmem:[#allocation8] sm:$0xff] %vm520, %v3993
    %3997 = vst.msk [vmem:[#allocation8 + $0x8] sm:$0xff] %vm520, %v3994
    %3998 = vst.msk [vmem:[#allocation8 + $0x10] sm:$0xf] %vm29, %v3995
    %v3999 = vld [vmem:[#allocation8] sm:$0xff]
    %v4000 = vld [vmem:[#allocation8 + $0x8] sm:$0xff]
    %v4001 = vld [vmem:[#allocation8 + $0x10] sm:$0xf]
    %4005 = vrot.lane.b32.xlu0 %v3999, 1
    %v4006 = vpop.permute.xlu0 %4005
    %4007 = vrot.lane.b32.xlu0 %v4000, 1
    %v4008 = vpop.permute.xlu0 %4007
    %4009 = vrot.lane.b32.xlu0 %v4001, 1
    %v4010 = vpop.permute.xlu0 %4009
    %vm4014 = vcmask 64520
    %4015 = vst.msk [vmem:[#allocation6] sm:$0xff] %vm4014, %v4006
    %4016 = vst.msk [vmem:[#allocation6 + $0x8] sm:$0xff] %vm4014, %v4008
    %vm4017 = vcmask 60424
    %4018 = vst.msk [vmem:[#allocation6 + $0x10] sm:$0xf] %vm4017, %v4010
    %v4019 = vld [vmem:[#allocation8] sm:$0xff]
    %v4020 = vld [vmem:[#allocation8 + $0x8] sm:$0xff]
    %v4021 = vld [vmem:[#allocation8 + $0x10] sm:$0xf]
    %4025 = vrot.lane.b32.xlu0 %v4019, 1
    %v4026 = vpop.permute.xlu0 %4025
    %4027 = vrot.lane.b32.xlu0 %v4020, 1
    %v4028 = vpop.permute.xlu0 %4027
    %4029 = vrot.lane.b32.xlu0 %v4021, 1
    %v4030 = vpop.permute.xlu0 %4029
    %vm4034 = vcmask 130120
    %4035 = vst.msk [vmem:[#allocation6] sm:$0xff] %vm4034, %v4026
    %4036 = vst.msk [vmem:[#allocation6 + $0x8] sm:$0xff] %vm4034, %v4028
    %vm4037 = vcmask 126024
    %4038 = vst.msk [vmem:[#allocation6 + $0x10] sm:$0xf] %vm4037, %v4030
    %v4039 = vld [vmem:[#allocation8] sm:$0xff]
    %v4040 = vld [vmem:[#allocation8 + $0x8] sm:$0xff]
    %v4041 = vld [vmem:[#allocation8 + $0x10] sm:$0xf]
    %vm4042 = vcmask 64512
    %4043 = vst.msk [vmem:[#allocation6 + $0x14] sm:$0xff] %vm4042, %v4039
    %4044 = vst.msk [vmem:[#allocation6 + $0x1c] sm:$0xff] %vm4042, %v4040
    %vm4045 = vcmask 60416
    %4046 = vst.msk [vmem:[#allocation6 + $0x24] sm:$0xf] %vm4045, %v4041
    %v4047 = vld [vmem:[#allocation8] sm:$0xff]
    %v4048 = vld [vmem:[#allocation8 + $0x8] sm:$0xff]
    %v4049 = vld [vmem:[#allocation8 + $0x10] sm:$0xf]
    %vm4050 = vcmask 130112
    %4051 = vst.msk [vmem:[#allocation6 + $0x14] sm:$0xff] %vm4050, %v4047
    %4052 = vst.msk [vmem:[#allocation6 + $0x1c] sm:$0xff] %vm4050, %v4048
    %vm4053 = vcmask 126016
    %4054 = vst.msk [vmem:[#allocation6 + $0x24] sm:$0xf] %vm4053, %v4049
    %v4055 = vld [vmem:[#allocation8] sm:$0xff]
    %v4056 = vld [vmem:[#allocation8 + $0x8] sm:$0xff]
    %v4057 = vld [vmem:[#allocation8 + $0x10] sm:$0xf]
    %4061 = vrot.lane.b32.xlu0 %v4055, 127
    %v4062 = vpop.permute.xlu0 %4061
    %4063 = vrot.lane.b32.xlu0 %v4056, 127
    %v4064 = vpop.permute.xlu0 %4063
    %4065 = vrot.lane.b32.xlu0 %v4057, 127
    %v4066 = vpop.permute.xlu0 %4065
    %vm4070 = vcmask 56320
    %4071 = vst.msk [vmem:[#allocation6 + $0x28] sm:$0xff] %vm4070, %v4062
    %4072 = vst.msk [vmem:[#allocation6 + $0x30] sm:$0xff] %vm4070, %v4064
    %vm4073 = vcmask 52224
    %4074 = vst.msk [vmem:[#allocation6 + $0x38] sm:$0xf] %vm4073, %v4066
    %v4075 = vld [vmem:[#allocation8] sm:$0xff]
    %v4076 = vld [vmem:[#allocation8 + $0x8] sm:$0xff]
    %v4077 = vld [vmem:[#allocation8 + $0x10] sm:$0xf]
    %4081 = vrot.lane.b32.xlu0 %v4075, 127
    %v4082 = vpop.permute.xlu0 %4081
    %4083 = vrot.lane.b32.xlu0 %v4076, 127
    %v4084 = vpop.permute.xlu0 %4083
    %4085 = vrot.lane.b32.xlu0 %v4077, 127
    %v4086 = vpop.permute.xlu0 %4085
    %vm4090 = vcmask 121920
    %4091 = vst.msk [vmem:[#allocation6 + $0x28] sm:$0xff] %vm4090, %v4082
    %4092 = vst.msk [vmem:[#allocation6 + $0x30] sm:$0xff] %vm4090, %v4084
    %vm4093 = vcmask 117824
    %4094 = vst.msk [vmem:[#allocation6 + $0x38] sm:$0xf] %vm4093, %v4086
    %v4095 = vld [vmem:[#allocation10 + $0x180] sm:$0x3c]
    %v4096 = vld [vmem:[#allocation6] sm:$0xff]
    %v4097 = vld [vmem:[#allocation6 + $0x8] sm:$0xff]
    %v4098 = vld [vmem:[#allocation6 + $0x10] sm:$0xff]
    %v4099 = vld [vmem:[#allocation6 + $0x18] sm:$0xff]
    %v4100 = vld [vmem:[#allocation6 + $0x20] sm:$0xff]
    %v4101 = vld [vmem:[#allocation6 + $0x28] sm:$0xff]
    %v4102 = vld [vmem:[#allocation6 + $0x30] sm:$0xff]
    %v4103 = vld [vmem:[#allocation6 + $0x38] sm:$0xf]
    %v4104 = vld [vmem:[%s1] sm:$0xf]
    %4106 = vset.pattern.permute.xlu0 26
    %4107 = vperm.xlu0 %4106, %v4104
    %v4108 = vpop.permute.xlu0 %4107
    %v4111 = vrot.slane %v4095, 2
    %vm4112 = vcmask 490496
    %v4113 = vsel %vm4112, %v4111, 0
    %v4116 = vsel %vm145, %v4103, 0
    %4118 = vmatprep.subr.mxu0 0.0
    %4119 = vmatpush1.msra.mxu0 %v4096
    %4120 = vmatprep.subr.mxu0 0.0
    %4121 = vmatpush1.msra.mxu0 %v4097
    %4122 = vmatprep.subr.mxu0 0.0
    %4123 = vmatpush1.msra.mxu0 %v4098
    %4124 = vmatprep.subr.mxu0 0.0
    %4125 = vmatpush1.msra.mxu0 %v4099
    %4126 = vmatprep.subr.mxu0 0.0
    %4127 = vmatpush1.msra.mxu0 %v4100
    %4128 = vmatprep.subr.mxu0 0.0
    %4129 = vmatpush1.msra.mxu0 %v4101
    %4130 = vmatprep.subr.mxu0 0.0
    %4131 = vmatpush1.msra.mxu0 %v4102
    %4132 = vmatprep.subr.mxu0 0.0
    %4133 = vmatpush1.msra.mxu0 %v4116
    %4134 = vmatprep.subr.mxu0 0.0
    %4135 = vmatpush1.msra.mxu0 0.0
    %4136 = vmatprep.subr.mxu0 0.0
    %4137 = vmatpush1.msra.mxu0 0.0
    %4138 = vmatprep.subr.mxu0 0.0
    %4139 = vmatpush1.msra.mxu0 0.0
    %4140 = vmatprep.subr.mxu0 0.0
    %4141 = vmatpush1.msra.mxu0 0.0
    %4142 = vmatprep.subr.mxu0 0.0
    %4143 = vmatpush1.msra.mxu0 0.0
    %4144 = vmatprep.subr.mxu0 0.0
    %4145 = vmatpush1.msra.mxu0 0.0
    %4146 = vmatprep.subr.mxu0 0.0
    %4147 = vmatpush1.msra.mxu0 0.0
    %4148 = vmatprep.subr.mxu0 0.0
    %4149 = vmatpush1.msra.mxu0 0.0
    %4150 = vmatprep.subr.mxu0 0.0
    %4151 = vmatpush1.msra.mxu0 0.0
    %4152 = vmatprep.subr.mxu0 0.0
    %4153 = vmatpush1.msra.mxu0 0.0
    %4154 = vmatprep.subr.mxu0 0.0
    %4155 = vmatpush1.msra.mxu0 0.0
    %4156 = vmatprep.subr.mxu0 0.0
    %4157 = vmatpush1.msra.mxu0 0.0
    %4158 = vmatprep.subr.mxu0 0.0
    %4159 = vmatpush1.msra.mxu0 0.0
    %4160 = vmatprep.subr.mxu0 0.0
    %4161 = vmatpush1.msra.mxu0 0.0
    %4162 = vmatprep.subr.mxu0 0.0
    %4163 = vmatpush1.msra.mxu0 0.0
    %4164 = vmatprep.subr.mxu0 0.0
    %4165 = vmatpush1.msra.mxu0 0.0
    %4166 = vmatprep.subr.mxu0 0.0
    %4167 = vmatpush1.msra.mxu0 0.0
    %4168 = vmatprep.subr.mxu0 0.0
    %4169 = vmatpush1.msra.mxu0 0.0
    %4170 = vmatprep.subr.mxu0 0.0
    %4171 = vmatpush1.msra.mxu0 0.0
    %4172 = vmatprep.subr.mxu0 0.0
    %4173 = vmatpush1.msra.mxu0 0.0
    %4174 = vmatprep.subr.mxu0 0.0
    %4175 = vmatpush1.msra.mxu0 0.0
    %4176 = vmatprep.subr.mxu0 0.0
    %4177 = vmatpush1.msra.mxu0 0.0
    %4178 = vmatprep.subr.mxu0 0.0
    %4179 = vmatpush1.msra.mxu0 0.0
    %4180 = vmatprep.subr.mxu0 0.0
    %4181 = vmatpush1.msra.mxu0 0.0
    %4182 = vmatprep.mubr.f32.mxu0 0.0
    %4183 = vmatmul.mubr.f32.gmra.mrb[0].mxu0 %v4113
    %v4184 = vpop.f32.mrb[0].mxu0
    %v4185 = vadd.f32 %v4108, %v4184
    %v4186 = vpop.f32.mrb[0].mxu0
    %4187 = vdwg.mxu0
    %4188 = vst.msk [vmem:[#allocation3 + $0x30] sm:$0xf] %vm29, %v4185
    %v4189 = vld [vmem:[#allocation3] sm:$0xff]
    %v4190 = vld [vmem:[#allocation3 + $0x8] sm:$0xff]
    %v4191 = vld [vmem:[#allocation3 + $0x10] sm:$0xff]
    %v4192 = vld [vmem:[#allocation3 + $0x18] sm:$0xff]
    %v4193 = vld [vmem:[#allocation3 + $0x20] sm:$0xff]
    %v4194 = vld [vmem:[#allocation3 + $0x28] sm:$0xff]
    %v4195 = vld [vmem:[#allocation3 + $0x30] sm:$0xf]
    %v4196 = vmax.f32 %v4189, 0.0
    %v4197 = vmax.f32 %v4190, 0.0
    %v4198 = vmax.f32 %v4191, 0.0
    %v4199 = vmax.f32 %v4192, 0.0
    %v4200 = vmax.f32 %v4193, 0.0
    %v4201 = vmax.f32 %v4194, 0.0
    %v4202 = vmax.f32 %v4195, 0.0
    %v4203 = vsel %vm520, %v4196, 0.0
    %4204 = vadd.xlane.f32.xlu0 %v4203
    %v4205 = vpop.xlane.xlu0 %4204
    %v4206 = vsel %vm520, %v4197, 0.0
    %4207 = vadd.xlane.f32.xlu0 %v4206
    %v4208 = vpop.xlane.xlu0 %4207
    %v4209 = vsel %vm520, %v4198, 0.0
    %4210 = vadd.xlane.f32.xlu0 %v4209
    %v4211 = vpop.xlane.xlu0 %4210
    %v4212 = vsel %vm520, %v4199, 0.0
    %4213 = vadd.xlane.f32.xlu0 %v4212
    %v4214 = vpop.xlane.xlu0 %4213
    %v4215 = vsel %vm520, %v4200, 0.0
    %4216 = vadd.xlane.f32.xlu0 %v4215
    %v4217 = vpop.xlane.xlu0 %4216
    %v4218 = vsel %vm520, %v4201, 0.0
    %4219 = vadd.xlane.f32.xlu0 %v4218
    %v4220 = vpop.xlane.xlu0 %4219
    %v4221 = vsel %vm29, %v4202, 0.0
    %4222 = vadd.xlane.f32.xlu0 %v4221
    %v4223 = vpop.xlane.xlu0 %4222
    %v4224 = vmul.f32 %v4205, %v3605
    %v4225 = vmul.f32 %v4208, %v3605
    %v4226 = vmul.f32 %v4211, %v3605
    %v4227 = vmul.f32 %v4214, %v3605
    %v4228 = vmul.f32 %v4217, %v3605
    %v4229 = vmul.f32 %v4220, %v3605
    %v4230 = vmul.f32 %v4223, %v3605
    %v4231 = vsub.f32 %v4196, %v4224
    %v4232 = vsub.f32 %v4197, %v4225
    %v4233 = vsub.f32 %v4198, %v4226
    %v4234 = vsub.f32 %v4199, %v4227
    %v4235 = vsub.f32 %v4200, %v4228
    %v4236 = vsub.f32 %v4201, %v4229
    %v4237 = vsub.f32 %v4202, %v4230
    %v4238 = vmul.f32 %v4231, %v4231
    %v4239 = vmul.f32 %v4232, %v4232
    %v4240 = vmul.f32 %v4233, %v4233
    %v4241 = vmul.f32 %v4234, %v4234
    %v4242 = vmul.f32 %v4235, %v4235
    %v4243 = vmul.f32 %v4236, %v4236
    %v4244 = vmul.f32 %v4237, %v4237
    %v4245 = vsel %vm520, %v4238, 0.0
    %4246 = vadd.xlane.f32.xlu0 %v4245
    %v4247 = vpop.xlane.xlu0 %4246
    %v4248 = vsel %vm520, %v4239, 0.0
    %4249 = vadd.xlane.f32.xlu0 %v4248
    %v4250 = vpop.xlane.xlu0 %4249
    %v4251 = vsel %vm520, %v4240, 0.0
    %4252 = vadd.xlane.f32.xlu0 %v4251
    %v4253 = vpop.xlane.xlu0 %4252
    %v4254 = vsel %vm520, %v4241, 0.0
    %4255 = vadd.xlane.f32.xlu0 %v4254
    %v4256 = vpop.xlane.xlu0 %4255
    %v4257 = vsel %vm520, %v4242, 0.0
    %4258 = vadd.xlane.f32.xlu0 %v4257
    %v4259 = vpop.xlane.xlu0 %4258
    %v4260 = vsel %vm520, %v4243, 0.0
    %4261 = vadd.xlane.f32.xlu0 %v4260
    %v4262 = vpop.xlane.xlu0 %4261
    %v4263 = vsel %vm29, %v4244, 0.0
    %4264 = vadd.xlane.f32.xlu0 %v4263
    %v4265 = vpop.xlane.xlu0 %4264
    %v4266 = vmul.f32 %v4247, %v3605
    %v4267 = vmul.f32 %v4250, %v3605
    %v4268 = vmul.f32 %v4253, %v3605
    %v4269 = vmul.f32 %v4256, %v3605
    %v4270 = vmul.f32 %v4259, %v3605
    %v4271 = vmul.f32 %v4262, %v3605
    %v4272 = vmul.f32 %v4265, %v3605
    %v4273 = vld [vmem:[%s1] sm:$0xff]
    %v4274 = vld [vmem:[%s1 + $0x8] sm:$0xff]
    %v4275 = vld [vmem:[%s1 + $0x10] sm:$0xff]
    %v4276 = vld [vmem:[%s1 + $0x18] sm:$0xff]
    %v4277 = vld [vmem:[%s1 + $0x20] sm:$0xff]
    %v4278 = vld [vmem:[%s1 + $0x28] sm:$0xff]
    %v4279 = vld [vmem:[%s1 + $0x30] sm:$0xf]
    %v4280 = vadd.f32 %v4266, 1e-05
    %v4281 = vadd.f32 %v4267, 1e-05
    %v4282 = vadd.f32 %v4268, 1e-05
    %v4283 = vadd.f32 %v4269, 1e-05
    %v4284 = vadd.f32 %v4270, 1e-05
    %v4285 = vadd.f32 %v4271, 1e-05
    %v4286 = vadd.f32 %v4272, 1e-05
    %v4287 = vrsqrt.pop %v4280
    %v4288 = vrsqrt.pop %v4281
    %v4289 = vrsqrt.pop %v4282
    %v4290 = vrsqrt.pop %v4283
    %v4291 = vrsqrt.pop %v4284
    %v4292 = vrsqrt.pop %v4285
    %v4293 = vrsqrt.pop %v4286
    %v4294 = vmul.f32 %v4273, %v4287
    %v4295 = vmul.f32 %v4274, %v4288
    %v4296 = vmul.f32 %v4275, %v4289
    %v4297 = vmul.f32 %v4276, %v4290
    %v4298 = vmul.f32 %v4277, %v4291
    %v4299 = vmul.f32 %v4278, %v4292
    %v4300 = vmul.f32 %v4279, %v4293
    %v4301 = vmul.f32 %v4224, %v4294
    %v4302 = vmul.f32 %v4225, %v4295
    %v4303 = vmul.f32 %v4226, %v4296
    %v4304 = vmul.f32 %v4227, %v4297
    %v4305 = vmul.f32 %v4228, %v4298
    %v4306 = vmul.f32 %v4229, %v4299
    %v4307 = vmul.f32 %v4230, %v4300
    %4315 = vrot.lane.b32.xlu0 %v4301, 1
    %v4316 = vpop.permute.xlu0 %4315
    %4317 = vrot.lane.b32.xlu0 %v4302, 1
    %v4318 = vpop.permute.xlu0 %4317
    %4319 = vrot.lane.b32.xlu0 %v4303, 1
    %v4320 = vpop.permute.xlu0 %4319
    %4321 = vrot.lane.b32.xlu0 %v4304, 1
    %v4322 = vpop.permute.xlu0 %4321
    %4323 = vrot.lane.b32.xlu0 %v4305, 1
    %v4324 = vpop.permute.xlu0 %4323
    %4325 = vrot.lane.b32.xlu0 %v4306, 1
    %v4326 = vpop.permute.xlu0 %4325
    %4327 = vrot.lane.b32.xlu0 %v4307, 1
    %v4328 = vpop.permute.xlu0 %4327
    %v4336 = vsub.f32 %v4273, %v4316
    %v4337 = vsub.f32 %v4274, %v4318
    %v4338 = vsub.f32 %v4275, %v4320
    %v4339 = vsub.f32 %v4276, %v4322
    %v4340 = vsub.f32 %v4277, %v4324
    %v4341 = vsub.f32 %v4278, %v4326
    %v4342 = vsub.f32 %v4279, %v4328
    %v4343 = vld [vmem:[#allocation10 + $0x180] sm:$0xc0]
    %v4344 = vld [vmem:[#allocation10 + $0x190] sm:$0xff]
    %v4345 = vld [vmem:[#allocation10 + $0x1a0] sm:$0xff]
    %v4346 = vld [vmem:[#allocation10 + $0x1b0] sm:$0x3]
    %4348 = vset.pattern.permute.xlu0 27
    %4349 = vperm.xlu0 %4348, %v4294
    %v4350 = vpop.permute.xlu0 %4349
    %4353 = vset.pattern.permute.xlu0 27
    %4354 = vperm.xlu0 %4353, %v4295
    %v4355 = vpop.permute.xlu0 %4354
    %4358 = vset.pattern.permute.xlu0 27
    %4359 = vperm.xlu0 %4358, %v4296
    %v4360 = vpop.permute.xlu0 %4359
    %4363 = vset.pattern.permute.xlu0 27
    %4364 = vperm.xlu0 %4363, %v4297
    %v4365 = vpop.permute.xlu0 %4364
    %4368 = vset.pattern.permute.xlu0 27
    %4369 = vperm.xlu0 %4368, %v4298
    %v4370 = vpop.permute.xlu0 %4369
    %4373 = vset.pattern.permute.xlu0 27
    %4374 = vperm.xlu0 %4373, %v4299
    %v4375 = vpop.permute.xlu0 %4374
    %4378 = vset.pattern.permute.xlu0 27
    %4379 = vperm.xlu0 %4378, %v4300
    %v4380 = vpop.permute.xlu0 %4379
    %v4382 = vmul.f32 %v4196, %v4350
    %v4383 = vmul.f32 %v4197, %v4355
    %v4384 = vmul.f32 %v4198, %v4360
    %v4385 = vmul.f32 %v4199, %v4365
    %v4386 = vmul.f32 %v4200, %v4370
    %v4387 = vmul.f32 %v4201, %v4375
    %v4388 = vmul.f32 %v4202, %v4380
    %4390 = vset.pattern.permute.xlu0 28
    %4391 = vperm.xlu0 %4390, %v4336
    %v4392 = vpop.permute.xlu0 %4391
    %4395 = vset.pattern.permute.xlu0 28
    %4396 = vperm.xlu0 %4395, %v4337
    %v4397 = vpop.permute.xlu0 %4396
    %4400 = vset.pattern.permute.xlu0 28
    %4401 = vperm.xlu0 %4400, %v4338
    %v4402 = vpop.permute.xlu0 %4401
    %4405 = vset.pattern.permute.xlu0 28
    %4406 = vperm.xlu0 %4405, %v4339
    %v4407 = vpop.permute.xlu0 %4406
    %4410 = vset.pattern.permute.xlu0 28
    %4411 = vperm.xlu0 %4410, %v4340
    %v4412 = vpop.permute.xlu0 %4411
    %4415 = vset.pattern.permute.xlu0 28
    %4416 = vperm.xlu0 %4415, %v4341
    %v4417 = vpop.permute.xlu0 %4416
    %4420 = vset.pattern.permute.xlu0 28
    %4421 = vperm.xlu0 %4420, %v4342
    %v4422 = vpop.permute.xlu0 %4421
    %v4424 = vadd.f32 %v4382, %v4392
    %v4425 = vadd.f32 %v4383, %v4397
    %v4426 = vadd.f32 %v4384, %v4402
    %v4427 = vadd.f32 %v4385, %v4407
    %v4428 = vadd.f32 %v4386, %v4412
    %v4429 = vadd.f32 %v4387, %v4417
    %v4430 = vadd.f32 %v4388, %v4422
    %v4431 = vld [vmem:[%s1] sm:$0xff]
    %v4432 = vld [vmem:[%s1 + $0x8] sm:$0xff]
    %v4433 = vld [vmem:[%s1 + $0x10] sm:$0xf]
    %4435 = vset.pattern.permute.xlu0 29
    %4436 = vperm.xlu0 %4435, %v4431
    %v4437 = vpop.permute.xlu0 %4436
    %4440 = vset.pattern.permute.xlu0 29
    %4441 = vperm.xlu0 %4440, %v4432
    %v4442 = vpop.permute.xlu0 %4441
    %4445 = vset.pattern.permute.xlu0 29
    %4446 = vperm.xlu0 %4445, %v4433
    %v4447 = vpop.permute.xlu0 %4446
    %v4453 = vrot.slane %v4343, 6
    %v4454 = vrot.slane %v4344, 6
    %v4455 = vsel %vm3436, %v4453, %v4454
    %v4456 = vrot.slane %v4345, 6
    %v4457 = vsel %vm3436, %v4454, %v4456
    %v4458 = vrot.slane %v4346, 6
    %v4459 = vsel %vm3436, %v4456, %v4458
    %vm4460 = vcmask 424960
    %v4461 = vsel %vm4460, %v4455, 0
    %v4463 = vsel %vm4460, %v4457, 0
    %v4465 = vsel %vm4460, %v4459, 0
    %v4468 = vsel %vm145, %v4430, 0
    %4470 = vmatprep.subr.mxu0 0.0
    %4471 = vmatpush1.msra.mxu0 %v4424
    %4472 = vmatprep.subr.mxu0 0.0
    %4473 = vmatpush1.msra.mxu0 %v4425
    %4474 = vmatprep.subr.mxu0 0.0
    %4475 = vmatpush1.msra.mxu0 %v4426
    %4476 = vmatprep.subr.mxu0 0.0
    %4477 = vmatpush1.msra.mxu0 %v4427
    %4478 = vmatprep.subr.mxu0 0.0
    %4479 = vmatpush1.msra.mxu0 %v4428
    %4480 = vmatprep.subr.mxu0 0.0
    %4481 = vmatpush1.msra.mxu0 %v4429
    %4482 = vmatprep.subr.mxu0 0.0
    %4483 = vmatpush1.msra.mxu0 %v4468
    %4484 = vmatprep.subr.mxu0 0.0
    %4485 = vmatpush1.msra.mxu0 0.0
    %4486 = vmatprep.subr.mxu0 0.0
    %4487 = vmatpush1.msra.mxu0 0.0
    %4488 = vmatprep.subr.mxu0 0.0
    %4489 = vmatpush1.msra.mxu0 0.0
    %4490 = vmatprep.subr.mxu0 0.0
    %4491 = vmatpush1.msra.mxu0 0.0
    %4492 = vmatprep.subr.mxu0 0.0
    %4493 = vmatpush1.msra.mxu0 0.0
    %4494 = vmatprep.subr.mxu0 0.0
    %4495 = vmatpush1.msra.mxu0 0.0
    %4496 = vmatprep.subr.mxu0 0.0
    %4497 = vmatpush1.msra.mxu0 0.0
    %4498 = vmatprep.subr.mxu0 0.0
    %4499 = vmatpush1.msra.mxu0 0.0
    %4500 = vmatprep.subr.mxu0 0.0
    %4501 = vmatpush1.msra.mxu0 0.0
    %4502 = vmatprep.subr.mxu0 0.0
    %4503 = vmatpush1.msra.mxu0 0.0
    %4504 = vmatprep.subr.mxu0 0.0
    %4505 = vmatpush1.msra.mxu0 0.0
    %4506 = vmatprep.subr.mxu0 0.0
    %4507 = vmatpush1.msra.mxu0 0.0
    %4508 = vmatprep.subr.mxu0 0.0
    %4509 = vmatpush1.msra.mxu0 0.0
    %4510 = vmatprep.subr.mxu0 0.0
    %4511 = vmatpush1.msra.mxu0 0.0
    %4512 = vmatprep.subr.mxu0 0.0
    %4513 = vmatpush1.msra.mxu0 0.0
    %4514 = vmatprep.subr.mxu0 0.0
    %4515 = vmatpush1.msra.mxu0 0.0
    %4516 = vmatprep.subr.mxu0 0.0
    %4517 = vmatpush1.msra.mxu0 0.0
    %4518 = vmatprep.subr.mxu0 0.0
    %4519 = vmatpush1.msra.mxu0 0.0
    %4520 = vmatprep.subr.mxu0 0.0
    %4521 = vmatpush1.msra.mxu0 0.0
    %4522 = vmatprep.subr.mxu0 0.0
    %4523 = vmatpush1.msra.mxu0 0.0
    %4524 = vmatprep.subr.mxu0 0.0
    %4525 = vmatpush1.msra.mxu0 0.0
    %4526 = vmatprep.subr.mxu0 0.0
    %4527 = vmatpush1.msra.mxu0 0.0
    %4528 = vmatprep.subr.mxu0 0.0
    %4529 = vmatpush1.msra.mxu0 0.0
    %4530 = vmatprep.subr.mxu0 0.0
    %4531 = vmatpush1.msra.mxu0 0.0
    %4532 = vmatprep.subr.mxu0 0.0
    %4533 = vmatpush1.msra.mxu0 0.0
    %4534 = vmatprep.mubr.f32.mxu0 0.0
    %4535 = vmatmul.mubr.f32.gmra.mrb[0].mxu0 %v4461
    %v4536 = vpop.f32.mrb[0].mxu0
    %v4537 = vadd.f32 %v4437, %v4536
    %v4538 = vpop.f32.mrb[0].mxu0
    %4539 = vmatprep.mubr.f32.mxu0 0.0
    %4540 = vmatmul.mubr.f32.gmra.mrb[0].mxu0 %v4463
    %v4541 = vpop.f32.mrb[0].mxu0
    %v4542 = vadd.f32 %v4442, %v4541
    %v4543 = vpop.f32.mrb[0].mxu0
    %4544 = vmatprep.mubr.f32.mxu0 0.0
    %4545 = vmatmul.mubr.f32.gmra.mrb[0].mxu0 %v4465
    %v4546 = vpop.f32.mrb[0].mxu0
    %v4547 = vadd.f32 %v4447, %v4546
    %v4548 = vpop.f32.mrb[0].mxu0
    %4549 = vdwg.mxu0
    %v4550 = vmax.f32 %v4537, 0.0
    %v4551 = vmax.f32 %v4542, 0.0
    %v4552 = vmax.f32 %v4547, 0.0
    %v4553 = vsel %vm520, %v4550, 0.0
    %4554 = vadd.xlane.f32.xlu0 %v4553
    %v4555 = vpop.xlane.xlu0 %4554
    %v4556 = vsel %vm520, %v4551, 0.0
    %4557 = vadd.xlane.f32.xlu0 %v4556
    %v4558 = vpop.xlane.xlu0 %4557
    %v4559 = vsel %vm29, %v4552, 0.0
    %4560 = vadd.xlane.f32.xlu0 %v4559
    %v4561 = vpop.xlane.xlu0 %4560
    %v4562 = vmul.f32 %v4555, %v3605
    %v4563 = vmul.f32 %v4558, %v3605
    %v4564 = vmul.f32 %v4561, %v3605
    %v4565 = vsub.f32 %v4550, %v4562
    %v4566 = vsub.f32 %v4551, %v4563
    %v4567 = vsub.f32 %v4552, %v4564
    %v4568 = vmul.f32 %v4565, %v4565
    %v4569 = vmul.f32 %v4566, %v4566
    %v4570 = vmul.f32 %v4567, %v4567
    %v4571 = vsel %vm520, %v4568, 0.0
    %4572 = vadd.xlane.f32.xlu0 %v4571
    %v4573 = vpop.xlane.xlu0 %4572
    %v4574 = vsel %vm520, %v4569, 0.0
    %4575 = vadd.xlane.f32.xlu0 %v4574
    %v4576 = vpop.xlane.xlu0 %4575
    %v4577 = vsel %vm29, %v4570, 0.0
    %4578 = vadd.xlane.f32.xlu0 %v4577
    %v4579 = vpop.xlane.xlu0 %4578
    %v4580 = vmul.f32 %v4573, %v3605
    %v4581 = vmul.f32 %v4576, %v3605
    %v4582 = vmul.f32 %v4579, %v3605
    %v4583 = vadd.f32 %v4580, 1e-05
    %v4584 = vadd.f32 %v4581, 1e-05
    %v4585 = vadd.f32 %v4582, 1e-05
    %v4586 = vrsqrt.pop %v4583
    %v4587 = vrsqrt.pop %v4584
    %v4588 = vrsqrt.pop %v4585
    %v4589 = vmul.f32 %v4431, %v4586
    %v4590 = vmul.f32 %v4432, %v4587
    %v4591 = vmul.f32 %v4433, %v4588
    %v4592 = vmul.f32 %v4562, %v4589
    %v4593 = vmul.f32 %v4563, %v4590
    %v4594 = vmul.f32 %v4564, %v4591
    %4598 = vrot.lane.b32.xlu0 %v4592, 1
    %v4599 = vpop.permute.xlu0 %4598
    %4600 = vrot.lane.b32.xlu0 %v4593, 1
    %v4601 = vpop.permute.xlu0 %4600
    %4602 = vrot.lane.b32.xlu0 %v4594, 1
    %v4603 = vpop.permute.xlu0 %4602
    %v4607 = vsub.f32 %v4431, %v4599
    %v4608 = vsub.f32 %v4432, %v4601
    %v4609 = vsub.f32 %v4433, %v4603
    %4611 = vset.pattern.permute.xlu0 30
    %4612 = vperm.xlu0 %4611, %v4589
    %v4613 = vpop.permute.xlu0 %4612
    %4616 = vset.pattern.permute.xlu0 30
    %4617 = vperm.xlu0 %4616, %v4590
    %v4618 = vpop.permute.xlu0 %4617
    %4621 = vset.pattern.permute.xlu0 30
    %4622 = vperm.xlu0 %4621, %v4591
    %v4623 = vpop.permute.xlu0 %4622
    %v4625 = vmul.f32 %v4550, %v4613
    %v4626 = vmul.f32 %v4551, %v4618
    %v4627 = vmul.f32 %v4552, %v4623
    %4629 = vset.pattern.permute.xlu0 31
    %4630 = vperm.xlu0 %4629, %v4607
    %v4631 = vpop.permute.xlu0 %4630
    %4634 = vset.pattern.permute.xlu0 31
    %4635 = vperm.xlu0 %4634, %v4608
    %v4636 = vpop.permute.xlu0 %4635
    %4639 = vset.pattern.permute.xlu0 31
    %4640 = vperm.xlu0 %4639, %v4609
    %v4641 = vpop.permute.xlu0 %4640
    %v4643 = vadd.f32 %v4625, %v4631
    %v4644 = vadd.f32 %v4626, %v4636
    %v4645 = vadd.f32 %v4627, %v4641
    %4646 = vst.msk [vmem:[#allocation8] sm:$0xff] %vm520, %v4643
    %4647 = vst.msk [vmem:[#allocation8 + $0x8] sm:$0xff] %vm520, %v4644
    %4648 = vst.msk [vmem:[#allocation8 + $0x10] sm:$0xf] %vm29, %v4645
    %v4649 = vld [vmem:[#allocation8] sm:$0xff]
    %v4650 = vld [vmem:[#allocation8 + $0x8] sm:$0xff]
    %v4651 = vld [vmem:[#allocation8 + $0x10] sm:$0xf]
    %4655 = vrot.lane.b32.xlu0 %v4649, 1
    %v4656 = vpop.permute.xlu0 %4655
    %4657 = vrot.lane.b32.xlu0 %v4650, 1
    %v4658 = vpop.permute.xlu0 %4657
    %4659 = vrot.lane.b32.xlu0 %v4651, 1
    %v4660 = vpop.permute.xlu0 %4659
    %4664 = vst.msk [vmem:[#allocation6] sm:$0xff] %vm4014, %v4656
    %4665 = vst.msk [vmem:[#allocation6 + $0x8] sm:$0xff] %vm4014, %v4658
    %4666 = vst.msk [vmem:[#allocation6 + $0x10] sm:$0xf] %vm4017, %v4660
    %v4667 = vld [vmem:[#allocation8] sm:$0xff]
    %v4668 = vld [vmem:[#allocation8 + $0x8] sm:$0xff]
    %v4669 = vld [vmem:[#allocation8 + $0x10] sm:$0xf]
    %4673 = vrot.lane.b32.xlu0 %v4667, 1
    %v4674 = vpop.permute.xlu0 %4673
    %4675 = vrot.lane.b32.xlu0 %v4668, 1
    %v4676 = vpop.permute.xlu0 %4675
    %4677 = vrot.lane.b32.xlu0 %v4669, 1
    %v4678 = vpop.permute.xlu0 %4677
    %4682 = vst.msk [vmem:[#allocation6] sm:$0xff] %vm4034, %v4674
    %4683 = vst.msk [vmem:[#allocation6 + $0x8] sm:$0xff] %vm4034, %v4676
    %4684 = vst.msk [vmem:[#allocation6 + $0x10] sm:$0xf] %vm4037, %v4678
    %v4685 = vld [vmem:[#allocation8] sm:$0xff]
    %v4686 = vld [vmem:[#allocation8 + $0x8] sm:$0xff]
    %v4687 = vld [vmem:[#allocation8 + $0x10] sm:$0xf]
    %4688 = vst.msk [vmem:[#allocation6 + $0x14] sm:$0xff] %vm4042, %v4685
    %4689 = vst.msk [vmem:[#allocation6 + $0x1c] sm:$0xff] %vm4042, %v4686
    %4690 = vst.msk [vmem:[#allocation6 + $0x24] sm:$0xf] %vm4045, %v4687
    %v4691 = vld [vmem:[#allocation8] sm:$0xff]
    %v4692 = vld [vmem:[#allocation8 + $0x8] sm:$0xff]
    %v4693 = vld [vmem:[#allocation8 + $0x10] sm:$0xf]
    %4694 = vst.msk [vmem:[#allocation6 + $0x14] sm:$0xff] %vm4050, %v4691
    %4695 = vst.msk [vmem:[#allocation6 + $0x1c] sm:$0xff] %vm4050, %v4692
    %4696 = vst.msk [vmem:[#allocation6 + $0x24] sm:$0xf] %vm4053, %v4693
    %v4697 = vld [vmem:[#allocation8] sm:$0xff]
    %v4698 = vld [vmem:[#allocation8 + $0x8] sm:$0xff]
    %v4699 = vld [vmem:[#allocation8 + $0x10] sm:$0xf]
    %4703 = vrot.lane.b32.xlu0 %v4697, 127
    %v4704 = vpop.permute.xlu0 %4703
    %4705 = vrot.lane.b32.xlu0 %v4698, 127
    %v4706 = vpop.permute.xlu0 %4705
    %4707 = vrot.lane.b32.xlu0 %v4699, 127
    %v4708 = vpop.permute.xlu0 %4707
    %4712 = vst.msk [vmem:[#allocation6 + $0x28] sm:$0xff] %vm4070, %v4704
    %4713 = vst.msk [vmem:[#allocation6 + $0x30] sm:$0xff] %vm4070, %v4706
    %4714 = vst.msk [vmem:[#allocation6 + $0x38] sm:$0xf] %vm4073, %v4708
    %v4715 = vld [vmem:[#allocation8] sm:$0xff]
    %v4716 = vld [vmem:[#allocation8 + $0x8] sm:$0xff]
    %v4717 = vld [vmem:[#allocation8 + $0x10] sm:$0xf]
    %4721 = vrot.lane.b32.xlu0 %v4715, 127
    %v4722 = vpop.permute.xlu0 %4721
    %4723 = vrot.lane.b32.xlu0 %v4716, 127
    %v4724 = vpop.permute.xlu0 %4723
    %4725 = vrot.lane.b32.xlu0 %v4717, 127
    %v4726 = vpop.permute.xlu0 %4725
    %4730 = vst.msk [vmem:[#allocation6 + $0x28] sm:$0xff] %vm4090, %v4722
    %4731 = vst.msk [vmem:[#allocation6 + $0x30] sm:$0xff] %vm4090, %v4724
    %4732 = vst.msk [vmem:[#allocation6 + $0x38] sm:$0xf] %vm4093, %v4726
    %v4733 = vld [vmem:[#allocation10 + $0x1b0] sm:$0x3c]
    %v4734 = vld [vmem:[#allocation6] sm:$0xff]
    %v4735 = vld [vmem:[#allocation6 + $0x8] sm:$0xff]
    %v4736 = vld [vmem:[#allocation6 + $0x10] sm:$0xff]
    %v4737 = vld [vmem:[#allocation6 + $0x18] sm:$0xff]
    %v4738 = vld [vmem:[#allocation6 + $0x20] sm:$0xff]
    %v4739 = vld [vmem:[#allocation6 + $0x28] sm:$0xff]
    %v4740 = vld [vmem:[#allocation6 + $0x30] sm:$0xff]
    %v4741 = vld [vmem:[#allocation6 + $0x38] sm:$0xf]
    %v4742 = vld [vmem:[%s1] sm:$0xf]
    %4744 = vset.pattern.permute.xlu0 32
    %4745 = vperm.xlu0 %4744, %v4742
    %v4746 = vpop.permute.xlu0 %4745
    %v4749 = vrot.slane %v4733, 2
    %v4750 = vsel %vm4112, %v4749, 0
    %v4753 = vsel %vm145, %v4741, 0
    %4755 = vmatprep.subr.mxu0 0.0
    %4756 = vmatpush1.msra.mxu0 %v4734
    %4757 = vmatprep.subr.mxu0 0.0
    %4758 = vmatpush1.msra.mxu0 %v4735
    %4759 = vmatprep.subr.mxu0 0.0
    %4760 = vmatpush1.msra.mxu0 %v4736
    %4761 = vmatprep.subr.mxu0 0.0
    %4762 = vmatpush1.msra.mxu0 %v4737
    %4763 = vmatprep.subr.mxu0 0.0
    %4764 = vmatpush1.msra.mxu0 %v4738
    %4765 = vmatprep.subr.mxu0 0.0
    %4766 = vmatpush1.msra.mxu0 %v4739
    %4767 = vmatprep.subr.mxu0 0.0
    %4768 = vmatpush1.msra.mxu0 %v4740
    %4769 = vmatprep.subr.mxu0 0.0
    %4770 = vmatpush1.msra.mxu0 %v4753
    %4771 = vmatprep.subr.mxu0 0.0
    %4772 = vmatpush1.msra.mxu0 0.0
    %4773 = vmatprep.subr.mxu0 0.0
    %4774 = vmatpush1.msra.mxu0 0.0
    %4775 = vmatprep.subr.mxu0 0.0
    %4776 = vmatpush1.msra.mxu0 0.0
    %4777 = vmatprep.subr.mxu0 0.0
    %4778 = vmatpush1.msra.mxu0 0.0
    %4779 = vmatprep.subr.mxu0 0.0
    %4780 = vmatpush1.msra.mxu0 0.0
    %4781 = vmatprep.subr.mxu0 0.0
    %4782 = vmatpush1.msra.mxu0 0.0
    %4783 = vmatprep.subr.mxu0 0.0
    %4784 = vmatpush1.msra.mxu0 0.0
    %4785 = vmatprep.subr.mxu0 0.0
    %4786 = vmatpush1.msra.mxu0 0.0
    %4787 = vmatprep.subr.mxu0 0.0
    %4788 = vmatpush1.msra.mxu0 0.0
    %4789 = vmatprep.subr.mxu0 0.0
    %4790 = vmatpush1.msra.mxu0 0.0
    %4791 = vmatprep.subr.mxu0 0.0
    %4792 = vmatpush1.msra.mxu0 0.0
    %4793 = vmatprep.subr.mxu0 0.0
    %4794 = vmatpush1.msra.mxu0 0.0
    %4795 = vmatprep.subr.mxu0 0.0
    %4796 = vmatpush1.msra.mxu0 0.0
    %4797 = vmatprep.subr.mxu0 0.0
    %4798 = vmatpush1.msra.mxu0 0.0
    %4799 = vmatprep.subr.mxu0 0.0
    %4800 = vmatpush1.msra.mxu0 0.0
    %4801 = vmatprep.subr.mxu0 0.0
    %4802 = vmatpush1.msra.mxu0 0.0
    %4803 = vmatprep.subr.mxu0 0.0
    %4804 = vmatpush1.msra.mxu0 0.0
    %4805 = vmatprep.subr.mxu0 0.0
    %4806 = vmatpush1.msra.mxu0 0.0
    %4807 = vmatprep.subr.mxu0 0.0
    %4808 = vmatpush1.msra.mxu0 0.0
    %4809 = vmatprep.subr.mxu0 0.0
    %4810 = vmatpush1.msra.mxu0 0.0
    %4811 = vmatprep.subr.mxu0 0.0
    %4812 = vmatpush1.msra.mxu0 0.0
    %4813 = vmatprep.subr.mxu0 0.0
    %4814 = vmatpush1.msra.mxu0 0.0
    %4815 = vmatprep.subr.mxu0 0.0
    %4816 = vmatpush1.msra.mxu0 0.0
    %4817 = vmatprep.subr.mxu0 0.0
    %4818 = vmatpush1.msra.mxu0 0.0
    %4819 = vmatprep.mubr.f32.mxu0 0.0
    %4820 = vmatmul.mubr.f32.gmra.mrb[0].mxu0 %v4750
    %v4821 = vpop.f32.mrb[0].mxu0
    %v4822 = vadd.f32 %v4746, %v4821
    %v4823 = vpop.f32.mrb[0].mxu0
    %4824 = vdwg.mxu0
    %4825 = vst.msk [vmem:[#allocation3 + $0x34] sm:$0xf] %vm29, %v4822
    %v4826 = vld [vmem:[#allocation3] sm:$0xff]
    %v4827 = vld [vmem:[#allocation3 + $0x8] sm:$0xff]
    %v4828 = vld [vmem:[#allocation3 + $0x10] sm:$0xff]
    %v4829 = vld [vmem:[#allocation3 + $0x18] sm:$0xff]
    %v4830 = vld [vmem:[#allocation3 + $0x20] sm:$0xff]
    %v4831 = vld [vmem:[#allocation3 + $0x28] sm:$0xff]
    %v4832 = vld [vmem:[#allocation3 + $0x30] sm:$0xff]
    %v4833 = vsel %vm520, %v4826, 0.0
    %4834 = vadd.xlane.f32.xlu0 %v4833
    %v4835 = vpop.xlane.xlu0 %4834
    %v4836 = vsel %vm520, %v4827, 0.0
    %4837 = vadd.xlane.f32.xlu0 %v4836
    %v4838 = vpop.xlane.xlu0 %4837
    %v4839 = vsel %vm520, %v4828, 0.0
    %4840 = vadd.xlane.f32.xlu0 %v4839
    %v4841 = vpop.xlane.xlu0 %4840
    %v4842 = vsel %vm520, %v4829, 0.0
    %4843 = vadd.xlane.f32.xlu0 %v4842
    %v4844 = vpop.xlane.xlu0 %4843
    %v4845 = vsel %vm520, %v4830, 0.0
    %4846 = vadd.xlane.f32.xlu0 %v4845
    %v4847 = vpop.xlane.xlu0 %4846
    %v4848 = vsel %vm520, %v4831, 0.0
    %4849 = vadd.xlane.f32.xlu0 %v4848
    %v4850 = vpop.xlane.xlu0 %4849
    %v4851 = vsel %vm520, %v4832, 0.0
    %4852 = vadd.xlane.f32.xlu0 %v4851
    %v4853 = vpop.xlane.xlu0 %4852
    %v4854 = vmul.f32 %v4835, %v3605
    %v4855 = vmul.f32 %v4838, %v3605
    %v4856 = vmul.f32 %v4841, %v3605
    %v4857 = vmul.f32 %v4844, %v3605
    %v4858 = vmul.f32 %v4847, %v3605
    %v4859 = vmul.f32 %v4850, %v3605
    %v4860 = vmul.f32 %v4853, %v3605
    %v4861 = vsub.f32 %v4826, %v4854
    %v4862 = vsub.f32 %v4827, %v4855
    %v4863 = vsub.f32 %v4828, %v4856
    %v4864 = vsub.f32 %v4829, %v4857
    %v4865 = vsub.f32 %v4830, %v4858
    %v4866 = vsub.f32 %v4831, %v4859
    %v4867 = vsub.f32 %v4832, %v4860
    %v4868 = vmul.f32 %v4861, %v4861
    %v4869 = vmul.f32 %v4862, %v4862
    %v4870 = vmul.f32 %v4863, %v4863
    %v4871 = vmul.f32 %v4864, %v4864
    %v4872 = vmul.f32 %v4865, %v4865
    %v4873 = vmul.f32 %v4866, %v4866
    %v4874 = vmul.f32 %v4867, %v4867
    %v4875 = vsel %vm520, %v4868, 0.0
    %4876 = vadd.xlane.f32.xlu0 %v4875
    %v4877 = vpop.xlane.xlu0 %4876
    %v4878 = vsel %vm520, %v4869, 0.0
    %4879 = vadd.xlane.f32.xlu0 %v4878
    %v4880 = vpop.xlane.xlu0 %4879
    %v4881 = vsel %vm520, %v4870, 0.0
    %4882 = vadd.xlane.f32.xlu0 %v4881
    %v4883 = vpop.xlane.xlu0 %4882
    %v4884 = vsel %vm520, %v4871, 0.0
    %4885 = vadd.xlane.f32.xlu0 %v4884
    %v4886 = vpop.xlane.xlu0 %4885
    %v4887 = vsel %vm520, %v4872, 0.0
    %4888 = vadd.xlane.f32.xlu0 %v4887
    %v4889 = vpop.xlane.xlu0 %4888
    %v4890 = vsel %vm520, %v4873, 0.0
    %4891 = vadd.xlane.f32.xlu0 %v4890
    %v4892 = vpop.xlane.xlu0 %4891
    %v4893 = vsel %vm520, %v4874, 0.0
    %4894 = vadd.xlane.f32.xlu0 %v4893
    %v4895 = vpop.xlane.xlu0 %4894
    %v4896 = vmul.f32 %v4877, %v3605
    %v4897 = vmul.f32 %v4880, %v3605
    %v4898 = vmul.f32 %v4883, %v3605
    %v4899 = vmul.f32 %v4886, %v3605
    %v4900 = vmul.f32 %v4889, %v3605
    %v4901 = vmul.f32 %v4892, %v3605
    %v4902 = vmul.f32 %v4895, %v3605
    %v4903 = vld [vmem:[%s1] sm:$0xff]
    %v4904 = vld [vmem:[%s1 + $0x8] sm:$0xff]
    %v4905 = vld [vmem:[%s1 + $0x10] sm:$0xff]
    %v4906 = vld [vmem:[%s1 + $0x18] sm:$0xff]
    %v4907 = vld [vmem:[%s1 + $0x20] sm:$0xff]
    %v4908 = vld [vmem:[%s1 + $0x28] sm:$0xff]
    %v4909 = vld [vmem:[%s1 + $0x30] sm:$0xff]
    %v4910 = vadd.f32 %v4896, 1e-05
    %v4911 = vadd.f32 %v4897, 1e-05
    %v4912 = vadd.f32 %v4898, 1e-05
    %v4913 = vadd.f32 %v4899, 1e-05
    %v4914 = vadd.f32 %v4900, 1e-05
    %v4915 = vadd.f32 %v4901, 1e-05
    %v4916 = vadd.f32 %v4902, 1e-05
    %v4917 = vrsqrt.pop %v4910
    %v4918 = vrsqrt.pop %v4911
    %v4919 = vrsqrt.pop %v4912
    %v4920 = vrsqrt.pop %v4913
    %v4921 = vrsqrt.pop %v4914
    %v4922 = vrsqrt.pop %v4915
    %v4923 = vrsqrt.pop %v4916
    %v4924 = vmul.f32 %v4903, %v4917
    %v4925 = vmul.f32 %v4904, %v4918
    %v4926 = vmul.f32 %v4905, %v4919
    %v4927 = vmul.f32 %v4906, %v4920
    %v4928 = vmul.f32 %v4907, %v4921
    %v4929 = vmul.f32 %v4908, %v4922
    %v4930 = vmul.f32 %v4909, %v4923
    %v4931 = vmul.f32 %v4854, %v4924
    %v4932 = vmul.f32 %v4855, %v4925
    %v4933 = vmul.f32 %v4856, %v4926
    %v4934 = vmul.f32 %v4857, %v4927
    %v4935 = vmul.f32 %v4858, %v4928
    %v4936 = vmul.f32 %v4859, %v4929
    %v4937 = vmul.f32 %v4860, %v4930
    %4945 = vrot.lane.b32.xlu0 %v4931, 1
    %v4946 = vpop.permute.xlu0 %4945
    %4947 = vrot.lane.b32.xlu0 %v4932, 1
    %v4948 = vpop.permute.xlu0 %4947
    %4949 = vrot.lane.b32.xlu0 %v4933, 1
    %v4950 = vpop.permute.xlu0 %4949
    %4951 = vrot.lane.b32.xlu0 %v4934, 1
    %v4952 = vpop.permute.xlu0 %4951
    %4953 = vrot.lane.b32.xlu0 %v4935, 1
    %v4954 = vpop.permute.xlu0 %4953
    %4955 = vrot.lane.b32.xlu0 %v4936, 1
    %v4956 = vpop.permute.xlu0 %4955
    %4957 = vrot.lane.b32.xlu0 %v4937, 1
    %v4958 = vpop.permute.xlu0 %4957
    %v4966 = vsub.f32 %v4903, %v4946
    %v4967 = vsub.f32 %v4904, %v4948
    %v4968 = vsub.f32 %v4905, %v4950
    %v4969 = vsub.f32 %v4906, %v4952
    %v4970 = vsub.f32 %v4907, %v4954
    %v4971 = vsub.f32 %v4908, %v4956
    %v4972 = vsub.f32 %v4909, %v4958
    %v4973 = vsel %vm2512, %v4826, 0.0
    %4974 = vadd.xlane.f32.xlu0 %v4973
    %v4975 = vpop.xlane.xlu0 %4974
    %v4976 = vsel %vm2512, %v4827, 0.0
    %4977 = vadd.xlane.f32.xlu0 %v4976
    %v4978 = vpop.xlane.xlu0 %4977
    %v4979 = vsel %vm2512, %v4828, 0.0
    %4980 = vadd.xlane.f32.xlu0 %v4979
    %v4981 = vpop.xlane.xlu0 %4980
    %v4982 = vsel %vm2512, %v4829, 0.0
    %4983 = vadd.xlane.f32.xlu0 %v4982
    %v4984 = vpop.xlane.xlu0 %4983
    %v4985 = vsel %vm2512, %v4830, 0.0
    %4986 = vadd.xlane.f32.xlu0 %v4985
    %v4987 = vpop.xlane.xlu0 %4986
    %v4988 = vsel %vm2512, %v4831, 0.0
    %4989 = vadd.xlane.f32.xlu0 %v4988
    %v4990 = vpop.xlane.xlu0 %4989
    %v4991 = vsel %vm2512, %v4832, 0.0
    %4992 = vadd.xlane.f32.xlu0 %v4991
    %v4993 = vpop.xlane.xlu0 %4992
    %v4994 = vmul.f32 %v4975, 0.5
    %v4995 = vmul.f32 %v4978, 0.5
    %v4996 = vmul.f32 %v4981, 0.5
    %v4997 = vmul.f32 %v4984, 0.5
    %v4998 = vmul.f32 %v4987, 0.5
    %v4999 = vmul.f32 %v4990, 0.5
    %v5000 = vmul.f32 %v4993, 0.5
    %5001 = vst.msk [vmem:[#allocation9] sm:$0xff] %vm2534, %v4994
    %5002 = vst.msk [vmem:[#allocation9 + $0x8] sm:$0xff] %vm2534, %v4995
    %5003 = vst.msk [vmem:[#allocation9 + $0x10] sm:$0xff] %vm2534, %v4996
    %5004 = vst.msk [vmem:[#allocation9 + $0x18] sm:$0xff] %vm2534, %v4997
    %5005 = vst.msk [vmem:[#allocation9 + $0x20] sm:$0xff] %vm2534, %v4998
    %5006 = vst.msk [vmem:[#allocation9 + $0x28] sm:$0xff] %vm2534, %v4999
    %5007 = vst.msk [vmem:[#allocation9 + $0x30] sm:$0xff] %vm2534, %v5000
    %v5008 = vld [vmem:[#allocation3] sm:$0xff]
    %v5009 = vld [vmem:[#allocation3 + $0x8] sm:$0xff]
    %v5010 = vld [vmem:[#allocation3 + $0x10] sm:$0xff]
    %v5011 = vld [vmem:[#allocation3 + $0x18] sm:$0xff]
    %v5012 = vld [vmem:[#allocation3 + $0x20] sm:$0xff]
    %v5013 = vld [vmem:[#allocation3 + $0x28] sm:$0xff]
    %v5014 = vld [vmem:[#allocation3 + $0x30] sm:$0xff]
    %5022 = vrot.lane.b32.xlu0 %v5008, 126
    %v5023 = vpop.permute.xlu0 %5022
    %5024 = vrot.lane.b32.xlu0 %v5009, 126
    %v5025 = vpop.permute.xlu0 %5024
    %5026 = vrot.lane.b32.xlu0 %v5010, 126
    %v5027 = vpop.permute.xlu0 %5026
    %5028 = vrot.lane.b32.xlu0 %v5011, 126
    %v5029 = vpop.permute.xlu0 %5028
    %5030 = vrot.lane.b32.xlu0 %v5012, 126
    %v5031 = vpop.permute.xlu0 %5030
    %5032 = vrot.lane.b32.xlu0 %v5013, 126
    %v5033 = vpop.permute.xlu0 %5032
    %5034 = vrot.lane.b32.xlu0 %v5014, 126
    %v5035 = vpop.permute.xlu0 %5034
    %v5043 = vsel %vm2512, %v5023, 0.0
    %5044 = vadd.xlane.f32.xlu0 %v5043
    %v5045 = vpop.xlane.xlu0 %5044
    %v5046 = vsel %vm2512, %v5025, 0.0
    %5047 = vadd.xlane.f32.xlu0 %v5046
    %v5048 = vpop.xlane.xlu0 %5047
    %v5049 = vsel %vm2512, %v5027, 0.0
    %5050 = vadd.xlane.f32.xlu0 %v5049
    %v5051 = vpop.xlane.xlu0 %5050
    %v5052 = vsel %vm2512, %v5029, 0.0
    %5053 = vadd.xlane.f32.xlu0 %v5052
    %v5054 = vpop.xlane.xlu0 %5053
    %v5055 = vsel %vm2512, %v5031, 0.0
    %5056 = vadd.xlane.f32.xlu0 %v5055
    %v5057 = vpop.xlane.xlu0 %5056
    %v5058 = vsel %vm2512, %v5033, 0.0
    %5059 = vadd.xlane.f32.xlu0 %v5058
    %v5060 = vpop.xlane.xlu0 %5059
    %v5061 = vsel %vm2512, %v5035, 0.0
    %5062 = vadd.xlane.f32.xlu0 %v5061
    %v5063 = vpop.xlane.xlu0 %5062
    %v5064 = vmul.f32 %v5045, 0.5
    %v5065 = vmul.f32 %v5048, 0.5
    %v5066 = vmul.f32 %v5051, 0.5
    %v5067 = vmul.f32 %v5054, 0.5
    %v5068 = vmul.f32 %v5057, 0.5
    %v5069 = vmul.f32 %v5060, 0.5
    %v5070 = vmul.f32 %v5063, 0.5
    %5071 = vst.msk [vmem:[#allocation9] sm:$0xff] %vm2586, %v5064
    %5072 = vst.msk [vmem:[#allocation9 + $0x8] sm:$0xff] %vm2586, %v5065
    %5073 = vst.msk [vmem:[#allocation9 + $0x10] sm:$0xff] %vm2586, %v5066
    %5074 = vst.msk [vmem:[#allocation9 + $0x18] sm:$0xff] %vm2586, %v5067
    %5075 = vst.msk [vmem:[#allocation9 + $0x20] sm:$0xff] %vm2586, %v5068
    %5076 = vst.msk [vmem:[#allocation9 + $0x28] sm:$0xff] %vm2586, %v5069
    %5077 = vst.msk [vmem:[#allocation9 + $0x30] sm:$0xff] %vm2586, %v5070
    %v5078 = vld [vmem:[#allocation3] sm:$0xff]
    %v5079 = vld [vmem:[#allocation3 + $0x8] sm:$0xff]
    %v5080 = vld [vmem:[#allocation3 + $0x10] sm:$0xff]
    %v5081 = vld [vmem:[#allocation3 + $0x18] sm:$0xff]
    %v5082 = vld [vmem:[#allocation3 + $0x20] sm:$0xff]
    %v5083 = vld [vmem:[#allocation3 + $0x28] sm:$0xff]
    %v5084 = vld [vmem:[#allocation3 + $0x30] sm:$0xff]
    %5092 = vrot.lane.b32.xlu0 %v5078, 124
    %v5093 = vpop.permute.xlu0 %5092
    %5094 = vrot.lane.b32.xlu0 %v5079, 124
    %v5095 = vpop.permute.xlu0 %5094
    %5096 = vrot.lane.b32.xlu0 %v5080, 124
    %v5097 = vpop.permute.xlu0 %5096
    %5098 = vrot.lane.b32.xlu0 %v5081, 124
    %v5099 = vpop.permute.xlu0 %5098
    %5100 = vrot.lane.b32.xlu0 %v5082, 124
    %v5101 = vpop.permute.xlu0 %5100
    %5102 = vrot.lane.b32.xlu0 %v5083, 124
    %v5103 = vpop.permute.xlu0 %5102
    %5104 = vrot.lane.b32.xlu0 %v5084, 124
    %v5105 = vpop.permute.xlu0 %5104
    %v5113 = vsel %vm2512, %v5093, 0.0
    %5114 = vadd.xlane.f32.xlu0 %v5113
    %v5115 = vpop.xlane.xlu0 %5114
    %v5116 = vsel %vm2512, %v5095, 0.0
    %5117 = vadd.xlane.f32.xlu0 %v5116
    %v5118 = vpop.xlane.xlu0 %5117
    %v5119 = vsel %vm2512, %v5097, 0.0
    %5120 = vadd.xlane.f32.xlu0 %v5119
    %v5121 = vpop.xlane.xlu0 %5120
    %v5122 = vsel %vm2512, %v5099, 0.0
    %5123 = vadd.xlane.f32.xlu0 %v5122
    %v5124 = vpop.xlane.xlu0 %5123
    %v5125 = vsel %vm2512, %v5101, 0.0
    %5126 = vadd.xlane.f32.xlu0 %v5125
    %v5127 = vpop.xlane.xlu0 %5126
    %v5128 = vsel %vm2512, %v5103, 0.0
    %5129 = vadd.xlane.f32.xlu0 %v5128
    %v5130 = vpop.xlane.xlu0 %5129
    %v5131 = vsel %vm2512, %v5105, 0.0
    %5132 = vadd.xlane.f32.xlu0 %v5131
    %v5133 = vpop.xlane.xlu0 %5132
    %v5134 = vmul.f32 %v5115, 0.5
    %v5135 = vmul.f32 %v5118, 0.5
    %v5136 = vmul.f32 %v5121, 0.5
    %v5137 = vmul.f32 %v5124, 0.5
    %v5138 = vmul.f32 %v5127, 0.5
    %v5139 = vmul.f32 %v5130, 0.5
    %v5140 = vmul.f32 %v5133, 0.5
    %5141 = vst.msk [vmem:[#allocation9] sm:$0xff] %vm2638, %v5134
    %5142 = vst.msk [vmem:[#allocation9 + $0x8] sm:$0xff] %vm2638, %v5135
    %5143 = vst.msk [vmem:[#allocation9 + $0x10] sm:$0xff] %vm2638, %v5136
    %5144 = vst.msk [vmem:[#allocation9 + $0x18] sm:$0xff] %vm2638, %v5137
    %5145 = vst.msk [vmem:[#allocation9 + $0x20] sm:$0xff] %vm2638, %v5138
    %5146 = vst.msk [vmem:[#allocation9 + $0x28] sm:$0xff] %vm2638, %v5139
    %5147 = vst.msk [vmem:[#allocation9 + $0x30] sm:$0xff] %vm2638, %v5140
    %v5148 = vld [vmem:[#allocation3] sm:$0xff]
    %v5149 = vld [vmem:[#allocation3 + $0x8] sm:$0xff]
    %v5150 = vld [vmem:[#allocation3 + $0x10] sm:$0xff]
    %v5151 = vld [vmem:[#allocation3 + $0x18] sm:$0xff]
    %v5152 = vld [vmem:[#allocation3 + $0x20] sm:$0xff]
    %v5153 = vld [vmem:[#allocation3 + $0x28] sm:$0xff]
    %v5154 = vld [vmem:[#allocation3 + $0x30] sm:$0xff]
    %5162 = vrot.lane.b32.xlu0 %v5148, 122
    %v5163 = vpop.permute.xlu0 %5162
    %5164 = vrot.lane.b32.xlu0 %v5149, 122
    %v5165 = vpop.permute.xlu0 %5164
    %5166 = vrot.lane.b32.xlu0 %v5150, 122
    %v5167 = vpop.permute.xlu0 %5166
    %5168 = vrot.lane.b32.xlu0 %v5151, 122
    %v5169 = vpop.permute.xlu0 %5168
    %5170 = vrot.lane.b32.xlu0 %v5152, 122
    %v5171 = vpop.permute.xlu0 %5170
    %5172 = vrot.lane.b32.xlu0 %v5153, 122
    %v5173 = vpop.permute.xlu0 %5172
    %5174 = vrot.lane.b32.xlu0 %v5154, 122
    %v5175 = vpop.permute.xlu0 %5174
    %v5183 = vsel %vm2512, %v5163, 0.0
    %5184 = vadd.xlane.f32.xlu0 %v5183
    %v5185 = vpop.xlane.xlu0 %5184
    %v5186 = vsel %vm2512, %v5165, 0.0
    %5187 = vadd.xlane.f32.xlu0 %v5186
    %v5188 = vpop.xlane.xlu0 %5187
    %v5189 = vsel %vm2512, %v5167, 0.0
    %5190 = vadd.xlane.f32.xlu0 %v5189
    %v5191 = vpop.xlane.xlu0 %5190
    %v5192 = vsel %vm2512, %v5169, 0.0
    %5193 = vadd.xlane.f32.xlu0 %v5192
    %v5194 = vpop.xlane.xlu0 %5193
    %v5195 = vsel %vm2512, %v5171, 0.0
    %5196 = vadd.xlane.f32.xlu0 %v5195
    %v5197 = vpop.xlane.xlu0 %5196
    %v5198 = vsel %vm2512, %v5173, 0.0
    %5199 = vadd.xlane.f32.xlu0 %v5198
    %v5200 = vpop.xlane.xlu0 %5199
    %v5201 = vsel %vm2512, %v5175, 0.0
    %5202 = vadd.xlane.f32.xlu0 %v5201
    %v5203 = vpop.xlane.xlu0 %5202
    %v5204 = vmul.f32 %v5185, 0.5
    %v5205 = vmul.f32 %v5188, 0.5
    %v5206 = vmul.f32 %v5191, 0.5
    %v5207 = vmul.f32 %v5194, 0.5
    %v5208 = vmul.f32 %v5197, 0.5
    %v5209 = vmul.f32 %v5200, 0.5
    %v5210 = vmul.f32 %v5203, 0.5
    %5211 = vst.msk [vmem:[#allocation9] sm:$0xff] %vm2690, %v5204
    %5212 = vst.msk [vmem:[#allocation9 + $0x8] sm:$0xff] %vm2690, %v5205
    %5213 = vst.msk [vmem:[#allocation9 + $0x10] sm:$0xff] %vm2690, %v5206
    %5214 = vst.msk [vmem:[#allocation9 + $0x18] sm:$0xff] %vm2690, %v5207
    %5215 = vst.msk [vmem:[#allocation9 + $0x20] sm:$0xff] %vm2690, %v5208
    %5216 = vst.msk [vmem:[#allocation9 + $0x28] sm:$0xff] %vm2690, %v5209
    %5217 = vst.msk [vmem:[#allocation9 + $0x30] sm:$0xff] %vm2690, %v5210
    %v5218 = vld [vmem:[#allocation3] sm:$0xff]
    %v5219 = vld [vmem:[#allocation3 + $0x8] sm:$0xff]
    %v5220 = vld [vmem:[#allocation3 + $0x10] sm:$0xff]
    %v5221 = vld [vmem:[#allocation3 + $0x18] sm:$0xff]
    %v5222 = vld [vmem:[#allocation3 + $0x20] sm:$0xff]
    %v5223 = vld [vmem:[#allocation3 + $0x28] sm:$0xff]
    %v5224 = vld [vmem:[#allocation3 + $0x30] sm:$0xff]
    %5232 = vrot.lane.b32.xlu0 %v5218, 120
    %v5233 = vpop.permute.xlu0 %5232
    %5234 = vrot.lane.b32.xlu0 %v5219, 120
    %v5235 = vpop.permute.xlu0 %5234
    %5236 = vrot.lane.b32.xlu0 %v5220, 120
    %v5237 = vpop.permute.xlu0 %5236
    %5238 = vrot.lane.b32.xlu0 %v5221, 120
    %v5239 = vpop.permute.xlu0 %5238
    %5240 = vrot.lane.b32.xlu0 %v5222, 120
    %v5241 = vpop.permute.xlu0 %5240
    %5242 = vrot.lane.b32.xlu0 %v5223, 120
    %v5243 = vpop.permute.xlu0 %5242
    %5244 = vrot.lane.b32.xlu0 %v5224, 120
    %v5245 = vpop.permute.xlu0 %5244
    %v5253 = vsel %vm2512, %v5233, 0.0
    %5254 = vadd.xlane.f32.xlu0 %v5253
    %v5255 = vpop.xlane.xlu0 %5254
    %v5256 = vsel %vm2512, %v5235, 0.0
    %5257 = vadd.xlane.f32.xlu0 %v5256
    %v5258 = vpop.xlane.xlu0 %5257
    %v5259 = vsel %vm2512, %v5237, 0.0
    %5260 = vadd.xlane.f32.xlu0 %v5259
    %v5261 = vpop.xlane.xlu0 %5260
    %v5262 = vsel %vm2512, %v5239, 0.0
    %5263 = vadd.xlane.f32.xlu0 %v5262
    %v5264 = vpop.xlane.xlu0 %5263
    %v5265 = vsel %vm2512, %v5241, 0.0
    %5266 = vadd.xlane.f32.xlu0 %v5265
    %v5267 = vpop.xlane.xlu0 %5266
    %v5268 = vsel %vm2512, %v5243, 0.0
    %5269 = vadd.xlane.f32.xlu0 %v5268
    %v5270 = vpop.xlane.xlu0 %5269
    %v5271 = vsel %vm2512, %v5245, 0.0
    %5272 = vadd.xlane.f32.xlu0 %v5271
    %v5273 = vpop.xlane.xlu0 %5272
    %v5274 = vmul.f32 %v5255, 0.5
    %v5275 = vmul.f32 %v5258, 0.5
    %v5276 = vmul.f32 %v5261, 0.5
    %v5277 = vmul.f32 %v5264, 0.5
    %v5278 = vmul.f32 %v5267, 0.5
    %v5279 = vmul.f32 %v5270, 0.5
    %v5280 = vmul.f32 %v5273, 0.5
    %5281 = vst.msk [vmem:[#allocation9] sm:$0xff] %vm2742, %v5274
    %5282 = vst.msk [vmem:[#allocation9 + $0x8] sm:$0xff] %vm2742, %v5275
    %5283 = vst.msk [vmem:[#allocation9 + $0x10] sm:$0xff] %vm2742, %v5276
    %5284 = vst.msk [vmem:[#allocation9 + $0x18] sm:$0xff] %vm2742, %v5277
    %5285 = vst.msk [vmem:[#allocation9 + $0x20] sm:$0xff] %vm2742, %v5278
    %5286 = vst.msk [vmem:[#allocation9 + $0x28] sm:$0xff] %vm2742, %v5279
    %5287 = vst.msk [vmem:[#allocation9 + $0x30] sm:$0xff] %vm2742, %v5280
    %v5288 = vld [vmem:[#allocation3] sm:$0xff]
    %v5289 = vld [vmem:[#allocation3 + $0x8] sm:$0xff]
    %v5290 = vld [vmem:[#allocation3 + $0x10] sm:$0xff]
    %v5291 = vld [vmem:[#allocation3 + $0x18] sm:$0xff]
    %v5292 = vld [vmem:[#allocation3 + $0x20] sm:$0xff]
    %v5293 = vld [vmem:[#allocation3 + $0x28] sm:$0xff]
    %v5294 = vld [vmem:[#allocation3 + $0x30] sm:$0xff]
    %5302 = vrot.lane.b32.xlu0 %v5288, 118
    %v5303 = vpop.permute.xlu0 %5302
    %5304 = vrot.lane.b32.xlu0 %v5289, 118
    %v5305 = vpop.permute.xlu0 %5304
    %5306 = vrot.lane.b32.xlu0 %v5290, 118
    %v5307 = vpop.permute.xlu0 %5306
    %5308 = vrot.lane.b32.xlu0 %v5291, 118
    %v5309 = vpop.permute.xlu0 %5308
    %5310 = vrot.lane.b32.xlu0 %v5292, 118
    %v5311 = vpop.permute.xlu0 %5310
    %5312 = vrot.lane.b32.xlu0 %v5293, 118
    %v5313 = vpop.permute.xlu0 %5312
    %5314 = vrot.lane.b32.xlu0 %v5294, 118
    %v5315 = vpop.permute.xlu0 %5314
    %v5323 = vsel %vm2512, %v5303, 0.0
    %5324 = vadd.xlane.f32.xlu0 %v5323
    %v5325 = vpop.xlane.xlu0 %5324
    %v5326 = vsel %vm2512, %v5305, 0.0
    %5327 = vadd.xlane.f32.xlu0 %v5326
    %v5328 = vpop.xlane.xlu0 %5327
    %v5329 = vsel %vm2512, %v5307, 0.0
    %5330 = vadd.xlane.f32.xlu0 %v5329
    %v5331 = vpop.xlane.xlu0 %5330
    %v5332 = vsel %vm2512, %v5309, 0.0
    %5333 = vadd.xlane.f32.xlu0 %v5332
    %v5334 = vpop.xlane.xlu0 %5333
    %v5335 = vsel %vm2512, %v5311, 0.0
    %5336 = vadd.xlane.f32.xlu0 %v5335
    %v5337 = vpop.xlane.xlu0 %5336
    %v5338 = vsel %vm2512, %v5313, 0.0
    %5339 = vadd.xlane.f32.xlu0 %v5338
    %v5340 = vpop.xlane.xlu0 %5339
    %v5341 = vsel %vm2512, %v5315, 0.0
    %5342 = vadd.xlane.f32.xlu0 %v5341
    %v5343 = vpop.xlane.xlu0 %5342
    %v5344 = vmul.f32 %v5325, 0.5
    %v5345 = vmul.f32 %v5328, 0.5
    %v5346 = vmul.f32 %v5331, 0.5
    %v5347 = vmul.f32 %v5334, 0.5
    %v5348 = vmul.f32 %v5337, 0.5
    %v5349 = vmul.f32 %v5340, 0.5
    %v5350 = vmul.f32 %v5343, 0.5
    %5351 = vst.msk [vmem:[#allocation9] sm:$0xff] %vm2794, %v5344
    %5352 = vst.msk [vmem:[#allocation9 + $0x8] sm:$0xff] %vm2794, %v5345
    %5353 = vst.msk [vmem:[#allocation9 + $0x10] sm:$0xff] %vm2794, %v5346
    %5354 = vst.msk [vmem:[#allocation9 + $0x18] sm:$0xff] %vm2794, %v5347
    %5355 = vst.msk [vmem:[#allocation9 + $0x20] sm:$0xff] %vm2794, %v5348
    %5356 = vst.msk [vmem:[#allocation9 + $0x28] sm:$0xff] %vm2794, %v5349
    %5357 = vst.msk [vmem:[#allocation9 + $0x30] sm:$0xff] %vm2794, %v5350
    %v5358 = vld [vmem:[#allocation3] sm:$0xff]
    %v5359 = vld [vmem:[#allocation3 + $0x8] sm:$0xff]
    %v5360 = vld [vmem:[#allocation3 + $0x10] sm:$0xff]
    %v5361 = vld [vmem:[#allocation3 + $0x18] sm:$0xff]
    %v5362 = vld [vmem:[#allocation3 + $0x20] sm:$0xff]
    %v5363 = vld [vmem:[#allocation3 + $0x28] sm:$0xff]
    %v5364 = vld [vmem:[#allocation3 + $0x30] sm:$0xff]
    %5372 = vrot.lane.b32.xlu0 %v5358, 116
    %v5373 = vpop.permute.xlu0 %5372
    %5374 = vrot.lane.b32.xlu0 %v5359, 116
    %v5375 = vpop.permute.xlu0 %5374
    %5376 = vrot.lane.b32.xlu0 %v5360, 116
    %v5377 = vpop.permute.xlu0 %5376
    %5378 = vrot.lane.b32.xlu0 %v5361, 116
    %v5379 = vpop.permute.xlu0 %5378
    %5380 = vrot.lane.b32.xlu0 %v5362, 116
    %v5381 = vpop.permute.xlu0 %5380
    %5382 = vrot.lane.b32.xlu0 %v5363, 116
    %v5383 = vpop.permute.xlu0 %5382
    %5384 = vrot.lane.b32.xlu0 %v5364, 116
    %v5385 = vpop.permute.xlu0 %5384
    %v5393 = vsel %vm2512, %v5373, 0.0
    %5394 = vadd.xlane.f32.xlu0 %v5393
    %v5395 = vpop.xlane.xlu0 %5394
    %v5396 = vsel %vm2512, %v5375, 0.0
    %5397 = vadd.xlane.f32.xlu0 %v5396
    %v5398 = vpop.xlane.xlu0 %5397
    %v5399 = vsel %vm2512, %v5377, 0.0
    %5400 = vadd.xlane.f32.xlu0 %v5399
    %v5401 = vpop.xlane.xlu0 %5400
    %v5402 = vsel %vm2512, %v5379, 0.0
    %5403 = vadd.xlane.f32.xlu0 %v5402
    %v5404 = vpop.xlane.xlu0 %5403
    %v5405 = vsel %vm2512, %v5381, 0.0
    %5406 = vadd.xlane.f32.xlu0 %v5405
    %v5407 = vpop.xlane.xlu0 %5406
    %v5408 = vsel %vm2512, %v5383, 0.0
    %5409 = vadd.xlane.f32.xlu0 %v5408
    %v5410 = vpop.xlane.xlu0 %5409
    %v5411 = vsel %vm2512, %v5385, 0.0
    %5412 = vadd.xlane.f32.xlu0 %v5411
    %v5413 = vpop.xlane.xlu0 %5412
    %v5414 = vmul.f32 %v5395, 0.5
    %v5415 = vmul.f32 %v5398, 0.5
    %v5416 = vmul.f32 %v5401, 0.5
    %v5417 = vmul.f32 %v5404, 0.5
    %v5418 = vmul.f32 %v5407, 0.5
    %v5419 = vmul.f32 %v5410, 0.5
    %v5420 = vmul.f32 %v5413, 0.5
    %5421 = vst.msk [vmem:[#allocation9] sm:$0xff] %vm2846, %v5414
    %5422 = vst.msk [vmem:[#allocation9 + $0x8] sm:$0xff] %vm2846, %v5415
    %5423 = vst.msk [vmem:[#allocation9 + $0x10] sm:$0xff] %vm2846, %v5416
    %5424 = vst.msk [vmem:[#allocation9 + $0x18] sm:$0xff] %vm2846, %v5417
    %5425 = vst.msk [vmem:[#allocation9 + $0x20] sm:$0xff] %vm2846, %v5418
    %5426 = vst.msk [vmem:[#allocation9 + $0x28] sm:$0xff] %vm2846, %v5419
    %5427 = vst.msk [vmem:[#allocation9 + $0x30] sm:$0xff] %vm2846, %v5420
    %v5428 = vld [vmem:[#allocation3] sm:$0xff]
    %v5429 = vld [vmem:[#allocation3 + $0x8] sm:$0xff]
    %v5430 = vld [vmem:[#allocation3 + $0x10] sm:$0xff]
    %v5431 = vld [vmem:[#allocation3 + $0x18] sm:$0xff]
    %v5432 = vld [vmem:[#allocation3 + $0x20] sm:$0xff]
    %v5433 = vld [vmem:[#allocation3 + $0x28] sm:$0xff]
    %v5434 = vld [vmem:[#allocation3 + $0x30] sm:$0xff]
    %5442 = vrot.lane.b32.xlu0 %v5428, 114
    %v5443 = vpop.permute.xlu0 %5442
    %5444 = vrot.lane.b32.xlu0 %v5429, 114
    %v5445 = vpop.permute.xlu0 %5444
    %5446 = vrot.lane.b32.xlu0 %v5430, 114
    %v5447 = vpop.permute.xlu0 %5446
    %5448 = vrot.lane.b32.xlu0 %v5431, 114
    %v5449 = vpop.permute.xlu0 %5448
    %5450 = vrot.lane.b32.xlu0 %v5432, 114
    %v5451 = vpop.permute.xlu0 %5450
    %5452 = vrot.lane.b32.xlu0 %v5433, 114
    %v5453 = vpop.permute.xlu0 %5452
    %5454 = vrot.lane.b32.xlu0 %v5434, 114
    %v5455 = vpop.permute.xlu0 %5454
    %v5463 = vsel %vm2512, %v5443, 0.0
    %5464 = vadd.xlane.f32.xlu0 %v5463
    %v5465 = vpop.xlane.xlu0 %5464
    %v5466 = vsel %vm2512, %v5445, 0.0
    %5467 = vadd.xlane.f32.xlu0 %v5466
    %v5468 = vpop.xlane.xlu0 %5467
    %v5469 = vsel %vm2512, %v5447, 0.0
    %5470 = vadd.xlane.f32.xlu0 %v5469
    %v5471 = vpop.xlane.xlu0 %5470
    %v5472 = vsel %vm2512, %v5449, 0.0
    %5473 = vadd.xlane.f32.xlu0 %v5472
    %v5474 = vpop.xlane.xlu0 %5473
    %v5475 = vsel %vm2512, %v5451, 0.0
    %5476 = vadd.xlane.f32.xlu0 %v5475
    %v5477 = vpop.xlane.xlu0 %5476
    %v5478 = vsel %vm2512, %v5453, 0.0
    %5479 = vadd.xlane.f32.xlu0 %v5478
    %v5480 = vpop.xlane.xlu0 %5479
    %v5481 = vsel %vm2512, %v5455, 0.0
    %5482 = vadd.xlane.f32.xlu0 %v5481
    %v5483 = vpop.xlane.xlu0 %5482
    %v5484 = vmul.f32 %v5465, 0.5
    %v5485 = vmul.f32 %v5468, 0.5
    %v5486 = vmul.f32 %v5471, 0.5
    %v5487 = vmul.f32 %v5474, 0.5
    %v5488 = vmul.f32 %v5477, 0.5
    %v5489 = vmul.f32 %v5480, 0.5
    %v5490 = vmul.f32 %v5483, 0.5
    %5491 = vst.msk [vmem:[#allocation9] sm:$0xff] %vm2898, %v5484
    %5492 = vst.msk [vmem:[#allocation9 + $0x8] sm:$0xff] %vm2898, %v5485
    %5493 = vst.msk [vmem:[#allocation9 + $0x10] sm:$0xff] %vm2898, %v5486
    %5494 = vst.msk [vmem:[#allocation9 + $0x18] sm:$0xff] %vm2898, %v5487
    %5495 = vst.msk [vmem:[#allocation9 + $0x20] sm:$0xff] %vm2898, %v5488
    %5496 = vst.msk [vmem:[#allocation9 + $0x28] sm:$0xff] %vm2898, %v5489
    %5497 = vst.msk [vmem:[#allocation9 + $0x30] sm:$0xff] %vm2898, %v5490
    %v5498 = vld [vmem:[#allocation9] sm:$0xff]
    %v5499 = vld [vmem:[#allocation9 + $0x8] sm:$0xff]
    %v5500 = vld [vmem:[#allocation9 + $0x10] sm:$0xff]
    %v5501 = vld [vmem:[#allocation9 + $0x18] sm:$0xff]
    %v5502 = vld [vmem:[#allocation9 + $0x20] sm:$0xff]
    %v5503 = vld [vmem:[#allocation9 + $0x28] sm:$0xff]
    %v5504 = vld [vmem:[#allocation9 + $0x30] sm:$0xff]
    %v5505 = vld [vmem:[#allocation10 + $0x1b0] sm:$0xc0]
    %v5506 = vld [vmem:[#allocation10 + $0x1c0] sm:$0xff]
    %v5507 = vld [vmem:[#allocation10 + $0x1d0] sm:$0xff]
    %v5508 = vld [vmem:[#allocation10 + $0x1e0] sm:$0xff]
    %v5509 = vld [vmem:[#allocation10 + $0x1f0] sm:$0xff]
    %v5510 = vld [vmem:[#allocation10 + $0x200] sm:$0xff]
    %v5511 = vld [vmem:[#allocation10 + $0x210] sm:$0x3f]
    %5513 = vset.pattern.permute.xlu0 33
    %5514 = vperm.xlu0 %5513, %v4924
    %v5515 = vpop.permute.xlu0 %5514
    %5518 = vset.pattern.permute.xlu0 33
    %5519 = vperm.xlu0 %5518, %v4925
    %v5520 = vpop.permute.xlu0 %5519
    %5523 = vset.pattern.permute.xlu0 33
    %5524 = vperm.xlu0 %5523, %v4926
    %v5525 = vpop.permute.xlu0 %5524
    %5528 = vset.pattern.permute.xlu0 33
    %5529 = vperm.xlu0 %5528, %v4927
    %v5530 = vpop.permute.xlu0 %5529
    %5533 = vset.pattern.permute.xlu0 33
    %5534 = vperm.xlu0 %5533, %v4928
    %v5535 = vpop.permute.xlu0 %5534
    %5538 = vset.pattern.permute.xlu0 33
    %5539 = vperm.xlu0 %5538, %v4929
    %v5540 = vpop.permute.xlu0 %5539
    %5543 = vset.pattern.permute.xlu0 33
    %5544 = vperm.xlu0 %5543, %v4930
    %v5545 = vpop.permute.xlu0 %5544
    %v5547 = vmul.f32 %v5498, %v5515
    %v5548 = vmul.f32 %v5499, %v5520
    %v5549 = vmul.f32 %v5500, %v5525
    %v5550 = vmul.f32 %v5501, %v5530
    %v5551 = vmul.f32 %v5502, %v5535
    %v5552 = vmul.f32 %v5503, %v5540
    %v5553 = vmul.f32 %v5504, %v5545
    %5555 = vset.pattern.permute.xlu0 34
    %5556 = vperm.xlu0 %5555, %v4966
    %v5557 = vpop.permute.xlu0 %5556
    %5560 = vset.pattern.permute.xlu0 34
    %5561 = vperm.xlu0 %5560, %v4967
    %v5562 = vpop.permute.xlu0 %5561
    %5565 = vset.pattern.permute.xlu0 34
    %5566 = vperm.xlu0 %5565, %v4968
    %v5567 = vpop.permute.xlu0 %5566
    %5570 = vset.pattern.permute.xlu0 34
    %5571 = vperm.xlu0 %5570, %v4969
    %v5572 = vpop.permute.xlu0 %5571
    %5575 = vset.pattern.permute.xlu0 34
    %5576 = vperm.xlu0 %5575, %v4970
    %v5577 = vpop.permute.xlu0 %5576
    %5580 = vset.pattern.permute.xlu0 34
    %5581 = vperm.xlu0 %5580, %v4971
    %v5582 = vpop.permute.xlu0 %5581
    %5585 = vset.pattern.permute.xlu0 34
    %5586 = vperm.xlu0 %5585, %v4972
    %v5587 = vpop.permute.xlu0 %5586
    %v5589 = vadd.f32 %v5547, %v5557
    %v5590 = vadd.f32 %v5548, %v5562
    %v5591 = vadd.f32 %v5549, %v5567
    %v5592 = vadd.f32 %v5550, %v5572
    %v5593 = vadd.f32 %v5551, %v5577
    %v5594 = vadd.f32 %v5552, %v5582
    %v5595 = vadd.f32 %v5553, %v5587
    %v5596 = vld [vmem:[%s1] sm:$0xff]
    %v5597 = vld [vmem:[%s1 + $0x8] sm:$0xff]
    %v5598 = vld [vmem:[%s1 + $0x10] sm:$0xff]
    %v5599 = vld [vmem:[%s1 + $0x18] sm:$0xff]
    %v5600 = vld [vmem:[%s1 + $0x20] sm:$0xff]
    %v5601 = vld [vmem:[%s1 + $0x28] sm:$0xff]
    %5603 = vset.pattern.permute.xlu0 35
    %5604 = vperm.xlu0 %5603, %v5596
    %v5605 = vpop.permute.xlu0 %5604
    %5608 = vset.pattern.permute.xlu0 35
    %5609 = vperm.xlu0 %5608, %v5597
    %v5610 = vpop.permute.xlu0 %5609
    %5613 = vset.pattern.permute.xlu0 35
    %5614 = vperm.xlu0 %5613, %v5598
    %v5615 = vpop.permute.xlu0 %5614
    %5618 = vset.pattern.permute.xlu0 35
    %5619 = vperm.xlu0 %5618, %v5599
    %v5620 = vpop.permute.xlu0 %5619
    %5623 = vset.pattern.permute.xlu0 35
    %5624 = vperm.xlu0 %5623, %v5600
    %v5625 = vpop.permute.xlu0 %5624
    %5628 = vset.pattern.permute.xlu0 35
    %5629 = vperm.xlu0 %5628, %v5601
    %v5630 = vpop.permute.xlu0 %5629
    %v5639 = vrot.slane %v5505, 6
    %v5640 = vrot.slane %v5506, 6
    %v5641 = vsel %vm3436, %v5639, %v5640
    %v5642 = vrot.slane %v5507, 6
    %v5643 = vsel %vm3436, %v5640, %v5642
    %v5644 = vrot.slane %v5508, 6
    %v5645 = vsel %vm3436, %v5642, %v5644
    %v5646 = vrot.slane %v5509, 6
    %v5647 = vsel %vm3436, %v5644, %v5646
    %v5648 = vrot.slane %v5510, 6
    %v5649 = vsel %vm3436, %v5646, %v5648
    %v5650 = vrot.slane %v5511, 6
    %v5651 = vsel %vm3436, %v5648, %v5650
    %vm5652 = vcmask 457728
    %v5653 = vsel %vm5652, %v5641, 0
    %v5655 = vsel %vm5652, %v5643, 0
    %v5657 = vsel %vm5652, %v5645, 0
    %v5659 = vsel %vm5652, %v5647, 0
    %v5661 = vsel %vm5652, %v5649, 0
    %v5663 = vsel %vm5652, %v5651, 0
    %5665 = vmatprep.subr.mxu0 0.0
    %5666 = vmatpush1.msra.mxu0 %v5589
    %5667 = vmatprep.subr.mxu0 0.0
    %5668 = vmatpush1.msra.mxu0 %v5590
    %5669 = vmatprep.subr.mxu0 0.0
    %5670 = vmatpush1.msra.mxu0 %v5591
    %5671 = vmatprep.subr.mxu0 0.0
    %5672 = vmatpush1.msra.mxu0 %v5592
    %5673 = vmatprep.subr.mxu0 0.0
    %5674 = vmatpush1.msra.mxu0 %v5593
    %5675 = vmatprep.subr.mxu0 0.0
    %5676 = vmatpush1.msra.mxu0 %v5594
    %5677 = vmatprep.subr.mxu0 0.0
    %5678 = vmatpush1.msra.mxu0 %v5595
    %5679 = vmatprep.subr.mxu0 0.0
    %5680 = vmatpush1.msra.mxu0 0.0
    %5681 = vmatprep.subr.mxu0 0.0
    %5682 = vmatpush1.msra.mxu0 0.0
    %5683 = vmatprep.subr.mxu0 0.0
    %5684 = vmatpush1.msra.mxu0 0.0
    %5685 = vmatprep.subr.mxu0 0.0
    %5686 = vmatpush1.msra.mxu0 0.0
    %5687 = vmatprep.subr.mxu0 0.0
    %5688 = vmatpush1.msra.mxu0 0.0
    %5689 = vmatprep.subr.mxu0 0.0
    %5690 = vmatpush1.msra.mxu0 0.0
    %5691 = vmatprep.subr.mxu0 0.0
    %5692 = vmatpush1.msra.mxu0 0.0
    %5693 = vmatprep.subr.mxu0 0.0
    %5694 = vmatpush1.msra.mxu0 0.0
    %5695 = vmatprep.subr.mxu0 0.0
    %5696 = vmatpush1.msra.mxu0 0.0
    %5697 = vmatprep.subr.mxu0 0.0
    %5698 = vmatpush1.msra.mxu0 0.0
    %5699 = vmatprep.subr.mxu0 0.0
    %5700 = vmatpush1.msra.mxu0 0.0
    %5701 = vmatprep.subr.mxu0 0.0
    %5702 = vmatpush1.msra.mxu0 0.0
    %5703 = vmatprep.subr.mxu0 0.0
    %5704 = vmatpush1.msra.mxu0 0.0
    %5705 = vmatprep.subr.mxu0 0.0
    %5706 = vmatpush1.msra.mxu0 0.0
    %5707 = vmatprep.subr.mxu0 0.0
    %5708 = vmatpush1.msra.mxu0 0.0
    %5709 = vmatprep.subr.mxu0 0.0
    %5710 = vmatpush1.msra.mxu0 0.0
    %5711 = vmatprep.subr.mxu0 0.0
    %5712 = vmatpush1.msra.mxu0 0.0
    %5713 = vmatprep.subr.mxu0 0.0
    %5714 = vmatpush1.msra.mxu0 0.0
    %5715 = vmatprep.subr.mxu0 0.0
    %5716 = vmatpush1.msra.mxu0 0.0
    %5717 = vmatprep.subr.mxu0 0.0
    %5718 = vmatpush1.msra.mxu0 0.0
    %5719 = vmatprep.subr.mxu0 0.0
    %5720 = vmatpush1.msra.mxu0 0.0
    %5721 = vmatprep.subr.mxu0 0.0
    %5722 = vmatpush1.msra.mxu0 0.0
    %5723 = vmatprep.subr.mxu0 0.0
    %5724 = vmatpush1.msra.mxu0 0.0
    %5725 = vmatprep.subr.mxu0 0.0
    %5726 = vmatpush1.msra.mxu0 0.0
    %5727 = vmatprep.subr.mxu0 0.0
    %5728 = vmatpush1.msra.mxu0 0.0
    %5729 = vmatprep.mubr.f32.mxu0 0.0
    %5730 = vmatmul.mubr.f32.gmra.mrb[0].mxu0 %v5653
    %v5731 = vpop.f32.mrb[0].mxu0
    %v5732 = vadd.f32 %v5605, %v5731
    %v5733 = vpop.f32.mrb[0].mxu0
    %5734 = vmatprep.mubr.f32.mxu0 0.0
    %5735 = vmatmul.mubr.f32.gmra.mrb[0].mxu0 %v5655
    %v5736 = vpop.f32.mrb[0].mxu0
    %v5737 = vadd.f32 %v5610, %v5736
    %v5738 = vpop.f32.mrb[0].mxu0
    %5739 = vmatprep.mubr.f32.mxu0 0.0
    %5740 = vmatmul.mubr.f32.gmra.mrb[0].mxu0 %v5657
    %v5741 = vpop.f32.mrb[0].mxu0
    %v5742 = vadd.f32 %v5615, %v5741
    %v5743 = vpop.f32.mrb[0].mxu0
    %5744 = vmatprep.mubr.f32.mxu0 0.0
    %5745 = vmatmul.mubr.f32.gmra.mrb[0].mxu0 %v5659
    %v5746 = vpop.f32.mrb[0].mxu0
    %v5747 = vadd.f32 %v5620, %v5746
    %v5748 = vpop.f32.mrb[0].mxu0
    %5749 = vmatprep.mubr.f32.mxu0 0.0
    %5750 = vmatmul.mubr.f32.gmra.mrb[0].mxu0 %v5661
    %v5751 = vpop.f32.mrb[0].mxu0
    %v5752 = vadd.f32 %v5625, %v5751
    %v5753 = vpop.f32.mrb[0].mxu0
    %5754 = vmatprep.mubr.f32.mxu0 0.0
    %5755 = vmatmul.mubr.f32.gmra.mrb[0].mxu0 %v5663
    %v5756 = vpop.f32.mrb[0].mxu0
    %v5757 = vadd.f32 %v5630, %v5756
    %v5758 = vpop.f32.mrb[0].mxu0
    %5759 = vdwg.mxu0
    %5760 = vst.msk [vmem:[#allocation4] sm:$0xff] %vm4042, %v5732
    %5761 = vst.msk [vmem:[#allocation4 + $0x8] sm:$0xff] %vm4042, %v5737
    %5762 = vst.msk [vmem:[#allocation4 + $0x10] sm:$0xff] %vm4042, %v5742
    %5763 = vst.msk [vmem:[#allocation4 + $0x18] sm:$0xff] %vm4042, %v5747
    %5764 = vst.msk [vmem:[#allocation4 + $0x20] sm:$0xff] %vm4042, %v5752
    %5765 = vst.msk [vmem:[#allocation4 + $0x28] sm:$0xff] %vm4042, %v5757
    %5766 = vst.msk [vmem:[#allocation7] sm:$0xff] %vm4042, 0.0
    %5767 = vst.msk [vmem:[#allocation7 + $0x8] sm:$0xff] %vm4042, 0.0
    %5768 = vst.msk [vmem:[#allocation7 + $0x10] sm:$0xff] %vm4042, 0.0
    %5769 = vst.msk [vmem:[#allocation7 + $0x18] sm:$0xff] %vm4042, 0.0
    %5770 = vst.msk [vmem:[#allocation7 + $0x20] sm:$0xff] %vm4042, 0.0
    %5771 = vst.msk [vmem:[#allocation7 + $0x28] sm:$0xff] %vm4042, 0.0
    %5772 = vst.msk [vmem:[#allocation7 + $0x30] sm:$0xff] %vm4042, 0.0
    %5773 = vst.msk [vmem:[#allocation7 + $0x38] sm:$0xf] %vm4045, 0.0
    %v5774 = vld [vmem:[#allocation4] sm:$0xff]
    %v5775 = vld [vmem:[#allocation4 + $0x8] sm:$0xff]
    %v5776 = vld [vmem:[#allocation4 + $0x10] sm:$0xff]
    %v5777 = vld [vmem:[#allocation4 + $0x18] sm:$0xff]
    %v5778 = vld [vmem:[#allocation4 + $0x20] sm:$0xff]
    %v5779 = vld [vmem:[#allocation4 + $0x28] sm:$0xff]
    %v5780 = vmax.f32 %v5774, 0.0
    %v5781 = vmax.f32 %v5775, 0.0
    %v5782 = vmax.f32 %v5776, 0.0
    %v5783 = vmax.f32 %v5777, 0.0
    %v5784 = vmax.f32 %v5778, 0.0
    %v5785 = vmax.f32 %v5779, 0.0
    %v5786 = vsel %vm4042, %v5780, 0.0
    %5787 = vadd.xlane.f32.xlu0 %v5786
    %v5788 = vpop.xlane.xlu0 %5787
    %v5789 = vsel %vm4042, %v5781, 0.0
    %5790 = vadd.xlane.f32.xlu0 %v5789
    %v5791 = vpop.xlane.xlu0 %5790
    %v5792 = vsel %vm4042, %v5782, 0.0
    %5793 = vadd.xlane.f32.xlu0 %v5792
    %v5794 = vpop.xlane.xlu0 %5793
    %v5795 = vsel %vm4042, %v5783, 0.0
    %5796 = vadd.xlane.f32.xlu0 %v5795
    %v5797 = vpop.xlane.xlu0 %5796
    %v5798 = vsel %vm4042, %v5784, 0.0
    %5799 = vadd.xlane.f32.xlu0 %v5798
    %v5800 = vpop.xlane.xlu0 %5799
    %v5801 = vsel %vm4042, %v5785, 0.0
    %5802 = vadd.xlane.f32.xlu0 %v5801
    %v5803 = vpop.xlane.xlu0 %5802
    %v5804 = vrcp.pop 8.0
    %v5805 = vmul.f32 %v5788, %v5804
    %v5806 = vmul.f32 %v5791, %v5804
    %v5807 = vmul.f32 %v5794, %v5804
    %v5808 = vmul.f32 %v5797, %v5804
    %v5809 = vmul.f32 %v5800, %v5804
    %v5810 = vmul.f32 %v5803, %v5804
    %v5811 = vsub.f32 %v5780, %v5805
    %v5812 = vsub.f32 %v5781, %v5806
    %v5813 = vsub.f32 %v5782, %v5807
    %v5814 = vsub.f32 %v5783, %v5808
    %v5815 = vsub.f32 %v5784, %v5809
    %v5816 = vsub.f32 %v5785, %v5810
    %v5817 = vmul.f32 %v5811, %v5811
    %v5818 = vmul.f32 %v5812, %v5812
    %v5819 = vmul.f32 %v5813, %v5813
    %v5820 = vmul.f32 %v5814, %v5814
    %v5821 = vmul.f32 %v5815, %v5815
    %v5822 = vmul.f32 %v5816, %v5816
    %v5823 = vsel %vm4042, %v5817, 0.0
    %5824 = vadd.xlane.f32.xlu0 %v5823
    %v5825 = vpop.xlane.xlu0 %5824
    %v5826 = vsel %vm4042, %v5818, 0.0
    %5827 = vadd.xlane.f32.xlu0 %v5826
    %v5828 = vpop.xlane.xlu0 %5827
    %v5829 = vsel %vm4042, %v5819, 0.0
    %5830 = vadd.xlane.f32.xlu0 %v5829
    %v5831 = vpop.xlane.xlu0 %5830
    %v5832 = vsel %vm4042, %v5820, 0.0
    %5833 = vadd.xlane.f32.xlu0 %v5832
    %v5834 = vpop.xlane.xlu0 %5833
    %v5835 = vsel %vm4042, %v5821, 0.0
    %5836 = vadd.xlane.f32.xlu0 %v5835
    %v5837 = vpop.xlane.xlu0 %5836
    %v5838 = vsel %vm4042, %v5822, 0.0
    %5839 = vadd.xlane.f32.xlu0 %v5838
    %v5840 = vpop.xlane.xlu0 %5839
    %v5841 = vmul.f32 %v5825, %v5804
    %v5842 = vmul.f32 %v5828, %v5804
    %v5843 = vmul.f32 %v5831, %v5804
    %v5844 = vmul.f32 %v5834, %v5804
    %v5845 = vmul.f32 %v5837, %v5804
    %v5846 = vmul.f32 %v5840, %v5804
    %v5847 = vld [vmem:[%s1] sm:$0xff]
    %v5848 = vld [vmem:[%s1 + $0x8] sm:$0xff]
    %v5849 = vld [vmem:[%s1 + $0x10] sm:$0xff]
    %v5850 = vld [vmem:[%s1 + $0x18] sm:$0xff]
    %v5851 = vld [vmem:[%s1 + $0x20] sm:$0xff]
    %v5852 = vld [vmem:[%s1 + $0x28] sm:$0xff]
    %v5853 = vadd.f32 %v5841, 1e-05
    %v5854 = vadd.f32 %v5842, 1e-05
    %v5855 = vadd.f32 %v5843, 1e-05
    %v5856 = vadd.f32 %v5844, 1e-05
    %v5857 = vadd.f32 %v5845, 1e-05
    %v5858 = vadd.f32 %v5846, 1e-05
    %v5859 = vrsqrt.pop %v5853
    %v5860 = vrsqrt.pop %v5854
    %v5861 = vrsqrt.pop %v5855
    %v5862 = vrsqrt.pop %v5856
    %v5863 = vrsqrt.pop %v5857
    %v5864 = vrsqrt.pop %v5858
    %v5865 = vmul.f32 %v5847, %v5859
    %v5866 = vmul.f32 %v5848, %v5860
    %v5867 = vmul.f32 %v5849, %v5861
    %v5868 = vmul.f32 %v5850, %v5862
    %v5869 = vmul.f32 %v5851, %v5863
    %v5870 = vmul.f32 %v5852, %v5864
    %v5871 = vmul.f32 %v5805, %v5865
    %v5872 = vmul.f32 %v5806, %v5866
    %v5873 = vmul.f32 %v5807, %v5867
    %v5874 = vmul.f32 %v5808, %v5868
    %v5875 = vmul.f32 %v5809, %v5869
    %v5876 = vmul.f32 %v5810, %v5870
    %5883 = vrot.lane.b32.xlu0 %v5871, 1
    %v5884 = vpop.permute.xlu0 %5883
    %5885 = vrot.lane.b32.xlu0 %v5872, 1
    %v5886 = vpop.permute.xlu0 %5885
    %5887 = vrot.lane.b32.xlu0 %v5873, 1
    %v5888 = vpop.permute.xlu0 %5887
    %5889 = vrot.lane.b32.xlu0 %v5874, 1
    %v5890 = vpop.permute.xlu0 %5889
    %5891 = vrot.lane.b32.xlu0 %v5875, 1
    %v5892 = vpop.permute.xlu0 %5891
    %5893 = vrot.lane.b32.xlu0 %v5876, 1
    %v5894 = vpop.permute.xlu0 %5893
    %v5901 = vsub.f32 %v5847, %v5884
    %v5902 = vsub.f32 %v5848, %v5886
    %v5903 = vsub.f32 %v5849, %v5888
    %v5904 = vsub.f32 %v5850, %v5890
    %v5905 = vsub.f32 %v5851, %v5892
    %v5906 = vsub.f32 %v5852, %v5894
    %v5907 = vld [vmem:[#allocation10 + $0x210] sm:$0xc0]
    %v5908 = vld [vmem:[#allocation10 + $0x220] sm:$0xff]
    %v5909 = vld [vmem:[#allocation10 + $0x230] sm:$0xff]
    %v5910 = vld [vmem:[#allocation10 + $0x240] sm:$0x3]
    %5912 = vset.pattern.permute.xlu0 36
    %5913 = vperm.xlu0 %5912, %v5865
    %v5914 = vpop.permute.xlu0 %5913
    %5917 = vset.pattern.permute.xlu0 36
    %5918 = vperm.xlu0 %5917, %v5866
    %v5919 = vpop.permute.xlu0 %5918
    %5922 = vset.pattern.permute.xlu0 36
    %5923 = vperm.xlu0 %5922, %v5867
    %v5924 = vpop.permute.xlu0 %5923
    %5927 = vset.pattern.permute.xlu0 36
    %5928 = vperm.xlu0 %5927, %v5868
    %v5929 = vpop.permute.xlu0 %5928
    %5932 = vset.pattern.permute.xlu0 36
    %5933 = vperm.xlu0 %5932, %v5869
    %v5934 = vpop.permute.xlu0 %5933
    %5937 = vset.pattern.permute.xlu0 36
    %5938 = vperm.xlu0 %5937, %v5870
    %v5939 = vpop.permute.xlu0 %5938
    %v5941 = vmul.f32 %v5780, %v5914
    %v5942 = vmul.f32 %v5781, %v5919
    %v5943 = vmul.f32 %v5782, %v5924
    %v5944 = vmul.f32 %v5783, %v5929
    %v5945 = vmul.f32 %v5784, %v5934
    %v5946 = vmul.f32 %v5785, %v5939
    %5948 = vset.pattern.permute.xlu0 37
    %5949 = vperm.xlu0 %5948, %v5901
    %v5950 = vpop.permute.xlu0 %5949
    %5953 = vset.pattern.permute.xlu0 37
    %5954 = vperm.xlu0 %5953, %v5902
    %v5955 = vpop.permute.xlu0 %5954
    %5958 = vset.pattern.permute.xlu0 37
    %5959 = vperm.xlu0 %5958, %v5903
    %v5960 = vpop.permute.xlu0 %5959
    %5963 = vset.pattern.permute.xlu0 37
    %5964 = vperm.xlu0 %5963, %v5904
    %v5965 = vpop.permute.xlu0 %5964
    %5968 = vset.pattern.permute.xlu0 37
    %5969 = vperm.xlu0 %5968, %v5905
    %v5970 = vpop.permute.xlu0 %5969
    %5973 = vset.pattern.permute.xlu0 37
    %5974 = vperm.xlu0 %5973, %v5906
    %v5975 = vpop.permute.xlu0 %5974
    %v5977 = vadd.f32 %v5941, %v5950
    %v5978 = vadd.f32 %v5942, %v5955
    %v5979 = vadd.f32 %v5943, %v5960
    %v5980 = vadd.f32 %v5944, %v5965
    %v5981 = vadd.f32 %v5945, %v5970
    %v5982 = vadd.f32 %v5946, %v5975
    %v5983 = vld [vmem:[%s1] sm:$0xff]
    %v5984 = vld [vmem:[%s1 + $0x8] sm:$0xff]
    %v5985 = vld [vmem:[%s1 + $0x10] sm:$0xf]
    %5987 = vset.pattern.permute.xlu0 38
    %5988 = vperm.xlu0 %5987, %v5983
    %v5989 = vpop.permute.xlu0 %5988
    %5992 = vset.pattern.permute.xlu0 38
    %5993 = vperm.xlu0 %5992, %v5984
    %v5994 = vpop.permute.xlu0 %5993
    %5997 = vset.pattern.permute.xlu0 38
    %5998 = vperm.xlu0 %5997, %v5985
    %v5999 = vpop.permute.xlu0 %5998
    %v6005 = vrot.slane %v5907, 6
    %v6006 = vrot.slane %v5908, 6
    %v6007 = vsel %vm3436, %v6005, %v6006
    %v6008 = vrot.slane %v5909, 6
    %v6009 = vsel %vm3436, %v6006, %v6008
    %v6010 = vrot.slane %v5910, 6
    %v6011 = vsel %vm3436, %v6008, %v6010
    %v6012 = vsel %vm3813, %v6007, 0
    %v6014 = vsel %vm3813, %v6009, 0
    %v6016 = vsel %vm3813, %v6011, 0
    %6018 = vmatprep.subr.mxu0 0.0
    %6019 = vmatpush1.msra.mxu0 %v5977
    %6020 = vmatprep.subr.mxu0 0.0
    %6021 = vmatpush1.msra.mxu0 %v5978
    %6022 = vmatprep.subr.mxu0 0.0
    %6023 = vmatpush1.msra.mxu0 %v5979
    %6024 = vmatprep.subr.mxu0 0.0
    %6025 = vmatpush1.msra.mxu0 %v5980
    %6026 = vmatprep.subr.mxu0 0.0
    %6027 = vmatpush1.msra.mxu0 %v5981
    %6028 = vmatprep.subr.mxu0 0.0
    %6029 = vmatpush1.msra.mxu0 %v5982
    %6030 = vmatprep.subr.mxu0 0.0
    %6031 = vmatpush1.msra.mxu0 0.0
    %6032 = vmatprep.subr.mxu0 0.0
    %6033 = vmatpush1.msra.mxu0 0.0
    %6034 = vmatprep.subr.mxu0 0.0
    %6035 = vmatpush1.msra.mxu0 0.0
    %6036 = vmatprep.subr.mxu0 0.0
    %6037 = vmatpush1.msra.mxu0 0.0
    %6038 = vmatprep.subr.mxu0 0.0
    %6039 = vmatpush1.msra.mxu0 0.0
    %6040 = vmatprep.subr.mxu0 0.0
    %6041 = vmatpush1.msra.mxu0 0.0
    %6042 = vmatprep.subr.mxu0 0.0
    %6043 = vmatpush1.msra.mxu0 0.0
    %6044 = vmatprep.subr.mxu0 0.0
    %6045 = vmatpush1.msra.mxu0 0.0
    %6046 = vmatprep.subr.mxu0 0.0
    %6047 = vmatpush1.msra.mxu0 0.0
    %6048 = vmatprep.subr.mxu0 0.0
    %6049 = vmatpush1.msra.mxu0 0.0
    %6050 = vmatprep.subr.mxu0 0.0
    %6051 = vmatpush1.msra.mxu0 0.0
    %6052 = vmatprep.subr.mxu0 0.0
    %6053 = vmatpush1.msra.mxu0 0.0
    %6054 = vmatprep.subr.mxu0 0.0
    %6055 = vmatpush1.msra.mxu0 0.0
    %6056 = vmatprep.subr.mxu0 0.0
    %6057 = vmatpush1.msra.mxu0 0.0
    %6058 = vmatprep.subr.mxu0 0.0
    %6059 = vmatpush1.msra.mxu0 0.0
    %6060 = vmatprep.subr.mxu0 0.0
    %6061 = vmatpush1.msra.mxu0 0.0
    %6062 = vmatprep.subr.mxu0 0.0
    %6063 = vmatpush1.msra.mxu0 0.0
    %6064 = vmatprep.subr.mxu0 0.0
    %6065 = vmatpush1.msra.mxu0 0.0
    %6066 = vmatprep.subr.mxu0 0.0
    %6067 = vmatpush1.msra.mxu0 0.0
    %6068 = vmatprep.subr.mxu0 0.0
    %6069 = vmatpush1.msra.mxu0 0.0
    %6070 = vmatprep.subr.mxu0 0.0
    %6071 = vmatpush1.msra.mxu0 0.0
    %6072 = vmatprep.subr.mxu0 0.0
    %6073 = vmatpush1.msra.mxu0 0.0
    %6074 = vmatprep.subr.mxu0 0.0
    %6075 = vmatpush1.msra.mxu0 0.0
    %6076 = vmatprep.subr.mxu0 0.0
    %6077 = vmatpush1.msra.mxu0 0.0
    %6078 = vmatprep.subr.mxu0 0.0
    %6079 = vmatpush1.msra.mxu0 0.0
    %6080 = vmatprep.subr.mxu0 0.0
    %6081 = vmatpush1.msra.mxu0 0.0
    %6082 = vmatprep.mubr.f32.mxu0 0.0
    %6083 = vmatmul.mubr.f32.gmra.mrb[0].mxu0 %v6012
    %v6084 = vpop.f32.mrb[0].mxu0
    %v6085 = vadd.f32 %v5989, %v6084
    %v6086 = vpop.f32.mrb[0].mxu0
    %6087 = vmatprep.mubr.f32.mxu0 0.0
    %6088 = vmatmul.mubr.f32.gmra.mrb[0].mxu0 %v6014
    %v6089 = vpop.f32.mrb[0].mxu0
    %v6090 = vadd.f32 %v5994, %v6089
    %v6091 = vpop.f32.mrb[0].mxu0
    %6092 = vmatprep.mubr.f32.mxu0 0.0
    %6093 = vmatmul.mubr.f32.gmra.mrb[0].mxu0 %v6016
    %v6094 = vpop.f32.mrb[0].mxu0
    %v6095 = vadd.f32 %v5999, %v6094
    %v6096 = vpop.f32.mrb[0].mxu0
    %6097 = vdwg.mxu0
    %v6098 = vmax.f32 %v6085, 0.0
    %v6099 = vmax.f32 %v6090, 0.0
    %v6100 = vmax.f32 %v6095, 0.0
    %v6101 = vsel %vm4042, %v6098, 0.0
    %6102 = vadd.xlane.f32.xlu0 %v6101
    %v6103 = vpop.xlane.xlu0 %6102
    %v6104 = vsel %vm4042, %v6099, 0.0
    %6105 = vadd.xlane.f32.xlu0 %v6104
    %v6106 = vpop.xlane.xlu0 %6105
    %v6107 = vsel %vm4045, %v6100, 0.0
    %6108 = vadd.xlane.f32.xlu0 %v6107
    %v6109 = vpop.xlane.xlu0 %6108
    %v6110 = vmul.f32 %v6103, %v5804
    %v6111 = vmul.f32 %v6106, %v5804
    %v6112 = vmul.f32 %v6109, %v5804
    %v6113 = vsub.f32 %v6098, %v6110
    %v6114 = vsub.f32 %v6099, %v6111
    %v6115 = vsub.f32 %v6100, %v6112
    %v6116 = vmul.f32 %v6113, %v6113
    %v6117 = vmul.f32 %v6114, %v6114
    %v6118 = vmul.f32 %v6115, %v6115
    %v6119 = vsel %vm4042, %v6116, 0.0
    %6120 = vadd.xlane.f32.xlu0 %v6119
    %v6121 = vpop.xlane.xlu0 %6120
    %v6122 = vsel %vm4042, %v6117, 0.0
    %6123 = vadd.xlane.f32.xlu0 %v6122
    %v6124 = vpop.xlane.xlu0 %6123
    %v6125 = vsel %vm4045, %v6118, 0.0
    %6126 = vadd.xlane.f32.xlu0 %v6125
    %v6127 = vpop.xlane.xlu0 %6126
    %v6128 = vmul.f32 %v6121, %v5804
    %v6129 = vmul.f32 %v6124, %v5804
    %v6130 = vmul.f32 %v6127, %v5804
    %v6131 = vadd.f32 %v6128, 1e-05
    %v6132 = vadd.f32 %v6129, 1e-05
    %v6133 = vadd.f32 %v6130, 1e-05
    %v6134 = vrsqrt.pop %v6131
    %v6135 = vrsqrt.pop %v6132
    %v6136 = vrsqrt.pop %v6133
    %v6137 = vmul.f32 %v5983, %v6134
    %v6138 = vmul.f32 %v5984, %v6135
    %v6139 = vmul.f32 %v5985, %v6136
    %v6140 = vmul.f32 %v6110, %v6137
    %v6141 = vmul.f32 %v6111, %v6138
    %v6142 = vmul.f32 %v6112, %v6139
    %6146 = vrot.lane.b32.xlu0 %v6140, 1
    %v6147 = vpop.permute.xlu0 %6146
    %6148 = vrot.lane.b32.xlu0 %v6141, 1
    %v6149 = vpop.permute.xlu0 %6148
    %6150 = vrot.lane.b32.xlu0 %v6142, 1
    %v6151 = vpop.permute.xlu0 %6150
    %v6155 = vsub.f32 %v5983, %v6147
    %v6156 = vsub.f32 %v5984, %v6149
    %v6157 = vsub.f32 %v5985, %v6151
    %6159 = vset.pattern.permute.xlu0 39
    %6160 = vperm.xlu0 %6159, %v6137
    %v6161 = vpop.permute.xlu0 %6160
    %6164 = vset.pattern.permute.xlu0 39
    %6165 = vperm.xlu0 %6164, %v6138
    %v6166 = vpop.permute.xlu0 %6165
    %6169 = vset.pattern.permute.xlu0 39
    %6170 = vperm.xlu0 %6169, %v6139
    %v6171 = vpop.permute.xlu0 %6170
    %v6173 = vmul.f32 %v6098, %v6161
    %v6174 = vmul.f32 %v6099, %v6166
    %v6175 = vmul.f32 %v6100, %v6171
    %6177 = vset.pattern.permute.xlu0 40
    %6178 = vperm.xlu0 %6177, %v6155
    %v6179 = vpop.permute.xlu0 %6178
    %6182 = vset.pattern.permute.xlu0 40
    %6183 = vperm.xlu0 %6182, %v6156
    %v6184 = vpop.permute.xlu0 %6183
    %6187 = vset.pattern.permute.xlu0 40
    %6188 = vperm.xlu0 %6187, %v6157
    %v6189 = vpop.permute.xlu0 %6188
    %v6191 = vadd.f32 %v6173, %v6179
    %v6192 = vadd.f32 %v6174, %v6184
    %v6193 = vadd.f32 %v6175, %v6189
    %6194 = vst.msk [vmem:[#allocation8] sm:$0xff] %vm4042, %v6191
    %6195 = vst.msk [vmem:[#allocation8 + $0x8] sm:$0xff] %vm4042, %v6192
    %6196 = vst.msk [vmem:[#allocation8 + $0x10] sm:$0xf] %vm4045, %v6193
    %v6197 = vld [vmem:[#allocation8] sm:$0xff]
    %v6198 = vld [vmem:[#allocation8 + $0x8] sm:$0xff]
    %v6199 = vld [vmem:[#allocation8 + $0x10] sm:$0xf]
    %6203 = vrot.lane.b32.xlu0 %v6197, 1
    %v6204 = vpop.permute.xlu0 %6203
    %6205 = vrot.lane.b32.xlu0 %v6198, 1
    %v6206 = vpop.permute.xlu0 %6205
    %6207 = vrot.lane.b32.xlu0 %v6199, 1
    %v6208 = vpop.permute.xlu0 %6207
    %vm6212 = vcmask 31752
    %6213 = vst.msk [vmem:[#allocation7] sm:$0xff] %vm6212, %v6204
    %6214 = vst.msk [vmem:[#allocation7 + $0x8] sm:$0xff] %vm6212, %v6206
    %vm6215 = vcmask 27656
    %6216 = vst.msk [vmem:[#allocation7 + $0x10] sm:$0xf] %vm6215, %v6208
    %v6217 = vld [vmem:[#allocation8] sm:$0xff]
    %v6218 = vld [vmem:[#allocation8 + $0x8] sm:$0xff]
    %v6219 = vld [vmem:[#allocation8 + $0x10] sm:$0xf]
    %6223 = vrot.lane.b32.xlu0 %v6217, 1
    %v6224 = vpop.permute.xlu0 %6223
    %6225 = vrot.lane.b32.xlu0 %v6218, 1
    %v6226 = vpop.permute.xlu0 %6225
    %6227 = vrot.lane.b32.xlu0 %v6219, 1
    %v6228 = vpop.permute.xlu0 %6227
    %vm6232 = vcmask 64552
    %6233 = vst.msk [vmem:[#allocation7] sm:$0xff] %vm6232, %v6224
    %6234 = vst.msk [vmem:[#allocation7 + $0x8] sm:$0xff] %vm6232, %v6226
    %vm6235 = vcmask 60456
    %6236 = vst.msk [vmem:[#allocation7 + $0x10] sm:$0xf] %vm6235, %v6228
    %v6237 = vld [vmem:[#allocation8] sm:$0xff]
    %v6238 = vld [vmem:[#allocation8 + $0x8] sm:$0xff]
    %v6239 = vld [vmem:[#allocation8 + $0x10] sm:$0xf]
    %6240 = vst.msk [vmem:[#allocation7 + $0x14] sm:$0xff] %vm132, %v6237
    %6241 = vst.msk [vmem:[#allocation7 + $0x1c] sm:$0xff] %vm132, %v6238
    %vm6242 = vcmask 27648
    %6243 = vst.msk [vmem:[#allocation7 + $0x24] sm:$0xf] %vm6242, %v6239
    %v6244 = vld [vmem:[#allocation8] sm:$0xff]
    %v6245 = vld [vmem:[#allocation8 + $0x8] sm:$0xff]
    %v6246 = vld [vmem:[#allocation8 + $0x10] sm:$0xf]
    %vm6247 = vcmask 64544
    %6248 = vst.msk [vmem:[#allocation7 + $0x14] sm:$0xff] %vm6247, %v6244
    %6249 = vst.msk [vmem:[#allocation7 + $0x1c] sm:$0xff] %vm6247, %v6245
    %vm6250 = vcmask 60448
    %6251 = vst.msk [vmem:[#allocation7 + $0x24] sm:$0xf] %vm6250, %v6246
    %v6252 = vld [vmem:[#allocation8] sm:$0xff]
    %v6253 = vld [vmem:[#allocation8 + $0x8] sm:$0xff]
    %v6254 = vld [vmem:[#allocation8 + $0x10] sm:$0xf]
    %6258 = vrot.lane.b32.xlu0 %v6252, 127
    %v6259 = vpop.permute.xlu0 %6258
    %6260 = vrot.lane.b32.xlu0 %v6253, 127
    %v6261 = vpop.permute.xlu0 %6260
    %6262 = vrot.lane.b32.xlu0 %v6254, 127
    %v6263 = vpop.permute.xlu0 %6262
    %vm6267 = vcmask 23552
    %6268 = vst.msk [vmem:[#allocation7 + $0x28] sm:$0xff] %vm6267, %v6259
    %6269 = vst.msk [vmem:[#allocation7 + $0x30] sm:$0xff] %vm6267, %v6261
    %vm6270 = vcmask 19456
    %6271 = vst.msk [vmem:[#allocation7 + $0x38] sm:$0xf] %vm6270, %v6263
    %v6272 = vld [vmem:[#allocation8] sm:$0xff]
    %v6273 = vld [vmem:[#allocation8 + $0x8] sm:$0xff]
    %v6274 = vld [vmem:[#allocation8 + $0x10] sm:$0xf]
    %6278 = vrot.lane.b32.xlu0 %v6272, 127
    %v6279 = vpop.permute.xlu0 %6278
    %6280 = vrot.lane.b32.xlu0 %v6273, 127
    %v6281 = vpop.permute.xlu0 %6280
    %6282 = vrot.lane.b32.xlu0 %v6274, 127
    %v6283 = vpop.permute.xlu0 %6282
    %vm6287 = vcmask 56352
    %6288 = vst.msk [vmem:[#allocation7 + $0x28] sm:$0xff] %vm6287, %v6279
    %6289 = vst.msk [vmem:[#allocation7 + $0x30] sm:$0xff] %vm6287, %v6281
    %vm6290 = vcmask 52256
    %6291 = vst.msk [vmem:[#allocation7 + $0x38] sm:$0xf] %vm6290, %v6283
    %v6292 = vld [vmem:[#allocation10 + $0x240] sm:$0x3c]
    %v6293 = vld [vmem:[#allocation7] sm:$0xff]
    %v6294 = vld [vmem:[#allocation7 + $0x8] sm:$0xff]
    %v6295 = vld [vmem:[#allocation7 + $0x10] sm:$0xff]
    %v6296 = vld [vmem:[#allocation7 + $0x18] sm:$0xff]
    %v6297 = vld [vmem:[#allocation7 + $0x20] sm:$0xff]
    %v6298 = vld [vmem:[#allocation7 + $0x28] sm:$0xff]
    %v6299 = vld [vmem:[#allocation7 + $0x30] sm:$0xff]
    %v6300 = vld [vmem:[#allocation7 + $0x38] sm:$0xf]
    %v6301 = vld [vmem:[%s1] sm:$0xf]
    %6303 = vset.pattern.permute.xlu0 41
    %6304 = vperm.xlu0 %6303, %v6301
    %v6305 = vpop.permute.xlu0 %6304
    %v6308 = vrot.slane %v6292, 2
    %v6309 = vsel %vm4112, %v6308, 0
    %v6312 = vsel %vm145, %v6300, 0
    %6314 = vmatprep.subr.mxu0 0.0
    %6315 = vmatpush1.msra.mxu0 %v6293
    %6316 = vmatprep.subr.mxu0 0.0
    %6317 = vmatpush1.msra.mxu0 %v6294
    %6318 = vmatprep.subr.mxu0 0.0
    %6319 = vmatpush1.msra.mxu0 %v6295
    %6320 = vmatprep.subr.mxu0 0.0
    %6321 = vmatpush1.msra.mxu0 %v6296
    %6322 = vmatprep.subr.mxu0 0.0
    %6323 = vmatpush1.msra.mxu0 %v6297
    %6324 = vmatprep.subr.mxu0 0.0
    %6325 = vmatpush1.msra.mxu0 %v6298
    %6326 = vmatprep.subr.mxu0 0.0
    %6327 = vmatpush1.msra.mxu0 %v6299
    %6328 = vmatprep.subr.mxu0 0.0
    %6329 = vmatpush1.msra.mxu0 %v6312
    %6330 = vmatprep.subr.mxu0 0.0
    %6331 = vmatpush1.msra.mxu0 0.0
    %6332 = vmatprep.subr.mxu0 0.0
    %6333 = vmatpush1.msra.mxu0 0.0
    %6334 = vmatprep.subr.mxu0 0.0
    %6335 = vmatpush1.msra.mxu0 0.0
    %6336 = vmatprep.subr.mxu0 0.0
    %6337 = vmatpush1.msra.mxu0 0.0
    %6338 = vmatprep.subr.mxu0 0.0
    %6339 = vmatpush1.msra.mxu0 0.0
    %6340 = vmatprep.subr.mxu0 0.0
    %6341 = vmatpush1.msra.mxu0 0.0
    %6342 = vmatprep.subr.mxu0 0.0
    %6343 = vmatpush1.msra.mxu0 0.0
    %6344 = vmatprep.subr.mxu0 0.0
    %6345 = vmatpush1.msra.mxu0 0.0
    %6346 = vmatprep.subr.mxu0 0.0
    %6347 = vmatpush1.msra.mxu0 0.0
    %6348 = vmatprep.subr.mxu0 0.0
    %6349 = vmatpush1.msra.mxu0 0.0
    %6350 = vmatprep.subr.mxu0 0.0
    %6351 = vmatpush1.msra.mxu0 0.0
    %6352 = vmatprep.subr.mxu0 0.0
    %6353 = vmatpush1.msra.mxu0 0.0
    %6354 = vmatprep.subr.mxu0 0.0
    %6355 = vmatpush1.msra.mxu0 0.0
    %6356 = vmatprep.subr.mxu0 0.0
    %6357 = vmatpush1.msra.mxu0 0.0
    %6358 = vmatprep.subr.mxu0 0.0
    %6359 = vmatpush1.msra.mxu0 0.0
    %6360 = vmatprep.subr.mxu0 0.0
    %6361 = vmatpush1.msra.mxu0 0.0
    %6362 = vmatprep.subr.mxu0 0.0
    %6363 = vmatpush1.msra.mxu0 0.0
    %6364 = vmatprep.subr.mxu0 0.0
    %6365 = vmatpush1.msra.mxu0 0.0
    %6366 = vmatprep.subr.mxu0 0.0
    %6367 = vmatpush1.msra.mxu0 0.0
    %6368 = vmatprep.subr.mxu0 0.0
    %6369 = vmatpush1.msra.mxu0 0.0
    %6370 = vmatprep.subr.mxu0 0.0
    %6371 = vmatpush1.msra.mxu0 0.0
    %6372 = vmatprep.subr.mxu0 0.0
    %6373 = vmatpush1.msra.mxu0 0.0
    %6374 = vmatprep.subr.mxu0 0.0
    %6375 = vmatpush1.msra.mxu0 0.0
    %6376 = vmatprep.subr.mxu0 0.0
    %6377 = vmatpush1.msra.mxu0 0.0
    %6378 = vmatprep.mubr.f32.mxu0 0.0
    %6379 = vmatmul.mubr.f32.gmra.mrb[0].mxu0 %v6309
    %v6380 = vpop.f32.mrb[0].mxu0
    %v6381 = vadd.f32 %v6305, %v6380
    %v6382 = vpop.f32.mrb[0].mxu0
    %6383 = vdwg.mxu0
    %6384 = vst.msk [vmem:[#allocation4 + $0x30] sm:$0xf] %vm4045, %v6381
    %v6385 = vld [vmem:[#allocation4] sm:$0xff]
    %v6386 = vld [vmem:[#allocation4 + $0x8] sm:$0xff]
    %v6387 = vld [vmem:[#allocation4 + $0x10] sm:$0xff]
    %v6388 = vld [vmem:[#allocation4 + $0x18] sm:$0xff]
    %v6389 = vld [vmem:[#allocation4 + $0x20] sm:$0xff]
    %v6390 = vld [vmem:[#allocation4 + $0x28] sm:$0xff]
    %v6391 = vld [vmem:[#allocation4 + $0x30] sm:$0xf]
    %v6392 = vmax.f32 %v6385, 0.0
    %v6393 = vmax.f32 %v6386, 0.0
    %v6394 = vmax.f32 %v6387, 0.0
    %v6395 = vmax.f32 %v6388, 0.0
    %v6396 = vmax.f32 %v6389, 0.0
    %v6397 = vmax.f32 %v6390, 0.0
    %v6398 = vmax.f32 %v6391, 0.0
    %v6399 = vsel %vm4042, %v6392, 0.0
    %6400 = vadd.xlane.f32.xlu0 %v6399
    %v6401 = vpop.xlane.xlu0 %6400
    %v6402 = vsel %vm4042, %v6393, 0.0
    %6403 = vadd.xlane.f32.xlu0 %v6402
    %v6404 = vpop.xlane.xlu0 %6403
    %v6405 = vsel %vm4042, %v6394, 0.0
    %6406 = vadd.xlane.f32.xlu0 %v6405
    %v6407 = vpop.xlane.xlu0 %6406
    %v6408 = vsel %vm4042, %v6395, 0.0
    %6409 = vadd.xlane.f32.xlu0 %v6408
    %v6410 = vpop.xlane.xlu0 %6409
    %v6411 = vsel %vm4042, %v6396, 0.0
    %6412 = vadd.xlane.f32.xlu0 %v6411
    %v6413 = vpop.xlane.xlu0 %6412
    %v6414 = vsel %vm4042, %v6397, 0.0
    %6415 = vadd.xlane.f32.xlu0 %v6414
    %v6416 = vpop.xlane.xlu0 %6415
    %v6417 = vsel %vm4045, %v6398, 0.0
    %6418 = vadd.xlane.f32.xlu0 %v6417
    %v6419 = vpop.xlane.xlu0 %6418
    %v6420 = vmul.f32 %v6401, %v5804
    %v6421 = vmul.f32 %v6404, %v5804
    %v6422 = vmul.f32 %v6407, %v5804
    %v6423 = vmul.f32 %v6410, %v5804
    %v6424 = vmul.f32 %v6413, %v5804
    %v6425 = vmul.f32 %v6416, %v5804
    %v6426 = vmul.f32 %v6419, %v5804
    %v6427 = vsub.f32 %v6392, %v6420
    %v6428 = vsub.f32 %v6393, %v6421
    %v6429 = vsub.f32 %v6394, %v6422
    %v6430 = vsub.f32 %v6395, %v6423
    %v6431 = vsub.f32 %v6396, %v6424
    %v6432 = vsub.f32 %v6397, %v6425
    %v6433 = vsub.f32 %v6398, %v6426
    %v6434 = vmul.f32 %v6427, %v6427
    %v6435 = vmul.f32 %v6428, %v6428
    %v6436 = vmul.f32 %v6429, %v6429
    %v6437 = vmul.f32 %v6430, %v6430
    %v6438 = vmul.f32 %v6431, %v6431
    %v6439 = vmul.f32 %v6432, %v6432
    %v6440 = vmul.f32 %v6433, %v6433
    %v6441 = vsel %vm4042, %v6434, 0.0
    %6442 = vadd.xlane.f32.xlu0 %v6441
    %v6443 = vpop.xlane.xlu0 %6442
    %v6444 = vsel %vm4042, %v6435, 0.0
    %6445 = vadd.xlane.f32.xlu0 %v6444
    %v6446 = vpop.xlane.xlu0 %6445
    %v6447 = vsel %vm4042, %v6436, 0.0
    %6448 = vadd.xlane.f32.xlu0 %v6447
    %v6449 = vpop.xlane.xlu0 %6448
    %v6450 = vsel %vm4042, %v6437, 0.0
    %6451 = vadd.xlane.f32.xlu0 %v6450
    %v6452 = vpop.xlane.xlu0 %6451
    %v6453 = vsel %vm4042, %v6438, 0.0
    %6454 = vadd.xlane.f32.xlu0 %v6453
    %v6455 = vpop.xlane.xlu0 %6454
    %v6456 = vsel %vm4042, %v6439, 0.0
    %6457 = vadd.xlane.f32.xlu0 %v6456
    %v6458 = vpop.xlane.xlu0 %6457
    %v6459 = vsel %vm4045, %v6440, 0.0
    %6460 = vadd.xlane.f32.xlu0 %v6459
    %v6461 = vpop.xlane.xlu0 %6460
    %v6462 = vmul.f32 %v6443, %v5804
    %v6463 = vmul.f32 %v6446, %v5804
    %v6464 = vmul.f32 %v6449, %v5804
    %v6465 = vmul.f32 %v6452, %v5804
    %v6466 = vmul.f32 %v6455, %v5804
    %v6467 = vmul.f32 %v6458, %v5804
    %v6468 = vmul.f32 %v6461, %v5804
    %v6469 = vld [vmem:[%s1] sm:$0xff]
    %v6470 = vld [vmem:[%s1 + $0x8] sm:$0xff]
    %v6471 = vld [vmem:[%s1 + $0x10] sm:$0xff]
    %v6472 = vld [vmem:[%s1 + $0x18] sm:$0xff]
    %v6473 = vld [vmem:[%s1 + $0x20] sm:$0xff]
    %v6474 = vld [vmem:[%s1 + $0x28] sm:$0xff]
    %v6475 = vld [vmem:[%s1 + $0x30] sm:$0xf]
    %v6476 = vadd.f32 %v6462, 1e-05
    %v6477 = vadd.f32 %v6463, 1e-05
    %v6478 = vadd.f32 %v6464, 1e-05
    %v6479 = vadd.f32 %v6465, 1e-05
    %v6480 = vadd.f32 %v6466, 1e-05
    %v6481 = vadd.f32 %v6467, 1e-05
    %v6482 = vadd.f32 %v6468, 1e-05
    %v6483 = vrsqrt.pop %v6476
    %v6484 = vrsqrt.pop %v6477
    %v6485 = vrsqrt.pop %v6478
    %v6486 = vrsqrt.pop %v6479
    %v6487 = vrsqrt.pop %v6480
    %v6488 = vrsqrt.pop %v6481
    %v6489 = vrsqrt.pop %v6482
    %v6490 = vmul.f32 %v6469, %v6483
    %v6491 = vmul.f32 %v6470, %v6484
    %v6492 = vmul.f32 %v6471, %v6485
    %v6493 = vmul.f32 %v6472, %v6486
    %v6494 = vmul.f32 %v6473, %v6487
    %v6495 = vmul.f32 %v6474, %v6488
    %v6496 = vmul.f32 %v6475, %v6489
    %v6497 = vmul.f32 %v6420, %v6490
    %v6498 = vmul.f32 %v6421, %v6491
    %v6499 = vmul.f32 %v6422, %v6492
    %v6500 = vmul.f32 %v6423, %v6493
    %v6501 = vmul.f32 %v6424, %v6494
    %v6502 = vmul.f32 %v6425, %v6495
    %v6503 = vmul.f32 %v6426, %v6496
    %6511 = vrot.lane.b32.xlu0 %v6497, 1
    %v6512 = vpop.permute.xlu0 %6511
    %6513 = vrot.lane.b32.xlu0 %v6498, 1
    %v6514 = vpop.permute.xlu0 %6513
    %6515 = vrot.lane.b32.xlu0 %v6499, 1
    %v6516 = vpop.permute.xlu0 %6515
    %6517 = vrot.lane.b32.xlu0 %v6500, 1
    %v6518 = vpop.permute.xlu0 %6517
    %6519 = vrot.lane.b32.xlu0 %v6501, 1
    %v6520 = vpop.permute.xlu0 %6519
    %6521 = vrot.lane.b32.xlu0 %v6502, 1
    %v6522 = vpop.permute.xlu0 %6521
    %6523 = vrot.lane.b32.xlu0 %v6503, 1
    %v6524 = vpop.permute.xlu0 %6523
    %v6532 = vsub.f32 %v6469, %v6512
    %v6533 = vsub.f32 %v6470, %v6514
    %v6534 = vsub.f32 %v6471, %v6516
    %v6535 = vsub.f32 %v6472, %v6518
    %v6536 = vsub.f32 %v6473, %v6520
    %v6537 = vsub.f32 %v6474, %v6522
    %v6538 = vsub.f32 %v6475, %v6524
    %v6539 = vld [vmem:[#allocation10 + $0x240] sm:$0xc0]
    %v6540 = vld [vmem:[#allocation10 + $0x250] sm:$0xff]
    %v6541 = vld [vmem:[#allocation10 + $0x260] sm:$0xff]
    %v6542 = vld [vmem:[#allocation10 + $0x270] sm:$0x3]
    %6544 = vset.pattern.permute.xlu0 42
    %6545 = vperm.xlu0 %6544, %v6490
    %v6546 = vpop.permute.xlu0 %6545
    %6549 = vset.pattern.permute.xlu0 42
    %6550 = vperm.xlu0 %6549, %v6491
    %v6551 = vpop.permute.xlu0 %6550
    %6554 = vset.pattern.permute.xlu0 42
    %6555 = vperm.xlu0 %6554, %v6492
    %v6556 = vpop.permute.xlu0 %6555
    %6559 = vset.pattern.permute.xlu0 42
    %6560 = vperm.xlu0 %6559, %v6493
    %v6561 = vpop.permute.xlu0 %6560
    %6564 = vset.pattern.permute.xlu0 42
    %6565 = vperm.xlu0 %6564, %v6494
    %v6566 = vpop.permute.xlu0 %6565
    %6569 = vset.pattern.permute.xlu0 42
    %6570 = vperm.xlu0 %6569, %v6495
    %v6571 = vpop.permute.xlu0 %6570
    %6574 = vset.pattern.permute.xlu0 42
    %6575 = vperm.xlu0 %6574, %v6496
    %v6576 = vpop.permute.xlu0 %6575
    %v6578 = vmul.f32 %v6392, %v6546
    %v6579 = vmul.f32 %v6393, %v6551
    %v6580 = vmul.f32 %v6394, %v6556
    %v6581 = vmul.f32 %v6395, %v6561
    %v6582 = vmul.f32 %v6396, %v6566
    %v6583 = vmul.f32 %v6397, %v6571
    %v6584 = vmul.f32 %v6398, %v6576
    %6586 = vset.pattern.permute.xlu0 43
    %6587 = vperm.xlu0 %6586, %v6532
    %v6588 = vpop.permute.xlu0 %6587
    %6591 = vset.pattern.permute.xlu0 43
    %6592 = vperm.xlu0 %6591, %v6533
    %v6593 = vpop.permute.xlu0 %6592
    %6596 = vset.pattern.permute.xlu0 43
    %6597 = vperm.xlu0 %6596, %v6534
    %v6598 = vpop.permute.xlu0 %6597
    %6601 = vset.pattern.permute.xlu0 43
    %6602 = vperm.xlu0 %6601, %v6535
    %v6603 = vpop.permute.xlu0 %6602
    %6606 = vset.pattern.permute.xlu0 43
    %6607 = vperm.xlu0 %6606, %v6536
    %v6608 = vpop.permute.xlu0 %6607
    %6611 = vset.pattern.permute.xlu0 43
    %6612 = vperm.xlu0 %6611, %v6537
    %v6613 = vpop.permute.xlu0 %6612
    %6616 = vset.pattern.permute.xlu0 43
    %6617 = vperm.xlu0 %6616, %v6538
    %v6618 = vpop.permute.xlu0 %6617
    %v6620 = vadd.f32 %v6578, %v6588
    %v6621 = vadd.f32 %v6579, %v6593
    %v6622 = vadd.f32 %v6580, %v6598
    %v6623 = vadd.f32 %v6581, %v6603
    %v6624 = vadd.f32 %v6582, %v6608
    %v6625 = vadd.f32 %v6583, %v6613
    %v6626 = vadd.f32 %v6584, %v6618
    %v6627 = vld [vmem:[%s1] sm:$0xff]
    %v6628 = vld [vmem:[%s1 + $0x8] sm:$0xff]
    %v6629 = vld [vmem:[%s1 + $0x10] sm:$0xf]
    %6631 = vset.pattern.permute.xlu0 44
    %6632 = vperm.xlu0 %6631, %v6627
    %v6633 = vpop.permute.xlu0 %6632
    %6636 = vset.pattern.permute.xlu0 44
    %6637 = vperm.xlu0 %6636, %v6628
    %v6638 = vpop.permute.xlu0 %6637
    %6641 = vset.pattern.permute.xlu0 44
    %6642 = vperm.xlu0 %6641, %v6629
    %v6643 = vpop.permute.xlu0 %6642
    %v6649 = vrot.slane %v6539, 6
    %v6650 = vrot.slane %v6540, 6
    %v6651 = vsel %vm3436, %v6649, %v6650
    %v6652 = vrot.slane %v6541, 6
    %v6653 = vsel %vm3436, %v6650, %v6652
    %v6654 = vrot.slane %v6542, 6
    %v6655 = vsel %vm3436, %v6652, %v6654
    %v6656 = vsel %vm4460, %v6651, 0
    %v6658 = vsel %vm4460, %v6653, 0
    %v6660 = vsel %vm4460, %v6655, 0
    %v6663 = vsel %vm145, %v6626, 0
    %6665 = vmatprep.subr.mxu0 0.0
    %6666 = vmatpush1.msra.mxu0 %v6620
    %6667 = vmatprep.subr.mxu0 0.0
    %6668 = vmatpush1.msra.mxu0 %v6621
    %6669 = vmatprep.subr.mxu0 0.0
    %6670 = vmatpush1.msra.mxu0 %v6622
    %6671 = vmatprep.subr.mxu0 0.0
    %6672 = vmatpush1.msra.mxu0 %v6623
    %6673 = vmatprep.subr.mxu0 0.0
    %6674 = vmatpush1.msra.mxu0 %v6624
    %6675 = vmatprep.subr.mxu0 0.0
    %6676 = vmatpush1.msra.mxu0 %v6625
    %6677 = vmatprep.subr.mxu0 0.0
    %6678 = vmatpush1.msra.mxu0 %v6663
    %6679 = vmatprep.subr.mxu0 0.0
    %6680 = vmatpush1.msra.mxu0 0.0
    %6681 = vmatprep.subr.mxu0 0.0
    %6682 = vmatpush1.msra.mxu0 0.0
    %6683 = vmatprep.subr.mxu0 0.0
    %6684 = vmatpush1.msra.mxu0 0.0
    %6685 = vmatprep.subr.mxu0 0.0
    %6686 = vmatpush1.msra.mxu0 0.0
    %6687 = vmatprep.subr.mxu0 0.0
    %6688 = vmatpush1.msra.mxu0 0.0
    %6689 = vmatprep.subr.mxu0 0.0
    %6690 = vmatpush1.msra.mxu0 0.0
    %6691 = vmatprep.subr.mxu0 0.0
    %6692 = vmatpush1.msra.mxu0 0.0
    %6693 = vmatprep.subr.mxu0 0.0
    %6694 = vmatpush1.msra.mxu0 0.0
    %6695 = vmatprep.subr.mxu0 0.0
    %6696 = vmatpush1.msra.mxu0 0.0
    %6697 = vmatprep.subr.mxu0 0.0
    %6698 = vmatpush1.msra.mxu0 0.0
    %6699 = vmatprep.subr.mxu0 0.0
    %6700 = vmatpush1.msra.mxu0 0.0
    %6701 = vmatprep.subr.mxu0 0.0
    %6702 = vmatpush1.msra.mxu0 0.0
    %6703 = vmatprep.subr.mxu0 0.0
    %6704 = vmatpush1.msra.mxu0 0.0
    %6705 = vmatprep.subr.mxu0 0.0
    %6706 = vmatpush1.msra.mxu0 0.0
    %6707 = vmatprep.subr.mxu0 0.0
    %6708 = vmatpush1.msra.mxu0 0.0
    %6709 = vmatprep.subr.mxu0 0.0
    %6710 = vmatpush1.msra.mxu0 0.0
    %6711 = vmatprep.subr.mxu0 0.0
    %6712 = vmatpush1.msra.mxu0 0.0
    %6713 = vmatprep.subr.mxu0 0.0
    %6714 = vmatpush1.msra.mxu0 0.0
    %6715 = vmatprep.subr.mxu0 0.0
    %6716 = vmatpush1.msra.mxu0 0.0
    %6717 = vmatprep.subr.mxu0 0.0
    %6718 = vmatpush1.msra.mxu0 0.0
    %6719 = vmatprep.subr.mxu0 0.0
    %6720 = vmatpush1.msra.mxu0 0.0
    %6721 = vmatprep.subr.mxu0 0.0
    %6722 = vmatpush1.msra.mxu0 0.0
    %6723 = vmatprep.subr.mxu0 0.0
    %6724 = vmatpush1.msra.mxu0 0.0
    %6725 = vmatprep.subr.mxu0 0.0
    %6726 = vmatpush1.msra.mxu0 0.0
    %6727 = vmatprep.subr.mxu0 0.0
    %6728 = vmatpush1.msra.mxu0 0.0
    %6729 = vmatprep.mubr.f32.mxu0 0.0
    %6730 = vmatmul.mubr.f32.gmra.mrb[0].mxu0 %v6656
    %v6731 = vpop.f32.mrb[0].mxu0
    %v6732 = vadd.f32 %v6633, %v6731
    %v6733 = vpop.f32.mrb[0].mxu0
    %6734 = vmatprep.mubr.f32.mxu0 0.0
    %6735 = vmatmul.mubr.f32.gmra.mrb[0].mxu0 %v6658
    %v6736 = vpop.f32.mrb[0].mxu0
    %v6737 = vadd.f32 %v6638, %v6736
    %v6738 = vpop.f32.mrb[0].mxu0
    %6739 = vmatprep.mubr.f32.mxu0 0.0
    %6740 = vmatmul.mubr.f32.gmra.mrb[0].mxu0 %v6660
    %v6741 = vpop.f32.mrb[0].mxu0
    %v6742 = vadd.f32 %v6643, %v6741
    %v6743 = vpop.f32.mrb[0].mxu0
    %6744 = vdwg.mxu0
    %v6745 = vmax.f32 %v6732, 0.0
    %v6746 = vmax.f32 %v6737, 0.0
    %v6747 = vmax.f32 %v6742, 0.0
    %v6748 = vsel %vm4042, %v6745, 0.0
    %6749 = vadd.xlane.f32.xlu0 %v6748
    %v6750 = vpop.xlane.xlu0 %6749
    %v6751 = vsel %vm4042, %v6746, 0.0
    %6752 = vadd.xlane.f32.xlu0 %v6751
    %v6753 = vpop.xlane.xlu0 %6752
    %v6754 = vsel %vm4045, %v6747, 0.0
    %6755 = vadd.xlane.f32.xlu0 %v6754
    %v6756 = vpop.xlane.xlu0 %6755
    %v6757 = vmul.f32 %v6750, %v5804
    %v6758 = vmul.f32 %v6753, %v5804
    %v6759 = vmul.f32 %v6756, %v5804
    %v6760 = vsub.f32 %v6745, %v6757
    %v6761 = vsub.f32 %v6746, %v6758
    %v6762 = vsub.f32 %v6747, %v6759
    %v6763 = vmul.f32 %v6760, %v6760
    %v6764 = vmul.f32 %v6761, %v6761
    %v6765 = vmul.f32 %v6762, %v6762
    %v6766 = vsel %vm4042, %v6763, 0.0
    %6767 = vadd.xlane.f32.xlu0 %v6766
    %v6768 = vpop.xlane.xlu0 %6767
    %v6769 = vsel %vm4042, %v6764, 0.0
    %6770 = vadd.xlane.f32.xlu0 %v6769
    %v6771 = vpop.xlane.xlu0 %6770
    %v6772 = vsel %vm4045, %v6765, 0.0
    %6773 = vadd.xlane.f32.xlu0 %v6772
    %v6774 = vpop.xlane.xlu0 %6773
    %v6775 = vmul.f32 %v6768, %v5804
    %v6776 = vmul.f32 %v6771, %v5804
    %v6777 = vmul.f32 %v6774, %v5804
    %v6778 = vadd.f32 %v6775, 1e-05
    %v6779 = vadd.f32 %v6776, 1e-05
    %v6780 = vadd.f32 %v6777, 1e-05
    %v6781 = vrsqrt.pop %v6778
    %v6782 = vrsqrt.pop %v6779
    %v6783 = vrsqrt.pop %v6780
    %v6784 = vmul.f32 %v6627, %v6781
    %v6785 = vmul.f32 %v6628, %v6782
    %v6786 = vmul.f32 %v6629, %v6783
    %v6787 = vmul.f32 %v6757, %v6784
    %v6788 = vmul.f32 %v6758, %v6785
    %v6789 = vmul.f32 %v6759, %v6786
    %6793 = vrot.lane.b32.xlu0 %v6787, 1
    %v6794 = vpop.permute.xlu0 %6793
    %6795 = vrot.lane.b32.xlu0 %v6788, 1
    %v6796 = vpop.permute.xlu0 %6795
    %6797 = vrot.lane.b32.xlu0 %v6789, 1
    %v6798 = vpop.permute.xlu0 %6797
    %v6802 = vsub.f32 %v6627, %v6794
    %v6803 = vsub.f32 %v6628, %v6796
    %v6804 = vsub.f32 %v6629, %v6798
    %6806 = vset.pattern.permute.xlu0 45
    %6807 = vperm.xlu0 %6806, %v6784
    %v6808 = vpop.permute.xlu0 %6807
    %6811 = vset.pattern.permute.xlu0 45
    %6812 = vperm.xlu0 %6811, %v6785
    %v6813 = vpop.permute.xlu0 %6812
    %6816 = vset.pattern.permute.xlu0 45
    %6817 = vperm.xlu0 %6816, %v6786
    %v6818 = vpop.permute.xlu0 %6817
    %v6820 = vmul.f32 %v6745, %v6808
    %v6821 = vmul.f32 %v6746, %v6813
    %v6822 = vmul.f32 %v6747, %v6818
    %6824 = vset.pattern.permute.xlu0 46
    %6825 = vperm.xlu0 %6824, %v6802
    %v6826 = vpop.permute.xlu0 %6825
    %6829 = vset.pattern.permute.xlu0 46
    %6830 = vperm.xlu0 %6829, %v6803
    %v6831 = vpop.permute.xlu0 %6830
    %6834 = vset.pattern.permute.xlu0 46
    %6835 = vperm.xlu0 %6834, %v6804
    %v6836 = vpop.permute.xlu0 %6835
    %v6838 = vadd.f32 %v6820, %v6826
    %v6839 = vadd.f32 %v6821, %v6831
    %v6840 = vadd.f32 %v6822, %v6836
    %6841 = vst.msk [vmem:[#allocation8] sm:$0xff] %vm4042, %v6838
    %6842 = vst.msk [vmem:[#allocation8 + $0x8] sm:$0xff] %vm4042, %v6839
    %6843 = vst.msk [vmem:[#allocation8 + $0x10] sm:$0xf] %vm4045, %v6840
    %v6844 = vld [vmem:[#allocation8] sm:$0xff]
    %v6845 = vld [vmem:[#allocation8 + $0x8] sm:$0xff]
    %v6846 = vld [vmem:[#allocation8 + $0x10] sm:$0xf]
    %6850 = vrot.lane.b32.xlu0 %v6844, 1
    %v6851 = vpop.permute.xlu0 %6850
    %6852 = vrot.lane.b32.xlu0 %v6845, 1
    %v6853 = vpop.permute.xlu0 %6852
    %6854 = vrot.lane.b32.xlu0 %v6846, 1
    %v6855 = vpop.permute.xlu0 %6854
    %6859 = vst.msk [vmem:[#allocation7] sm:$0xff] %vm6212, %v6851
    %6860 = vst.msk [vmem:[#allocation7 + $0x8] sm:$0xff] %vm6212, %v6853
    %6861 = vst.msk [vmem:[#allocation7 + $0x10] sm:$0xf] %vm6215, %v6855
    %v6862 = vld [vmem:[#allocation8] sm:$0xff]
    %v6863 = vld [vmem:[#allocation8 + $0x8] sm:$0xff]
    %v6864 = vld [vmem:[#allocation8 + $0x10] sm:$0xf]
    %6868 = vrot.lane.b32.xlu0 %v6862, 1
    %v6869 = vpop.permute.xlu0 %6868
    %6870 = vrot.lane.b32.xlu0 %v6863, 1
    %v6871 = vpop.permute.xlu0 %6870
    %6872 = vrot.lane.b32.xlu0 %v6864, 1
    %v6873 = vpop.permute.xlu0 %6872
    %6877 = vst.msk [vmem:[#allocation7] sm:$0xff] %vm6232, %v6869
    %6878 = vst.msk [vmem:[#allocation7 + $0x8] sm:$0xff] %vm6232, %v6871
    %6879 = vst.msk [vmem:[#allocation7 + $0x10] sm:$0xf] %vm6235, %v6873
    %v6880 = vld [vmem:[#allocation8] sm:$0xff]
    %v6881 = vld [vmem:[#allocation8 + $0x8] sm:$0xff]
    %v6882 = vld [vmem:[#allocation8 + $0x10] sm:$0xf]
    %6883 = vst.msk [vmem:[#allocation7 + $0x14] sm:$0xff] %vm132, %v6880
    %6884 = vst.msk [vmem:[#allocation7 + $0x1c] sm:$0xff] %vm132, %v6881
    %6885 = vst.msk [vmem:[#allocation7 + $0x24] sm:$0xf] %vm6242, %v6882
    %v6886 = vld [vmem:[#allocation8] sm:$0xff]
    %v6887 = vld [vmem:[#allocation8 + $0x8] sm:$0xff]
    %v6888 = vld [vmem:[#allocation8 + $0x10] sm:$0xf]
    %6889 = vst.msk [vmem:[#allocation7 + $0x14] sm:$0xff] %vm6247, %v6886
    %6890 = vst.msk [vmem:[#allocation7 + $0x1c] sm:$0xff] %vm6247, %v6887
    %6891 = vst.msk [vmem:[#allocation7 + $0x24] sm:$0xf] %vm6250, %v6888
    %v6892 = vld [vmem:[#allocation8] sm:$0xff]
    %v6893 = vld [vmem:[#allocation8 + $0x8] sm:$0xff]
    %v6894 = vld [vmem:[#allocation8 + $0x10] sm:$0xf]
    %6898 = vrot.lane.b32.xlu0 %v6892, 127
    %v6899 = vpop.permute.xlu0 %6898
    %6900 = vrot.lane.b32.xlu0 %v6893, 127
    %v6901 = vpop.permute.xlu0 %6900
    %6902 = vrot.lane.b32.xlu0 %v6894, 127
    %v6903 = vpop.permute.xlu0 %6902
    %6907 = vst.msk [vmem:[#allocation7 + $0x28] sm:$0xff] %vm6267, %v6899
    %6908 = vst.msk [vmem:[#allocation7 + $0x30] sm:$0xff] %vm6267, %v6901
    %6909 = vst.msk [vmem:[#allocation7 + $0x38] sm:$0xf] %vm6270, %v6903
    %v6910 = vld [vmem:[#allocation8] sm:$0xff]
    %v6911 = vld [vmem:[#allocation8 + $0x8] sm:$0xff]
    %v6912 = vld [vmem:[#allocation8 + $0x10] sm:$0xf]
    %6916 = vrot.lane.b32.xlu0 %v6910, 127
    %v6917 = vpop.permute.xlu0 %6916
    %6918 = vrot.lane.b32.xlu0 %v6911, 127
    %v6919 = vpop.permute.xlu0 %6918
    %6920 = vrot.lane.b32.xlu0 %v6912, 127
    %v6921 = vpop.permute.xlu0 %6920
    %6925 = vst.msk [vmem:[#allocation7 + $0x28] sm:$0xff] %vm6287, %v6917
    %6926 = vst.msk [vmem:[#allocation7 + $0x30] sm:$0xff] %vm6287, %v6919
    %6927 = vst.msk [vmem:[#allocation7 + $0x38] sm:$0xf] %vm6290, %v6921
    %v6928 = vld [vmem:[#allocation10 + $0x270] sm:$0x3c]
    %v6929 = vld [vmem:[#allocation7] sm:$0xff]
    %v6930 = vld [vmem:[#allocation7 + $0x8] sm:$0xff]
    %v6931 = vld [vmem:[#allocation7 + $0x10] sm:$0xff]
    %v6932 = vld [vmem:[#allocation7 + $0x18] sm:$0xff]
    %v6933 = vld [vmem:[#allocation7 + $0x20] sm:$0xff]
    %v6934 = vld [vmem:[#allocation7 + $0x28] sm:$0xff]
    %v6935 = vld [vmem:[#allocation7 + $0x30] sm:$0xff]
    %v6936 = vld [vmem:[#allocation7 + $0x38] sm:$0xf]
    %v6937 = vld [vmem:[%s1] sm:$0xf]
    %6939 = vset.pattern.permute.xlu0 47
    %6940 = vperm.xlu0 %6939, %v6937
    %v6941 = vpop.permute.xlu0 %6940
    %v6944 = vrot.slane %v6928, 2
    %v6945 = vsel %vm4112, %v6944, 0
    %v6948 = vsel %vm145, %v6936, 0
    %6950 = vmatprep.subr.mxu0 0.0
    %6951 = vmatpush1.msra.mxu0 %v6929
    %6952 = vmatprep.subr.mxu0 0.0
    %6953 = vmatpush1.msra.mxu0 %v6930
    %6954 = vmatprep.subr.mxu0 0.0
    %6955 = vmatpush1.msra.mxu0 %v6931
    %6956 = vmatprep.subr.mxu0 0.0
    %6957 = vmatpush1.msra.mxu0 %v6932
    %6958 = vmatprep.subr.mxu0 0.0
    %6959 = vmatpush1.msra.mxu0 %v6933
    %6960 = vmatprep.subr.mxu0 0.0
    %6961 = vmatpush1.msra.mxu0 %v6934
    %6962 = vmatprep.subr.mxu0 0.0
    %6963 = vmatpush1.msra.mxu0 %v6935
    %6964 = vmatprep.subr.mxu0 0.0
    %6965 = vmatpush1.msra.mxu0 %v6948
    %6966 = vmatprep.subr.mxu0 0.0
    %6967 = vmatpush1.msra.mxu0 0.0
    %6968 = vmatprep.subr.mxu0 0.0
    %6969 = vmatpush1.msra.mxu0 0.0
    %6970 = vmatprep.subr.mxu0 0.0
    %6971 = vmatpush1.msra.mxu0 0.0
    %6972 = vmatprep.subr.mxu0 0.0
    %6973 = vmatpush1.msra.mxu0 0.0
    %6974 = vmatprep.subr.mxu0 0.0
    %6975 = vmatpush1.msra.mxu0 0.0
    %6976 = vmatprep.subr.mxu0 0.0
    %6977 = vmatpush1.msra.mxu0 0.0
    %6978 = vmatprep.subr.mxu0 0.0
    %6979 = vmatpush1.msra.mxu0 0.0
    %6980 = vmatprep.subr.mxu0 0.0
    %6981 = vmatpush1.msra.mxu0 0.0
    %6982 = vmatprep.subr.mxu0 0.0
    %6983 = vmatpush1.msra.mxu0 0.0
    %6984 = vmatprep.subr.mxu0 0.0
    %6985 = vmatpush1.msra.mxu0 0.0
    %6986 = vmatprep.subr.mxu0 0.0
    %6987 = vmatpush1.msra.mxu0 0.0
    %6988 = vmatprep.subr.mxu0 0.0
    %6989 = vmatpush1.msra.mxu0 0.0
    %6990 = vmatprep.subr.mxu0 0.0
    %6991 = vmatpush1.msra.mxu0 0.0
    %6992 = vmatprep.subr.mxu0 0.0
    %6993 = vmatpush1.msra.mxu0 0.0
    %6994 = vmatprep.subr.mxu0 0.0
    %6995 = vmatpush1.msra.mxu0 0.0
    %6996 = vmatprep.subr.mxu0 0.0
    %6997 = vmatpush1.msra.mxu0 0.0
    %6998 = vmatprep.subr.mxu0 0.0
    %6999 = vmatpush1.msra.mxu0 0.0
    %7000 = vmatprep.subr.mxu0 0.0
    %7001 = vmatpush1.msra.mxu0 0.0
    %7002 = vmatprep.subr.mxu0 0.0
    %7003 = vmatpush1.msra.mxu0 0.0
    %7004 = vmatprep.subr.mxu0 0.0
    %7005 = vmatpush1.msra.mxu0 0.0
    %7006 = vmatprep.subr.mxu0 0.0
    %7007 = vmatpush1.msra.mxu0 0.0
    %7008 = vmatprep.subr.mxu0 0.0
    %7009 = vmatpush1.msra.mxu0 0.0
    %7010 = vmatprep.subr.mxu0 0.0
    %7011 = vmatpush1.msra.mxu0 0.0
    %7012 = vmatprep.subr.mxu0 0.0
    %7013 = vmatpush1.msra.mxu0 0.0
    %7014 = vmatprep.mubr.f32.mxu0 0.0
    %7015 = vmatmul.mubr.f32.gmra.mrb[0].mxu0 %v6945
    %v7016 = vpop.f32.mrb[0].mxu0
    %v7017 = vadd.f32 %v6941, %v7016
    %v7018 = vpop.f32.mrb[0].mxu0
    %7019 = vdwg.mxu0
    %7020 = vst.msk [vmem:[#allocation4 + $0x34] sm:$0xf] %vm4045, %v7017
    %v7021 = vld [vmem:[#allocation4] sm:$0xff]
    %v7022 = vld [vmem:[#allocation4 + $0x8] sm:$0xff]
    %v7023 = vld [vmem:[#allocation4 + $0x10] sm:$0xff]
    %v7024 = vld [vmem:[#allocation4 + $0x18] sm:$0xff]
    %v7025 = vld [vmem:[#allocation4 + $0x20] sm:$0xff]
    %v7026 = vld [vmem:[#allocation4 + $0x28] sm:$0xff]
    %v7027 = vld [vmem:[#allocation4 + $0x30] sm:$0xff]
    %7028 = vst.msk [vmem:[%s3] sm:$0xff] %vm132, %v7021
    %7029 = vst.msk [vmem:[%s3 + $0x8] sm:$0xff] %vm132, %v7022
    %7030 = vst.msk [vmem:[%s3 + $0x10] sm:$0xff] %vm132, %v7023
    %7031 = vst.msk [vmem:[%s3 + $0x18] sm:$0xff] %vm132, %v7024
    %7032 = vst.msk [vmem:[%s3 + $0x20] sm:$0xff] %vm132, %v7025
    %7033 = vst.msk [vmem:[%s3 + $0x28] sm:$0xff] %vm132, %v7026
    %7034 = vst.msk [vmem:[%s3 + $0x30] sm:$0xff] %vm132, %v7027
    %v7035 = vld [vmem:[#allocation4] sm:$0xff]
    %v7036 = vld [vmem:[#allocation4 + $0x8] sm:$0xff]
    %v7037 = vld [vmem:[#allocation4 + $0x10] sm:$0xff]
    %v7038 = vld [vmem:[#allocation4 + $0x18] sm:$0xff]
    %v7039 = vld [vmem:[#allocation4 + $0x20] sm:$0xff]
    %v7040 = vld [vmem:[#allocation4 + $0x28] sm:$0xff]
    %v7041 = vld [vmem:[#allocation4 + $0x30] sm:$0xff]
    %7049 = vrot.lane.b32.xlu0 %v7035, 124
    %v7050 = vpop.permute.xlu0 %7049
    %7051 = vrot.lane.b32.xlu0 %v7036, 124
    %v7052 = vpop.permute.xlu0 %7051
    %7053 = vrot.lane.b32.xlu0 %v7037, 124
    %v7054 = vpop.permute.xlu0 %7053
    %7055 = vrot.lane.b32.xlu0 %v7038, 124
    %v7056 = vpop.permute.xlu0 %7055
    %7057 = vrot.lane.b32.xlu0 %v7039, 124
    %v7058 = vpop.permute.xlu0 %7057
    %7059 = vrot.lane.b32.xlu0 %v7040, 124
    %v7060 = vpop.permute.xlu0 %7059
    %7061 = vrot.lane.b32.xlu0 %v7041, 124
    %v7062 = vpop.permute.xlu0 %7061
    %s7070 = scalar_lea.vmem %s3, 56
    %7071 = vst.msk [vmem:[%s7070] sm:$0xff] %vm132, %v7050
    %7072 = vst.msk [vmem:[%s7070 + $0x8] sm:$0xff] %vm132, %v7052
    %7073 = vst.msk [vmem:[%s7070 + $0x10] sm:$0xff] %vm132, %v7054
    %7074 = vst.msk [vmem:[%s7070 + $0x18] sm:$0xff] %vm132, %v7056
    %7075 = vst.msk [vmem:[%s7070 + $0x20] sm:$0xff] %vm132, %v7058
    %7076 = vst.msk [vmem:[%s7070 + $0x28] sm:$0xff] %vm132, %v7060
    %7077 = vst.msk [vmem:[%s7070 + $0x30] sm:$0xff] %vm132, %v7062
    // Predicated region
    $region18: #{fwd.1} parent=1 // pred_check
      _
    $region19: #{fwd.1} parent=1 // pred_check_branch
      %7079 = sbr.rel (0) target = $region21
    $region20: #{fwd.1} parent=1 // pred_region
      _
    $region21: #{fwd.1} parent=1 // pred_fallthru
      _
    // Predicated region
    $region22: #{fwd.1} parent=1 // pred_check
      _
    $region23: #{fwd.1} parent=1 // pred_check_branch
      %7081 = sbr.rel (0) target = $region25
    $region24: #{fwd.1} parent=1 // pred_region
      _
    $region25: #{fwd.1} parent=1 // pred_fallthru
      _
    %7082 = vsyncpa [#allocation11], 1

</llo_original>
